<compile_context>
chip_gen: v5e
topology: v5e:2x2
jax: 0.10.0
libtpu: 0.0.40
codegen_flags: <defaults>
</compile_context>

<pallas_src>
import functools

import jax
import jax.numpy as jnp
from jax.experimental import pallas as pl
from jax.experimental.pallas import tpu as pltpu

_KS = 7    # depthwise conv kernel size
_PAD = 3   # padding = kernel_size // 2
_LANES = 128


def _round_up(x, m):
    return ((x + m - 1) // m) * m


def _erf_poly(x):
    # Abramowitz & Stegun 7.1.26, |error| <= 1.5e-7.  The division rides the
    # EUP via pl.reciprocal(approx=True); exp() is EUP as well, so the VALU
    # only sees the Horner polynomial and a few mul/adds.
    a1, a2, a3, a4, a5 = (0.254829592, -0.284496736, 1.421413741,
                          -1.453152027, 1.061405429)
    p = 0.3275911
    sgn = jnp.where(x < 0.0, -1.0, 1.0)
    ax = jnp.abs(x)
    t = pl.reciprocal(1.0 + p * ax, approx=True)
    poly = ((((a5 * t + a4) * t + a3) * t + a2) * t + a1) * t
    return sgn * (1.0 - poly * jnp.exp(-ax * ax))


def _gelu_exact(x):
    # torch.nn.GELU() default (approximate='none'): 0.5 * x * (1 + erf(x/sqrt(2)))
    return 0.5 * x * (1.0 + _erf_poly(x * 0.7071067811865476))


def _ada_block_kernel(x_ref, wdw_ref, vec_ref, w1_ref, b1_ref, w2_ref,
                      o_ref, pad_ref, *, H, W, C_true, eps):
    # x_ref block : (1, H, W, Cp)      unpadded NHWC image (channels lane-padded)
    # pad_ref     : (H+6, W+6, Cp)     f32 VMEM scratch holding the spatially
    #                                  zero-padded image
    Hp, Wp, Cp = pad_ref.shape

    # --- in-kernel spatial zero-padding ------------------------------------
    # Re-zero the halo every step (not just step 0) so the kernel stays correct
    # when the "parallel" batch axis is split across TensorCores on megacore.
    zrow = jnp.zeros((_PAD, Wp, Cp), jnp.float32)
    zcol = jnp.zeros((H, _PAD, Cp), jnp.float32)
    pad_ref[0:_PAD, :, :] = zrow
    pad_ref[_PAD + H:Hp, :, :] = zrow
    pad_ref[_PAD:_PAD + H, 0:_PAD, :] = zcol
    pad_ref[_PAD:_PAD + H, _PAD + W:Wp, :] = zcol
    pad_ref[_PAD:_PAD + H, _PAD:_PAD + W, :] = x_ref[0].astype(jnp.float32)

    # --- 7x7 depthwise conv (cross-correlation) -----------------------------
    # Each tap slices the scratch *ref* directly (no whole-slab value is kept
    # live); only the f32 accumulator plus one tap window are resident.
    acc = pad_ref[0:H, 0:W, :] * wdw_ref[0:1, :]
    for tap in range(1, _KS * _KS):
        dh, dwi = tap // _KS, tap % _KS
        acc = acc + pad_ref[dh:dh + H, dwi:dwi + W, :] * wdw_ref[tap:tap + 1, :]
    y = acc + vec_ref[0:1, :]                      # + depthwise bias  (H, W, Cp)
    # Padded channel lanes of y are exactly 0 (weights/bias/input all padded 0).

    # --- LayerNorm over true channels (channels_last, biased var, eps) ------
    inv_c = 1.0 / float(C_true)
    u = jnp.sum(y, axis=-1, keepdims=True) * inv_c
    d = (y - u) * vec_ref[4:5, :]                  # channel mask zeroes padded lanes
    v = jnp.sum(d * d, axis=-1, keepdims=True) * inv_c
    yn = d * jax.lax.rsqrt(v + eps) * vec_ref[1:2, :] + vec_ref[2:3, :]

    # --- pointwise MLP on the MXU (bf16 operands, f32 accumulation) ---------
    # TODO(synk): if W % 8 != 0 (e.g. 7x7 final ConvNeXt stage) this reshape
    # forces sublane repacking; pad the spatial tile to 8 rows in that case.
    yn2 = yn.reshape(H * W, Cp).astype(jnp.bfloat16)
    h = jnp.dot(yn2, w1_ref[...], preferred_element_type=jnp.float32)
    h = _gelu_exact(h + b1_ref[...])               # (H*W, Hidp), padded lanes stay 0
    z = jnp.dot(h.astype(jnp.bfloat16), w2_ref[...],
                preferred_element_type=jnp.float32) + vec_ref[3:4, :]

    # --- residual add (layer-scale gamma folded into w2 / b2); direct store -
    o_ref[0] = (x_ref[0].astype(jnp.float32) + z.reshape(H, W, Cp)).astype(o_ref.dtype)


def ada_block_pallas(x, params, eps=1e-6):
    """AdaBlock.forward(x, mask=None) with drop_path=0.  x: (N, C, H, W)."""
    N, C, H, W = x.shape
    hidden = params["w1"].shape[0]
    assert params["w1"].shape == (hidden, C)
    assert params["w2"].shape == (C, hidden), "pwconv2 must map back to dim=C"

    Cp = _round_up(C, _LANES)        # lane-dense channel width
    Hd = _round_up(hidden, _LANES)   # lane-dense hidden width
    Hp, Wp = H + 2 * _PAD, W + 2 * _PAD

    # ---- wrapper glue: folding + lane padding + layout plumbing ------------
    gamma = params["gamma"].astype(jnp.float32)

    wdw = params["dw_w"].reshape(C, _KS * _KS).T.astype(jnp.float32)      # (49, C)
    wdw = jnp.pad(wdw, ((0, 0), (0, Cp - C)))                             # (49, Cp)

    def padc(v):
        return jnp.pad(v.astype(jnp.float32), (0, Cp - C))

    cmask = jnp.pad(jnp.ones((C,), jnp.float32), (0, Cp - C))
    vecs = jnp.stack([padc(params["dw_b"]),                # dw bias
                      padc(params["ln_w"]),                # LN weight
                      padc(params["ln_b"]),                # LN bias
                      padc(params["b2"] * gamma),          # b2 * gamma (folded)
                      cmask], axis=0)                      # channel mask  -> (5, Cp)

    w1 = jnp.pad(params["w1"].T.astype(jnp.float32),
                 ((0, Cp - C), (0, Hd - hidden))).astype(jnp.bfloat16)    # (Cp, Hd)
    b1 = jnp.pad(params["b1"].astype(jnp.float32),
                 (0, Hd - hidden)).reshape(1, Hd)                          # (1, Hd)
    w2 = jnp.pad((params["w2"].T * gamma[None, :]).astype(jnp.float32),
                 ((0, Hd - hidden), (0, Cp - C))).astype(jnp.bfloat16)    # (Hd, Cp)

    x_nhwc = jnp.transpose(x, (0, 2, 3, 1))                               # NHWC
    x_in = jnp.pad(x_nhwc, ((0, 0), (0, 0), (0, 0), (0, Cp - C)))         # lane pad only

    kernel = functools.partial(_ada_block_kernel, H=H, W=W,
                               C_true=C, eps=float(eps))

    # VMEM budget: double-buffered in/out blocks + scratch slab + weights +
    # rough intermediate headroom, clamped into [16 MiB, 48 MiB] (v7x-safe).
    xb = jnp.dtype(x.dtype).itemsize
    est = (2 * H * W * Cp * (xb + xb)            # in/out blocks, double-buffered
           + Hp * Wp * Cp * 4                    # padded scratch slab (f32)
           + 2 * ((49 + 5) * Cp * 4 + Hd * 4 + 2 * Cp * Hd * 2)  # params (2x buf)
           + 3 * H * W * Cp * 4 + 2 * H * W * Hd * 4)            # live intermediates
    vmem_limit = int(min(max(2 * est, 16 * 1024 * 1024), 48 * 1024 * 1024))

    flops = int(N * (2 * _KS * _KS * H * W * Cp      # depthwise conv
                     + 4 * H * W * Cp * Hd           # two pointwise matmuls
                     + 14 * H * W * Hd               # gelu polynomial
                     + 12 * H * W * Cp))             # layernorm + residual
    bytes_accessed = int(xb * 2 * N * H * W * Cp
                         + 2 * 2 * Cp * Hd + 4 * (49 + 6) * Cp)

    out_nhwc = pl.pallas_call(
        kernel,
        out_shape=jax.ShapeDtypeStruct((N, H, W, Cp), x.dtype),
        grid=(N,),
        in_specs=[
            pl.BlockSpec((1, H, W, Cp), lambda n: (n, 0, 0, 0)),   # x (unpadded HxW)
            pl.BlockSpec((_KS * _KS, Cp), lambda n: (0, 0)),       # dw weights
            pl.BlockSpec((5, Cp), lambda n: (0, 0)),               # packed vectors
            pl.BlockSpec((Cp, Hd), lambda n: (0, 0)),              # w1^T (bf16)
            pl.BlockSpec((1, Hd), lambda n: (0, 0)),               # b1
            pl.BlockSpec((Hd, Cp), lambda n: (0, 0)),              # w2^T * gamma (bf16)
        ],
        out_specs=pl.BlockSpec((1, H, W, Cp), lambda n: (n, 0, 0, 0)),
        scratch_shapes=[pltpu.VMEM((Hp, Wp, Cp), jnp.float32)],
        compiler_params=pltpu.CompilerParams(
            dimension_semantics=("parallel",),
            vmem_limit_bytes=vmem_limit),
        cost_estimate=pl.CostEstimate(
            flops=flops,
            transcendentals=int(2 * N * H * W * Hd),
            bytes_accessed=bytes_accessed),
    )(x_in, wdw, vecs, w1, b1, w2)

    return jnp.transpose(out_nhwc[..., :C], (0, 3, 1, 2))           # back to NCHW


def ada_block_reference(x, params, eps=1e-6):
    """Pure-JAX reference matching PyTorch AdaBlock.forward (mask=None)."""
    N, C, H, W = x.shape
    prec = jax.lax.Precision.HIGHEST
    y = jax.lax.conv_general_dilated(
        x, params["dw_w"].reshape(C, 1, _KS, _KS),
        window_strides=(1, 1), padding=((_PAD, _PAD), (_PAD, _PAD)),
        dimension_numbers=("NCHW", "OIHW", "NCHW"),
        feature_group_count=C, precision=prec)
    y = y + params["dw_b"][None, :, None, None]
    y = jnp.transpose(y, (0, 2, 3, 1))                              # NHWC
    u = jnp.mean(y, axis=-1, keepdims=True)
    v = jnp.mean((y - u) ** 2, axis=-1, keepdims=True)
    y = (y - u) / jnp.sqrt(v + eps) * params["ln_w"] + params["ln_b"]
    h = jnp.einsum("nhwc,oc->nhwo", y, params["w1"], precision=prec) + params["b1"]
    h = jax.nn.gelu(h, approximate=False)
    z = jnp.einsum("nhwo,co->nhwc", h, params["w2"], precision=prec) + params["b2"]
    z = z * params["gamma"]
    return x + jnp.transpose(z, (0, 3, 1, 2))


if __name__ == "__main__":
    # Small shapes consistent with AdaBlock(dim=4): hidden = 4*dim = 16.
    N, C, H, W = 2, 4, 16, 16
    hidden = 4 * C

    key = jax.random.PRNGKey(0)
    ks = jax.random.split(key, 10)
    x = jax.random.normal(ks[0], (N, C, H, W), dtype=jnp.float32)

    params = {
        "dw_w": 0.1 * jax.random.normal(ks[1], (C, _KS, _KS), dtype=jnp.float32),
        "dw_b": 0.1 * jax.random.normal(ks[2], (C,), dtype=jnp.float32),
        "ln_w": 1.0 + 0.1 * jax.random.normal(ks[3], (C,), dtype=jnp.float32),
        "ln_b": 0.1 * jax.random.normal(ks[4], (C,), dtype=jnp.float32),
        "w1": 0.2 * jax.random.normal(ks[5], (hidden, C), dtype=jnp.float32),
        "b1": 0.1 * jax.random.normal(ks[6], (hidden,), dtype=jnp.float32),
        "w2": 0.2 * jax.random.normal(ks[7], (C, hidden), dtype=jnp.float32),
        "b2": 0.1 * jax.random.normal(ks[8], (C,), dtype=jnp.float32),
        # Module init is layer_scale_init_value * ones (1e-6); use a non-trivial
        # gamma so the test actually exercises the scaled MLP branch.
        "gamma": 0.5 + 0.1 * jax.random.normal(ks[9], (C,), dtype=jnp.float32),
    }

    out = jax.block_until_ready(ada_block_pallas(x, params))
    ref = ada_block_reference(x, params)

    assert out.shape == (N, C, H, W)
    # bf16 MXU operands + approx-EUP reciprocal => loosen tolerance vs. the f32
    # reference (per the review's correctness note); error is ~1e-3 in practice.
    max_err = float(jnp.max(jnp.abs(out - ref)))
    assert jnp.allclose(out, ref, atol=5e-2, rtol=5e-2), f"mismatch: {max_err}"

    print("KERNEL_OK")
</pallas_src>

<mosaic_0001>
module attributes {stable_mosaic.version = 11 : i64} {
  func.func @_ada_block_kernel(%arg0: i32, %arg1: memref<1x16x16x128xf32, #tpu.memory_space<vmem>>, %arg2: memref<49x128xf32, #tpu.memory_space<vmem>>, %arg3: memref<5x128xf32, #tpu.memory_space<vmem>>, %arg4: memref<128x128xbf16, #tpu.memory_space<vmem>>, %arg5: memref<1x128xf32, #tpu.memory_space<vmem>>, %arg6: memref<128x128xbf16, #tpu.memory_space<vmem>>, %arg7: memref<1x16x16x128xf32, #tpu.memory_space<vmem>>, %arg8: memref<22x22x128xf32, #tpu.memory_space<vmem>>) attributes {dimension_semantics = [#tpu.dimension_semantics<parallel>], iteration_bounds = array<i64: 2>, scalar_prefetch = 0 : i64, scratch_operands = 1 : i64, tpu.core_type = #tpu.core_type<tc>, window_params = [{transform_indices = @transform_0, window_bounds = array<i64: 1, 16, 16, 128>}, {pipeline_mode = #tpu.pipeline_mode<synchronous>, transform_indices = @transform_1, window_bounds = array<i64: 49, 128>}, {pipeline_mode = #tpu.pipeline_mode<synchronous>, transform_indices = @transform_2, window_bounds = array<i64: 5, 128>}, {pipeline_mode = #tpu.pipeline_mode<synchronous>, transform_indices = @transform_3, window_bounds = array<i64: 128, 128>}, {pipeline_mode = #tpu.pipeline_mode<synchronous>, transform_indices = @transform_4, window_bounds = array<i64: 1, 128>}, {pipeline_mode = #tpu.pipeline_mode<synchronous>, transform_indices = @transform_5, window_bounds = array<i64: 128, 128>}, {transform_indices = @transform_6, window_bounds = array<i64: 1, 16, 16, 128>}]} {
    %cst = arith.constant 0.000000e+00 : f32
    %0 = vector.broadcast %cst : f32 to vector<3x22x128xf32>
    %cst_0 = arith.constant 0.000000e+00 : f32
    %1 = vector.broadcast %cst_0 : f32 to vector<16x3x128xf32>
    %c0 = arith.constant 0 : index
    %c0_1 = arith.constant 0 : index
    %c0_2 = arith.constant 0 : index
    %2 = vector.load %arg8[%c0, %c0_1, %c0_2] : memref<22x22x128xf32, #tpu.memory_space<vmem>>, vector<3x22x128xf32>
    tpu.vector_store %arg8[%c0, %c0_1, %c0_2], %0 {strides = array<i32>} : memref<22x22x128xf32, #tpu.memory_space<vmem>>, vector<3x22x128xf32>,
    %c19 = arith.constant 19 : index
    %c0_3 = arith.constant 0 : index
    %c0_4 = arith.constant 0 : index
    %3 = vector.load %arg8[%c19, %c0_3, %c0_4] : memref<22x22x128xf32, #tpu.memory_space<vmem>>, vector<3x22x128xf32>
    tpu.vector_store %arg8[%c19, %c0_3, %c0_4], %0 {strides = array<i32>} : memref<22x22x128xf32, #tpu.memory_space<vmem>>, vector<3x22x128xf32>,
    %c3 = arith.constant 3 : index
    %c0_5 = arith.constant 0 : index
    %c0_6 = arith.constant 0 : index
    %4 = vector.load %arg8[%c3, %c0_5, %c0_6] : memref<22x22x128xf32, #tpu.memory_space<vmem>>, vector<16x3x128xf32>
    tpu.vector_store %arg8[%c3, %c0_5, %c0_6], %1 {strides = array<i32>} : memref<22x22x128xf32, #tpu.memory_space<vmem>>, vector<16x3x128xf32>,
    %c3_7 = arith.constant 3 : index
    %c19_8 = arith.constant 19 : index
    %c0_9 = arith.constant 0 : index
    %5 = vector.load %arg8[%c3_7, %c19_8, %c0_9] : memref<22x22x128xf32, #tpu.memory_space<vmem>>, vector<16x3x128xf32>
    tpu.vector_store %arg8[%c3_7, %c19_8, %c0_9], %1 {strides = array<i32>} : memref<22x22x128xf32, #tpu.memory_space<vmem>>, vector<16x3x128xf32>,
    %c0_10 = arith.constant 0 : index
    %c0_11 = arith.constant 0 : index
    %c0_12 = arith.constant 0 : index
    %c0_13 = arith.constant 0 : index
    %6 = vector.load %arg1[%c0_10, %c0_11, %c0_12, %c0_13] : memref<1x16x16x128xf32, #tpu.memory_space<vmem>>, vector<1x16x16x128xf32>
    %7 = vector.shape_cast %6 : vector<1x16x16x128xf32> to vector<16x16x128xf32>
    %c3_14 = arith.constant 3 : index
    %c3_15 = arith.constant 3 : index
    %c0_16 = arith.constant 0 : index
    %8 = vector.load %arg8[%c3_14, %c3_15, %c0_16] : memref<22x22x128xf32, #tpu.memory_space<vmem>>, vector<16x16x128xf32>
    tpu.vector_store %arg8[%c3_14, %c3_15, %c0_16], %7 {strides = array<i32>} : memref<22x22x128xf32, #tpu.memory_space<vmem>>, vector<16x16x128xf32>,
    %c0_17 = arith.constant 0 : index
    %c0_18 = arith.constant 0 : index
    %c0_19 = arith.constant 0 : index
    %9 = vector.load %arg8[%c0_17, %c0_18, %c0_19] : memref<22x22x128xf32, #tpu.memory_space<vmem>>, vector<16x16x128xf32>
    %c0_20 = arith.constant 0 : index
    %c0_21 = arith.constant 0 : index
    %10 = vector.load %arg2[%c0_20, %c0_21] : memref<49x128xf32, #tpu.memory_space<vmem>>, vector<1x128xf32>
    %11 = vector.shape_cast %10 : vector<1x128xf32> to vector<1x1x128xf32>
    %12 = vector.broadcast %11 : vector<1x1x128xf32> to vector<16x16x128xf32>
    %13 = arith.mulf %9, %12 : vector<16x16x128xf32>
    %c0_22 = arith.constant 0 : index
    %c1 = arith.constant 1 : index
    %c0_23 = arith.constant 0 : index
    %14 = vector.load %arg8[%c0_22, %c1, %c0_23] : memref<22x22x128xf32, #tpu.memory_space<vmem>>, vector<16x16x128xf32>
    %c1_24 = arith.constant 1 : index
    %c0_25 = arith.constant 0 : index
    %15 = vector.load %arg2[%c1_24, %c0_25] : memref<49x128xf32, #tpu.memory_space<vmem>>, vector<1x128xf32>
    %16 = vector.shape_cast %15 : vector<1x128xf32> to vector<1x1x128xf32>
    %17 = vector.broadcast %16 : vector<1x1x128xf32> to vector<16x16x128xf32>
    %18 = arith.mulf %14, %17 : vector<16x16x128xf32>
    %19 = arith.addf %13, %18 : vector<16x16x128xf32>
    %c0_26 = arith.constant 0 : index
    %c2 = arith.constant 2 : index
    %c0_27 = arith.constant 0 : index
    %20 = vector.load %arg8[%c0_26, %c2, %c0_27] : memref<22x22x128xf32, #tpu.memory_space<vmem>>, vector<16x16x128xf32>
    %c2_28 = arith.constant 2 : index
    %c0_29 = arith.constant 0 : index
    %21 = vector.load %arg2[%c2_28, %c0_29] : memref<49x128xf32, #tpu.memory_space<vmem>>, vector<1x128xf32>
    %22 = vector.shape_cast %21 : vector<1x128xf32> to vector<1x1x128xf32>
    %23 = vector.broadcast %22 : vector<1x1x128xf32> to vector<16x16x128xf32>
    %24 = arith.mulf %20, %23 : vector<16x16x128xf32>
    %25 = arith.addf %19, %24 : vector<16x16x128xf32>
    %c0_30 = arith.constant 0 : index
    %c3_31 = arith.constant 3 : index
    %c0_32 = arith.constant 0 : index
    %26 = vector.load %arg8[%c0_30, %c3_31, %c0_32] : memref<22x22x128xf32, #tpu.memory_space<vmem>>, vector<16x16x128xf32>
    %c3_33 = arith.constant 3 : index
    %c0_34 = arith.constant 0 : index
    %27 = vector.load %arg2[%c3_33, %c0_34] : memref<49x128xf32, #tpu.memory_space<vmem>>, vector<1x128xf32>
    %28 = vector.shape_cast %27 : vector<1x128xf32> to vector<1x1x128xf32>
    %29 = vector.broadcast %28 : vector<1x1x128xf32> to vector<16x16x128xf32>
    %30 = arith.mulf %26, %29 : vector<16x16x128xf32>
    %31 = arith.addf %25, %30 : vector<16x16x128xf32>
    %c0_35 = arith.constant 0 : index
    %c4 = arith.constant 4 : index
    %c0_36 = arith.constant 0 : index
    %32 = vector.load %arg8[%c0_35, %c4, %c0_36] : memref<22x22x128xf32, #tpu.memory_space<vmem>>, vector<16x16x128xf32>
    %c4_37 = arith.constant 4 : index
    %c0_38 = arith.constant 0 : index
    %33 = vector.load %arg2[%c4_37, %c0_38] : memref<49x128xf32, #tpu.memory_space<vmem>>, vector<1x128xf32>
    %34 = vector.shape_cast %33 : vector<1x128xf32> to vector<1x1x128xf32>
    %35 = vector.broadcast %34 : vector<1x1x128xf32> to vector<16x16x128xf32>
    %36 = arith.mulf %32, %35 : vector<16x16x128xf32>
    %37 = arith.addf %31, %36 : vector<16x16x128xf32>
    %c0_39 = arith.constant 0 : index
    %c5 = arith.constant 5 : index
    %c0_40 = arith.constant 0 : index
    %38 = vector.load %arg8[%c0_39, %c5, %c0_40] : memref<22x22x128xf32, #tpu.memory_space<vmem>>, vector<16x16x128xf32>
    %c5_41 = arith.constant 5 : index
    %c0_42 = arith.constant 0 : index
    %39 = vector.load %arg2[%c5_41, %c0_42] : memref<49x128xf32, #tpu.memory_space<vmem>>, vector<1x128xf32>
    %40 = vector.shape_cast %39 : vector<1x128xf32> to vector<1x1x128xf32>
    %41 = vector.broadcast %40 : vector<1x1x128xf32> to vector<16x16x128xf32>
    %42 = arith.mulf %38, %41 : vector<16x16x128xf32>
    %43 = arith.addf %37, %42 : vector<16x16x128xf32>
    %c0_43 = arith.constant 0 : index
    %c6 = arith.constant 6 : index
    %c0_44 = arith.constant 0 : index
    %44 = vector.load %arg8[%c0_43, %c6, %c0_44] : memref<22x22x128xf32, #tpu.memory_space<vmem>>, vector<16x16x128xf32>
    %c6_45 = arith.constant 6 : index
    %c0_46 = arith.constant 0 : index
    %45 = vector.load %arg2[%c6_45, %c0_46] : memref<49x128xf32, #tpu.memory_space<vmem>>, vector<1x128xf32>
    %46 = vector.shape_cast %45 : vector<1x128xf32> to vector<1x1x128xf32>
    %47 = vector.broadcast %46 : vector<1x1x128xf32> to vector<16x16x128xf32>
    %48 = arith.mulf %44, %47 : vector<16x16x128xf32>
    %49 = arith.addf %43, %48 : vector<16x16x128xf32>
    %c1_47 = arith.constant 1 : index
    %c0_48 = arith.constant 0 : index
    %c0_49 = arith.constant 0 : index
    %50 = vector.load %arg8[%c1_47, %c0_48, %c0_49] : memref<22x22x128xf32, #tpu.memory_space<vmem>>, vector<16x16x128xf32>
    %c7 = arith.constant 7 : index
    %c0_50 = arith.constant 0 : index
    %51 = vector.load %arg2[%c7, %c0_50] : memref<49x128xf32, #tpu.memory_space<vmem>>, vector<1x128xf32>
    %52 = vector.shape_cast %51 : vector<1x128xf32> to vector<1x1x128xf32>
    %53 = vector.broadcast %52 : vector<1x1x128xf32> to vector<16x16x128xf32>
    %54 = arith.mulf %50, %53 : vector<16x16x128xf32>
    %55 = arith.addf %49, %54 : vector<16x16x128xf32>
    %c1_51 = arith.constant 1 : index
    %c1_52 = arith.constant 1 : index
    %c0_53 = arith.constant 0 : index
    %56 = vector.load %arg8[%c1_51, %c1_52, %c0_53] : memref<22x22x128xf32, #tpu.memory_space<vmem>>, vector<16x16x128xf32>
    %c8 = arith.constant 8 : index
    %c0_54 = arith.constant 0 : index
    %57 = vector.load %arg2[%c8, %c0_54] : memref<49x128xf32, #tpu.memory_space<vmem>>, vector<1x128xf32>
    %58 = vector.shape_cast %57 : vector<1x128xf32> to vector<1x1x128xf32>
    %59 = vector.broadcast %58 : vector<1x1x128xf32> to vector<16x16x128xf32>
    %60 = arith.mulf %56, %59 : vector<16x16x128xf32>
    %61 = arith.addf %55, %60 : vector<16x16x128xf32>
    %c1_55 = arith.constant 1 : index
    %c2_56 = arith.constant 2 : index
    %c0_57 = arith.constant 0 : index
    %62 = vector.load %arg8[%c1_55, %c2_56, %c0_57] : memref<22x22x128xf32, #tpu.memory_space<vmem>>, vector<16x16x128xf32>
    %c9 = arith.constant 9 : index
    %c0_58 = arith.constant 0 : index
    %63 = vector.load %arg2[%c9, %c0_58] : memref<49x128xf32, #tpu.memory_space<vmem>>, vector<1x128xf32>
    %64 = vector.shape_cast %63 : vector<1x128xf32> to vector<1x1x128xf32>
    %65 = vector.broadcast %64 : vector<1x1x128xf32> to vector<16x16x128xf32>
    %66 = arith.mulf %62, %65 : vector<16x16x128xf32>
    %67 = arith.addf %61, %66 : vector<16x16x128xf32>
    %c1_59 = arith.constant 1 : index
    %c3_60 = arith.constant 3 : index
    %c0_61 = arith.constant 0 : index
    %68 = vector.load %arg8[%c1_59, %c3_60, %c0_61] : memref<22x22x128xf32, #tpu.memory_space<vmem>>, vector<16x16x128xf32>
    %c10 = arith.constant 10 : index
    %c0_62 = arith.constant 0 : index
    %69 = vector.load %arg2[%c10, %c0_62] : memref<49x128xf32, #tpu.memory_space<vmem>>, vector<1x128xf32>
    %70 = vector.shape_cast %69 : vector<1x128xf32> to vector<1x1x128xf32>
    %71 = vector.broadcast %70 : vector<1x1x128xf32> to vector<16x16x128xf32>
    %72 = arith.mulf %68, %71 : vector<16x16x128xf32>
    %73 = arith.addf %67, %72 : vector<16x16x128xf32>
    %c1_63 = arith.constant 1 : index
    %c4_64 = arith.constant 4 : index
    %c0_65 = arith.constant 0 : index
    %74 = vector.load %arg8[%c1_63, %c4_64, %c0_65] : memref<22x22x128xf32, #tpu.memory_space<vmem>>, vector<16x16x128xf32>
    %c11 = arith.constant 11 : index
    %c0_66 = arith.constant 0 : index
    %75 = vector.load %arg2[%c11, %c0_66] : memref<49x128xf32, #tpu.memory_space<vmem>>, vector<1x128xf32>
    %76 = vector.shape_cast %75 : vector<1x128xf32> to vector<1x1x128xf32>
    %77 = vector.broadcast %76 : vector<1x1x128xf32> to vector<16x16x128xf32>
    %78 = arith.mulf %74, %77 : vector<16x16x128xf32>
    %79 = arith.addf %73, %78 : vector<16x16x128xf32>
    %c1_67 = arith.constant 1 : index
    %c5_68 = arith.constant 5 : index
    %c0_69 = arith.constant 0 : index
    %80 = vector.load %arg8[%c1_67, %c5_68, %c0_69] : memref<22x22x128xf32, #tpu.memory_space<vmem>>, vector<16x16x128xf32>
    %c12 = arith.constant 12 : index
    %c0_70 = arith.constant 0 : index
    %81 = vector.load %arg2[%c12, %c0_70] : memref<49x128xf32, #tpu.memory_space<vmem>>, vector<1x128xf32>
    %82 = vector.shape_cast %81 : vector<1x128xf32> to vector<1x1x128xf32>
    %83 = vector.broadcast %82 : vector<1x1x128xf32> to vector<16x16x128xf32>
    %84 = arith.mulf %80, %83 : vector<16x16x128xf32>
    %85 = arith.addf %79, %84 : vector<16x16x128xf32>
    %c1_71 = arith.constant 1 : index
    %c6_72 = arith.constant 6 : index
    %c0_73 = arith.constant 0 : index
    %86 = vector.load %arg8[%c1_71, %c6_72, %c0_73] : memref<22x22x128xf32, #tpu.memory_space<vmem>>, vector<16x16x128xf32>
    %c13 = arith.constant 13 : index
    %c0_74 = arith.constant 0 : index
    %87 = vector.load %arg2[%c13, %c0_74] : memref<49x128xf32, #tpu.memory_space<vmem>>, vector<1x128xf32>
    %88 = vector.shape_cast %87 : vector<1x128xf32> to vector<1x1x128xf32>
    %89 = vector.broadcast %88 : vector<1x1x128xf32> to vector<16x16x128xf32>
    %90 = arith.mulf %86, %89 : vector<16x16x128xf32>
    %91 = arith.addf %85, %90 : vector<16x16x128xf32>
    %c2_75 = arith.constant 2 : index
    %c0_76 = arith.constant 0 : index
    %c0_77 = arith.constant 0 : index
    %92 = vector.load %arg8[%c2_75, %c0_76, %c0_77] : memref<22x22x128xf32, #tpu.memory_space<vmem>>, vector<16x16x128xf32>
    %c14 = arith.constant 14 : index
    %c0_78 = arith.constant 0 : index
    %93 = vector.load %arg2[%c14, %c0_78] : memref<49x128xf32, #tpu.memory_space<vmem>>, vector<1x128xf32>
    %94 = vector.shape_cast %93 : vector<1x128xf32> to vector<1x1x128xf32>
    %95 = vector.broadcast %94 : vector<1x1x128xf32> to vector<16x16x128xf32>
    %96 = arith.mulf %92, %95 : vector<16x16x128xf32>
    %97 = arith.addf %91, %96 : vector<16x16x128xf32>
    %c2_79 = arith.constant 2 : index
    %c1_80 = arith.constant 1 : index
    %c0_81 = arith.constant 0 : index
    %98 = vector.load %arg8[%c2_79, %c1_80, %c0_81] : memref<22x22x128xf32, #tpu.memory_space<vmem>>, vector<16x16x128xf32>
    %c15 = arith.constant 15 : index
    %c0_82 = arith.constant 0 : index
    %99 = vector.load %arg2[%c15, %c0_82] : memref<49x128xf32, #tpu.memory_space<vmem>>, vector<1x128xf32>
    %100 = vector.shape_cast %99 : vector<1x128xf32> to vector<1x1x128xf32>
    %101 = vector.broadcast %100 : vector<1x1x128xf32> to vector<16x16x128xf32>
    %102 = arith.mulf %98, %101 : vector<16x16x128xf32>
    %103 = arith.addf %97, %102 : vector<16x16x128xf32>
    %c2_83 = arith.constant 2 : index
    %c2_84 = arith.constant 2 : index
    %c0_85 = arith.constant 0 : index
    %104 = vector.load %arg8[%c2_83, %c2_84, %c0_85] : memref<22x22x128xf32, #tpu.memory_space<vmem>>, vector<16x16x128xf32>
    %c16 = arith.constant 16 : index
    %c0_86 = arith.constant 0 : index
    %105 = vector.load %arg2[%c16, %c0_86] : memref<49x128xf32, #tpu.memory_space<vmem>>, vector<1x128xf32>
    %106 = vector.shape_cast %105 : vector<1x128xf32> to vector<1x1x128xf32>
    %107 = vector.broadcast %106 : vector<1x1x128xf32> to vector<16x16x128xf32>
    %108 = arith.mulf %104, %107 : vector<16x16x128xf32>
    %109 = arith.addf %103, %108 : vector<16x16x128xf32>
    %c2_87 = arith.constant 2 : index
    %c3_88 = arith.constant 3 : index
    %c0_89 = arith.constant 0 : index
    %110 = vector.load %arg8[%c2_87, %c3_88, %c0_89] : memref<22x22x128xf32, #tpu.memory_space<vmem>>, vector<16x16x128xf32>
    %c17 = arith.constant 17 : index
    %c0_90 = arith.constant 0 : index
    %111 = vector.load %arg2[%c17, %c0_90] : memref<49x128xf32, #tpu.memory_space<vmem>>, vector<1x128xf32>
    %112 = vector.shape_cast %111 : vector<1x128xf32> to vector<1x1x128xf32>
    %113 = vector.broadcast %112 : vector<1x1x128xf32> to vector<16x16x128xf32>
    %114 = arith.mulf %110, %113 : vector<16x16x128xf32>
    %115 = arith.addf %109, %114 : vector<16x16x128xf32>
    %c2_91 = arith.constant 2 : index
    %c4_92 = arith.constant 4 : index
    %c0_93 = arith.constant 0 : index
    %116 = vector.load %arg8[%c2_91, %c4_92, %c0_93] : memref<22x22x128xf32, #tpu.memory_space<vmem>>, vector<16x16x128xf32>
    %c18 = arith.constant 18 : index
    %c0_94 = arith.constant 0 : index
    %117 = vector.load %arg2[%c18, %c0_94] : memref<49x128xf32, #tpu.memory_space<vmem>>, vector<1x128xf32>
    %118 = vector.shape_cast %117 : vector<1x128xf32> to vector<1x1x128xf32>
    %119 = vector.broadcast %118 : vector<1x1x128xf32> to vector<16x16x128xf32>
    %120 = arith.mulf %116, %119 : vector<16x16x128xf32>
    %121 = arith.addf %115, %120 : vector<16x16x128xf32>
    %c2_95 = arith.constant 2 : index
    %c5_96 = arith.constant 5 : index
    %c0_97 = arith.constant 0 : index
    %122 = vector.load %arg8[%c2_95, %c5_96, %c0_97] : memref<22x22x128xf32, #tpu.memory_space<vmem>>, vector<16x16x128xf32>
    %c19_98 = arith.constant 19 : index
    %c0_99 = arith.constant 0 : index
    %123 = vector.load %arg2[%c19_98, %c0_99] : memref<49x128xf32, #tpu.memory_space<vmem>>, vector<1x128xf32>
    %124 = vector.shape_cast %123 : vector<1x128xf32> to vector<1x1x128xf32>
    %125 = vector.broadcast %124 : vector<1x1x128xf32> to vector<16x16x128xf32>
    %126 = arith.mulf %122, %125 : vector<16x16x128xf32>
    %127 = arith.addf %121, %126 : vector<16x16x128xf32>
    %c2_100 = arith.constant 2 : index
    %c6_101 = arith.constant 6 : index
    %c0_102 = arith.constant 0 : index
    %128 = vector.load %arg8[%c2_100, %c6_101, %c0_102] : memref<22x22x128xf32, #tpu.memory_space<vmem>>, vector<16x16x128xf32>
    %c20 = arith.constant 20 : index
    %c0_103 = arith.constant 0 : index
    %129 = vector.load %arg2[%c20, %c0_103] : memref<49x128xf32, #tpu.memory_space<vmem>>, vector<1x128xf32>
    %130 = vector.shape_cast %129 : vector<1x128xf32> to vector<1x1x128xf32>
    %131 = vector.broadcast %130 : vector<1x1x128xf32> to vector<16x16x128xf32>
    %132 = arith.mulf %128, %131 : vector<16x16x128xf32>
    %133 = arith.addf %127, %132 : vector<16x16x128xf32>
    %c3_104 = arith.constant 3 : index
    %c0_105 = arith.constant 0 : index
    %c0_106 = arith.constant 0 : index
    %134 = vector.load %arg8[%c3_104, %c0_105, %c0_106] : memref<22x22x128xf32, #tpu.memory_space<vmem>>, vector<16x16x128xf32>
    %c21 = arith.constant 21 : index
    %c0_107 = arith.constant 0 : index
    %135 = vector.load %arg2[%c21, %c0_107] : memref<49x128xf32, #tpu.memory_space<vmem>>, vector<1x128xf32>
    %136 = vector.shape_cast %135 : vector<1x128xf32> to vector<1x1x128xf32>
    %137 = vector.broadcast %136 : vector<1x1x128xf32> to vector<16x16x128xf32>
    %138 = arith.mulf %134, %137 : vector<16x16x128xf32>
    %139 = arith.addf %133, %138 : vector<16x16x128xf32>
    %c3_108 = arith.constant 3 : index
    %c1_109 = arith.constant 1 : index
    %c0_110 = arith.constant 0 : index
    %140 = vector.load %arg8[%c3_108, %c1_109, %c0_110] : memref<22x22x128xf32, #tpu.memory_space<vmem>>, vector<16x16x128xf32>
    %c22 = arith.constant 22 : index
    %c0_111 = arith.constant 0 : index
    %141 = vector.load %arg2[%c22, %c0_111] : memref<49x128xf32, #tpu.memory_space<vmem>>, vector<1x128xf32>
    %142 = vector.shape_cast %141 : vector<1x128xf32> to vector<1x1x128xf32>
    %143 = vector.broadcast %142 : vector<1x1x128xf32> to vector<16x16x128xf32>
    %144 = arith.mulf %140, %143 : vector<16x16x128xf32>
    %145 = arith.addf %139, %144 : vector<16x16x128xf32>
    %c3_112 = arith.constant 3 : index
    %c2_113 = arith.constant 2 : index
    %c0_114 = arith.constant 0 : index
    %146 = vector.load %arg8[%c3_112, %c2_113, %c0_114] : memref<22x22x128xf32, #tpu.memory_space<vmem>>, vector<16x16x128xf32>
    %c23 = arith.constant 23 : index
    %c0_115 = arith.constant 0 : index
    %147 = vector.load %arg2[%c23, %c0_115] : memref<49x128xf32, #tpu.memory_space<vmem>>, vector<1x128xf32>
    %148 = vector.shape_cast %147 : vector<1x128xf32> to vector<1x1x128xf32>
    %149 = vector.broadcast %148 : vector<1x1x128xf32> to vector<16x16x128xf32>
    %150 = arith.mulf %146, %149 : vector<16x16x128xf32>
    %151 = arith.addf %145, %150 : vector<16x16x128xf32>
    %c3_116 = arith.constant 3 : index
    %c3_117 = arith.constant 3 : index
    %c0_118 = arith.constant 0 : index
    %152 = vector.load %arg8[%c3_116, %c3_117, %c0_118] : memref<22x22x128xf32, #tpu.memory_space<vmem>>, vector<16x16x128xf32>
    %c24 = arith.constant 24 : index
    %c0_119 = arith.constant 0 : index
    %153 = vector.load %arg2[%c24, %c0_119] : memref<49x128xf32, #tpu.memory_space<vmem>>, vector<1x128xf32>
    %154 = vector.shape_cast %153 : vector<1x128xf32> to vector<1x1x128xf32>
    %155 = vector.broadcast %154 : vector<1x1x128xf32> to vector<16x16x128xf32>
    %156 = arith.mulf %152, %155 : vector<16x16x128xf32>
    %157 = arith.addf %151, %156 : vector<16x16x128xf32>
    %c3_120 = arith.constant 3 : index
    %c4_121 = arith.constant 4 : index
    %c0_122 = arith.constant 0 : index
    %158 = vector.load %arg8[%c3_120, %c4_121, %c0_122] : memref<22x22x128xf32, #tpu.memory_space<vmem>>, vector<16x16x128xf32>
    %c25 = arith.constant 25 : index
    %c0_123 = arith.constant 0 : index
    %159 = vector.load %arg2[%c25, %c0_123] : memref<49x128xf32, #tpu.memory_space<vmem>>, vector<1x128xf32>
    %160 = vector.shape_cast %159 : vector<1x128xf32> to vector<1x1x128xf32>
    %161 = vector.broadcast %160 : vector<1x1x128xf32> to vector<16x16x128xf32>
    %162 = arith.mulf %158, %161 : vector<16x16x128xf32>
    %163 = arith.addf %157, %162 : vector<16x16x128xf32>
    %c3_124 = arith.constant 3 : index
    %c5_125 = arith.constant 5 : index
    %c0_126 = arith.constant 0 : index
    %164 = vector.load %arg8[%c3_124, %c5_125, %c0_126] : memref<22x22x128xf32, #tpu.memory_space<vmem>>, vector<16x16x128xf32>
    %c26 = arith.constant 26 : index
    %c0_127 = arith.constant 0 : index
    %165 = vector.load %arg2[%c26, %c0_127] : memref<49x128xf32, #tpu.memory_space<vmem>>, vector<1x128xf32>
    %166 = vector.shape_cast %165 : vector<1x128xf32> to vector<1x1x128xf32>
    %167 = vector.broadcast %166 : vector<1x1x128xf32> to vector<16x16x128xf32>
    %168 = arith.mulf %164, %167 : vector<16x16x128xf32>
    %169 = arith.addf %163, %168 : vector<16x16x128xf32>
    %c3_128 = arith.constant 3 : index
    %c6_129 = arith.constant 6 : index
    %c0_130 = arith.constant 0 : index
    %170 = vector.load %arg8[%c3_128, %c6_129, %c0_130] : memref<22x22x128xf32, #tpu.memory_space<vmem>>, vector<16x16x128xf32>
    %c27 = arith.constant 27 : index
    %c0_131 = arith.constant 0 : index
    %171 = vector.load %arg2[%c27, %c0_131] : memref<49x128xf32, #tpu.memory_space<vmem>>, vector<1x128xf32>
    %172 = vector.shape_cast %171 : vector<1x128xf32> to vector<1x1x128xf32>
    %173 = vector.broadcast %172 : vector<1x1x128xf32> to vector<16x16x128xf32>
    %174 = arith.mulf %170, %173 : vector<16x16x128xf32>
    %175 = arith.addf %169, %174 : vector<16x16x128xf32>
    %c4_132 = arith.constant 4 : index
    %c0_133 = arith.constant 0 : index
    %c0_134 = arith.constant 0 : index
    %176 = vector.load %arg8[%c4_132, %c0_133, %c0_134] : memref<22x22x128xf32, #tpu.memory_space<vmem>>, vector<16x16x128xf32>
    %c28 = arith.constant 28 : index
    %c0_135 = arith.constant 0 : index
    %177 = vector.load %arg2[%c28, %c0_135] : memref<49x128xf32, #tpu.memory_space<vmem>>, vector<1x128xf32>
    %178 = vector.shape_cast %177 : vector<1x128xf32> to vector<1x1x128xf32>
    %179 = vector.broadcast %178 : vector<1x1x128xf32> to vector<16x16x128xf32>
    %180 = arith.mulf %176, %179 : vector<16x16x128xf32>
    %181 = arith.addf %175, %180 : vector<16x16x128xf32>
    %c4_136 = arith.constant 4 : index
    %c1_137 = arith.constant 1 : index
    %c0_138 = arith.constant 0 : index
    %182 = vector.load %arg8[%c4_136, %c1_137, %c0_138] : memref<22x22x128xf32, #tpu.memory_space<vmem>>, vector<16x16x128xf32>
    %c29 = arith.constant 29 : index
    %c0_139 = arith.constant 0 : index
    %183 = vector.load %arg2[%c29, %c0_139] : memref<49x128xf32, #tpu.memory_space<vmem>>, vector<1x128xf32>
    %184 = vector.shape_cast %183 : vector<1x128xf32> to vector<1x1x128xf32>
    %185 = vector.broadcast %184 : vector<1x1x128xf32> to vector<16x16x128xf32>
    %186 = arith.mulf %182, %185 : vector<16x16x128xf32>
    %187 = arith.addf %181, %186 : vector<16x16x128xf32>
    %c4_140 = arith.constant 4 : index
    %c2_141 = arith.constant 2 : index
    %c0_142 = arith.constant 0 : index
    %188 = vector.load %arg8[%c4_140, %c2_141, %c0_142] : memref<22x22x128xf32, #tpu.memory_space<vmem>>, vector<16x16x128xf32>
    %c30 = arith.constant 30 : index
    %c0_143 = arith.constant 0 : index
    %189 = vector.load %arg2[%c30, %c0_143] : memref<49x128xf32, #tpu.memory_space<vmem>>, vector<1x128xf32>
    %190 = vector.shape_cast %189 : vector<1x128xf32> to vector<1x1x128xf32>
    %191 = vector.broadcast %190 : vector<1x1x128xf32> to vector<16x16x128xf32>
    %192 = arith.mulf %188, %191 : vector<16x16x128xf32>
    %193 = arith.addf %187, %192 : vector<16x16x128xf32>
    %c4_144 = arith.constant 4 : index
    %c3_145 = arith.constant 3 : index
    %c0_146 = arith.constant 0 : index
    %194 = vector.load %arg8[%c4_144, %c3_145, %c0_146] : memref<22x22x128xf32, #tpu.memory_space<vmem>>, vector<16x16x128xf32>
    %c31 = arith.constant 31 : index
    %c0_147 = arith.constant 0 : index
    %195 = vector.load %arg2[%c31, %c0_147] : memref<49x128xf32, #tpu.memory_space<vmem>>, vector<1x128xf32>
    %196 = vector.shape_cast %195 : vector<1x128xf32> to vector<1x1x128xf32>
    %197 = vector.broadcast %196 : vector<1x1x128xf32> to vector<16x16x128xf32>
    %198 = arith.mulf %194, %197 : vector<16x16x128xf32>
    %199 = arith.addf %193, %198 : vector<16x16x128xf32>
    %c4_148 = arith.constant 4 : index
    %c4_149 = arith.constant 4 : index
    %c0_150 = arith.constant 0 : index
    %200 = vector.load %arg8[%c4_148, %c4_149, %c0_150] : memref<22x22x128xf32, #tpu.memory_space<vmem>>, vector<16x16x128xf32>
    %c32 = arith.constant 32 : index
    %c0_151 = arith.constant 0 : index
    %201 = vector.load %arg2[%c32, %c0_151] : memref<49x128xf32, #tpu.memory_space<vmem>>, vector<1x128xf32>
    %202 = vector.shape_cast %201 : vector<1x128xf32> to vector<1x1x128xf32>
    %203 = vector.broadcast %202 : vector<1x1x128xf32> to vector<16x16x128xf32>
    %204 = arith.mulf %200, %203 : vector<16x16x128xf32>
    %205 = arith.addf %199, %204 : vector<16x16x128xf32>
    %c4_152 = arith.constant 4 : index
    %c5_153 = arith.constant 5 : index
    %c0_154 = arith.constant 0 : index
    %206 = vector.load %arg8[%c4_152, %c5_153, %c0_154] : memref<22x22x128xf32, #tpu.memory_space<vmem>>, vector<16x16x128xf32>
    %c33 = arith.constant 33 : index
    %c0_155 = arith.constant 0 : index
    %207 = vector.load %arg2[%c33, %c0_155] : memref<49x128xf32, #tpu.memory_space<vmem>>, vector<1x128xf32>
    %208 = vector.shape_cast %207 : vector<1x128xf32> to vector<1x1x128xf32>
    %209 = vector.broadcast %208 : vector<1x1x128xf32> to vector<16x16x128xf32>
    %210 = arith.mulf %206, %209 : vector<16x16x128xf32>
    %211 = arith.addf %205, %210 : vector<16x16x128xf32>
    %c4_156 = arith.constant 4 : index
    %c6_157 = arith.constant 6 : index
    %c0_158 = arith.constant 0 : index
    %212 = vector.load %arg8[%c4_156, %c6_157, %c0_158] : memref<22x22x128xf32, #tpu.memory_space<vmem>>, vector<16x16x128xf32>
    %c34 = arith.constant 34 : index
    %c0_159 = arith.constant 0 : index
    %213 = vector.load %arg2[%c34, %c0_159] : memref<49x128xf32, #tpu.memory_space<vmem>>, vector<1x128xf32>
    %214 = vector.shape_cast %213 : vector<1x128xf32> to vector<1x1x128xf32>
    %215 = vector.broadcast %214 : vector<1x1x128xf32> to vector<16x16x128xf32>
    %216 = arith.mulf %212, %215 : vector<16x16x128xf32>
    %217 = arith.addf %211, %216 : vector<16x16x128xf32>
    %c5_160 = arith.constant 5 : index
    %c0_161 = arith.constant 0 : index
    %c0_162 = arith.constant 0 : index
    %218 = vector.load %arg8[%c5_160, %c0_161, %c0_162] : memref<22x22x128xf32, #tpu.memory_space<vmem>>, vector<16x16x128xf32>
    %c35 = arith.constant 35 : index
    %c0_163 = arith.constant 0 : index
    %219 = vector.load %arg2[%c35, %c0_163] : memref<49x128xf32, #tpu.memory_space<vmem>>, vector<1x128xf32>
    %220 = vector.shape_cast %219 : vector<1x128xf32> to vector<1x1x128xf32>
    %221 = vector.broadcast %220 : vector<1x1x128xf32> to vector<16x16x128xf32>
    %222 = arith.mulf %218, %221 : vector<16x16x128xf32>
    %223 = arith.addf %217, %222 : vector<16x16x128xf32>
    %c5_164 = arith.constant 5 : index
    %c1_165 = arith.constant 1 : index
    %c0_166 = arith.constant 0 : index
    %224 = vector.load %arg8[%c5_164, %c1_165, %c0_166] : memref<22x22x128xf32, #tpu.memory_space<vmem>>, vector<16x16x128xf32>
    %c36 = arith.constant 36 : index
    %c0_167 = arith.constant 0 : index
    %225 = vector.load %arg2[%c36, %c0_167] : memref<49x128xf32, #tpu.memory_space<vmem>>, vector<1x128xf32>
    %226 = vector.shape_cast %225 : vector<1x128xf32> to vector<1x1x128xf32>
    %227 = vector.broadcast %226 : vector<1x1x128xf32> to vector<16x16x128xf32>
    %228 = arith.mulf %224, %227 : vector<16x16x128xf32>
    %229 = arith.addf %223, %228 : vector<16x16x128xf32>
    %c5_168 = arith.constant 5 : index
    %c2_169 = arith.constant 2 : index
    %c0_170 = arith.constant 0 : index
    %230 = vector.load %arg8[%c5_168, %c2_169, %c0_170] : memref<22x22x128xf32, #tpu.memory_space<vmem>>, vector<16x16x128xf32>
    %c37 = arith.constant 37 : index
    %c0_171 = arith.constant 0 : index
    %231 = vector.load %arg2[%c37, %c0_171] : memref<49x128xf32, #tpu.memory_space<vmem>>, vector<1x128xf32>
    %232 = vector.shape_cast %231 : vector<1x128xf32> to vector<1x1x128xf32>
    %233 = vector.broadcast %232 : vector<1x1x128xf32> to vector<16x16x128xf32>
    %234 = arith.mulf %230, %233 : vector<16x16x128xf32>
    %235 = arith.addf %229, %234 : vector<16x16x128xf32>
    %c5_172 = arith.constant 5 : index
    %c3_173 = arith.constant 3 : index
    %c0_174 = arith.constant 0 : index
    %236 = vector.load %arg8[%c5_172, %c3_173, %c0_174] : memref<22x22x128xf32, #tpu.memory_space<vmem>>, vector<16x16x128xf32>
    %c38 = arith.constant 38 : index
    %c0_175 = arith.constant 0 : index
    %237 = vector.load %arg2[%c38, %c0_175] : memref<49x128xf32, #tpu.memory_space<vmem>>, vector<1x128xf32>
    %238 = vector.shape_cast %237 : vector<1x128xf32> to vector<1x1x128xf32>
    %239 = vector.broadcast %238 : vector<1x1x128xf32> to vector<16x16x128xf32>
    %240 = arith.mulf %236, %239 : vector<16x16x128xf32>
    %241 = arith.addf %235, %240 : vector<16x16x128xf32>
    %c5_176 = arith.constant 5 : index
    %c4_177 = arith.constant 4 : index
    %c0_178 = arith.constant 0 : index
    %242 = vector.load %arg8[%c5_176, %c4_177, %c0_178] : memref<22x22x128xf32, #tpu.memory_space<vmem>>, vector<16x16x128xf32>
    %c39 = arith.constant 39 : index
    %c0_179 = arith.constant 0 : index
    %243 = vector.load %arg2[%c39, %c0_179] : memref<49x128xf32, #tpu.memory_space<vmem>>, vector<1x128xf32>
    %244 = vector.shape_cast %243 : vector<1x128xf32> to vector<1x1x128xf32>
    %245 = vector.broadcast %244 : vector<1x1x128xf32> to vector<16x16x128xf32>
    %246 = arith.mulf %242, %245 : vector<16x16x128xf32>
    %247 = arith.addf %241, %246 : vector<16x16x128xf32>
    %c5_180 = arith.constant 5 : index
    %c5_181 = arith.constant 5 : index
    %c0_182 = arith.constant 0 : index
    %248 = vector.load %arg8[%c5_180, %c5_181, %c0_182] : memref<22x22x128xf32, #tpu.memory_space<vmem>>, vector<16x16x128xf32>
    %c40 = arith.constant 40 : index
    %c0_183 = arith.constant 0 : index
    %249 = vector.load %arg2[%c40, %c0_183] : memref<49x128xf32, #tpu.memory_space<vmem>>, vector<1x128xf32>
    %250 = vector.shape_cast %249 : vector<1x128xf32> to vector<1x1x128xf32>
    %251 = vector.broadcast %250 : vector<1x1x128xf32> to vector<16x16x128xf32>
    %252 = arith.mulf %248, %251 : vector<16x16x128xf32>
    %253 = arith.addf %247, %252 : vector<16x16x128xf32>
    %c5_184 = arith.constant 5 : index
    %c6_185 = arith.constant 6 : index
    %c0_186 = arith.constant 0 : index
    %254 = vector.load %arg8[%c5_184, %c6_185, %c0_186] : memref<22x22x128xf32, #tpu.memory_space<vmem>>, vector<16x16x128xf32>
    %c41 = arith.constant 41 : index
    %c0_187 = arith.constant 0 : index
    %255 = vector.load %arg2[%c41, %c0_187] : memref<49x128xf32, #tpu.memory_space<vmem>>, vector<1x128xf32>
    %256 = vector.shape_cast %255 : vector<1x128xf32> to vector<1x1x128xf32>
    %257 = vector.broadcast %256 : vector<1x1x128xf32> to vector<16x16x128xf32>
    %258 = arith.mulf %254, %257 : vector<16x16x128xf32>
    %259 = arith.addf %253, %258 : vector<16x16x128xf32>
    %c6_188 = arith.constant 6 : index
    %c0_189 = arith.constant 0 : index
    %c0_190 = arith.constant 0 : index
    %260 = vector.load %arg8[%c6_188, %c0_189, %c0_190] : memref<22x22x128xf32, #tpu.memory_space<vmem>>, vector<16x16x128xf32>
    %c42 = arith.constant 42 : index
    %c0_191 = arith.constant 0 : index
    %261 = vector.load %arg2[%c42, %c0_191] : memref<49x128xf32, #tpu.memory_space<vmem>>, vector<1x128xf32>
    %262 = vector.shape_cast %261 : vector<1x128xf32> to vector<1x1x128xf32>
    %263 = vector.broadcast %262 : vector<1x1x128xf32> to vector<16x16x128xf32>
    %264 = arith.mulf %260, %263 : vector<16x16x128xf32>
    %265 = arith.addf %259, %264 : vector<16x16x128xf32>
    %c6_192 = arith.constant 6 : index
    %c1_193 = arith.constant 1 : index
    %c0_194 = arith.constant 0 : index
    %266 = vector.load %arg8[%c6_192, %c1_193, %c0_194] : memref<22x22x128xf32, #tpu.memory_space<vmem>>, vector<16x16x128xf32>
    %c43 = arith.constant 43 : index
    %c0_195 = arith.constant 0 : index
    %267 = vector.load %arg2[%c43, %c0_195] : memref<49x128xf32, #tpu.memory_space<vmem>>, vector<1x128xf32>
    %268 = vector.shape_cast %267 : vector<1x128xf32> to vector<1x1x128xf32>
    %269 = vector.broadcast %268 : vector<1x1x128xf32> to vector<16x16x128xf32>
    %270 = arith.mulf %266, %269 : vector<16x16x128xf32>
    %271 = arith.addf %265, %270 : vector<16x16x128xf32>
    %c6_196 = arith.constant 6 : index
    %c2_197 = arith.constant 2 : index
    %c0_198 = arith.constant 0 : index
    %272 = vector.load %arg8[%c6_196, %c2_197, %c0_198] : memref<22x22x128xf32, #tpu.memory_space<vmem>>, vector<16x16x128xf32>
    %c44 = arith.constant 44 : index
    %c0_199 = arith.constant 0 : index
    %273 = vector.load %arg2[%c44, %c0_199] : memref<49x128xf32, #tpu.memory_space<vmem>>, vector<1x128xf32>
    %274 = vector.shape_cast %273 : vector<1x128xf32> to vector<1x1x128xf32>
    %275 = vector.broadcast %274 : vector<1x1x128xf32> to vector<16x16x128xf32>
    %276 = arith.mulf %272, %275 : vector<16x16x128xf32>
    %277 = arith.addf %271, %276 : vector<16x16x128xf32>
    %c6_200 = arith.constant 6 : index
    %c3_201 = arith.constant 3 : index
    %c0_202 = arith.constant 0 : index
    %278 = vector.load %arg8[%c6_200, %c3_201, %c0_202] : memref<22x22x128xf32, #tpu.memory_space<vmem>>, vector<16x16x128xf32>
    %c45 = arith.constant 45 : index
    %c0_203 = arith.constant 0 : index
    %279 = vector.load %arg2[%c45, %c0_203] : memref<49x128xf32, #tpu.memory_space<vmem>>, vector<1x128xf32>
    %280 = vector.shape_cast %279 : vector<1x128xf32> to vector<1x1x128xf32>
    %281 = vector.broadcast %280 : vector<1x1x128xf32> to vector<16x16x128xf32>
    %282 = arith.mulf %278, %281 : vector<16x16x128xf32>
    %283 = arith.addf %277, %282 : vector<16x16x128xf32>
    %c6_204 = arith.constant 6 : index
    %c4_205 = arith.constant 4 : index
    %c0_206 = arith.constant 0 : index
    %284 = vector.load %arg8[%c6_204, %c4_205, %c0_206] : memref<22x22x128xf32, #tpu.memory_space<vmem>>, vector<16x16x128xf32>
    %c46 = arith.constant 46 : index
    %c0_207 = arith.constant 0 : index
    %285 = vector.load %arg2[%c46, %c0_207] : memref<49x128xf32, #tpu.memory_space<vmem>>, vector<1x128xf32>
    %286 = vector.shape_cast %285 : vector<1x128xf32> to vector<1x1x128xf32>
    %287 = vector.broadcast %286 : vector<1x1x128xf32> to vector<16x16x128xf32>
    %288 = arith.mulf %284, %287 : vector<16x16x128xf32>
    %289 = arith.addf %283, %288 : vector<16x16x128xf32>
    %c6_208 = arith.constant 6 : index
    %c5_209 = arith.constant 5 : index
    %c0_210 = arith.constant 0 : index
    %290 = vector.load %arg8[%c6_208, %c5_209, %c0_210] : memref<22x22x128xf32, #tpu.memory_space<vmem>>, vector<16x16x128xf32>
    %c47 = arith.constant 47 : index
    %c0_211 = arith.constant 0 : index
    %291 = vector.load %arg2[%c47, %c0_211] : memref<49x128xf32, #tpu.memory_space<vmem>>, vector<1x128xf32>
    %292 = vector.shape_cast %291 : vector<1x128xf32> to vector<1x1x128xf32>
    %293 = vector.broadcast %292 : vector<1x1x128xf32> to vector<16x16x128xf32>
    %294 = arith.mulf %290, %293 : vector<16x16x128xf32>
    %295 = arith.addf %289, %294 : vector<16x16x128xf32>
    %c6_212 = arith.constant 6 : index
    %c6_213 = arith.constant 6 : index
    %c0_214 = arith.constant 0 : index
    %296 = vector.load %arg8[%c6_212, %c6_213, %c0_214] : memref<22x22x128xf32, #tpu.memory_space<vmem>>, vector<16x16x128xf32>
    %c48 = arith.constant 48 : index
    %c0_215 = arith.constant 0 : index
    %297 = vector.load %arg2[%c48, %c0_215] : memref<49x128xf32, #tpu.memory_space<vmem>>, vector<1x128xf32>
    %298 = vector.shape_cast %297 : vector<1x128xf32> to vector<1x1x128xf32>
    %299 = vector.broadcast %298 : vector<1x1x128xf32> to vector<16x16x128xf32>
    %300 = arith.mulf %296, %299 : vector<16x16x128xf32>
    %301 = arith.addf %295, %300 : vector<16x16x128xf32>
    %c0_216 = arith.constant 0 : index
    %c0_217 = arith.constant 0 : index
    %302 = vector.load %arg3[%c0_216, %c0_217] : memref<5x128xf32, #tpu.memory_space<vmem>>, vector<1x128xf32>
    %303 = vector.shape_cast %302 : vector<1x128xf32> to vector<1x1x128xf32>
    %304 = vector.broadcast %303 : vector<1x1x128xf32> to vector<16x16x128xf32>
    %305 = arith.addf %301, %304 : vector<16x16x128xf32>
    %cst_218 = arith.constant dense<0.000000e+00> : vector<16x16xf32>
    %306 = vector.multi_reduction <add>, %305, %cst_218 [2] : vector<16x16x128xf32> to vector<16x16xf32>
    %307 = vector.shape_cast %306 : vector<16x16xf32> to vector<16x16x1xf32>
    %cst_219 = arith.constant 2.500000e-01 : f32
    %308 = vector.broadcast %cst_219 : f32 to vector<16x16x1xf32>
    %309 = arith.mulf %307, %308 : vector<16x16x1xf32>
    %310 = vector.broadcast %309 : vector<16x16x1xf32> to vector<16x16x128xf32>
    %311 = arith.subf %305, %310 : vector<16x16x128xf32>
    %c4_220 = arith.constant 4 : index
    %c0_221 = arith.constant 0 : index
    %312 = vector.load %arg3[%c4_220, %c0_221] : memref<5x128xf32, #tpu.memory_space<vmem>>, vector<1x128xf32>
    %313 = vector.shape_cast %312 : vector<1x128xf32> to vector<1x1x128xf32>
    %314 = vector.broadcast %313 : vector<1x1x128xf32> to vector<16x16x128xf32>
    %315 = arith.mulf %311, %314 : vector<16x16x128xf32>
    %316 = arith.mulf %315, %315 : vector<16x16x128xf32>
    %cst_222 = arith.constant dense<0.000000e+00> : vector<16x16xf32>
    %317 = vector.multi_reduction <add>, %316, %cst_222 [2] : vector<16x16x128xf32> to vector<16x16xf32>
    %318 = vector.shape_cast %317 : vector<16x16xf32> to vector<16x16x1xf32>
    %cst_223 = arith.constant 2.500000e-01 : f32
    %319 = vector.broadcast %cst_223 : f32 to vector<16x16x1xf32>
    %320 = arith.mulf %318, %319 : vector<16x16x1xf32>
    %cst_224 = arith.constant 9.99999997E-7 : f32
    %321 = vector.broadcast %cst_224 : f32 to vector<16x16x1xf32>
    %322 = arith.addf %320, %321 : vector<16x16x1xf32>
    %323 = math.rsqrt %322 : vector<16x16x1xf32>
    %324 = vector.broadcast %323 : vector<16x16x1xf32> to vector<16x16x128xf32>
    %325 = arith.mulf %315, %324 : vector<16x16x128xf32>
    %c1_225 = arith.constant 1 : index
    %c0_226 = arith.constant 0 : index
    %326 = vector.load %arg3[%c1_225, %c0_226] : memref<5x128xf32, #tpu.memory_space<vmem>>, vector<1x128xf32>
    %327 = vector.shape_cast %326 : vector<1x128xf32> to vector<1x1x128xf32>
    %328 = vector.broadcast %327 : vector<1x1x128xf32> to vector<16x16x128xf32>
    %329 = arith.mulf %325, %328 : vector<16x16x128xf32>
    %c2_227 = arith.constant 2 : index
    %c0_228 = arith.constant 0 : index
    %330 = vector.load %arg3[%c2_227, %c0_228] : memref<5x128xf32, #tpu.memory_space<vmem>>, vector<1x128xf32>
    %331 = vector.shape_cast %330 : vector<1x128xf32> to vector<1x1x128xf32>
    %332 = vector.broadcast %331 : vector<1x1x128xf32> to vector<16x16x128xf32>
    %333 = arith.addf %329, %332 : vector<16x16x128xf32>
    %334 = vector.shape_cast %333 : vector<16x16x128xf32> to vector<256x128xf32>
    %335 = arith.truncf %334 : vector<256x128xf32> to vector<256x128xbf16>
    %c0_229 = arith.constant 0 : index
    %c0_230 = arith.constant 0 : index
    %336 = vector.load %arg4[%c0_229, %c0_230] : memref<128x128xbf16, #tpu.memory_space<vmem>>, vector<128x128xbf16>
    %cst_231 = arith.constant dense<0.000000e+00> : vector<256x128xf32>
    %337 = tpu.matmul %335, %336, %cst_231 {dimension_numbers = #tpu.dot_dimension_numbers<[1], [0], [0], [1], [0, 0, 1, 1], [], []>} : vector<256x128xbf16>, vector<128x128xbf16>, vector<256x128xf32> -> vector<256x128xf32>
    %c0_232 = arith.constant 0 : index
    %c0_233 = arith.constant 0 : index
    %338 = vector.load %arg5[%c0_232, %c0_233] : memref<1x128xf32, #tpu.memory_space<vmem>>, vector<1x128xf32>
    %339 = vector.broadcast %338 : vector<1x128xf32> to vector<256x128xf32>
    %340 = arith.addf %337, %339 : vector<256x128xf32>
    %cst_234 = arith.constant 5.000000e-01 : f32
    %341 = vector.broadcast %cst_234 : f32 to vector<256x128xf32>
    %342 = arith.mulf %341, %340 : vector<256x128xf32>
    %cst_235 = arith.constant 0.707106769 : f32
    %343 = vector.broadcast %cst_235 : f32 to vector<256x128xf32>
    %344 = arith.mulf %340, %343 : vector<256x128xf32>
    %cst_236 = arith.constant 0.000000e+00 : f32
    %345 = vector.broadcast %cst_236 : f32 to vector<256x128xf32>
    %346 = arith.cmpf olt, %344, %345 : vector<256x128xf32>
    %cst_237 = arith.constant -1.000000e+00 : f32
    %cst_238 = arith.constant 1.000000e+00 : f32
    %347 = vector.broadcast %cst_237 : f32 to vector<256x128xf32>
    %348 = vector.broadcast %cst_238 : f32 to vector<256x128xf32>
    %349 = arith.select %346, %347, %348 : vector<256x128xi1>, vector<256x128xf32>
    %350 = math.absf %344 : vector<256x128xf32>
    %cst_239 = arith.constant 0.327591091 : f32
    %351 = vector.broadcast %cst_239 : f32 to vector<256x128xf32>
    %352 = arith.mulf %351, %350 : vector<256x128xf32>
    %cst_240 = arith.constant 1.000000e+00 : f32
    %353 = vector.broadcast %cst_240 : f32 to vector<256x128xf32>
    %354 = arith.addf %353, %352 : vector<256x128xf32>
    %355 = tpu.reciprocal %354 {approx = true} : vector<256x128xf32> -> vector<256x128xf32>
    %cst_241 = arith.constant 1.06140542 : f32
    %356 = vector.broadcast %cst_241 : f32 to vector<256x128xf32>
    %357 = arith.mulf %356, %355 : vector<256x128xf32>
    %cst_242 = arith.constant -1.45315206 : f32
    %358 = vector.broadcast %cst_242 : f32 to vector<256x128xf32>
    %359 = arith.addf %357, %358 : vector<256x128xf32>
    %360 = arith.mulf %359, %355 : vector<256x128xf32>
    %cst_243 = arith.constant 1.42141378 : f32
    %361 = vector.broadcast %cst_243 : f32 to vector<256x128xf32>
    %362 = arith.addf %360, %361 : vector<256x128xf32>
    %363 = arith.mulf %362, %355 : vector<256x128xf32>
    %cst_244 = arith.constant -0.284496725 : f32
    %364 = vector.broadcast %cst_244 : f32 to vector<256x128xf32>
    %365 = arith.addf %363, %364 : vector<256x128xf32>
    %366 = arith.mulf %365, %355 : vector<256x128xf32>
    %cst_245 = arith.constant 0.254829586 : f32
    %367 = vector.broadcast %cst_245 : f32 to vector<256x128xf32>
    %368 = arith.addf %366, %367 : vector<256x128xf32>
    %369 = arith.mulf %368, %355 : vector<256x128xf32>
    %cst_246 = arith.constant 0.000000e+00 : f32
    %370 = vector.broadcast %cst_246 : f32 to vector<256x128xf32>
    %371 = arith.subf %370, %350 : vector<256x128xf32>
    %372 = arith.mulf %371, %350 : vector<256x128xf32>
    %373 = math.exp %372 : vector<256x128xf32>
    %374 = arith.mulf %369, %373 : vector<256x128xf32>
    %cst_247 = arith.constant 1.000000e+00 : f32
    %375 = vector.broadcast %cst_247 : f32 to vector<256x128xf32>
    %376 = arith.subf %375, %374 : vector<256x128xf32>
    %377 = arith.mulf %349, %376 : vector<256x128xf32>
    %cst_248 = arith.constant 1.000000e+00 : f32
    %378 = vector.broadcast %cst_248 : f32 to vector<256x128xf32>
    %379 = arith.addf %378, %377 : vector<256x128xf32>
    %380 = arith.mulf %342, %379 : vector<256x128xf32>
    %381 = arith.truncf %380 : vector<256x128xf32> to vector<256x128xbf16>
    %c0_249 = arith.constant 0 : index
    %c0_250 = arith.constant 0 : index
    %382 = vector.load %arg6[%c0_249, %c0_250] : memref<128x128xbf16, #tpu.memory_space<vmem>>, vector<128x128xbf16>
    %cst_251 = arith.constant dense<0.000000e+00> : vector<256x128xf32>
    %383 = tpu.matmul %381, %382, %cst_251 {dimension_numbers = #tpu.dot_dimension_numbers<[1], [0], [0], [1], [0, 0, 1, 1], [], []>} : vector<256x128xbf16>, vector<128x128xbf16>, vector<256x128xf32> -> vector<256x128xf32>
    %c3_252 = arith.constant 3 : index
    %c0_253 = arith.constant 0 : index
    %384 = vector.load %arg3[%c3_252, %c0_253] : memref<5x128xf32, #tpu.memory_space<vmem>>, vector<1x128xf32>
    %385 = vector.broadcast %384 : vector<1x128xf32> to vector<256x128xf32>
    %386 = arith.addf %383, %385 : vector<256x128xf32>
    %c0_254 = arith.constant 0 : index
    %c0_255 = arith.constant 0 : index
    %c0_256 = arith.constant 0 : index
    %c0_257 = arith.constant 0 : index
    %387 = vector.load %arg1[%c0_254, %c0_255, %c0_256, %c0_257] : memref<1x16x16x128xf32, #tpu.memory_space<vmem>>, vector<1x16x16x128xf32>
    %388 = vector.shape_cast %387 : vector<1x16x16x128xf32> to vector<16x16x128xf32>
    %389 = vector.shape_cast %386 : vector<256x128xf32> to vector<16x16x128xf32>
    %390 = arith.addf %388, %389 : vector<16x16x128xf32>
    %c0_258 = arith.constant 0 : index
    %c0_259 = arith.constant 0 : index
    %c0_260 = arith.constant 0 : index
    %c0_261 = arith.constant 0 : index
    %391 = vector.load %arg7[%c0_258, %c0_259, %c0_260, %c0_261] : memref<1x16x16x128xf32, #tpu.memory_space<vmem>>, vector<1x16x16x128xf32>
    %392 = vector.shape_cast %391 : vector<1x16x16x128xf32> to vector<16x16x128xf32>
    %393 = vector.shape_cast %390 : vector<16x16x128xf32> to vector<1x16x16x128xf32>
    tpu.vector_store %arg7[%c0_258, %c0_259, %c0_260, %c0_261], %393 {strides = array<i32>} : memref<1x16x16x128xf32, #tpu.memory_space<vmem>>, vector<1x16x16x128xf32>,
    return
  }
  func.func @transform_0(%arg0: i32) -> (i32, i32, i32, i32) {
    %c0_i32 = arith.constant 0 : i32
    %c0_i32_0 = arith.constant 0 : i32
    %c0_i32_1 = arith.constant 0 : i32
    %c0_i32_2 = arith.constant 0 : i32
    return %arg0, %c0_i32, %c0_i32_0, %c0_i32_1 : i32, i32, i32, i32
  }
  func.func @transform_1(%arg0: i32) -> (i32, i32) {
    %c0_i32 = arith.constant 0 : i32
    %c0_i32_0 = arith.constant 0 : i32
    %c0_i32_1 = arith.constant 0 : i32
    return %c0_i32, %c0_i32_0 : i32, i32
  }
  func.func @transform_2(%arg0: i32) -> (i32, i32) {
    %c0_i32 = arith.constant 0 : i32
    %c0_i32_0 = arith.constant 0 : i32
    %c0_i32_1 = arith.constant 0 : i32
    return %c0_i32, %c0_i32_0 : i32, i32
  }
  func.func @transform_3(%arg0: i32) -> (i32, i32) {
    %c0_i32 = arith.constant 0 : i32
    %c0_i32_0 = arith.constant 0 : i32
    %c0_i32_1 = arith.constant 0 : i32
    return %c0_i32, %c0_i32_0 : i32, i32
  }
  func.func @transform_4(%arg0: i32) -> (i32, i32) {
    %c0_i32 = arith.constant 0 : i32
    %c0_i32_0 = arith.constant 0 : i32
    %c0_i32_1 = arith.constant 0 : i32
    return %c0_i32, %c0_i32_0 : i32, i32
  }
  func.func @transform_5(%arg0: i32) -> (i32, i32) {
    %c0_i32 = arith.constant 0 : i32
    %c0_i32_0 = arith.constant 0 : i32
    %c0_i32_1 = arith.constant 0 : i32
    return %c0_i32, %c0_i32_0 : i32, i32
  }
  func.func @transform_6(%arg0: i32) -> (i32, i32, i32, i32) {
    %c0_i32 = arith.constant 0 : i32
    %c0_i32_0 = arith.constant 0 : i32
    %c0_i32_1 = arith.constant 0 : i32
    %c0_i32_2 = arith.constant 0 : i32
    return %arg0, %c0_i32, %c0_i32_0, %c0_i32_1 : i32, i32, i32, i32
  }
}

</mosaic_0001>

<llo_original>
// kernel: tpu_custom_call.1
$region0: #{tpu_custom_call.1}
  #allocation0 [shape = 'u32[]', space=smem, size = 0x4, offset = 0x4, fixed_abs, tag = 'smem constant byte address 0x4 - core index']
  #allocation1 [shape = 'u32[72,128]{1,0:T(1,128)}', space=vmem, size = 0x9000, scoped, tag = 'internal scratch']
  #allocation2 [shape = 'f32[22,22,128]{2,1,0:T(8,128)}', space=vmem, size = 0x42000, scoped, tag = 'scratch operand']
  %s0 = inlined_call_operand.hbm [shape: f32[2,16,16,128], index: 0, kind: input, shape index: {}]
  %s1 = inlined_call_operand.hbm [shape: f32[49,128], index: 1, kind: input, shape index: {}]
  %s2 = inlined_call_operand.hbm [shape: f32[5,128], index: 2, kind: input, shape index: {}]
  %s3 = inlined_call_operand.hbm [shape: bf16[128,128], index: 3, kind: input, shape index: {}]
  %s4 = inlined_call_operand.vmem [shape: f32[1,128], index: 4, kind: input, shape index: {}]
  %s5 = inlined_call_operand.hbm [shape: bf16[128,128], index: 5, kind: input, shape index: {}]
  %s6 = inlined_call_operand.hbm [shape: f32[2,16,16,128], index: 6, kind: output, shape index: {}]
  %s7 = sld [smem:[#allocation0]]
  $region77: #{tpu_custom_call.1} parent=0
    _
  %s9 = ssub.s32 1, %s7
  %s10 = scalar_select 0, %s9, %s7
  $region1: #{tpu_custom_call.1} parent=0
    #allocation3 [shape = 'u8[262144]{0}', space=vmem, size = 0x40000, scoped, tag = 'input window, operand 0']
    #allocation4 [shape = 's32[2]{0}', space=sflag, size = 0x8, scoped, tag = 'scoped memory for tpu_custom_call.1']
    #allocation5 [shape = 's32[2]{0}', space=sflag, size = 0x8, scoped, tag = 'scoped memory for tpu_custom_call.1']
    #allocation6 [shape = 'u8[28672]{0}', space=vmem, size = 0x7000, scoped, tag = 'input window, operand 1, single buffered']
    #allocation7 [shape = 's32[1]{0}', space=sflag, size = 0x4, scoped, tag = 'scoped memory for tpu_custom_call.1']
    #allocation8 [shape = 'u8[4096]{0}', space=vmem, size = 0x1000, scoped, tag = 'input window, operand 2, single buffered']
    #allocation9 [shape = 'u8[32768]{0}', space=vmem, size = 0x8000, scoped, tag = 'input window, operand 3, single buffered']
    #allocation10 [shape = 's32[1]{0}', space=sflag, size = 0x4, scoped, tag = 'scoped memory for tpu_custom_call.1']
    #allocation11 [shape = 'u8[32768]{0}', space=vmem, size = 0x8000, scoped, tag = 'input window, operand 5, single buffered']
    #allocation12 [shape = 'u8[262144]{0}', space=vmem, size = 0x40000, scoped, tag = 'output window, operand 0']
    %11 = vsyncpa [#allocation4], 0
    %s12 = scalar_lea.sflag [#allocation4], 1
    %13 = vsyncpa %s12, 0
    %14 = vsyncpa [#allocation7], 0
    %15 = vsyncpa [#allocation10], 0
    %16 = vsyncpa [#allocation5], 0
    %s17 = scalar_lea.sflag [#allocation5], 1
    %18 = vsyncpa %s17, 0
    loop: start=0, step=1, limit=4
    $region2: #{tpu_custom_call.1} parent=1 // loop_pre_header
      _
    $region3: #{tpu_custom_call.1} parent=1 // loop_header
      %s20 = sphi 0, %s24
      %p21 = scmp.ge.s32.totalorder %s20, 4
      %s30 = sphi 0, %s32
      %s33 = sphi 0, %s30
      %s34 = sphi 0, %s33
      %s50 = sphi 0, %s34
      %s54 = sphi 0, %s54
      %s56 = sphi 0, %s54
      %s57 = sphi 0, %s56
      %s71 = sphi 0, %s57
      %s75 = sphi 0, %s75
      %s77 = sphi 0, %s75
      %s78 = sphi 0, %s77
      %s92 = sphi 0, %s78
      %s96 = sphi 0, %s96
      %s98 = sphi 0, %s96
      %s99 = sphi 0, %s98
      %s113 = sphi 0, %s99
      %s117 = sphi 0, %s117
      %s119 = sphi 0, %s117
      %s120 = sphi 0, %s119
      %s134 = sphi 0, %s120
      %s138 = sphi 0, %s138
      %s140 = sphi 0, %s138
      %s141 = sphi 0, %s140
      %s155 = sphi 0, %s141
      %s161 = sphi 0, %s163
      %s164 = sphi 0, %s161
      %s165 = sphi 0, %s164
      %s181 = sphi 0, %s165
    $region4: #{tpu_custom_call.1} parent=1 // loop_header_branch
      %23 = sbr.rel (%p21) target = $region8
    $region5: #{tpu_custom_call.1} parent=1 // loop_body
      %s25 = ssub.s32 %s20, 1
      %s26 = ssub.s32 %s20, 2
      %s27 = sadd.s32 %s20, 1
      %s28 = ssub.s32 %s20, %s27
      %p29 = scmp.eq.s32.totalorder %s28, 0
      %s31 = sadd.s32 %s30, 1
      %s32 = scalar_select %p29, %s30, %s31
      %p35 = pneg %p29
      %p36 = scmp.eq.s32.totalorder %s20, 1
      %p37 = por %p35, %p36
      %p38 = scmp.ne.s32.totalorder %s30, %s33
      %p39 = scmp.eq.s32.totalorder %s20, 0
      %p40 = por %p38, %p39
      %p41 = scmp.ne.s32.totalorder %s30, %s33
      %p42 = scmp.eq.s32.totalorder %s25, 1
      %p43 = por %p41, %p42
      %p44 = scmp.ne.s32.totalorder %s33, %s34
      %p45 = scmp.eq.s32.totalorder %s25, 0
      %p46 = por %p44, %p45
      %p47 = scmp.ne.s32.totalorder %s33, %s34
      %p48 = scmp.eq.s32.totalorder %s26, 1
      %p49 = por %p47, %p48
      %p51 = scmp.ne.s32.totalorder %s34, %s50
      %p52 = scmp.eq.s32.totalorder %s26, 0
      %p53 = por %p51, %p52
      %s55 = sadd.s32 %s54, 1
      %p58 = scmp.eq.s32.totalorder %s20, 1
      %p59 = scmp.ne.s32.totalorder %s54, %s56
      %p60 = scmp.eq.s32.totalorder %s20, 0
      %p61 = por %p59, %p60
      %p62 = scmp.ne.s32.totalorder %s54, %s56
      %p63 = scmp.eq.s32.totalorder %s25, 1
      %p64 = por %p62, %p63
      %p65 = scmp.ne.s32.totalorder %s56, %s57
      %p66 = scmp.eq.s32.totalorder %s25, 0
      %p67 = por %p65, %p66
      %p68 = scmp.ne.s32.totalorder %s56, %s57
      %p69 = scmp.eq.s32.totalorder %s26, 1
      %p70 = por %p68, %p69
      %p72 = scmp.ne.s32.totalorder %s57, %s71
      %p73 = scmp.eq.s32.totalorder %s26, 0
      %p74 = por %p72, %p73
      %s76 = sadd.s32 %s75, 1
      %p79 = scmp.eq.s32.totalorder %s20, 1
      %p80 = scmp.ne.s32.totalorder %s75, %s77
      %p81 = scmp.eq.s32.totalorder %s20, 0
      %p82 = por %p80, %p81
      %p83 = scmp.ne.s32.totalorder %s75, %s77
      %p84 = scmp.eq.s32.totalorder %s25, 1
      %p85 = por %p83, %p84
      %p86 = scmp.ne.s32.totalorder %s77, %s78
      %p87 = scmp.eq.s32.totalorder %s25, 0
      %p88 = por %p86, %p87
      %p89 = scmp.ne.s32.totalorder %s77, %s78
      %p90 = scmp.eq.s32.totalorder %s26, 1
      %p91 = por %p89, %p90
      %p93 = scmp.ne.s32.totalorder %s78, %s92
      %p94 = scmp.eq.s32.totalorder %s26, 0
      %p95 = por %p93, %p94
      %s97 = sadd.s32 %s96, 1
      %p100 = scmp.eq.s32.totalorder %s20, 1
      %p101 = scmp.ne.s32.totalorder %s96, %s98
      %p102 = scmp.eq.s32.totalorder %s20, 0
      %p103 = por %p101, %p102
      %p104 = scmp.ne.s32.totalorder %s96, %s98
      %p105 = scmp.eq.s32.totalorder %s25, 1
      %p106 = por %p104, %p105
      %p107 = scmp.ne.s32.totalorder %s98, %s99
      %p108 = scmp.eq.s32.totalorder %s25, 0
      %p109 = por %p107, %p108
      %p110 = scmp.ne.s32.totalorder %s98, %s99
      %p111 = scmp.eq.s32.totalorder %s26, 1
      %p112 = por %p110, %p111
      %p114 = scmp.ne.s32.totalorder %s99, %s113
      %p115 = scmp.eq.s32.totalorder %s26, 0
      %p116 = por %p114, %p115
      %s118 = sadd.s32 %s117, 1
      %p121 = scmp.eq.s32.totalorder %s20, 1
      %p122 = scmp.ne.s32.totalorder %s117, %s119
      %p123 = scmp.eq.s32.totalorder %s20, 0
      %p124 = por %p122, %p123
      %p125 = scmp.ne.s32.totalorder %s117, %s119
      %p126 = scmp.eq.s32.totalorder %s25, 1
      %p127 = por %p125, %p126
      %p128 = scmp.ne.s32.totalorder %s119, %s120
      %p129 = scmp.eq.s32.totalorder %s25, 0
      %p130 = por %p128, %p129
      %p131 = scmp.ne.s32.totalorder %s119, %s120
      %p132 = scmp.eq.s32.totalorder %s26, 1
      %p133 = por %p131, %p132
      %p135 = scmp.ne.s32.totalorder %s120, %s134
      %p136 = scmp.eq.s32.totalorder %s26, 0
      %p137 = por %p135, %p136
      %s139 = sadd.s32 %s138, 1
      %p142 = scmp.eq.s32.totalorder %s20, 1
      %p143 = scmp.ne.s32.totalorder %s138, %s140
      %p144 = scmp.eq.s32.totalorder %s20, 0
      %p145 = por %p143, %p144
      %p146 = scmp.ne.s32.totalorder %s138, %s140
      %p147 = scmp.eq.s32.totalorder %s25, 1
      %p148 = por %p146, %p147
      %p149 = scmp.ne.s32.totalorder %s140, %s141
      %p150 = scmp.eq.s32.totalorder %s25, 0
      %p151 = por %p149, %p150
      %p152 = scmp.ne.s32.totalorder %s140, %s141
      %p153 = scmp.eq.s32.totalorder %s26, 1
      %p154 = por %p152, %p153
      %p156 = scmp.ne.s32.totalorder %s141, %s155
      %p157 = scmp.eq.s32.totalorder %s26, 0
      %p158 = por %p156, %p157
      %s159 = ssub.s32 %s20, %s27
      %p160 = scmp.eq.s32.totalorder %s159, 0
      %s162 = sadd.s32 %s161, 1
      %s163 = scalar_select %p160, %s161, %s162
      %p166 = pneg %p160
      %p167 = scmp.eq.s32.totalorder %s20, 1
      %p168 = por %p166, %p167
      %p169 = scmp.ne.s32.totalorder %s161, %s164
      %p170 = scmp.eq.s32.totalorder %s20, 0
      %p171 = por %p169, %p170
      %p172 = scmp.ne.s32.totalorder %s161, %s164
      %p173 = scmp.eq.s32.totalorder %s25, 1
      %p174 = por %p172, %p173
      %p175 = scmp.ne.s32.totalorder %s164, %s165
      %p176 = scmp.eq.s32.totalorder %s25, 0
      %p177 = por %p175, %p176
      %p178 = scmp.ne.s32.totalorder %s164, %s165
      %p179 = scmp.eq.s32.totalorder %s26, 1
      %p180 = por %p178, %p179
      %p182 = scmp.ne.s32.totalorder %s165, %s181
      %p183 = scmp.eq.s32.totalorder %s26, 0
      %p184 = por %p182, %p183
      %p185 = scmp.le.s32.totalorder 1, %s20
      %p186 = scmp.lt.s32.totalorder %s20, 3
      %p187 = pnand %p185, %p186
      %p188 = pneg %p187
      // Predicated region
      $region9: #{tpu_custom_call.1} parent=5 // pred_check
        _
      $region10: #{tpu_custom_call.1} parent=5 // pred_check_branch
        %190 = sbr.rel (%p187) target = $region12
      $region11: #{tpu_custom_call.1} parent=5 // pred_region
        %s191 = ssub.s32 %s20, 1
        // Predicated region
        $region13: #{tpu_custom_call.1} parent=11 // pred_check
          %p192 = pneg %p67
        $region14: #{tpu_custom_call.1} parent=11 // pred_check_branch
          %194 = sbr.rel (%p192) target = $region16
        $region15: #{tpu_custom_call.1} parent=11 // pred_region
          %196 = vsyncadd [#allocation7], 0
          %s197 = sshll.u32 %s1, 4
          %s198 = int_to_ptr.hbm [resolvable:$true] %s197
          %s199 = sshll.u32 [#allocation6], 4
          %s200 = int_to_ptr.vmem [resolvable:$true] %s199
          %205 = dma.hbm_to_vmem [thread:$0]  %s198, 896, %s200, [#allocation7], 128, 128, 8
        $region16: #{tpu_custom_call.1} parent=11 // pred_fallthru
          _
        // Predicated region
        $region17: #{tpu_custom_call.1} parent=11 // pred_check
          %p206 = pneg %p88
        $region18: #{tpu_custom_call.1} parent=11 // pred_check_branch
          %208 = sbr.rel (%p206) target = $region20
        $region19: #{tpu_custom_call.1} parent=11 // pred_region
          %210 = vsyncadd [#allocation7], 0
          %s212 = sshll.u32 %s2, 4
          %s213 = int_to_ptr.hbm [resolvable:$true] %s212
          %s214 = sshll.u32 [#allocation8], 4
          %s215 = int_to_ptr.vmem [resolvable:$true] %s214
          %217 = dma.hbm_to_vmem [thread:$0]  %s213, 128, %s215, [#allocation7]
        $region20: #{tpu_custom_call.1} parent=11 // pred_fallthru
          _
        // Predicated region
        $region21: #{tpu_custom_call.1} parent=11 // pred_check
          %p218 = pneg %p109
        $region22: #{tpu_custom_call.1} parent=11 // pred_check_branch
          %220 = sbr.rel (%p218) target = $region24
        $region23: #{tpu_custom_call.1} parent=11 // pred_region
          %222 = vsyncadd [#allocation10], 0
          %s223 = sshll.u32 %s3, 4
          %s224 = int_to_ptr.hbm [resolvable:$true] %s223
          %s225 = sshll.u32 [#allocation9], 4
          %s226 = int_to_ptr.vmem [resolvable:$true] %s225
          %231 = dma.hbm_to_vmem [thread:$0]  %s224, 1024, %s226, [#allocation10], 64, 64, 4
        $region24: #{tpu_custom_call.1} parent=11 // pred_fallthru
          _
        // Predicated region
        $region25: #{tpu_custom_call.1} parent=11 // pred_check
          %p232 = pneg %p130
        $region26: #{tpu_custom_call.1} parent=11 // pred_check_branch
          %234 = sbr.rel (%p232) target = $region28
        $region27: #{tpu_custom_call.1} parent=11 // pred_region
          _
        $region28: #{tpu_custom_call.1} parent=11 // pred_fallthru
          _
        // Predicated region
        $region29: #{tpu_custom_call.1} parent=11 // pred_check
          %p235 = pneg %p151
        $region30: #{tpu_custom_call.1} parent=11 // pred_check_branch
          %237 = sbr.rel (%p235) target = $region32
        $region31: #{tpu_custom_call.1} parent=11 // pred_region
          %239 = vsyncadd [#allocation10], 0
          %s240 = sshll.u32 %s5, 4
          %s241 = int_to_ptr.hbm [resolvable:$true] %s240
          %s242 = sshll.u32 [#allocation11], 4
          %s243 = int_to_ptr.vmem [resolvable:$true] %s242
          %248 = dma.hbm_to_vmem [thread:$0]  %s241, 1024, %s243, [#allocation10], 64, 64, 4
        $region32: #{tpu_custom_call.1} parent=11 // pred_fallthru
          _
      $region12: #{tpu_custom_call.1} parent=5 // pred_fallthru
        _
      %p249 = scmp.lt.s32.totalorder %s20, 2
      // Predicated region
      $region33: #{tpu_custom_call.1} parent=5 // pred_check
        %p250 = pneg %p249
      $region34: #{tpu_custom_call.1} parent=5 // pred_check_branch
        %252 = sbr.rel (%p250) target = $region36
      $region35: #{tpu_custom_call.1} parent=5 // pred_region
        // Predicated region
        $region37: #{tpu_custom_call.1} parent=35 // pred_check
          %p253 = pneg %p40
        $region38: #{tpu_custom_call.1} parent=35 // pred_check_branch
          %255 = sbr.rel (%p253) target = $region40
        $region39: #{tpu_custom_call.1} parent=35 // pred_region
          %s256 = sand.u32 %s30, 1
          %s257 = scalar_lea.sflag [#allocation4], %s256
          %s258 = sand.u32 %s30, 1
          %s259 = smul.addr %s258, 256
          %s260 = scalar_lea.vmem [#allocation3], %s259
          %262 = vsyncadd %s257, 0
          %s263 = smul.addr %s20, 32
          %s264 = smul.addr %s263, 8
          %s265 = scalar_lea.hbm %s0, %s264
          %s266 = sshll.u32 %s265, 4
          %s267 = int_to_ptr.hbm [resolvable:$true] %s266
          %s268 = sshll.u32 %s260, 4
          %s269 = int_to_ptr.vmem [resolvable:$true] %s268
          %274 = dma.hbm_to_vmem [thread:$0]  %s267, 4096, %s269, %s257, 128, 128, 8
        $region40: #{tpu_custom_call.1} parent=35 // pred_fallthru
          _
      $region36: #{tpu_custom_call.1} parent=5 // pred_fallthru
        _
      %p275 = scmp.le.s32.totalorder 1, %s20
      %p276 = scmp.lt.s32.totalorder %s20, 3
      %p277 = pnand %p275, %p276
      %p278 = pneg %p277
      // Predicated region
      $region41: #{tpu_custom_call.1} parent=5 // pred_check
        _
      $region42: #{tpu_custom_call.1} parent=5 // pred_check_branch
        %280 = sbr.rel (%p277) target = $region44
      $region43: #{tpu_custom_call.1} parent=5 // pred_region
        %s281 = ssub.s32 %s20, 1
        %s282 = sand.u32 %s33, 1
        %s283 = scalar_lea.sflag [#allocation4], %s282
        %s284 = sand.u32 %s33, 1
        %s285 = smul.addr %s284, 256
        %s286 = scalar_lea.vmem [#allocation3], %s285
        // Predicated region
        $region45: #{tpu_custom_call.1} parent=43 // pred_check
          %p287 = pneg %p46
        $region46: #{tpu_custom_call.1} parent=43 // pred_check_branch
          %289 = sbr.rel (%p287) target = $region48
        $region47: #{tpu_custom_call.1} parent=43 // pred_region
          %291 = dma.done %s283, 4096
        $region48: #{tpu_custom_call.1} parent=43 // pred_fallthru
          _
        // Predicated region
        $region49: #{tpu_custom_call.1} parent=43 // pred_check
          %p292 = pneg %p67
        $region50: #{tpu_custom_call.1} parent=43 // pred_check_branch
          %294 = sbr.rel (%p292) target = $region52
        $region51: #{tpu_custom_call.1} parent=43 // pred_region
          %296 = dma.done [#allocation7], 896
        $region52: #{tpu_custom_call.1} parent=43 // pred_fallthru
          _
        // Predicated region
        $region53: #{tpu_custom_call.1} parent=43 // pred_check
          %p297 = pneg %p88
        $region54: #{tpu_custom_call.1} parent=43 // pred_check_branch
          %299 = sbr.rel (%p297) target = $region56
        $region55: #{tpu_custom_call.1} parent=43 // pred_region
          %301 = dma.done [#allocation7], 128
        $region56: #{tpu_custom_call.1} parent=43 // pred_fallthru
          _
        // Predicated region
        $region57: #{tpu_custom_call.1} parent=43 // pred_check
          %p302 = pneg %p109
        $region58: #{tpu_custom_call.1} parent=43 // pred_check_branch
          %304 = sbr.rel (%p302) target = $region60
        $region59: #{tpu_custom_call.1} parent=43 // pred_region
          %306 = dma.done [#allocation10], 1024
        $region60: #{tpu_custom_call.1} parent=43 // pred_fallthru
          _
        // Predicated region
        $region61: #{tpu_custom_call.1} parent=43 // pred_check
          %p307 = pneg %p151
        $region62: #{tpu_custom_call.1} parent=43 // pred_check_branch
          %309 = sbr.rel (%p307) target = $region64
        $region63: #{tpu_custom_call.1} parent=43 // pred_region
          %311 = dma.done [#allocation10], 1024
        $region64: #{tpu_custom_call.1} parent=43 // pred_fallthru
          _
        %s312 = sand.u32 %s33, 1
        %s313 = scalar_lea.sflag [#allocation4], %s312
        %s314 = sand.u32 %s33, 1
        %s315 = smul.addr %s314, 256
        %s316 = scalar_lea.vmem [#allocation3], %s315
        %p317 = pneg %p46
        %p318 = pneg %p43
        %p319 = pneg %p67
        %p320 = pneg %p64
        %p321 = pneg %p88
        %p322 = pneg %p85
        %p323 = pneg %p109
        %p324 = pneg %p106
        %p325 = pneg %p130
        %p326 = pneg %p127
        %p327 = pneg %p151
        %p328 = pneg %p148
        %p329 = pneg %p177
        %p330 = pneg %p174
        %s331 = sand.u32 %s164, 1
        %s332 = scalar_lea.sflag [#allocation5], %s331
        %s333 = sand.u32 %s164, 1
        %s334 = smul.addr %s333, 256
        %s335 = scalar_lea.vmem [#allocation12], %s334
        %336 = vst [vmem:[#allocation2] sm:$0xff] 0.0
        %337 = vst [vmem:[#allocation2 + $0x8] sm:$0xff] 0.0
        %338 = vst [vmem:[#allocation2 + $0x10] sm:$0x3f] 0.0
        %339 = vst [vmem:[#allocation2 + $0x18] sm:$0xff] 0.0
        %340 = vst [vmem:[#allocation2 + $0x20] sm:$0xff] 0.0
        %341 = vst [vmem:[#allocation2 + $0x28] sm:$0x3f] 0.0
        %342 = vst [vmem:[#allocation2 + $0x30] sm:$0xff] 0.0
        %343 = vst [vmem:[#allocation2 + $0x38] sm:$0xff] 0.0
        %344 = vst [vmem:[#allocation2 + $0x40] sm:$0x3f] 0.0
        %s345 = scalar_lea.vmem [#allocation2], 456
        %346 = vst [vmem:[%s345] sm:$0xff] 0.0
        %347 = vst [vmem:[%s345 + $0x8] sm:$0xff] 0.0
        %348 = vst [vmem:[%s345 + $0x10] sm:$0x3f] 0.0
        %349 = vst [vmem:[%s345 + $0x18] sm:$0xff] 0.0
        %350 = vst [vmem:[%s345 + $0x20] sm:$0xff] 0.0
        %351 = vst [vmem:[%s345 + $0x28] sm:$0x3f] 0.0
        %352 = vst [vmem:[%s345 + $0x30] sm:$0xff] 0.0
        %353 = vst [vmem:[%s345 + $0x38] sm:$0xff] 0.0
        %354 = vst [vmem:[%s345 + $0x40] sm:$0x3f] 0.0
        %s355 = scalar_lea.vmem [#allocation2], 72
        %356 = vst [vmem:[%s355] sm:$0x7] 0.0
        %357 = vst [vmem:[%s355 + $0x18] sm:$0x7] 0.0
        %358 = vst [vmem:[%s355 + $0x30] sm:$0x7] 0.0
        %359 = vst [vmem:[%s355 + $0x48] sm:$0x7] 0.0
        %360 = vst [vmem:[%s355 + $0x60] sm:$0x7] 0.0
        %361 = vst [vmem:[%s355 + $0x78] sm:$0x7] 0.0
        %362 = vst [vmem:[%s355 + $0x90] sm:$0x7] 0.0
        %363 = vst [vmem:[%s355 + $0xa8] sm:$0x7] 0.0
        %364 = vst [vmem:[%s355 + $0xc0] sm:$0x7] 0.0
        %365 = vst [vmem:[%s355 + $0xd8] sm:$0x7] 0.0
        %366 = vst [vmem:[%s355 + $0xf0] sm:$0x7] 0.0
        %367 = vst [vmem:[%s355 + $0x108] sm:$0x7] 0.0
        %368 = vst [vmem:[%s355 + $0x120] sm:$0x7] 0.0
        %369 = vst [vmem:[%s355 + $0x138] sm:$0x7] 0.0
        %370 = vst [vmem:[%s355 + $0x150] sm:$0x7] 0.0
        %371 = vst [vmem:[%s355 + $0x168] sm:$0x7] 0.0
        %372 = vst [vmem:[%s355 + $0x13] sm:$0x7] 0.0
        %373 = vst [vmem:[%s355 + $0x2b] sm:$0x7] 0.0
        %374 = vst [vmem:[%s355 + $0x43] sm:$0x7] 0.0
        %375 = vst [vmem:[%s355 + $0x5b] sm:$0x7] 0.0
        %376 = vst [vmem:[%s355 + $0x73] sm:$0x7] 0.0
        %377 = vst [vmem:[%s355 + $0x8b] sm:$0x7] 0.0
        %378 = vst [vmem:[%s355 + $0xa3] sm:$0x7] 0.0
        %379 = vst [vmem:[%s355 + $0xbb] sm:$0x7] 0.0
        %380 = vst [vmem:[%s355 + $0xd3] sm:$0x7] 0.0
        %381 = vst [vmem:[%s355 + $0xeb] sm:$0x7] 0.0
        %382 = vst [vmem:[%s355 + $0x103] sm:$0x7] 0.0
        %383 = vst [vmem:[%s355 + $0x11b] sm:$0x7] 0.0
        %384 = vst [vmem:[%s355 + $0x133] sm:$0x7] 0.0
        %385 = vst [vmem:[%s355 + $0x14b] sm:$0x7] 0.0
        %386 = vst [vmem:[%s355 + $0x163] sm:$0x7] 0.0
        %387 = vst [vmem:[%s355 + $0x17b] sm:$0x7] 0.0
        %v388 = vld [vmem:[%s286] sm:$0xff]
        %v389 = vld [vmem:[%s286 + $0x8] sm:$0xff]
        %v390 = vld [vmem:[%s286 + $0x10] sm:$0xff]
        %v391 = vld [vmem:[%s286 + $0x18] sm:$0xff]
        %v392 = vld [vmem:[%s286 + $0x20] sm:$0xff]
        %v393 = vld [vmem:[%s286 + $0x28] sm:$0xff]
        %v394 = vld [vmem:[%s286 + $0x30] sm:$0xff]
        %v395 = vld [vmem:[%s286 + $0x38] sm:$0xff]
        %v396 = vld [vmem:[%s286 + $0x40] sm:$0xff]
        %v397 = vld [vmem:[%s286 + $0x48] sm:$0xff]
        %v398 = vld [vmem:[%s286 + $0x50] sm:$0xff]
        %v399 = vld [vmem:[%s286 + $0x58] sm:$0xff]
        %v400 = vld [vmem:[%s286 + $0x60] sm:$0xff]
        %v401 = vld [vmem:[%s286 + $0x68] sm:$0xff]
        %v402 = vld [vmem:[%s286 + $0x70] sm:$0xff]
        %v403 = vld [vmem:[%s286 + $0x78] sm:$0xff]
        %v404 = vld [vmem:[%s286 + $0x80] sm:$0xff]
        %v405 = vld [vmem:[%s286 + $0x88] sm:$0xff]
        %v406 = vld [vmem:[%s286 + $0x90] sm:$0xff]
        %v407 = vld [vmem:[%s286 + $0x98] sm:$0xff]
        %v408 = vld [vmem:[%s286 + $0xa0] sm:$0xff]
        %v409 = vld [vmem:[%s286 + $0xa8] sm:$0xff]
        %v410 = vld [vmem:[%s286 + $0xb0] sm:$0xff]
        %v411 = vld [vmem:[%s286 + $0xb8] sm:$0xff]
        %v412 = vld [vmem:[%s286 + $0xc0] sm:$0xff]
        %v413 = vld [vmem:[%s286 + $0xc8] sm:$0xff]
        %v414 = vld [vmem:[%s286 + $0xd0] sm:$0xff]
        %v415 = vld [vmem:[%s286 + $0xd8] sm:$0xff]
        %v416 = vld [vmem:[%s286 + $0xe0] sm:$0xff]
        %v417 = vld [vmem:[%s286 + $0xe8] sm:$0xff]
        %v418 = vld [vmem:[%s286 + $0xf0] sm:$0xff]
        %v419 = vld [vmem:[%s286 + $0xf8] sm:$0xff]
        %420 = vst [vmem:[%s355 + $0x3] sm:$0xff] %v388
        %421 = vst [vmem:[%s355 + $0xb] sm:$0xff] %v389
        %422 = vst [vmem:[%s355 + $0x1b] sm:$0xff] %v390
        %423 = vst [vmem:[%s355 + $0x23] sm:$0xff] %v391
        %424 = vst [vmem:[%s355 + $0x33] sm:$0xff] %v392
        %425 = vst [vmem:[%s355 + $0x3b] sm:$0xff] %v393
        %426 = vst [vmem:[%s355 + $0x4b] sm:$0xff] %v394
        %427 = vst [vmem:[%s355 + $0x53] sm:$0xff] %v395
        %428 = vst [vmem:[%s355 + $0x63] sm:$0xff] %v396
        %429 = vst [vmem:[%s355 + $0x6b] sm:$0xff] %v397
        %430 = vst [vmem:[%s355 + $0x7b] sm:$0xff] %v398
        %431 = vst [vmem:[%s355 + $0x83] sm:$0xff] %v399
        %432 = vst [vmem:[%s355 + $0x93] sm:$0xff] %v400
        %433 = vst [vmem:[%s355 + $0x9b] sm:$0xff] %v401
        %434 = vst [vmem:[%s355 + $0xab] sm:$0xff] %v402
        %435 = vst [vmem:[%s355 + $0xb3] sm:$0xff] %v403
        %436 = vst [vmem:[%s355 + $0xc3] sm:$0xff] %v404
        %437 = vst [vmem:[%s355 + $0xcb] sm:$0xff] %v405
        %438 = vst [vmem:[%s355 + $0xdb] sm:$0xff] %v406
        %439 = vst [vmem:[%s355 + $0xe3] sm:$0xff] %v407
        %440 = vst [vmem:[%s355 + $0xf3] sm:$0xff] %v408
        %441 = vst [vmem:[%s355 + $0xfb] sm:$0xff] %v409
        %442 = vst [vmem:[%s355 + $0x10b] sm:$0xff] %v410
        %443 = vst [vmem:[%s355 + $0x113] sm:$0xff] %v411
        %444 = vst [vmem:[%s355 + $0x123] sm:$0xff] %v412
        %445 = vst [vmem:[%s355 + $0x12b] sm:$0xff] %v413
        %446 = vst [vmem:[%s355 + $0x13b] sm:$0xff] %v414
        %447 = vst [vmem:[%s355 + $0x143] sm:$0xff] %v415
        %448 = vst [vmem:[%s355 + $0x153] sm:$0xff] %v416
        %449 = vst [vmem:[%s355 + $0x15b] sm:$0xff] %v417
        %450 = vst [vmem:[%s355 + $0x16b] sm:$0xff] %v418
        %451 = vst [vmem:[%s355 + $0x173] sm:$0xff] %v419
        %v452 = vld [vmem:[#allocation2] sm:$0xff]
        %v453 = vld [vmem:[#allocation2 + $0x8] sm:$0xff]
        %v454 = vld [vmem:[#allocation2 + $0x18] sm:$0xff]
        %v455 = vld [vmem:[#allocation2 + $0x20] sm:$0xff]
        %v456 = vld [vmem:[#allocation2 + $0x30] sm:$0xff]
        %v457 = vld [vmem:[#allocation2 + $0x38] sm:$0xff]
        %v458 = vld [vmem:[#allocation2 + $0x48] sm:$0xff]
        %v459 = vld [vmem:[#allocation2 + $0x50] sm:$0xff]
        %v460 = vld [vmem:[#allocation2 + $0x60] sm:$0xff]
        %v461 = vld [vmem:[#allocation2 + $0x68] sm:$0xff]
        %v462 = vld [vmem:[#allocation2 + $0x78] sm:$0xff]
        %v463 = vld [vmem:[#allocation2 + $0x80] sm:$0xff]
        %v464 = vld [vmem:[#allocation2 + $0x90] sm:$0xff]
        %v465 = vld [vmem:[#allocation2 + $0x98] sm:$0xff]
        %v466 = vld [vmem:[#allocation2 + $0xa8] sm:$0xff]
        %v467 = vld [vmem:[#allocation2 + $0xb0] sm:$0xff]
        %v468 = vld [vmem:[#allocation2 + $0xc0] sm:$0xff]
        %v469 = vld [vmem:[#allocation2 + $0xc8] sm:$0xff]
        %v470 = vld [vmem:[#allocation2 + $0xd8] sm:$0xff]
        %v471 = vld [vmem:[#allocation2 + $0xe0] sm:$0xff]
        %v472 = vld [vmem:[#allocation2 + $0xf0] sm:$0xff]
        %v473 = vld [vmem:[#allocation2 + $0xf8] sm:$0xff]
        %v474 = vld [vmem:[#allocation2 + $0x108] sm:$0xff]
        %v475 = vld [vmem:[#allocation2 + $0x110] sm:$0xff]
        %v476 = vld [vmem:[#allocation2 + $0x120] sm:$0xff]
        %v477 = vld [vmem:[#allocation2 + $0x128] sm:$0xff]
        %v478 = vld [vmem:[#allocation2 + $0x138] sm:$0xff]
        %v479 = vld [vmem:[#allocation2 + $0x140] sm:$0xff]
        %v480 = vld [vmem:[#allocation2 + $0x150] sm:$0xff]
        %v481 = vld [vmem:[#allocation2 + $0x158] sm:$0xff]
        %v482 = vld [vmem:[#allocation2 + $0x168] sm:$0xff]
        %v483 = vld [vmem:[#allocation2 + $0x170] sm:$0xff]
        %v484 = vld [vmem:[#allocation6] sm:$0x1]
        %v485 = vperm.slane %v484, 0
        %v486 = vmul.f32 %v452, %v485
        %v487 = vmul.f32 %v453, %v485
        %v488 = vmul.f32 %v454, %v485
        %v489 = vmul.f32 %v455, %v485
        %v490 = vmul.f32 %v456, %v485
        %v491 = vmul.f32 %v457, %v485
        %v492 = vmul.f32 %v458, %v485
        %v493 = vmul.f32 %v459, %v485
        %v494 = vmul.f32 %v460, %v485
        %v495 = vmul.f32 %v461, %v485
        %v496 = vmul.f32 %v462, %v485
        %v497 = vmul.f32 %v463, %v485
        %v498 = vmul.f32 %v464, %v485
        %v499 = vmul.f32 %v465, %v485
        %v500 = vmul.f32 %v466, %v485
        %v501 = vmul.f32 %v467, %v485
        %v502 = vmul.f32 %v468, %v485
        %v503 = vmul.f32 %v469, %v485
        %v504 = vmul.f32 %v470, %v485
        %v505 = vmul.f32 %v471, %v485
        %v506 = vmul.f32 %v472, %v485
        %v507 = vmul.f32 %v473, %v485
        %v508 = vmul.f32 %v474, %v485
        %v509 = vmul.f32 %v475, %v485
        %v510 = vmul.f32 %v476, %v485
        %v511 = vmul.f32 %v477, %v485
        %v512 = vmul.f32 %v478, %v485
        %v513 = vmul.f32 %v479, %v485
        %v514 = vmul.f32 %v480, %v485
        %v515 = vmul.f32 %v481, %v485
        %v516 = vmul.f32 %v482, %v485
        %v517 = vmul.f32 %v483, %v485
        %v518 = vld [vmem:[#allocation2 + $0x1] sm:$0xff]
        %v519 = vld [vmem:[#allocation2 + $0x9] sm:$0xff]
        %v520 = vld [vmem:[#allocation2 + $0x19] sm:$0xff]
        %v521 = vld [vmem:[#allocation2 + $0x21] sm:$0xff]
        %v522 = vld [vmem:[#allocation2 + $0x31] sm:$0xff]
        %v523 = vld [vmem:[#allocation2 + $0x39] sm:$0xff]
        %v524 = vld [vmem:[#allocation2 + $0x49] sm:$0xff]
        %v525 = vld [vmem:[#allocation2 + $0x51] sm:$0xff]
        %v526 = vld [vmem:[#allocation2 + $0x61] sm:$0xff]
        %v527 = vld [vmem:[#allocation2 + $0x69] sm:$0xff]
        %v528 = vld [vmem:[#allocation2 + $0x79] sm:$0xff]
        %v529 = vld [vmem:[#allocation2 + $0x81] sm:$0xff]
        %v530 = vld [vmem:[#allocation2 + $0x91] sm:$0xff]
        %v531 = vld [vmem:[#allocation2 + $0x99] sm:$0xff]
        %v532 = vld [vmem:[#allocation2 + $0xa9] sm:$0xff]
        %v533 = vld [vmem:[#allocation2 + $0xb1] sm:$0xff]
        %v534 = vld [vmem:[#allocation2 + $0xc1] sm:$0xff]
        %v535 = vld [vmem:[#allocation2 + $0xc9] sm:$0xff]
        %v536 = vld [vmem:[#allocation2 + $0xd9] sm:$0xff]
        %v537 = vld [vmem:[#allocation2 + $0xe1] sm:$0xff]
        %v538 = vld [vmem:[#allocation2 + $0xf1] sm:$0xff]
        %v539 = vld [vmem:[#allocation2 + $0xf9] sm:$0xff]
        %v540 = vld [vmem:[#allocation2 + $0x109] sm:$0xff]
        %v541 = vld [vmem:[#allocation2 + $0x111] sm:$0xff]
        %v542 = vld [vmem:[#allocation2 + $0x121] sm:$0xff]
        %v543 = vld [vmem:[#allocation2 + $0x129] sm:$0xff]
        %v544 = vld [vmem:[#allocation2 + $0x139] sm:$0xff]
        %v545 = vld [vmem:[#allocation2 + $0x141] sm:$0xff]
        %v546 = vld [vmem:[#allocation2 + $0x151] sm:$0xff]
        %v547 = vld [vmem:[#allocation2 + $0x159] sm:$0xff]
        %v548 = vld [vmem:[#allocation2 + $0x169] sm:$0xff]
        %v549 = vld [vmem:[#allocation2 + $0x171] sm:$0xff]
        %v550 = vld [vmem:[#allocation6 + $0x1] sm:$0x1]
        %v551 = vperm.slane %v550, 0
        %v552 = vmul.f32 %v518, %v551
        %v553 = vmul.f32 %v519, %v551
        %v554 = vmul.f32 %v520, %v551
        %v555 = vmul.f32 %v521, %v551
        %v556 = vmul.f32 %v522, %v551
        %v557 = vmul.f32 %v523, %v551
        %v558 = vmul.f32 %v524, %v551
        %v559 = vmul.f32 %v525, %v551
        %v560 = vmul.f32 %v526, %v551
        %v561 = vmul.f32 %v527, %v551
        %v562 = vmul.f32 %v528, %v551
        %v563 = vmul.f32 %v529, %v551
        %v564 = vmul.f32 %v530, %v551
        %v565 = vmul.f32 %v531, %v551
        %v566 = vmul.f32 %v532, %v551
        %v567 = vmul.f32 %v533, %v551
        %v568 = vmul.f32 %v534, %v551
        %v569 = vmul.f32 %v535, %v551
        %v570 = vmul.f32 %v536, %v551
        %v571 = vmul.f32 %v537, %v551
        %v572 = vmul.f32 %v538, %v551
        %v573 = vmul.f32 %v539, %v551
        %v574 = vmul.f32 %v540, %v551
        %v575 = vmul.f32 %v541, %v551
        %v576 = vmul.f32 %v542, %v551
        %v577 = vmul.f32 %v543, %v551
        %v578 = vmul.f32 %v544, %v551
        %v579 = vmul.f32 %v545, %v551
        %v580 = vmul.f32 %v546, %v551
        %v581 = vmul.f32 %v547, %v551
        %v582 = vmul.f32 %v548, %v551
        %v583 = vmul.f32 %v549, %v551
        %v584 = vadd.f32 %v486, %v552
        %v585 = vadd.f32 %v487, %v553
        %v586 = vadd.f32 %v488, %v554
        %v587 = vadd.f32 %v489, %v555
        %v588 = vadd.f32 %v490, %v556
        %v589 = vadd.f32 %v491, %v557
        %v590 = vadd.f32 %v492, %v558
        %v591 = vadd.f32 %v493, %v559
        %v592 = vadd.f32 %v494, %v560
        %v593 = vadd.f32 %v495, %v561
        %v594 = vadd.f32 %v496, %v562
        %v595 = vadd.f32 %v497, %v563
        %v596 = vadd.f32 %v498, %v564
        %v597 = vadd.f32 %v499, %v565
        %v598 = vadd.f32 %v500, %v566
        %v599 = vadd.f32 %v501, %v567
        %v600 = vadd.f32 %v502, %v568
        %v601 = vadd.f32 %v503, %v569
        %v602 = vadd.f32 %v504, %v570
        %v603 = vadd.f32 %v505, %v571
        %v604 = vadd.f32 %v506, %v572
        %v605 = vadd.f32 %v507, %v573
        %v606 = vadd.f32 %v508, %v574
        %v607 = vadd.f32 %v509, %v575
        %v608 = vadd.f32 %v510, %v576
        %v609 = vadd.f32 %v511, %v577
        %v610 = vadd.f32 %v512, %v578
        %v611 = vadd.f32 %v513, %v579
        %v612 = vadd.f32 %v514, %v580
        %v613 = vadd.f32 %v515, %v581
        %v614 = vadd.f32 %v516, %v582
        %v615 = vadd.f32 %v517, %v583
        %v616 = vld [vmem:[#allocation2 + $0x2] sm:$0xff]
        %v617 = vld [vmem:[#allocation2 + $0xa] sm:$0xff]
        %v618 = vld [vmem:[#allocation2 + $0x1a] sm:$0xff]
        %v619 = vld [vmem:[#allocation2 + $0x22] sm:$0xff]
        %v620 = vld [vmem:[#allocation2 + $0x32] sm:$0xff]
        %v621 = vld [vmem:[#allocation2 + $0x3a] sm:$0xff]
        %v622 = vld [vmem:[#allocation2 + $0x4a] sm:$0xff]
        %v623 = vld [vmem:[#allocation2 + $0x52] sm:$0xff]
        %v624 = vld [vmem:[#allocation2 + $0x62] sm:$0xff]
        %v625 = vld [vmem:[#allocation2 + $0x6a] sm:$0xff]
        %v626 = vld [vmem:[#allocation2 + $0x7a] sm:$0xff]
        %v627 = vld [vmem:[#allocation2 + $0x82] sm:$0xff]
        %v628 = vld [vmem:[#allocation2 + $0x92] sm:$0xff]
        %v629 = vld [vmem:[#allocation2 + $0x9a] sm:$0xff]
        %v630 = vld [vmem:[#allocation2 + $0xaa] sm:$0xff]
        %v631 = vld [vmem:[#allocation2 + $0xb2] sm:$0xff]
        %v632 = vld [vmem:[#allocation2 + $0xc2] sm:$0xff]
        %v633 = vld [vmem:[#allocation2 + $0xca] sm:$0xff]
        %v634 = vld [vmem:[#allocation2 + $0xda] sm:$0xff]
        %v635 = vld [vmem:[#allocation2 + $0xe2] sm:$0xff]
        %v636 = vld [vmem:[#allocation2 + $0xf2] sm:$0xff]
        %v637 = vld [vmem:[#allocation2 + $0xfa] sm:$0xff]
        %v638 = vld [vmem:[#allocation2 + $0x10a] sm:$0xff]
        %v639 = vld [vmem:[#allocation2 + $0x112] sm:$0xff]
        %v640 = vld [vmem:[#allocation2 + $0x122] sm:$0xff]
        %v641 = vld [vmem:[#allocation2 + $0x12a] sm:$0xff]
        %v642 = vld [vmem:[#allocation2 + $0x13a] sm:$0xff]
        %v643 = vld [vmem:[#allocation2 + $0x142] sm:$0xff]
        %v644 = vld [vmem:[#allocation2 + $0x152] sm:$0xff]
        %v645 = vld [vmem:[#allocation2 + $0x15a] sm:$0xff]
        %v646 = vld [vmem:[#allocation2 + $0x16a] sm:$0xff]
        %v647 = vld [vmem:[#allocation2 + $0x172] sm:$0xff]
        %v648 = vld [vmem:[#allocation6 + $0x2] sm:$0x1]
        %v649 = vperm.slane %v648, 0
        %v650 = vmul.f32 %v616, %v649
        %v651 = vmul.f32 %v617, %v649
        %v652 = vmul.f32 %v618, %v649
        %v653 = vmul.f32 %v619, %v649
        %v654 = vmul.f32 %v620, %v649
        %v655 = vmul.f32 %v621, %v649
        %v656 = vmul.f32 %v622, %v649
        %v657 = vmul.f32 %v623, %v649
        %v658 = vmul.f32 %v624, %v649
        %v659 = vmul.f32 %v625, %v649
        %v660 = vmul.f32 %v626, %v649
        %v661 = vmul.f32 %v627, %v649
        %v662 = vmul.f32 %v628, %v649
        %v663 = vmul.f32 %v629, %v649
        %v664 = vmul.f32 %v630, %v649
        %v665 = vmul.f32 %v631, %v649
        %v666 = vmul.f32 %v632, %v649
        %v667 = vmul.f32 %v633, %v649
        %v668 = vmul.f32 %v634, %v649
        %v669 = vmul.f32 %v635, %v649
        %v670 = vmul.f32 %v636, %v649
        %v671 = vmul.f32 %v637, %v649
        %v672 = vmul.f32 %v638, %v649
        %v673 = vmul.f32 %v639, %v649
        %v674 = vmul.f32 %v640, %v649
        %v675 = vmul.f32 %v641, %v649
        %v676 = vmul.f32 %v642, %v649
        %v677 = vmul.f32 %v643, %v649
        %v678 = vmul.f32 %v644, %v649
        %v679 = vmul.f32 %v645, %v649
        %v680 = vmul.f32 %v646, %v649
        %v681 = vmul.f32 %v647, %v649
        %v682 = vadd.f32 %v584, %v650
        %v683 = vadd.f32 %v585, %v651
        %v684 = vadd.f32 %v586, %v652
        %v685 = vadd.f32 %v587, %v653
        %v686 = vadd.f32 %v588, %v654
        %v687 = vadd.f32 %v589, %v655
        %v688 = vadd.f32 %v590, %v656
        %v689 = vadd.f32 %v591, %v657
        %v690 = vadd.f32 %v592, %v658
        %v691 = vadd.f32 %v593, %v659
        %v692 = vadd.f32 %v594, %v660
        %v693 = vadd.f32 %v595, %v661
        %v694 = vadd.f32 %v596, %v662
        %v695 = vadd.f32 %v597, %v663
        %v696 = vadd.f32 %v598, %v664
        %v697 = vadd.f32 %v599, %v665
        %v698 = vadd.f32 %v600, %v666
        %v699 = vadd.f32 %v601, %v667
        %v700 = vadd.f32 %v602, %v668
        %v701 = vadd.f32 %v603, %v669
        %v702 = vadd.f32 %v604, %v670
        %v703 = vadd.f32 %v605, %v671
        %v704 = vadd.f32 %v606, %v672
        %v705 = vadd.f32 %v607, %v673
        %v706 = vadd.f32 %v608, %v674
        %v707 = vadd.f32 %v609, %v675
        %v708 = vadd.f32 %v610, %v676
        %v709 = vadd.f32 %v611, %v677
        %v710 = vadd.f32 %v612, %v678
        %v711 = vadd.f32 %v613, %v679
        %v712 = vadd.f32 %v614, %v680
        %v713 = vadd.f32 %v615, %v681
        %v714 = vld [vmem:[#allocation2 + $0x3] sm:$0xff]
        %v715 = vld [vmem:[#allocation2 + $0xb] sm:$0xff]
        %v716 = vld [vmem:[#allocation2 + $0x1b] sm:$0xff]
        %v717 = vld [vmem:[#allocation2 + $0x23] sm:$0xff]
        %v718 = vld [vmem:[#allocation2 + $0x33] sm:$0xff]
        %v719 = vld [vmem:[#allocation2 + $0x3b] sm:$0xff]
        %v720 = vld [vmem:[#allocation2 + $0x4b] sm:$0xff]
        %v721 = vld [vmem:[#allocation2 + $0x53] sm:$0xff]
        %v722 = vld [vmem:[#allocation2 + $0x63] sm:$0xff]
        %v723 = vld [vmem:[#allocation2 + $0x6b] sm:$0xff]
        %v724 = vld [vmem:[#allocation2 + $0x7b] sm:$0xff]
        %v725 = vld [vmem:[#allocation2 + $0x83] sm:$0xff]
        %v726 = vld [vmem:[#allocation2 + $0x93] sm:$0xff]
        %v727 = vld [vmem:[#allocation2 + $0x9b] sm:$0xff]
        %v728 = vld [vmem:[#allocation2 + $0xab] sm:$0xff]
        %v729 = vld [vmem:[#allocation2 + $0xb3] sm:$0xff]
        %v730 = vld [vmem:[#allocation2 + $0xc3] sm:$0xff]
        %v731 = vld [vmem:[#allocation2 + $0xcb] sm:$0xff]
        %v732 = vld [vmem:[#allocation2 + $0xdb] sm:$0xff]
        %v733 = vld [vmem:[#allocation2 + $0xe3] sm:$0xff]
        %v734 = vld [vmem:[#allocation2 + $0xf3] sm:$0xff]
        %v735 = vld [vmem:[#allocation2 + $0xfb] sm:$0xff]
        %v736 = vld [vmem:[#allocation2 + $0x10b] sm:$0xff]
        %v737 = vld [vmem:[#allocation2 + $0x113] sm:$0xff]
        %v738 = vld [vmem:[#allocation2 + $0x123] sm:$0xff]
        %v739 = vld [vmem:[#allocation2 + $0x12b] sm:$0xff]
        %v740 = vld [vmem:[#allocation2 + $0x13b] sm:$0xff]
        %v741 = vld [vmem:[#allocation2 + $0x143] sm:$0xff]
        %v742 = vld [vmem:[#allocation2 + $0x153] sm:$0xff]
        %v743 = vld [vmem:[#allocation2 + $0x15b] sm:$0xff]
        %v744 = vld [vmem:[#allocation2 + $0x16b] sm:$0xff]
        %v745 = vld [vmem:[#allocation2 + $0x173] sm:$0xff]
        %v746 = vld [vmem:[#allocation6 + $0x3] sm:$0x1]
        %v747 = vperm.slane %v746, 0
        %v748 = vmul.f32 %v714, %v747
        %v749 = vmul.f32 %v715, %v747
        %v750 = vmul.f32 %v716, %v747
        %v751 = vmul.f32 %v717, %v747
        %v752 = vmul.f32 %v718, %v747
        %v753 = vmul.f32 %v719, %v747
        %v754 = vmul.f32 %v720, %v747
        %v755 = vmul.f32 %v721, %v747
        %v756 = vmul.f32 %v722, %v747
        %v757 = vmul.f32 %v723, %v747
        %v758 = vmul.f32 %v724, %v747
        %v759 = vmul.f32 %v725, %v747
        %v760 = vmul.f32 %v726, %v747
        %v761 = vmul.f32 %v727, %v747
        %v762 = vmul.f32 %v728, %v747
        %v763 = vmul.f32 %v729, %v747
        %v764 = vmul.f32 %v730, %v747
        %v765 = vmul.f32 %v731, %v747
        %v766 = vmul.f32 %v732, %v747
        %v767 = vmul.f32 %v733, %v747
        %v768 = vmul.f32 %v734, %v747
        %v769 = vmul.f32 %v735, %v747
        %v770 = vmul.f32 %v736, %v747
        %v771 = vmul.f32 %v737, %v747
        %v772 = vmul.f32 %v738, %v747
        %v773 = vmul.f32 %v739, %v747
        %v774 = vmul.f32 %v740, %v747
        %v775 = vmul.f32 %v741, %v747
        %v776 = vmul.f32 %v742, %v747
        %v777 = vmul.f32 %v743, %v747
        %v778 = vmul.f32 %v744, %v747
        %v779 = vmul.f32 %v745, %v747
        %v780 = vadd.f32 %v682, %v748
        %v781 = vadd.f32 %v683, %v749
        %v782 = vadd.f32 %v684, %v750
        %v783 = vadd.f32 %v685, %v751
        %v784 = vadd.f32 %v686, %v752
        %v785 = vadd.f32 %v687, %v753
        %v786 = vadd.f32 %v688, %v754
        %v787 = vadd.f32 %v689, %v755
        %v788 = vadd.f32 %v690, %v756
        %v789 = vadd.f32 %v691, %v757
        %v790 = vadd.f32 %v692, %v758
        %v791 = vadd.f32 %v693, %v759
        %v792 = vadd.f32 %v694, %v760
        %v793 = vadd.f32 %v695, %v761
        %v794 = vadd.f32 %v696, %v762
        %v795 = vadd.f32 %v697, %v763
        %v796 = vadd.f32 %v698, %v764
        %v797 = vadd.f32 %v699, %v765
        %v798 = vadd.f32 %v700, %v766
        %v799 = vadd.f32 %v701, %v767
        %v800 = vadd.f32 %v702, %v768
        %v801 = vadd.f32 %v703, %v769
        %v802 = vadd.f32 %v704, %v770
        %v803 = vadd.f32 %v705, %v771
        %v804 = vadd.f32 %v706, %v772
        %v805 = vadd.f32 %v707, %v773
        %v806 = vadd.f32 %v708, %v774
        %v807 = vadd.f32 %v709, %v775
        %v808 = vadd.f32 %v710, %v776
        %v809 = vadd.f32 %v711, %v777
        %v810 = vadd.f32 %v712, %v778
        %v811 = vadd.f32 %v713, %v779
        %v812 = vld [vmem:[#allocation2 + $0x4] sm:$0xff]
        %v813 = vld [vmem:[#allocation2 + $0xc] sm:$0xff]
        %v814 = vld [vmem:[#allocation2 + $0x1c] sm:$0xff]
        %v815 = vld [vmem:[#allocation2 + $0x24] sm:$0xff]
        %v816 = vld [vmem:[#allocation2 + $0x34] sm:$0xff]
        %v817 = vld [vmem:[#allocation2 + $0x3c] sm:$0xff]
        %v818 = vld [vmem:[#allocation2 + $0x4c] sm:$0xff]
        %v819 = vld [vmem:[#allocation2 + $0x54] sm:$0xff]
        %v820 = vld [vmem:[#allocation2 + $0x64] sm:$0xff]
        %v821 = vld [vmem:[#allocation2 + $0x6c] sm:$0xff]
        %v822 = vld [vmem:[#allocation2 + $0x7c] sm:$0xff]
        %v823 = vld [vmem:[#allocation2 + $0x84] sm:$0xff]
        %v824 = vld [vmem:[#allocation2 + $0x94] sm:$0xff]
        %v825 = vld [vmem:[#allocation2 + $0x9c] sm:$0xff]
        %v826 = vld [vmem:[#allocation2 + $0xac] sm:$0xff]
        %v827 = vld [vmem:[#allocation2 + $0xb4] sm:$0xff]
        %v828 = vld [vmem:[#allocation2 + $0xc4] sm:$0xff]
        %v829 = vld [vmem:[#allocation2 + $0xcc] sm:$0xff]
        %v830 = vld [vmem:[#allocation2 + $0xdc] sm:$0xff]
        %v831 = vld [vmem:[#allocation2 + $0xe4] sm:$0xff]
        %v832 = vld [vmem:[#allocation2 + $0xf4] sm:$0xff]
        %v833 = vld [vmem:[#allocation2 + $0xfc] sm:$0xff]
        %v834 = vld [vmem:[#allocation2 + $0x10c] sm:$0xff]
        %v835 = vld [vmem:[#allocation2 + $0x114] sm:$0xff]
        %v836 = vld [vmem:[#allocation2 + $0x124] sm:$0xff]
        %v837 = vld [vmem:[#allocation2 + $0x12c] sm:$0xff]
        %v838 = vld [vmem:[#allocation2 + $0x13c] sm:$0xff]
        %v839 = vld [vmem:[#allocation2 + $0x144] sm:$0xff]
        %v840 = vld [vmem:[#allocation2 + $0x154] sm:$0xff]
        %v841 = vld [vmem:[#allocation2 + $0x15c] sm:$0xff]
        %v842 = vld [vmem:[#allocation2 + $0x16c] sm:$0xff]
        %v843 = vld [vmem:[#allocation2 + $0x174] sm:$0xff]
        %v844 = vld [vmem:[#allocation6 + $0x4] sm:$0x1]
        %v845 = vperm.slane %v844, 0
        %v846 = vmul.f32 %v812, %v845
        %v847 = vmul.f32 %v813, %v845
        %v848 = vmul.f32 %v814, %v845
        %v849 = vmul.f32 %v815, %v845
        %v850 = vmul.f32 %v816, %v845
        %v851 = vmul.f32 %v817, %v845
        %v852 = vmul.f32 %v818, %v845
        %v853 = vmul.f32 %v819, %v845
        %v854 = vmul.f32 %v820, %v845
        %v855 = vmul.f32 %v821, %v845
        %v856 = vmul.f32 %v822, %v845
        %v857 = vmul.f32 %v823, %v845
        %v858 = vmul.f32 %v824, %v845
        %v859 = vmul.f32 %v825, %v845
        %v860 = vmul.f32 %v826, %v845
        %v861 = vmul.f32 %v827, %v845
        %v862 = vmul.f32 %v828, %v845
        %v863 = vmul.f32 %v829, %v845
        %v864 = vmul.f32 %v830, %v845
        %v865 = vmul.f32 %v831, %v845
        %v866 = vmul.f32 %v832, %v845
        %v867 = vmul.f32 %v833, %v845
        %v868 = vmul.f32 %v834, %v845
        %v869 = vmul.f32 %v835, %v845
        %v870 = vmul.f32 %v836, %v845
        %v871 = vmul.f32 %v837, %v845
        %v872 = vmul.f32 %v838, %v845
        %v873 = vmul.f32 %v839, %v845
        %v874 = vmul.f32 %v840, %v845
        %v875 = vmul.f32 %v841, %v845
        %v876 = vmul.f32 %v842, %v845
        %v877 = vmul.f32 %v843, %v845
        %v878 = vadd.f32 %v780, %v846
        %v879 = vadd.f32 %v781, %v847
        %v880 = vadd.f32 %v782, %v848
        %v881 = vadd.f32 %v783, %v849
        %v882 = vadd.f32 %v784, %v850
        %v883 = vadd.f32 %v785, %v851
        %v884 = vadd.f32 %v786, %v852
        %v885 = vadd.f32 %v787, %v853
        %v886 = vadd.f32 %v788, %v854
        %v887 = vadd.f32 %v789, %v855
        %v888 = vadd.f32 %v790, %v856
        %v889 = vadd.f32 %v791, %v857
        %v890 = vadd.f32 %v792, %v858
        %v891 = vadd.f32 %v793, %v859
        %v892 = vadd.f32 %v794, %v860
        %v893 = vadd.f32 %v795, %v861
        %v894 = vadd.f32 %v796, %v862
        %v895 = vadd.f32 %v797, %v863
        %v896 = vadd.f32 %v798, %v864
        %v897 = vadd.f32 %v799, %v865
        %v898 = vadd.f32 %v800, %v866
        %v899 = vadd.f32 %v801, %v867
        %v900 = vadd.f32 %v802, %v868
        %v901 = vadd.f32 %v803, %v869
        %v902 = vadd.f32 %v804, %v870
        %v903 = vadd.f32 %v805, %v871
        %v904 = vadd.f32 %v806, %v872
        %v905 = vadd.f32 %v807, %v873
        %v906 = vadd.f32 %v808, %v874
        %v907 = vadd.f32 %v809, %v875
        %v908 = vadd.f32 %v810, %v876
        %v909 = vadd.f32 %v811, %v877
        %v910 = vld [vmem:[#allocation2 + $0x5] sm:$0xff]
        %v911 = vld [vmem:[#allocation2 + $0xd] sm:$0xff]
        %v912 = vld [vmem:[#allocation2 + $0x1d] sm:$0xff]
        %v913 = vld [vmem:[#allocation2 + $0x25] sm:$0xff]
        %v914 = vld [vmem:[#allocation2 + $0x35] sm:$0xff]
        %v915 = vld [vmem:[#allocation2 + $0x3d] sm:$0xff]
        %v916 = vld [vmem:[#allocation2 + $0x4d] sm:$0xff]
        %v917 = vld [vmem:[#allocation2 + $0x55] sm:$0xff]
        %v918 = vld [vmem:[#allocation2 + $0x65] sm:$0xff]
        %v919 = vld [vmem:[#allocation2 + $0x6d] sm:$0xff]
        %v920 = vld [vmem:[#allocation2 + $0x7d] sm:$0xff]
        %v921 = vld [vmem:[#allocation2 + $0x85] sm:$0xff]
        %v922 = vld [vmem:[#allocation2 + $0x95] sm:$0xff]
        %v923 = vld [vmem:[#allocation2 + $0x9d] sm:$0xff]
        %v924 = vld [vmem:[#allocation2 + $0xad] sm:$0xff]
        %v925 = vld [vmem:[#allocation2 + $0xb5] sm:$0xff]
        %v926 = vld [vmem:[#allocation2 + $0xc5] sm:$0xff]
        %v927 = vld [vmem:[#allocation2 + $0xcd] sm:$0xff]
        %v928 = vld [vmem:[#allocation2 + $0xdd] sm:$0xff]
        %v929 = vld [vmem:[#allocation2 + $0xe5] sm:$0xff]
        %v930 = vld [vmem:[#allocation2 + $0xf5] sm:$0xff]
        %v931 = vld [vmem:[#allocation2 + $0xfd] sm:$0xff]
        %v932 = vld [vmem:[#allocation2 + $0x10d] sm:$0xff]
        %v933 = vld [vmem:[#allocation2 + $0x115] sm:$0xff]
        %v934 = vld [vmem:[#allocation2 + $0x125] sm:$0xff]
        %v935 = vld [vmem:[#allocation2 + $0x12d] sm:$0xff]
        %v936 = vld [vmem:[#allocation2 + $0x13d] sm:$0xff]
        %v937 = vld [vmem:[#allocation2 + $0x145] sm:$0xff]
        %v938 = vld [vmem:[#allocation2 + $0x155] sm:$0xff]
        %v939 = vld [vmem:[#allocation2 + $0x15d] sm:$0xff]
        %v940 = vld [vmem:[#allocation2 + $0x16d] sm:$0xff]
        %v941 = vld [vmem:[#allocation2 + $0x175] sm:$0xff]
        %v942 = vld [vmem:[#allocation6 + $0x5] sm:$0x1]
        %v943 = vperm.slane %v942, 0
        %v944 = vmul.f32 %v910, %v943
        %v945 = vmul.f32 %v911, %v943
        %v946 = vmul.f32 %v912, %v943
        %v947 = vmul.f32 %v913, %v943
        %v948 = vmul.f32 %v914, %v943
        %v949 = vmul.f32 %v915, %v943
        %v950 = vmul.f32 %v916, %v943
        %v951 = vmul.f32 %v917, %v943
        %v952 = vmul.f32 %v918, %v943
        %v953 = vmul.f32 %v919, %v943
        %v954 = vmul.f32 %v920, %v943
        %v955 = vmul.f32 %v921, %v943
        %v956 = vmul.f32 %v922, %v943
        %v957 = vmul.f32 %v923, %v943
        %v958 = vmul.f32 %v924, %v943
        %v959 = vmul.f32 %v925, %v943
        %v960 = vmul.f32 %v926, %v943
        %v961 = vmul.f32 %v927, %v943
        %v962 = vmul.f32 %v928, %v943
        %v963 = vmul.f32 %v929, %v943
        %v964 = vmul.f32 %v930, %v943
        %v965 = vmul.f32 %v931, %v943
        %v966 = vmul.f32 %v932, %v943
        %v967 = vmul.f32 %v933, %v943
        %v968 = vmul.f32 %v934, %v943
        %v969 = vmul.f32 %v935, %v943
        %v970 = vmul.f32 %v936, %v943
        %v971 = vmul.f32 %v937, %v943
        %v972 = vmul.f32 %v938, %v943
        %v973 = vmul.f32 %v939, %v943
        %v974 = vmul.f32 %v940, %v943
        %v975 = vmul.f32 %v941, %v943
        %v976 = vadd.f32 %v878, %v944
        %v977 = vadd.f32 %v879, %v945
        %v978 = vadd.f32 %v880, %v946
        %v979 = vadd.f32 %v881, %v947
        %v980 = vadd.f32 %v882, %v948
        %v981 = vadd.f32 %v883, %v949
        %v982 = vadd.f32 %v884, %v950
        %v983 = vadd.f32 %v885, %v951
        %v984 = vadd.f32 %v886, %v952
        %v985 = vadd.f32 %v887, %v953
        %v986 = vadd.f32 %v888, %v954
        %v987 = vadd.f32 %v889, %v955
        %v988 = vadd.f32 %v890, %v956
        %v989 = vadd.f32 %v891, %v957
        %v990 = vadd.f32 %v892, %v958
        %v991 = vadd.f32 %v893, %v959
        %v992 = vadd.f32 %v894, %v960
        %v993 = vadd.f32 %v895, %v961
        %v994 = vadd.f32 %v896, %v962
        %v995 = vadd.f32 %v897, %v963
        %v996 = vadd.f32 %v898, %v964
        %v997 = vadd.f32 %v899, %v965
        %v998 = vadd.f32 %v900, %v966
        %v999 = vadd.f32 %v901, %v967
        %v1000 = vadd.f32 %v902, %v968
        %v1001 = vadd.f32 %v903, %v969
        %v1002 = vadd.f32 %v904, %v970
        %v1003 = vadd.f32 %v905, %v971
        %v1004 = vadd.f32 %v906, %v972
        %v1005 = vadd.f32 %v907, %v973
        %v1006 = vadd.f32 %v908, %v974
        %v1007 = vadd.f32 %v909, %v975
        %v1008 = vld [vmem:[#allocation2 + $0x6] sm:$0xff]
        %v1009 = vld [vmem:[#allocation2 + $0xe] sm:$0xff]
        %v1010 = vld [vmem:[#allocation2 + $0x1e] sm:$0xff]
        %v1011 = vld [vmem:[#allocation2 + $0x26] sm:$0xff]
        %v1012 = vld [vmem:[#allocation2 + $0x36] sm:$0xff]
        %v1013 = vld [vmem:[#allocation2 + $0x3e] sm:$0xff]
        %v1014 = vld [vmem:[#allocation2 + $0x4e] sm:$0xff]
        %v1015 = vld [vmem:[#allocation2 + $0x56] sm:$0xff]
        %v1016 = vld [vmem:[#allocation2 + $0x66] sm:$0xff]
        %v1017 = vld [vmem:[#allocation2 + $0x6e] sm:$0xff]
        %v1018 = vld [vmem:[#allocation2 + $0x7e] sm:$0xff]
        %v1019 = vld [vmem:[#allocation2 + $0x86] sm:$0xff]
        %v1020 = vld [vmem:[#allocation2 + $0x96] sm:$0xff]
        %v1021 = vld [vmem:[#allocation2 + $0x9e] sm:$0xff]
        %v1022 = vld [vmem:[#allocation2 + $0xae] sm:$0xff]
        %v1023 = vld [vmem:[#allocation2 + $0xb6] sm:$0xff]
        %v1024 = vld [vmem:[#allocation2 + $0xc6] sm:$0xff]
        %v1025 = vld [vmem:[#allocation2 + $0xce] sm:$0xff]
        %v1026 = vld [vmem:[#allocation2 + $0xde] sm:$0xff]
        %v1027 = vld [vmem:[#allocation2 + $0xe6] sm:$0xff]
        %v1028 = vld [vmem:[#allocation2 + $0xf6] sm:$0xff]
        %v1029 = vld [vmem:[#allocation2 + $0xfe] sm:$0xff]
        %v1030 = vld [vmem:[#allocation2 + $0x10e] sm:$0xff]
        %v1031 = vld [vmem:[#allocation2 + $0x116] sm:$0xff]
        %v1032 = vld [vmem:[#allocation2 + $0x126] sm:$0xff]
        %v1033 = vld [vmem:[#allocation2 + $0x12e] sm:$0xff]
        %v1034 = vld [vmem:[#allocation2 + $0x13e] sm:$0xff]
        %v1035 = vld [vmem:[#allocation2 + $0x146] sm:$0xff]
        %v1036 = vld [vmem:[#allocation2 + $0x156] sm:$0xff]
        %v1037 = vld [vmem:[#allocation2 + $0x15e] sm:$0xff]
        %v1038 = vld [vmem:[#allocation2 + $0x16e] sm:$0xff]
        %v1039 = vld [vmem:[#allocation2 + $0x176] sm:$0xff]
        %v1040 = vld [vmem:[#allocation6 + $0x6] sm:$0x1]
        %v1041 = vperm.slane %v1040, 0
        %v1042 = vmul.f32 %v1008, %v1041
        %v1043 = vmul.f32 %v1009, %v1041
        %v1044 = vmul.f32 %v1010, %v1041
        %v1045 = vmul.f32 %v1011, %v1041
        %v1046 = vmul.f32 %v1012, %v1041
        %v1047 = vmul.f32 %v1013, %v1041
        %v1048 = vmul.f32 %v1014, %v1041
        %v1049 = vmul.f32 %v1015, %v1041
        %v1050 = vmul.f32 %v1016, %v1041
        %v1051 = vmul.f32 %v1017, %v1041
        %v1052 = vmul.f32 %v1018, %v1041
        %v1053 = vmul.f32 %v1019, %v1041
        %v1054 = vmul.f32 %v1020, %v1041
        %v1055 = vmul.f32 %v1021, %v1041
        %v1056 = vmul.f32 %v1022, %v1041
        %v1057 = vmul.f32 %v1023, %v1041
        %v1058 = vmul.f32 %v1024, %v1041
        %v1059 = vmul.f32 %v1025, %v1041
        %v1060 = vmul.f32 %v1026, %v1041
        %v1061 = vmul.f32 %v1027, %v1041
        %v1062 = vmul.f32 %v1028, %v1041
        %v1063 = vmul.f32 %v1029, %v1041
        %v1064 = vmul.f32 %v1030, %v1041
        %v1065 = vmul.f32 %v1031, %v1041
        %v1066 = vmul.f32 %v1032, %v1041
        %v1067 = vmul.f32 %v1033, %v1041
        %v1068 = vmul.f32 %v1034, %v1041
        %v1069 = vmul.f32 %v1035, %v1041
        %v1070 = vmul.f32 %v1036, %v1041
        %v1071 = vmul.f32 %v1037, %v1041
        %v1072 = vmul.f32 %v1038, %v1041
        %v1073 = vmul.f32 %v1039, %v1041
        %v1074 = vadd.f32 %v976, %v1042
        %v1075 = vadd.f32 %v977, %v1043
        %v1076 = vadd.f32 %v978, %v1044
        %v1077 = vadd.f32 %v979, %v1045
        %v1078 = vadd.f32 %v980, %v1046
        %v1079 = vadd.f32 %v981, %v1047
        %v1080 = vadd.f32 %v982, %v1048
        %v1081 = vadd.f32 %v983, %v1049
        %v1082 = vadd.f32 %v984, %v1050
        %v1083 = vadd.f32 %v985, %v1051
        %v1084 = vadd.f32 %v986, %v1052
        %v1085 = vadd.f32 %v987, %v1053
        %v1086 = vadd.f32 %v988, %v1054
        %v1087 = vadd.f32 %v989, %v1055
        %v1088 = vadd.f32 %v990, %v1056
        %v1089 = vadd.f32 %v991, %v1057
        %v1090 = vadd.f32 %v992, %v1058
        %v1091 = vadd.f32 %v993, %v1059
        %v1092 = vadd.f32 %v994, %v1060
        %v1093 = vadd.f32 %v995, %v1061
        %v1094 = vadd.f32 %v996, %v1062
        %v1095 = vadd.f32 %v997, %v1063
        %v1096 = vadd.f32 %v998, %v1064
        %v1097 = vadd.f32 %v999, %v1065
        %v1098 = vadd.f32 %v1000, %v1066
        %v1099 = vadd.f32 %v1001, %v1067
        %v1100 = vadd.f32 %v1002, %v1068
        %v1101 = vadd.f32 %v1003, %v1069
        %v1102 = vadd.f32 %v1004, %v1070
        %v1103 = vadd.f32 %v1005, %v1071
        %v1104 = vadd.f32 %v1006, %v1072
        %v1105 = vadd.f32 %v1007, %v1073
        %s1106 = scalar_lea.vmem [#allocation2], 24
        %v1107 = vld [vmem:[%s1106] sm:$0xff]
        %v1108 = vld [vmem:[%s1106 + $0x8] sm:$0xff]
        %v1109 = vld [vmem:[%s1106 + $0x18] sm:$0xff]
        %v1110 = vld [vmem:[%s1106 + $0x20] sm:$0xff]
        %v1111 = vld [vmem:[%s1106 + $0x30] sm:$0xff]
        %v1112 = vld [vmem:[%s1106 + $0x38] sm:$0xff]
        %v1113 = vld [vmem:[%s1106 + $0x48] sm:$0xff]
        %v1114 = vld [vmem:[%s1106 + $0x50] sm:$0xff]
        %v1115 = vld [vmem:[%s1106 + $0x60] sm:$0xff]
        %v1116 = vld [vmem:[%s1106 + $0x68] sm:$0xff]
        %v1117 = vld [vmem:[%s1106 + $0x78] sm:$0xff]
        %v1118 = vld [vmem:[%s1106 + $0x80] sm:$0xff]
        %v1119 = vld [vmem:[%s1106 + $0x90] sm:$0xff]
        %v1120 = vld [vmem:[%s1106 + $0x98] sm:$0xff]
        %v1121 = vld [vmem:[%s1106 + $0xa8] sm:$0xff]
        %v1122 = vld [vmem:[%s1106 + $0xb0] sm:$0xff]
        %v1123 = vld [vmem:[%s1106 + $0xc0] sm:$0xff]
        %v1124 = vld [vmem:[%s1106 + $0xc8] sm:$0xff]
        %v1125 = vld [vmem:[%s1106 + $0xd8] sm:$0xff]
        %v1126 = vld [vmem:[%s1106 + $0xe0] sm:$0xff]
        %v1127 = vld [vmem:[%s1106 + $0xf0] sm:$0xff]
        %v1128 = vld [vmem:[%s1106 + $0xf8] sm:$0xff]
        %v1129 = vld [vmem:[%s1106 + $0x108] sm:$0xff]
        %v1130 = vld [vmem:[%s1106 + $0x110] sm:$0xff]
        %v1131 = vld [vmem:[%s1106 + $0x120] sm:$0xff]
        %v1132 = vld [vmem:[%s1106 + $0x128] sm:$0xff]
        %v1133 = vld [vmem:[%s1106 + $0x138] sm:$0xff]
        %v1134 = vld [vmem:[%s1106 + $0x140] sm:$0xff]
        %v1135 = vld [vmem:[%s1106 + $0x150] sm:$0xff]
        %v1136 = vld [vmem:[%s1106 + $0x158] sm:$0xff]
        %v1137 = vld [vmem:[%s1106 + $0x168] sm:$0xff]
        %v1138 = vld [vmem:[%s1106 + $0x170] sm:$0xff]
        %v1139 = vld [vmem:[#allocation6 + $0x7] sm:$0x1]
        %v1140 = vperm.slane %v1139, 0
        %v1141 = vmul.f32 %v1107, %v1140
        %v1142 = vmul.f32 %v1108, %v1140
        %v1143 = vmul.f32 %v1109, %v1140
        %v1144 = vmul.f32 %v1110, %v1140
        %v1145 = vmul.f32 %v1111, %v1140
        %v1146 = vmul.f32 %v1112, %v1140
        %v1147 = vmul.f32 %v1113, %v1140
        %v1148 = vmul.f32 %v1114, %v1140
        %v1149 = vmul.f32 %v1115, %v1140
        %v1150 = vmul.f32 %v1116, %v1140
        %v1151 = vmul.f32 %v1117, %v1140
        %v1152 = vmul.f32 %v1118, %v1140
        %v1153 = vmul.f32 %v1119, %v1140
        %v1154 = vmul.f32 %v1120, %v1140
        %v1155 = vmul.f32 %v1121, %v1140
        %v1156 = vmul.f32 %v1122, %v1140
        %v1157 = vmul.f32 %v1123, %v1140
        %v1158 = vmul.f32 %v1124, %v1140
        %v1159 = vmul.f32 %v1125, %v1140
        %v1160 = vmul.f32 %v1126, %v1140
        %v1161 = vmul.f32 %v1127, %v1140
        %v1162 = vmul.f32 %v1128, %v1140
        %v1163 = vmul.f32 %v1129, %v1140
        %v1164 = vmul.f32 %v1130, %v1140
        %v1165 = vmul.f32 %v1131, %v1140
        %v1166 = vmul.f32 %v1132, %v1140
        %v1167 = vmul.f32 %v1133, %v1140
        %v1168 = vmul.f32 %v1134, %v1140
        %v1169 = vmul.f32 %v1135, %v1140
        %v1170 = vmul.f32 %v1136, %v1140
        %v1171 = vmul.f32 %v1137, %v1140
        %v1172 = vmul.f32 %v1138, %v1140
        %v1173 = vadd.f32 %v1074, %v1141
        %v1174 = vadd.f32 %v1075, %v1142
        %v1175 = vadd.f32 %v1076, %v1143
        %v1176 = vadd.f32 %v1077, %v1144
        %v1177 = vadd.f32 %v1078, %v1145
        %v1178 = vadd.f32 %v1079, %v1146
        %v1179 = vadd.f32 %v1080, %v1147
        %v1180 = vadd.f32 %v1081, %v1148
        %v1181 = vadd.f32 %v1082, %v1149
        %v1182 = vadd.f32 %v1083, %v1150
        %v1183 = vadd.f32 %v1084, %v1151
        %v1184 = vadd.f32 %v1085, %v1152
        %v1185 = vadd.f32 %v1086, %v1153
        %v1186 = vadd.f32 %v1087, %v1154
        %v1187 = vadd.f32 %v1088, %v1155
        %v1188 = vadd.f32 %v1089, %v1156
        %v1189 = vadd.f32 %v1090, %v1157
        %v1190 = vadd.f32 %v1091, %v1158
        %v1191 = vadd.f32 %v1092, %v1159
        %v1192 = vadd.f32 %v1093, %v1160
        %v1193 = vadd.f32 %v1094, %v1161
        %v1194 = vadd.f32 %v1095, %v1162
        %v1195 = vadd.f32 %v1096, %v1163
        %v1196 = vadd.f32 %v1097, %v1164
        %v1197 = vadd.f32 %v1098, %v1165
        %v1198 = vadd.f32 %v1099, %v1166
        %v1199 = vadd.f32 %v1100, %v1167
        %v1200 = vadd.f32 %v1101, %v1168
        %v1201 = vadd.f32 %v1102, %v1169
        %v1202 = vadd.f32 %v1103, %v1170
        %v1203 = vadd.f32 %v1104, %v1171
        %v1204 = vadd.f32 %v1105, %v1172
        %v1205 = vld [vmem:[%s1106 + $0x1] sm:$0xff]
        %v1206 = vld [vmem:[%s1106 + $0x9] sm:$0xff]
        %v1207 = vld [vmem:[%s1106 + $0x19] sm:$0xff]
        %v1208 = vld [vmem:[%s1106 + $0x21] sm:$0xff]
        %v1209 = vld [vmem:[%s1106 + $0x31] sm:$0xff]
        %v1210 = vld [vmem:[%s1106 + $0x39] sm:$0xff]
        %v1211 = vld [vmem:[%s1106 + $0x49] sm:$0xff]
        %v1212 = vld [vmem:[%s1106 + $0x51] sm:$0xff]
        %v1213 = vld [vmem:[%s1106 + $0x61] sm:$0xff]
        %v1214 = vld [vmem:[%s1106 + $0x69] sm:$0xff]
        %v1215 = vld [vmem:[%s1106 + $0x79] sm:$0xff]
        %v1216 = vld [vmem:[%s1106 + $0x81] sm:$0xff]
        %v1217 = vld [vmem:[%s1106 + $0x91] sm:$0xff]
        %v1218 = vld [vmem:[%s1106 + $0x99] sm:$0xff]
        %v1219 = vld [vmem:[%s1106 + $0xa9] sm:$0xff]
        %v1220 = vld [vmem:[%s1106 + $0xb1] sm:$0xff]
        %v1221 = vld [vmem:[%s1106 + $0xc1] sm:$0xff]
        %v1222 = vld [vmem:[%s1106 + $0xc9] sm:$0xff]
        %v1223 = vld [vmem:[%s1106 + $0xd9] sm:$0xff]
        %v1224 = vld [vmem:[%s1106 + $0xe1] sm:$0xff]
        %v1225 = vld [vmem:[%s1106 + $0xf1] sm:$0xff]
        %v1226 = vld [vmem:[%s1106 + $0xf9] sm:$0xff]
        %v1227 = vld [vmem:[%s1106 + $0x109] sm:$0xff]
        %v1228 = vld [vmem:[%s1106 + $0x111] sm:$0xff]
        %v1229 = vld [vmem:[%s1106 + $0x121] sm:$0xff]
        %v1230 = vld [vmem:[%s1106 + $0x129] sm:$0xff]
        %v1231 = vld [vmem:[%s1106 + $0x139] sm:$0xff]
        %v1232 = vld [vmem:[%s1106 + $0x141] sm:$0xff]
        %v1233 = vld [vmem:[%s1106 + $0x151] sm:$0xff]
        %v1234 = vld [vmem:[%s1106 + $0x159] sm:$0xff]
        %v1235 = vld [vmem:[%s1106 + $0x169] sm:$0xff]
        %v1236 = vld [vmem:[%s1106 + $0x171] sm:$0xff]
        %v1237 = vld [vmem:[#allocation6 + $0x8] sm:$0x1]
        %v1238 = vperm.slane %v1237, 0
        %v1239 = vmul.f32 %v1205, %v1238
        %v1240 = vmul.f32 %v1206, %v1238
        %v1241 = vmul.f32 %v1207, %v1238
        %v1242 = vmul.f32 %v1208, %v1238
        %v1243 = vmul.f32 %v1209, %v1238
        %v1244 = vmul.f32 %v1210, %v1238
        %v1245 = vmul.f32 %v1211, %v1238
        %v1246 = vmul.f32 %v1212, %v1238
        %v1247 = vmul.f32 %v1213, %v1238
        %v1248 = vmul.f32 %v1214, %v1238
        %v1249 = vmul.f32 %v1215, %v1238
        %v1250 = vmul.f32 %v1216, %v1238
        %v1251 = vmul.f32 %v1217, %v1238
        %v1252 = vmul.f32 %v1218, %v1238
        %v1253 = vmul.f32 %v1219, %v1238
        %v1254 = vmul.f32 %v1220, %v1238
        %v1255 = vmul.f32 %v1221, %v1238
        %v1256 = vmul.f32 %v1222, %v1238
        %v1257 = vmul.f32 %v1223, %v1238
        %v1258 = vmul.f32 %v1224, %v1238
        %v1259 = vmul.f32 %v1225, %v1238
        %v1260 = vmul.f32 %v1226, %v1238
        %v1261 = vmul.f32 %v1227, %v1238
        %v1262 = vmul.f32 %v1228, %v1238
        %v1263 = vmul.f32 %v1229, %v1238
        %v1264 = vmul.f32 %v1230, %v1238
        %v1265 = vmul.f32 %v1231, %v1238
        %v1266 = vmul.f32 %v1232, %v1238
        %v1267 = vmul.f32 %v1233, %v1238
        %v1268 = vmul.f32 %v1234, %v1238
        %v1269 = vmul.f32 %v1235, %v1238
        %v1270 = vmul.f32 %v1236, %v1238
        %v1271 = vadd.f32 %v1173, %v1239
        %v1272 = vadd.f32 %v1174, %v1240
        %v1273 = vadd.f32 %v1175, %v1241
        %v1274 = vadd.f32 %v1176, %v1242
        %v1275 = vadd.f32 %v1177, %v1243
        %v1276 = vadd.f32 %v1178, %v1244
        %v1277 = vadd.f32 %v1179, %v1245
        %v1278 = vadd.f32 %v1180, %v1246
        %v1279 = vadd.f32 %v1181, %v1247
        %v1280 = vadd.f32 %v1182, %v1248
        %v1281 = vadd.f32 %v1183, %v1249
        %v1282 = vadd.f32 %v1184, %v1250
        %v1283 = vadd.f32 %v1185, %v1251
        %v1284 = vadd.f32 %v1186, %v1252
        %v1285 = vadd.f32 %v1187, %v1253
        %v1286 = vadd.f32 %v1188, %v1254
        %v1287 = vadd.f32 %v1189, %v1255
        %v1288 = vadd.f32 %v1190, %v1256
        %v1289 = vadd.f32 %v1191, %v1257
        %v1290 = vadd.f32 %v1192, %v1258
        %v1291 = vadd.f32 %v1193, %v1259
        %v1292 = vadd.f32 %v1194, %v1260
        %v1293 = vadd.f32 %v1195, %v1261
        %v1294 = vadd.f32 %v1196, %v1262
        %v1295 = vadd.f32 %v1197, %v1263
        %v1296 = vadd.f32 %v1198, %v1264
        %v1297 = vadd.f32 %v1199, %v1265
        %v1298 = vadd.f32 %v1200, %v1266
        %v1299 = vadd.f32 %v1201, %v1267
        %v1300 = vadd.f32 %v1202, %v1268
        %v1301 = vadd.f32 %v1203, %v1269
        %v1302 = vadd.f32 %v1204, %v1270
        %v1303 = vld [vmem:[%s1106 + $0x2] sm:$0xff]
        %v1304 = vld [vmem:[%s1106 + $0xa] sm:$0xff]
        %v1305 = vld [vmem:[%s1106 + $0x1a] sm:$0xff]
        %v1306 = vld [vmem:[%s1106 + $0x22] sm:$0xff]
        %v1307 = vld [vmem:[%s1106 + $0x32] sm:$0xff]
        %v1308 = vld [vmem:[%s1106 + $0x3a] sm:$0xff]
        %v1309 = vld [vmem:[%s1106 + $0x4a] sm:$0xff]
        %v1310 = vld [vmem:[%s1106 + $0x52] sm:$0xff]
        %v1311 = vld [vmem:[%s1106 + $0x62] sm:$0xff]
        %v1312 = vld [vmem:[%s1106 + $0x6a] sm:$0xff]
        %v1313 = vld [vmem:[%s1106 + $0x7a] sm:$0xff]
        %v1314 = vld [vmem:[%s1106 + $0x82] sm:$0xff]
        %v1315 = vld [vmem:[%s1106 + $0x92] sm:$0xff]
        %v1316 = vld [vmem:[%s1106 + $0x9a] sm:$0xff]
        %v1317 = vld [vmem:[%s1106 + $0xaa] sm:$0xff]
        %v1318 = vld [vmem:[%s1106 + $0xb2] sm:$0xff]
        %v1319 = vld [vmem:[%s1106 + $0xc2] sm:$0xff]
        %v1320 = vld [vmem:[%s1106 + $0xca] sm:$0xff]
        %v1321 = vld [vmem:[%s1106 + $0xda] sm:$0xff]
        %v1322 = vld [vmem:[%s1106 + $0xe2] sm:$0xff]
        %v1323 = vld [vmem:[%s1106 + $0xf2] sm:$0xff]
        %v1324 = vld [vmem:[%s1106 + $0xfa] sm:$0xff]
        %v1325 = vld [vmem:[%s1106 + $0x10a] sm:$0xff]
        %v1326 = vld [vmem:[%s1106 + $0x112] sm:$0xff]
        %v1327 = vld [vmem:[%s1106 + $0x122] sm:$0xff]
        %v1328 = vld [vmem:[%s1106 + $0x12a] sm:$0xff]
        %v1329 = vld [vmem:[%s1106 + $0x13a] sm:$0xff]
        %v1330 = vld [vmem:[%s1106 + $0x142] sm:$0xff]
        %v1331 = vld [vmem:[%s1106 + $0x152] sm:$0xff]
        %v1332 = vld [vmem:[%s1106 + $0x15a] sm:$0xff]
        %v1333 = vld [vmem:[%s1106 + $0x16a] sm:$0xff]
        %v1334 = vld [vmem:[%s1106 + $0x172] sm:$0xff]
        %v1335 = vld [vmem:[#allocation6 + $0x9] sm:$0x1]
        %v1336 = vperm.slane %v1335, 0
        %v1337 = vmul.f32 %v1303, %v1336
        %v1338 = vmul.f32 %v1304, %v1336
        %v1339 = vmul.f32 %v1305, %v1336
        %v1340 = vmul.f32 %v1306, %v1336
        %v1341 = vmul.f32 %v1307, %v1336
        %v1342 = vmul.f32 %v1308, %v1336
        %v1343 = vmul.f32 %v1309, %v1336
        %v1344 = vmul.f32 %v1310, %v1336
        %v1345 = vmul.f32 %v1311, %v1336
        %v1346 = vmul.f32 %v1312, %v1336
        %v1347 = vmul.f32 %v1313, %v1336
        %v1348 = vmul.f32 %v1314, %v1336
        %v1349 = vmul.f32 %v1315, %v1336
        %v1350 = vmul.f32 %v1316, %v1336
        %v1351 = vmul.f32 %v1317, %v1336
        %v1352 = vmul.f32 %v1318, %v1336
        %v1353 = vmul.f32 %v1319, %v1336
        %v1354 = vmul.f32 %v1320, %v1336
        %v1355 = vmul.f32 %v1321, %v1336
        %v1356 = vmul.f32 %v1322, %v1336
        %v1357 = vmul.f32 %v1323, %v1336
        %v1358 = vmul.f32 %v1324, %v1336
        %v1359 = vmul.f32 %v1325, %v1336
        %v1360 = vmul.f32 %v1326, %v1336
        %v1361 = vmul.f32 %v1327, %v1336
        %v1362 = vmul.f32 %v1328, %v1336
        %v1363 = vmul.f32 %v1329, %v1336
        %v1364 = vmul.f32 %v1330, %v1336
        %v1365 = vmul.f32 %v1331, %v1336
        %v1366 = vmul.f32 %v1332, %v1336
        %v1367 = vmul.f32 %v1333, %v1336
        %v1368 = vmul.f32 %v1334, %v1336
        %v1369 = vadd.f32 %v1271, %v1337
        %v1370 = vadd.f32 %v1272, %v1338
        %v1371 = vadd.f32 %v1273, %v1339
        %v1372 = vadd.f32 %v1274, %v1340
        %v1373 = vadd.f32 %v1275, %v1341
        %v1374 = vadd.f32 %v1276, %v1342
        %v1375 = vadd.f32 %v1277, %v1343
        %v1376 = vadd.f32 %v1278, %v1344
        %v1377 = vadd.f32 %v1279, %v1345
        %v1378 = vadd.f32 %v1280, %v1346
        %v1379 = vadd.f32 %v1281, %v1347
        %v1380 = vadd.f32 %v1282, %v1348
        %v1381 = vadd.f32 %v1283, %v1349
        %v1382 = vadd.f32 %v1284, %v1350
        %v1383 = vadd.f32 %v1285, %v1351
        %v1384 = vadd.f32 %v1286, %v1352
        %v1385 = vadd.f32 %v1287, %v1353
        %v1386 = vadd.f32 %v1288, %v1354
        %v1387 = vadd.f32 %v1289, %v1355
        %v1388 = vadd.f32 %v1290, %v1356
        %v1389 = vadd.f32 %v1291, %v1357
        %v1390 = vadd.f32 %v1292, %v1358
        %v1391 = vadd.f32 %v1293, %v1359
        %v1392 = vadd.f32 %v1294, %v1360
        %v1393 = vadd.f32 %v1295, %v1361
        %v1394 = vadd.f32 %v1296, %v1362
        %v1395 = vadd.f32 %v1297, %v1363
        %v1396 = vadd.f32 %v1298, %v1364
        %v1397 = vadd.f32 %v1299, %v1365
        %v1398 = vadd.f32 %v1300, %v1366
        %v1399 = vadd.f32 %v1301, %v1367
        %v1400 = vadd.f32 %v1302, %v1368
        %v1401 = vld [vmem:[%s1106 + $0x3] sm:$0xff]
        %v1402 = vld [vmem:[%s1106 + $0xb] sm:$0xff]
        %v1403 = vld [vmem:[%s1106 + $0x1b] sm:$0xff]
        %v1404 = vld [vmem:[%s1106 + $0x23] sm:$0xff]
        %v1405 = vld [vmem:[%s1106 + $0x33] sm:$0xff]
        %v1406 = vld [vmem:[%s1106 + $0x3b] sm:$0xff]
        %v1407 = vld [vmem:[%s1106 + $0x4b] sm:$0xff]
        %v1408 = vld [vmem:[%s1106 + $0x53] sm:$0xff]
        %v1409 = vld [vmem:[%s1106 + $0x63] sm:$0xff]
        %v1410 = vld [vmem:[%s1106 + $0x6b] sm:$0xff]
        %v1411 = vld [vmem:[%s1106 + $0x7b] sm:$0xff]
        %v1412 = vld [vmem:[%s1106 + $0x83] sm:$0xff]
        %v1413 = vld [vmem:[%s1106 + $0x93] sm:$0xff]
        %v1414 = vld [vmem:[%s1106 + $0x9b] sm:$0xff]
        %v1415 = vld [vmem:[%s1106 + $0xab] sm:$0xff]
        %v1416 = vld [vmem:[%s1106 + $0xb3] sm:$0xff]
        %v1417 = vld [vmem:[%s1106 + $0xc3] sm:$0xff]
        %v1418 = vld [vmem:[%s1106 + $0xcb] sm:$0xff]
        %v1419 = vld [vmem:[%s1106 + $0xdb] sm:$0xff]
        %v1420 = vld [vmem:[%s1106 + $0xe3] sm:$0xff]
        %v1421 = vld [vmem:[%s1106 + $0xf3] sm:$0xff]
        %v1422 = vld [vmem:[%s1106 + $0xfb] sm:$0xff]
        %v1423 = vld [vmem:[%s1106 + $0x10b] sm:$0xff]
        %v1424 = vld [vmem:[%s1106 + $0x113] sm:$0xff]
        %v1425 = vld [vmem:[%s1106 + $0x123] sm:$0xff]
        %v1426 = vld [vmem:[%s1106 + $0x12b] sm:$0xff]
        %v1427 = vld [vmem:[%s1106 + $0x13b] sm:$0xff]
        %v1428 = vld [vmem:[%s1106 + $0x143] sm:$0xff]
        %v1429 = vld [vmem:[%s1106 + $0x153] sm:$0xff]
        %v1430 = vld [vmem:[%s1106 + $0x15b] sm:$0xff]
        %v1431 = vld [vmem:[%s1106 + $0x16b] sm:$0xff]
        %v1432 = vld [vmem:[%s1106 + $0x173] sm:$0xff]
        %v1433 = vld [vmem:[#allocation6 + $0xa] sm:$0x1]
        %v1434 = vperm.slane %v1433, 0
        %v1435 = vmul.f32 %v1401, %v1434
        %v1436 = vmul.f32 %v1402, %v1434
        %v1437 = vmul.f32 %v1403, %v1434
        %v1438 = vmul.f32 %v1404, %v1434
        %v1439 = vmul.f32 %v1405, %v1434
        %v1440 = vmul.f32 %v1406, %v1434
        %v1441 = vmul.f32 %v1407, %v1434
        %v1442 = vmul.f32 %v1408, %v1434
        %v1443 = vmul.f32 %v1409, %v1434
        %v1444 = vmul.f32 %v1410, %v1434
        %v1445 = vmul.f32 %v1411, %v1434
        %v1446 = vmul.f32 %v1412, %v1434
        %v1447 = vmul.f32 %v1413, %v1434
        %v1448 = vmul.f32 %v1414, %v1434
        %v1449 = vmul.f32 %v1415, %v1434
        %v1450 = vmul.f32 %v1416, %v1434
        %v1451 = vmul.f32 %v1417, %v1434
        %v1452 = vmul.f32 %v1418, %v1434
        %v1453 = vmul.f32 %v1419, %v1434
        %v1454 = vmul.f32 %v1420, %v1434
        %v1455 = vmul.f32 %v1421, %v1434
        %v1456 = vmul.f32 %v1422, %v1434
        %v1457 = vmul.f32 %v1423, %v1434
        %v1458 = vmul.f32 %v1424, %v1434
        %v1459 = vmul.f32 %v1425, %v1434
        %v1460 = vmul.f32 %v1426, %v1434
        %v1461 = vmul.f32 %v1427, %v1434
        %v1462 = vmul.f32 %v1428, %v1434
        %v1463 = vmul.f32 %v1429, %v1434
        %v1464 = vmul.f32 %v1430, %v1434
        %v1465 = vmul.f32 %v1431, %v1434
        %v1466 = vmul.f32 %v1432, %v1434
        %v1467 = vadd.f32 %v1369, %v1435
        %v1468 = vadd.f32 %v1370, %v1436
        %v1469 = vadd.f32 %v1371, %v1437
        %v1470 = vadd.f32 %v1372, %v1438
        %v1471 = vadd.f32 %v1373, %v1439
        %v1472 = vadd.f32 %v1374, %v1440
        %v1473 = vadd.f32 %v1375, %v1441
        %v1474 = vadd.f32 %v1376, %v1442
        %v1475 = vadd.f32 %v1377, %v1443
        %v1476 = vadd.f32 %v1378, %v1444
        %v1477 = vadd.f32 %v1379, %v1445
        %v1478 = vadd.f32 %v1380, %v1446
        %v1479 = vadd.f32 %v1381, %v1447
        %v1480 = vadd.f32 %v1382, %v1448
        %v1481 = vadd.f32 %v1383, %v1449
        %v1482 = vadd.f32 %v1384, %v1450
        %v1483 = vadd.f32 %v1385, %v1451
        %v1484 = vadd.f32 %v1386, %v1452
        %v1485 = vadd.f32 %v1387, %v1453
        %v1486 = vadd.f32 %v1388, %v1454
        %v1487 = vadd.f32 %v1389, %v1455
        %v1488 = vadd.f32 %v1390, %v1456
        %v1489 = vadd.f32 %v1391, %v1457
        %v1490 = vadd.f32 %v1392, %v1458
        %v1491 = vadd.f32 %v1393, %v1459
        %v1492 = vadd.f32 %v1394, %v1460
        %v1493 = vadd.f32 %v1395, %v1461
        %v1494 = vadd.f32 %v1396, %v1462
        %v1495 = vadd.f32 %v1397, %v1463
        %v1496 = vadd.f32 %v1398, %v1464
        %v1497 = vadd.f32 %v1399, %v1465
        %v1498 = vadd.f32 %v1400, %v1466
        %v1499 = vld [vmem:[%s1106 + $0x4] sm:$0xff]
        %v1500 = vld [vmem:[%s1106 + $0xc] sm:$0xff]
        %v1501 = vld [vmem:[%s1106 + $0x1c] sm:$0xff]
        %v1502 = vld [vmem:[%s1106 + $0x24] sm:$0xff]
        %v1503 = vld [vmem:[%s1106 + $0x34] sm:$0xff]
        %v1504 = vld [vmem:[%s1106 + $0x3c] sm:$0xff]
        %v1505 = vld [vmem:[%s1106 + $0x4c] sm:$0xff]
        %v1506 = vld [vmem:[%s1106 + $0x54] sm:$0xff]
        %v1507 = vld [vmem:[%s1106 + $0x64] sm:$0xff]
        %v1508 = vld [vmem:[%s1106 + $0x6c] sm:$0xff]
        %v1509 = vld [vmem:[%s1106 + $0x7c] sm:$0xff]
        %v1510 = vld [vmem:[%s1106 + $0x84] sm:$0xff]
        %v1511 = vld [vmem:[%s1106 + $0x94] sm:$0xff]
        %v1512 = vld [vmem:[%s1106 + $0x9c] sm:$0xff]
        %v1513 = vld [vmem:[%s1106 + $0xac] sm:$0xff]
        %v1514 = vld [vmem:[%s1106 + $0xb4] sm:$0xff]
        %v1515 = vld [vmem:[%s1106 + $0xc4] sm:$0xff]
        %v1516 = vld [vmem:[%s1106 + $0xcc] sm:$0xff]
        %v1517 = vld [vmem:[%s1106 + $0xdc] sm:$0xff]
        %v1518 = vld [vmem:[%s1106 + $0xe4] sm:$0xff]
        %v1519 = vld [vmem:[%s1106 + $0xf4] sm:$0xff]
        %v1520 = vld [vmem:[%s1106 + $0xfc] sm:$0xff]
        %v1521 = vld [vmem:[%s1106 + $0x10c] sm:$0xff]
        %v1522 = vld [vmem:[%s1106 + $0x114] sm:$0xff]
        %v1523 = vld [vmem:[%s1106 + $0x124] sm:$0xff]
        %v1524 = vld [vmem:[%s1106 + $0x12c] sm:$0xff]
        %v1525 = vld [vmem:[%s1106 + $0x13c] sm:$0xff]
        %v1526 = vld [vmem:[%s1106 + $0x144] sm:$0xff]
        %v1527 = vld [vmem:[%s1106 + $0x154] sm:$0xff]
        %v1528 = vld [vmem:[%s1106 + $0x15c] sm:$0xff]
        %v1529 = vld [vmem:[%s1106 + $0x16c] sm:$0xff]
        %v1530 = vld [vmem:[%s1106 + $0x174] sm:$0xff]
        %v1531 = vld [vmem:[#allocation6 + $0xb] sm:$0x1]
        %v1532 = vperm.slane %v1531, 0
        %v1533 = vmul.f32 %v1499, %v1532
        %v1534 = vmul.f32 %v1500, %v1532
        %v1535 = vmul.f32 %v1501, %v1532
        %v1536 = vmul.f32 %v1502, %v1532
        %v1537 = vmul.f32 %v1503, %v1532
        %v1538 = vmul.f32 %v1504, %v1532
        %v1539 = vmul.f32 %v1505, %v1532
        %v1540 = vmul.f32 %v1506, %v1532
        %v1541 = vmul.f32 %v1507, %v1532
        %v1542 = vmul.f32 %v1508, %v1532
        %v1543 = vmul.f32 %v1509, %v1532
        %v1544 = vmul.f32 %v1510, %v1532
        %v1545 = vmul.f32 %v1511, %v1532
        %v1546 = vmul.f32 %v1512, %v1532
        %v1547 = vmul.f32 %v1513, %v1532
        %v1548 = vmul.f32 %v1514, %v1532
        %v1549 = vmul.f32 %v1515, %v1532
        %v1550 = vmul.f32 %v1516, %v1532
        %v1551 = vmul.f32 %v1517, %v1532
        %v1552 = vmul.f32 %v1518, %v1532
        %v1553 = vmul.f32 %v1519, %v1532
        %v1554 = vmul.f32 %v1520, %v1532
        %v1555 = vmul.f32 %v1521, %v1532
        %v1556 = vmul.f32 %v1522, %v1532
        %v1557 = vmul.f32 %v1523, %v1532
        %v1558 = vmul.f32 %v1524, %v1532
        %v1559 = vmul.f32 %v1525, %v1532
        %v1560 = vmul.f32 %v1526, %v1532
        %v1561 = vmul.f32 %v1527, %v1532
        %v1562 = vmul.f32 %v1528, %v1532
        %v1563 = vmul.f32 %v1529, %v1532
        %v1564 = vmul.f32 %v1530, %v1532
        %v1565 = vadd.f32 %v1467, %v1533
        %v1566 = vadd.f32 %v1468, %v1534
        %v1567 = vadd.f32 %v1469, %v1535
        %v1568 = vadd.f32 %v1470, %v1536
        %v1569 = vadd.f32 %v1471, %v1537
        %v1570 = vadd.f32 %v1472, %v1538
        %v1571 = vadd.f32 %v1473, %v1539
        %v1572 = vadd.f32 %v1474, %v1540
        %v1573 = vadd.f32 %v1475, %v1541
        %v1574 = vadd.f32 %v1476, %v1542
        %v1575 = vadd.f32 %v1477, %v1543
        %v1576 = vadd.f32 %v1478, %v1544
        %v1577 = vadd.f32 %v1479, %v1545
        %v1578 = vadd.f32 %v1480, %v1546
        %v1579 = vadd.f32 %v1481, %v1547
        %v1580 = vadd.f32 %v1482, %v1548
        %v1581 = vadd.f32 %v1483, %v1549
        %v1582 = vadd.f32 %v1484, %v1550
        %v1583 = vadd.f32 %v1485, %v1551
        %v1584 = vadd.f32 %v1486, %v1552
        %v1585 = vadd.f32 %v1487, %v1553
        %v1586 = vadd.f32 %v1488, %v1554
        %v1587 = vadd.f32 %v1489, %v1555
        %v1588 = vadd.f32 %v1490, %v1556
        %v1589 = vadd.f32 %v1491, %v1557
        %v1590 = vadd.f32 %v1492, %v1558
        %v1591 = vadd.f32 %v1493, %v1559
        %v1592 = vadd.f32 %v1494, %v1560
        %v1593 = vadd.f32 %v1495, %v1561
        %v1594 = vadd.f32 %v1496, %v1562
        %v1595 = vadd.f32 %v1497, %v1563
        %v1596 = vadd.f32 %v1498, %v1564
        %v1597 = vld [vmem:[%s1106 + $0x5] sm:$0xff]
        %v1598 = vld [vmem:[%s1106 + $0xd] sm:$0xff]
        %v1599 = vld [vmem:[%s1106 + $0x1d] sm:$0xff]
        %v1600 = vld [vmem:[%s1106 + $0x25] sm:$0xff]
        %v1601 = vld [vmem:[%s1106 + $0x35] sm:$0xff]
        %v1602 = vld [vmem:[%s1106 + $0x3d] sm:$0xff]
        %v1603 = vld [vmem:[%s1106 + $0x4d] sm:$0xff]
        %v1604 = vld [vmem:[%s1106 + $0x55] sm:$0xff]
        %v1605 = vld [vmem:[%s1106 + $0x65] sm:$0xff]
        %v1606 = vld [vmem:[%s1106 + $0x6d] sm:$0xff]
        %v1607 = vld [vmem:[%s1106 + $0x7d] sm:$0xff]
        %v1608 = vld [vmem:[%s1106 + $0x85] sm:$0xff]
        %v1609 = vld [vmem:[%s1106 + $0x95] sm:$0xff]
        %v1610 = vld [vmem:[%s1106 + $0x9d] sm:$0xff]
        %v1611 = vld [vmem:[%s1106 + $0xad] sm:$0xff]
        %v1612 = vld [vmem:[%s1106 + $0xb5] sm:$0xff]
        %v1613 = vld [vmem:[%s1106 + $0xc5] sm:$0xff]
        %v1614 = vld [vmem:[%s1106 + $0xcd] sm:$0xff]
        %v1615 = vld [vmem:[%s1106 + $0xdd] sm:$0xff]
        %v1616 = vld [vmem:[%s1106 + $0xe5] sm:$0xff]
        %v1617 = vld [vmem:[%s1106 + $0xf5] sm:$0xff]
        %v1618 = vld [vmem:[%s1106 + $0xfd] sm:$0xff]
        %v1619 = vld [vmem:[%s1106 + $0x10d] sm:$0xff]
        %v1620 = vld [vmem:[%s1106 + $0x115] sm:$0xff]
        %v1621 = vld [vmem:[%s1106 + $0x125] sm:$0xff]
        %v1622 = vld [vmem:[%s1106 + $0x12d] sm:$0xff]
        %v1623 = vld [vmem:[%s1106 + $0x13d] sm:$0xff]
        %v1624 = vld [vmem:[%s1106 + $0x145] sm:$0xff]
        %v1625 = vld [vmem:[%s1106 + $0x155] sm:$0xff]
        %v1626 = vld [vmem:[%s1106 + $0x15d] sm:$0xff]
        %v1627 = vld [vmem:[%s1106 + $0x16d] sm:$0xff]
        %v1628 = vld [vmem:[%s1106 + $0x175] sm:$0xff]
        %v1629 = vld [vmem:[#allocation6 + $0xc] sm:$0x1]
        %v1630 = vperm.slane %v1629, 0
        %v1631 = vmul.f32 %v1597, %v1630
        %v1632 = vmul.f32 %v1598, %v1630
        %v1633 = vmul.f32 %v1599, %v1630
        %v1634 = vmul.f32 %v1600, %v1630
        %v1635 = vmul.f32 %v1601, %v1630
        %v1636 = vmul.f32 %v1602, %v1630
        %v1637 = vmul.f32 %v1603, %v1630
        %v1638 = vmul.f32 %v1604, %v1630
        %v1639 = vmul.f32 %v1605, %v1630
        %v1640 = vmul.f32 %v1606, %v1630
        %v1641 = vmul.f32 %v1607, %v1630
        %v1642 = vmul.f32 %v1608, %v1630
        %v1643 = vmul.f32 %v1609, %v1630
        %v1644 = vmul.f32 %v1610, %v1630
        %v1645 = vmul.f32 %v1611, %v1630
        %v1646 = vmul.f32 %v1612, %v1630
        %v1647 = vmul.f32 %v1613, %v1630
        %v1648 = vmul.f32 %v1614, %v1630
        %v1649 = vmul.f32 %v1615, %v1630
        %v1650 = vmul.f32 %v1616, %v1630
        %v1651 = vmul.f32 %v1617, %v1630
        %v1652 = vmul.f32 %v1618, %v1630
        %v1653 = vmul.f32 %v1619, %v1630
        %v1654 = vmul.f32 %v1620, %v1630
        %v1655 = vmul.f32 %v1621, %v1630
        %v1656 = vmul.f32 %v1622, %v1630
        %v1657 = vmul.f32 %v1623, %v1630
        %v1658 = vmul.f32 %v1624, %v1630
        %v1659 = vmul.f32 %v1625, %v1630
        %v1660 = vmul.f32 %v1626, %v1630
        %v1661 = vmul.f32 %v1627, %v1630
        %v1662 = vmul.f32 %v1628, %v1630
        %v1663 = vadd.f32 %v1565, %v1631
        %v1664 = vadd.f32 %v1566, %v1632
        %v1665 = vadd.f32 %v1567, %v1633
        %v1666 = vadd.f32 %v1568, %v1634
        %v1667 = vadd.f32 %v1569, %v1635
        %v1668 = vadd.f32 %v1570, %v1636
        %v1669 = vadd.f32 %v1571, %v1637
        %v1670 = vadd.f32 %v1572, %v1638
        %v1671 = vadd.f32 %v1573, %v1639
        %v1672 = vadd.f32 %v1574, %v1640
        %v1673 = vadd.f32 %v1575, %v1641
        %v1674 = vadd.f32 %v1576, %v1642
        %v1675 = vadd.f32 %v1577, %v1643
        %v1676 = vadd.f32 %v1578, %v1644
        %v1677 = vadd.f32 %v1579, %v1645
        %v1678 = vadd.f32 %v1580, %v1646
        %v1679 = vadd.f32 %v1581, %v1647
        %v1680 = vadd.f32 %v1582, %v1648
        %v1681 = vadd.f32 %v1583, %v1649
        %v1682 = vadd.f32 %v1584, %v1650
        %v1683 = vadd.f32 %v1585, %v1651
        %v1684 = vadd.f32 %v1586, %v1652
        %v1685 = vadd.f32 %v1587, %v1653
        %v1686 = vadd.f32 %v1588, %v1654
        %v1687 = vadd.f32 %v1589, %v1655
        %v1688 = vadd.f32 %v1590, %v1656
        %v1689 = vadd.f32 %v1591, %v1657
        %v1690 = vadd.f32 %v1592, %v1658
        %v1691 = vadd.f32 %v1593, %v1659
        %v1692 = vadd.f32 %v1594, %v1660
        %v1693 = vadd.f32 %v1595, %v1661
        %v1694 = vadd.f32 %v1596, %v1662
        %v1695 = vld [vmem:[%s1106 + $0x6] sm:$0xff]
        %v1696 = vld [vmem:[%s1106 + $0xe] sm:$0xff]
        %v1697 = vld [vmem:[%s1106 + $0x1e] sm:$0xff]
        %v1698 = vld [vmem:[%s1106 + $0x26] sm:$0xff]
        %v1699 = vld [vmem:[%s1106 + $0x36] sm:$0xff]
        %v1700 = vld [vmem:[%s1106 + $0x3e] sm:$0xff]
        %v1701 = vld [vmem:[%s1106 + $0x4e] sm:$0xff]
        %v1702 = vld [vmem:[%s1106 + $0x56] sm:$0xff]
        %v1703 = vld [vmem:[%s1106 + $0x66] sm:$0xff]
        %v1704 = vld [vmem:[%s1106 + $0x6e] sm:$0xff]
        %v1705 = vld [vmem:[%s1106 + $0x7e] sm:$0xff]
        %v1706 = vld [vmem:[%s1106 + $0x86] sm:$0xff]
        %v1707 = vld [vmem:[%s1106 + $0x96] sm:$0xff]
        %v1708 = vld [vmem:[%s1106 + $0x9e] sm:$0xff]
        %v1709 = vld [vmem:[%s1106 + $0xae] sm:$0xff]
        %v1710 = vld [vmem:[%s1106 + $0xb6] sm:$0xff]
        %v1711 = vld [vmem:[%s1106 + $0xc6] sm:$0xff]
        %v1712 = vld [vmem:[%s1106 + $0xce] sm:$0xff]
        %v1713 = vld [vmem:[%s1106 + $0xde] sm:$0xff]
        %v1714 = vld [vmem:[%s1106 + $0xe6] sm:$0xff]
        %v1715 = vld [vmem:[%s1106 + $0xf6] sm:$0xff]
        %v1716 = vld [vmem:[%s1106 + $0xfe] sm:$0xff]
        %v1717 = vld [vmem:[%s1106 + $0x10e] sm:$0xff]
        %v1718 = vld [vmem:[%s1106 + $0x116] sm:$0xff]
        %v1719 = vld [vmem:[%s1106 + $0x126] sm:$0xff]
        %v1720 = vld [vmem:[%s1106 + $0x12e] sm:$0xff]
        %v1721 = vld [vmem:[%s1106 + $0x13e] sm:$0xff]
        %v1722 = vld [vmem:[%s1106 + $0x146] sm:$0xff]
        %v1723 = vld [vmem:[%s1106 + $0x156] sm:$0xff]
        %v1724 = vld [vmem:[%s1106 + $0x15e] sm:$0xff]
        %v1725 = vld [vmem:[%s1106 + $0x16e] sm:$0xff]
        %v1726 = vld [vmem:[%s1106 + $0x176] sm:$0xff]
        %v1727 = vld [vmem:[#allocation6 + $0xd] sm:$0x1]
        %v1728 = vperm.slane %v1727, 0
        %v1729 = vmul.f32 %v1695, %v1728
        %v1730 = vmul.f32 %v1696, %v1728
        %v1731 = vmul.f32 %v1697, %v1728
        %v1732 = vmul.f32 %v1698, %v1728
        %v1733 = vmul.f32 %v1699, %v1728
        %v1734 = vmul.f32 %v1700, %v1728
        %v1735 = vmul.f32 %v1701, %v1728
        %v1736 = vmul.f32 %v1702, %v1728
        %v1737 = vmul.f32 %v1703, %v1728
        %v1738 = vmul.f32 %v1704, %v1728
        %v1739 = vmul.f32 %v1705, %v1728
        %v1740 = vmul.f32 %v1706, %v1728
        %v1741 = vmul.f32 %v1707, %v1728
        %v1742 = vmul.f32 %v1708, %v1728
        %v1743 = vmul.f32 %v1709, %v1728
        %v1744 = vmul.f32 %v1710, %v1728
        %v1745 = vmul.f32 %v1711, %v1728
        %v1746 = vmul.f32 %v1712, %v1728
        %v1747 = vmul.f32 %v1713, %v1728
        %v1748 = vmul.f32 %v1714, %v1728
        %v1749 = vmul.f32 %v1715, %v1728
        %v1750 = vmul.f32 %v1716, %v1728
        %v1751 = vmul.f32 %v1717, %v1728
        %v1752 = vmul.f32 %v1718, %v1728
        %v1753 = vmul.f32 %v1719, %v1728
        %v1754 = vmul.f32 %v1720, %v1728
        %v1755 = vmul.f32 %v1721, %v1728
        %v1756 = vmul.f32 %v1722, %v1728
        %v1757 = vmul.f32 %v1723, %v1728
        %v1758 = vmul.f32 %v1724, %v1728
        %v1759 = vmul.f32 %v1725, %v1728
        %v1760 = vmul.f32 %v1726, %v1728
        %v1761 = vadd.f32 %v1663, %v1729
        %v1762 = vadd.f32 %v1664, %v1730
        %v1763 = vadd.f32 %v1665, %v1731
        %v1764 = vadd.f32 %v1666, %v1732
        %v1765 = vadd.f32 %v1667, %v1733
        %v1766 = vadd.f32 %v1668, %v1734
        %v1767 = vadd.f32 %v1669, %v1735
        %v1768 = vadd.f32 %v1670, %v1736
        %v1769 = vadd.f32 %v1671, %v1737
        %v1770 = vadd.f32 %v1672, %v1738
        %v1771 = vadd.f32 %v1673, %v1739
        %v1772 = vadd.f32 %v1674, %v1740
        %v1773 = vadd.f32 %v1675, %v1741
        %v1774 = vadd.f32 %v1676, %v1742
        %v1775 = vadd.f32 %v1677, %v1743
        %v1776 = vadd.f32 %v1678, %v1744
        %v1777 = vadd.f32 %v1679, %v1745
        %v1778 = vadd.f32 %v1680, %v1746
        %v1779 = vadd.f32 %v1681, %v1747
        %v1780 = vadd.f32 %v1682, %v1748
        %v1781 = vadd.f32 %v1683, %v1749
        %v1782 = vadd.f32 %v1684, %v1750
        %v1783 = vadd.f32 %v1685, %v1751
        %v1784 = vadd.f32 %v1686, %v1752
        %v1785 = vadd.f32 %v1687, %v1753
        %v1786 = vadd.f32 %v1688, %v1754
        %v1787 = vadd.f32 %v1689, %v1755
        %v1788 = vadd.f32 %v1690, %v1756
        %v1789 = vadd.f32 %v1691, %v1757
        %v1790 = vadd.f32 %v1692, %v1758
        %v1791 = vadd.f32 %v1693, %v1759
        %v1792 = vadd.f32 %v1694, %v1760
        %s1793 = scalar_lea.vmem [#allocation2], 48
        %v1794 = vld [vmem:[%s1793] sm:$0xff]
        %v1795 = vld [vmem:[%s1793 + $0x8] sm:$0xff]
        %v1796 = vld [vmem:[%s1793 + $0x18] sm:$0xff]
        %v1797 = vld [vmem:[%s1793 + $0x20] sm:$0xff]
        %v1798 = vld [vmem:[%s1793 + $0x30] sm:$0xff]
        %v1799 = vld [vmem:[%s1793 + $0x38] sm:$0xff]
        %v1800 = vld [vmem:[%s1793 + $0x48] sm:$0xff]
        %v1801 = vld [vmem:[%s1793 + $0x50] sm:$0xff]
        %v1802 = vld [vmem:[%s1793 + $0x60] sm:$0xff]
        %v1803 = vld [vmem:[%s1793 + $0x68] sm:$0xff]
        %v1804 = vld [vmem:[%s1793 + $0x78] sm:$0xff]
        %v1805 = vld [vmem:[%s1793 + $0x80] sm:$0xff]
        %v1806 = vld [vmem:[%s1793 + $0x90] sm:$0xff]
        %v1807 = vld [vmem:[%s1793 + $0x98] sm:$0xff]
        %v1808 = vld [vmem:[%s1793 + $0xa8] sm:$0xff]
        %v1809 = vld [vmem:[%s1793 + $0xb0] sm:$0xff]
        %v1810 = vld [vmem:[%s1793 + $0xc0] sm:$0xff]
        %v1811 = vld [vmem:[%s1793 + $0xc8] sm:$0xff]
        %v1812 = vld [vmem:[%s1793 + $0xd8] sm:$0xff]
        %v1813 = vld [vmem:[%s1793 + $0xe0] sm:$0xff]
        %v1814 = vld [vmem:[%s1793 + $0xf0] sm:$0xff]
        %v1815 = vld [vmem:[%s1793 + $0xf8] sm:$0xff]
        %v1816 = vld [vmem:[%s1793 + $0x108] sm:$0xff]
        %v1817 = vld [vmem:[%s1793 + $0x110] sm:$0xff]
        %v1818 = vld [vmem:[%s1793 + $0x120] sm:$0xff]
        %v1819 = vld [vmem:[%s1793 + $0x128] sm:$0xff]
        %v1820 = vld [vmem:[%s1793 + $0x138] sm:$0xff]
        %v1821 = vld [vmem:[%s1793 + $0x140] sm:$0xff]
        %v1822 = vld [vmem:[%s1793 + $0x150] sm:$0xff]
        %v1823 = vld [vmem:[%s1793 + $0x158] sm:$0xff]
        %v1824 = vld [vmem:[%s1793 + $0x168] sm:$0xff]
        %v1825 = vld [vmem:[%s1793 + $0x170] sm:$0xff]
        %v1826 = vld [vmem:[#allocation6 + $0xe] sm:$0x1]
        %v1827 = vperm.slane %v1826, 0
        %v1828 = vmul.f32 %v1794, %v1827
        %v1829 = vmul.f32 %v1795, %v1827
        %v1830 = vmul.f32 %v1796, %v1827
        %v1831 = vmul.f32 %v1797, %v1827
        %v1832 = vmul.f32 %v1798, %v1827
        %v1833 = vmul.f32 %v1799, %v1827
        %v1834 = vmul.f32 %v1800, %v1827
        %v1835 = vmul.f32 %v1801, %v1827
        %v1836 = vmul.f32 %v1802, %v1827
        %v1837 = vmul.f32 %v1803, %v1827
        %v1838 = vmul.f32 %v1804, %v1827
        %v1839 = vmul.f32 %v1805, %v1827
        %v1840 = vmul.f32 %v1806, %v1827
        %v1841 = vmul.f32 %v1807, %v1827
        %v1842 = vmul.f32 %v1808, %v1827
        %v1843 = vmul.f32 %v1809, %v1827
        %v1844 = vmul.f32 %v1810, %v1827
        %v1845 = vmul.f32 %v1811, %v1827
        %v1846 = vmul.f32 %v1812, %v1827
        %v1847 = vmul.f32 %v1813, %v1827
        %v1848 = vmul.f32 %v1814, %v1827
        %v1849 = vmul.f32 %v1815, %v1827
        %v1850 = vmul.f32 %v1816, %v1827
        %v1851 = vmul.f32 %v1817, %v1827
        %v1852 = vmul.f32 %v1818, %v1827
        %v1853 = vmul.f32 %v1819, %v1827
        %v1854 = vmul.f32 %v1820, %v1827
        %v1855 = vmul.f32 %v1821, %v1827
        %v1856 = vmul.f32 %v1822, %v1827
        %v1857 = vmul.f32 %v1823, %v1827
        %v1858 = vmul.f32 %v1824, %v1827
        %v1859 = vmul.f32 %v1825, %v1827
        %v1860 = vadd.f32 %v1761, %v1828
        %v1861 = vadd.f32 %v1762, %v1829
        %v1862 = vadd.f32 %v1763, %v1830
        %v1863 = vadd.f32 %v1764, %v1831
        %v1864 = vadd.f32 %v1765, %v1832
        %v1865 = vadd.f32 %v1766, %v1833
        %v1866 = vadd.f32 %v1767, %v1834
        %v1867 = vadd.f32 %v1768, %v1835
        %v1868 = vadd.f32 %v1769, %v1836
        %v1869 = vadd.f32 %v1770, %v1837
        %v1870 = vadd.f32 %v1771, %v1838
        %v1871 = vadd.f32 %v1772, %v1839
        %v1872 = vadd.f32 %v1773, %v1840
        %v1873 = vadd.f32 %v1774, %v1841
        %v1874 = vadd.f32 %v1775, %v1842
        %v1875 = vadd.f32 %v1776, %v1843
        %v1876 = vadd.f32 %v1777, %v1844
        %v1877 = vadd.f32 %v1778, %v1845
        %v1878 = vadd.f32 %v1779, %v1846
        %v1879 = vadd.f32 %v1780, %v1847
        %v1880 = vadd.f32 %v1781, %v1848
        %v1881 = vadd.f32 %v1782, %v1849
        %v1882 = vadd.f32 %v1783, %v1850
        %v1883 = vadd.f32 %v1784, %v1851
        %v1884 = vadd.f32 %v1785, %v1852
        %v1885 = vadd.f32 %v1786, %v1853
        %v1886 = vadd.f32 %v1787, %v1854
        %v1887 = vadd.f32 %v1788, %v1855
        %v1888 = vadd.f32 %v1789, %v1856
        %v1889 = vadd.f32 %v1790, %v1857
        %v1890 = vadd.f32 %v1791, %v1858
        %v1891 = vadd.f32 %v1792, %v1859
        %v1892 = vld [vmem:[%s1793 + $0x1] sm:$0xff]
        %v1893 = vld [vmem:[%s1793 + $0x9] sm:$0xff]
        %v1894 = vld [vmem:[%s1793 + $0x19] sm:$0xff]
        %v1895 = vld [vmem:[%s1793 + $0x21] sm:$0xff]
        %v1896 = vld [vmem:[%s1793 + $0x31] sm:$0xff]
        %v1897 = vld [vmem:[%s1793 + $0x39] sm:$0xff]
        %v1898 = vld [vmem:[%s1793 + $0x49] sm:$0xff]
        %v1899 = vld [vmem:[%s1793 + $0x51] sm:$0xff]
        %v1900 = vld [vmem:[%s1793 + $0x61] sm:$0xff]
        %v1901 = vld [vmem:[%s1793 + $0x69] sm:$0xff]
        %v1902 = vld [vmem:[%s1793 + $0x79] sm:$0xff]
        %v1903 = vld [vmem:[%s1793 + $0x81] sm:$0xff]
        %v1904 = vld [vmem:[%s1793 + $0x91] sm:$0xff]
        %v1905 = vld [vmem:[%s1793 + $0x99] sm:$0xff]
        %v1906 = vld [vmem:[%s1793 + $0xa9] sm:$0xff]
        %v1907 = vld [vmem:[%s1793 + $0xb1] sm:$0xff]
        %v1908 = vld [vmem:[%s1793 + $0xc1] sm:$0xff]
        %v1909 = vld [vmem:[%s1793 + $0xc9] sm:$0xff]
        %v1910 = vld [vmem:[%s1793 + $0xd9] sm:$0xff]
        %v1911 = vld [vmem:[%s1793 + $0xe1] sm:$0xff]
        %v1912 = vld [vmem:[%s1793 + $0xf1] sm:$0xff]
        %v1913 = vld [vmem:[%s1793 + $0xf9] sm:$0xff]
        %v1914 = vld [vmem:[%s1793 + $0x109] sm:$0xff]
        %v1915 = vld [vmem:[%s1793 + $0x111] sm:$0xff]
        %v1916 = vld [vmem:[%s1793 + $0x121] sm:$0xff]
        %v1917 = vld [vmem:[%s1793 + $0x129] sm:$0xff]
        %v1918 = vld [vmem:[%s1793 + $0x139] sm:$0xff]
        %v1919 = vld [vmem:[%s1793 + $0x141] sm:$0xff]
        %v1920 = vld [vmem:[%s1793 + $0x151] sm:$0xff]
        %v1921 = vld [vmem:[%s1793 + $0x159] sm:$0xff]
        %v1922 = vld [vmem:[%s1793 + $0x169] sm:$0xff]
        %v1923 = vld [vmem:[%s1793 + $0x171] sm:$0xff]
        %v1924 = vld [vmem:[#allocation6 + $0xf] sm:$0x1]
        %v1925 = vperm.slane %v1924, 0
        %v1926 = vmul.f32 %v1892, %v1925
        %v1927 = vmul.f32 %v1893, %v1925
        %v1928 = vmul.f32 %v1894, %v1925
        %v1929 = vmul.f32 %v1895, %v1925
        %v1930 = vmul.f32 %v1896, %v1925
        %v1931 = vmul.f32 %v1897, %v1925
        %v1932 = vmul.f32 %v1898, %v1925
        %v1933 = vmul.f32 %v1899, %v1925
        %v1934 = vmul.f32 %v1900, %v1925
        %v1935 = vmul.f32 %v1901, %v1925
        %v1936 = vmul.f32 %v1902, %v1925
        %v1937 = vmul.f32 %v1903, %v1925
        %v1938 = vmul.f32 %v1904, %v1925
        %v1939 = vmul.f32 %v1905, %v1925
        %v1940 = vmul.f32 %v1906, %v1925
        %v1941 = vmul.f32 %v1907, %v1925
        %v1942 = vmul.f32 %v1908, %v1925
        %v1943 = vmul.f32 %v1909, %v1925
        %v1944 = vmul.f32 %v1910, %v1925
        %v1945 = vmul.f32 %v1911, %v1925
        %v1946 = vmul.f32 %v1912, %v1925
        %v1947 = vmul.f32 %v1913, %v1925
        %v1948 = vmul.f32 %v1914, %v1925
        %v1949 = vmul.f32 %v1915, %v1925
        %v1950 = vmul.f32 %v1916, %v1925
        %v1951 = vmul.f32 %v1917, %v1925
        %v1952 = vmul.f32 %v1918, %v1925
        %v1953 = vmul.f32 %v1919, %v1925
        %v1954 = vmul.f32 %v1920, %v1925
        %v1955 = vmul.f32 %v1921, %v1925
        %v1956 = vmul.f32 %v1922, %v1925
        %v1957 = vmul.f32 %v1923, %v1925
        %v1958 = vadd.f32 %v1860, %v1926
        %v1959 = vadd.f32 %v1861, %v1927
        %v1960 = vadd.f32 %v1862, %v1928
        %v1961 = vadd.f32 %v1863, %v1929
        %v1962 = vadd.f32 %v1864, %v1930
        %v1963 = vadd.f32 %v1865, %v1931
        %v1964 = vadd.f32 %v1866, %v1932
        %v1965 = vadd.f32 %v1867, %v1933
        %v1966 = vadd.f32 %v1868, %v1934
        %v1967 = vadd.f32 %v1869, %v1935
        %v1968 = vadd.f32 %v1870, %v1936
        %v1969 = vadd.f32 %v1871, %v1937
        %v1970 = vadd.f32 %v1872, %v1938
        %v1971 = vadd.f32 %v1873, %v1939
        %v1972 = vadd.f32 %v1874, %v1940
        %v1973 = vadd.f32 %v1875, %v1941
        %v1974 = vadd.f32 %v1876, %v1942
        %v1975 = vadd.f32 %v1877, %v1943
        %v1976 = vadd.f32 %v1878, %v1944
        %v1977 = vadd.f32 %v1879, %v1945
        %v1978 = vadd.f32 %v1880, %v1946
        %v1979 = vadd.f32 %v1881, %v1947
        %v1980 = vadd.f32 %v1882, %v1948
        %v1981 = vadd.f32 %v1883, %v1949
        %v1982 = vadd.f32 %v1884, %v1950
        %v1983 = vadd.f32 %v1885, %v1951
        %v1984 = vadd.f32 %v1886, %v1952
        %v1985 = vadd.f32 %v1887, %v1953
        %v1986 = vadd.f32 %v1888, %v1954
        %v1987 = vadd.f32 %v1889, %v1955
        %v1988 = vadd.f32 %v1890, %v1956
        %v1989 = vadd.f32 %v1891, %v1957
        %v1990 = vld [vmem:[%s1793 + $0x2] sm:$0xff]
        %v1991 = vld [vmem:[%s1793 + $0xa] sm:$0xff]
        %v1992 = vld [vmem:[%s1793 + $0x1a] sm:$0xff]
        %v1993 = vld [vmem:[%s1793 + $0x22] sm:$0xff]
        %v1994 = vld [vmem:[%s1793 + $0x32] sm:$0xff]
        %v1995 = vld [vmem:[%s1793 + $0x3a] sm:$0xff]
        %v1996 = vld [vmem:[%s1793 + $0x4a] sm:$0xff]
        %v1997 = vld [vmem:[%s1793 + $0x52] sm:$0xff]
        %v1998 = vld [vmem:[%s1793 + $0x62] sm:$0xff]
        %v1999 = vld [vmem:[%s1793 + $0x6a] sm:$0xff]
        %v2000 = vld [vmem:[%s1793 + $0x7a] sm:$0xff]
        %v2001 = vld [vmem:[%s1793 + $0x82] sm:$0xff]
        %v2002 = vld [vmem:[%s1793 + $0x92] sm:$0xff]
        %v2003 = vld [vmem:[%s1793 + $0x9a] sm:$0xff]
        %v2004 = vld [vmem:[%s1793 + $0xaa] sm:$0xff]
        %v2005 = vld [vmem:[%s1793 + $0xb2] sm:$0xff]
        %v2006 = vld [vmem:[%s1793 + $0xc2] sm:$0xff]
        %v2007 = vld [vmem:[%s1793 + $0xca] sm:$0xff]
        %v2008 = vld [vmem:[%s1793 + $0xda] sm:$0xff]
        %v2009 = vld [vmem:[%s1793 + $0xe2] sm:$0xff]
        %v2010 = vld [vmem:[%s1793 + $0xf2] sm:$0xff]
        %v2011 = vld [vmem:[%s1793 + $0xfa] sm:$0xff]
        %v2012 = vld [vmem:[%s1793 + $0x10a] sm:$0xff]
        %v2013 = vld [vmem:[%s1793 + $0x112] sm:$0xff]
        %v2014 = vld [vmem:[%s1793 + $0x122] sm:$0xff]
        %v2015 = vld [vmem:[%s1793 + $0x12a] sm:$0xff]
        %v2016 = vld [vmem:[%s1793 + $0x13a] sm:$0xff]
        %v2017 = vld [vmem:[%s1793 + $0x142] sm:$0xff]
        %v2018 = vld [vmem:[%s1793 + $0x152] sm:$0xff]
        %v2019 = vld [vmem:[%s1793 + $0x15a] sm:$0xff]
        %v2020 = vld [vmem:[%s1793 + $0x16a] sm:$0xff]
        %v2021 = vld [vmem:[%s1793 + $0x172] sm:$0xff]
        %v2022 = vld [vmem:[#allocation6 + $0x10] sm:$0x1]
        %v2023 = vperm.slane %v2022, 0
        %v2024 = vmul.f32 %v1990, %v2023
        %v2025 = vmul.f32 %v1991, %v2023
        %v2026 = vmul.f32 %v1992, %v2023
        %v2027 = vmul.f32 %v1993, %v2023
        %v2028 = vmul.f32 %v1994, %v2023
        %v2029 = vmul.f32 %v1995, %v2023
        %v2030 = vmul.f32 %v1996, %v2023
        %v2031 = vmul.f32 %v1997, %v2023
        %v2032 = vmul.f32 %v1998, %v2023
        %v2033 = vmul.f32 %v1999, %v2023
        %v2034 = vmul.f32 %v2000, %v2023
        %v2035 = vmul.f32 %v2001, %v2023
        %v2036 = vmul.f32 %v2002, %v2023
        %v2037 = vmul.f32 %v2003, %v2023
        %v2038 = vmul.f32 %v2004, %v2023
        %v2039 = vmul.f32 %v2005, %v2023
        %v2040 = vmul.f32 %v2006, %v2023
        %v2041 = vmul.f32 %v2007, %v2023
        %v2042 = vmul.f32 %v2008, %v2023
        %v2043 = vmul.f32 %v2009, %v2023
        %v2044 = vmul.f32 %v2010, %v2023
        %v2045 = vmul.f32 %v2011, %v2023
        %v2046 = vmul.f32 %v2012, %v2023
        %v2047 = vmul.f32 %v2013, %v2023
        %v2048 = vmul.f32 %v2014, %v2023
        %v2049 = vmul.f32 %v2015, %v2023
        %v2050 = vmul.f32 %v2016, %v2023
        %v2051 = vmul.f32 %v2017, %v2023
        %v2052 = vmul.f32 %v2018, %v2023
        %v2053 = vmul.f32 %v2019, %v2023
        %v2054 = vmul.f32 %v2020, %v2023
        %v2055 = vmul.f32 %v2021, %v2023
        %v2056 = vadd.f32 %v1958, %v2024
        %v2057 = vadd.f32 %v1959, %v2025
        %v2058 = vadd.f32 %v1960, %v2026
        %v2059 = vadd.f32 %v1961, %v2027
        %v2060 = vadd.f32 %v1962, %v2028
        %v2061 = vadd.f32 %v1963, %v2029
        %v2062 = vadd.f32 %v1964, %v2030
        %v2063 = vadd.f32 %v1965, %v2031
        %v2064 = vadd.f32 %v1966, %v2032
        %v2065 = vadd.f32 %v1967, %v2033
        %v2066 = vadd.f32 %v1968, %v2034
        %v2067 = vadd.f32 %v1969, %v2035
        %v2068 = vadd.f32 %v1970, %v2036
        %v2069 = vadd.f32 %v1971, %v2037
        %v2070 = vadd.f32 %v1972, %v2038
        %v2071 = vadd.f32 %v1973, %v2039
        %v2072 = vadd.f32 %v1974, %v2040
        %v2073 = vadd.f32 %v1975, %v2041
        %v2074 = vadd.f32 %v1976, %v2042
        %v2075 = vadd.f32 %v1977, %v2043
        %v2076 = vadd.f32 %v1978, %v2044
        %v2077 = vadd.f32 %v1979, %v2045
        %v2078 = vadd.f32 %v1980, %v2046
        %v2079 = vadd.f32 %v1981, %v2047
        %v2080 = vadd.f32 %v1982, %v2048
        %v2081 = vadd.f32 %v1983, %v2049
        %v2082 = vadd.f32 %v1984, %v2050
        %v2083 = vadd.f32 %v1985, %v2051
        %v2084 = vadd.f32 %v1986, %v2052
        %v2085 = vadd.f32 %v1987, %v2053
        %v2086 = vadd.f32 %v1988, %v2054
        %v2087 = vadd.f32 %v1989, %v2055
        %v2088 = vld [vmem:[%s1793 + $0x3] sm:$0xff]
        %v2089 = vld [vmem:[%s1793 + $0xb] sm:$0xff]
        %v2090 = vld [vmem:[%s1793 + $0x1b] sm:$0xff]
        %v2091 = vld [vmem:[%s1793 + $0x23] sm:$0xff]
        %v2092 = vld [vmem:[%s1793 + $0x33] sm:$0xff]
        %v2093 = vld [vmem:[%s1793 + $0x3b] sm:$0xff]
        %v2094 = vld [vmem:[%s1793 + $0x4b] sm:$0xff]
        %v2095 = vld [vmem:[%s1793 + $0x53] sm:$0xff]
        %v2096 = vld [vmem:[%s1793 + $0x63] sm:$0xff]
        %v2097 = vld [vmem:[%s1793 + $0x6b] sm:$0xff]
        %v2098 = vld [vmem:[%s1793 + $0x7b] sm:$0xff]
        %v2099 = vld [vmem:[%s1793 + $0x83] sm:$0xff]
        %v2100 = vld [vmem:[%s1793 + $0x93] sm:$0xff]
        %v2101 = vld [vmem:[%s1793 + $0x9b] sm:$0xff]
        %v2102 = vld [vmem:[%s1793 + $0xab] sm:$0xff]
        %v2103 = vld [vmem:[%s1793 + $0xb3] sm:$0xff]
        %v2104 = vld [vmem:[%s1793 + $0xc3] sm:$0xff]
        %v2105 = vld [vmem:[%s1793 + $0xcb] sm:$0xff]
        %v2106 = vld [vmem:[%s1793 + $0xdb] sm:$0xff]
        %v2107 = vld [vmem:[%s1793 + $0xe3] sm:$0xff]
        %v2108 = vld [vmem:[%s1793 + $0xf3] sm:$0xff]
        %v2109 = vld [vmem:[%s1793 + $0xfb] sm:$0xff]
        %v2110 = vld [vmem:[%s1793 + $0x10b] sm:$0xff]
        %v2111 = vld [vmem:[%s1793 + $0x113] sm:$0xff]
        %v2112 = vld [vmem:[%s1793 + $0x123] sm:$0xff]
        %v2113 = vld [vmem:[%s1793 + $0x12b] sm:$0xff]
        %v2114 = vld [vmem:[%s1793 + $0x13b] sm:$0xff]
        %v2115 = vld [vmem:[%s1793 + $0x143] sm:$0xff]
        %v2116 = vld [vmem:[%s1793 + $0x153] sm:$0xff]
        %v2117 = vld [vmem:[%s1793 + $0x15b] sm:$0xff]
        %v2118 = vld [vmem:[%s1793 + $0x16b] sm:$0xff]
        %v2119 = vld [vmem:[%s1793 + $0x173] sm:$0xff]
        %v2120 = vld [vmem:[#allocation6 + $0x11] sm:$0x1]
        %v2121 = vperm.slane %v2120, 0
        %v2122 = vmul.f32 %v2088, %v2121
        %v2123 = vmul.f32 %v2089, %v2121
        %v2124 = vmul.f32 %v2090, %v2121
        %v2125 = vmul.f32 %v2091, %v2121
        %v2126 = vmul.f32 %v2092, %v2121
        %v2127 = vmul.f32 %v2093, %v2121
        %v2128 = vmul.f32 %v2094, %v2121
        %v2129 = vmul.f32 %v2095, %v2121
        %v2130 = vmul.f32 %v2096, %v2121
        %v2131 = vmul.f32 %v2097, %v2121
        %v2132 = vmul.f32 %v2098, %v2121
        %v2133 = vmul.f32 %v2099, %v2121
        %v2134 = vmul.f32 %v2100, %v2121
        %v2135 = vmul.f32 %v2101, %v2121
        %v2136 = vmul.f32 %v2102, %v2121
        %v2137 = vmul.f32 %v2103, %v2121
        %v2138 = vmul.f32 %v2104, %v2121
        %v2139 = vmul.f32 %v2105, %v2121
        %v2140 = vmul.f32 %v2106, %v2121
        %v2141 = vmul.f32 %v2107, %v2121
        %v2142 = vmul.f32 %v2108, %v2121
        %v2143 = vmul.f32 %v2109, %v2121
        %v2144 = vmul.f32 %v2110, %v2121
        %v2145 = vmul.f32 %v2111, %v2121
        %v2146 = vmul.f32 %v2112, %v2121
        %v2147 = vmul.f32 %v2113, %v2121
        %v2148 = vmul.f32 %v2114, %v2121
        %v2149 = vmul.f32 %v2115, %v2121
        %v2150 = vmul.f32 %v2116, %v2121
        %v2151 = vmul.f32 %v2117, %v2121
        %v2152 = vmul.f32 %v2118, %v2121
        %v2153 = vmul.f32 %v2119, %v2121
        %v2154 = vadd.f32 %v2056, %v2122
        %v2155 = vadd.f32 %v2057, %v2123
        %v2156 = vadd.f32 %v2058, %v2124
        %v2157 = vadd.f32 %v2059, %v2125
        %v2158 = vadd.f32 %v2060, %v2126
        %v2159 = vadd.f32 %v2061, %v2127
        %v2160 = vadd.f32 %v2062, %v2128
        %v2161 = vadd.f32 %v2063, %v2129
        %v2162 = vadd.f32 %v2064, %v2130
        %v2163 = vadd.f32 %v2065, %v2131
        %v2164 = vadd.f32 %v2066, %v2132
        %v2165 = vadd.f32 %v2067, %v2133
        %v2166 = vadd.f32 %v2068, %v2134
        %v2167 = vadd.f32 %v2069, %v2135
        %v2168 = vadd.f32 %v2070, %v2136
        %v2169 = vadd.f32 %v2071, %v2137
        %v2170 = vadd.f32 %v2072, %v2138
        %v2171 = vadd.f32 %v2073, %v2139
        %v2172 = vadd.f32 %v2074, %v2140
        %v2173 = vadd.f32 %v2075, %v2141
        %v2174 = vadd.f32 %v2076, %v2142
        %v2175 = vadd.f32 %v2077, %v2143
        %v2176 = vadd.f32 %v2078, %v2144
        %v2177 = vadd.f32 %v2079, %v2145
        %v2178 = vadd.f32 %v2080, %v2146
        %v2179 = vadd.f32 %v2081, %v2147
        %v2180 = vadd.f32 %v2082, %v2148
        %v2181 = vadd.f32 %v2083, %v2149
        %v2182 = vadd.f32 %v2084, %v2150
        %v2183 = vadd.f32 %v2085, %v2151
        %v2184 = vadd.f32 %v2086, %v2152
        %v2185 = vadd.f32 %v2087, %v2153
        %v2186 = vld [vmem:[%s1793 + $0x4] sm:$0xff]
        %v2187 = vld [vmem:[%s1793 + $0xc] sm:$0xff]
        %v2188 = vld [vmem:[%s1793 + $0x1c] sm:$0xff]
        %v2189 = vld [vmem:[%s1793 + $0x24] sm:$0xff]
        %v2190 = vld [vmem:[%s1793 + $0x34] sm:$0xff]
        %v2191 = vld [vmem:[%s1793 + $0x3c] sm:$0xff]
        %v2192 = vld [vmem:[%s1793 + $0x4c] sm:$0xff]
        %v2193 = vld [vmem:[%s1793 + $0x54] sm:$0xff]
        %v2194 = vld [vmem:[%s1793 + $0x64] sm:$0xff]
        %v2195 = vld [vmem:[%s1793 + $0x6c] sm:$0xff]
        %v2196 = vld [vmem:[%s1793 + $0x7c] sm:$0xff]
        %v2197 = vld [vmem:[%s1793 + $0x84] sm:$0xff]
        %v2198 = vld [vmem:[%s1793 + $0x94] sm:$0xff]
        %v2199 = vld [vmem:[%s1793 + $0x9c] sm:$0xff]
        %v2200 = vld [vmem:[%s1793 + $0xac] sm:$0xff]
        %v2201 = vld [vmem:[%s1793 + $0xb4] sm:$0xff]
        %v2202 = vld [vmem:[%s1793 + $0xc4] sm:$0xff]
        %v2203 = vld [vmem:[%s1793 + $0xcc] sm:$0xff]
        %v2204 = vld [vmem:[%s1793 + $0xdc] sm:$0xff]
        %v2205 = vld [vmem:[%s1793 + $0xe4] sm:$0xff]
        %v2206 = vld [vmem:[%s1793 + $0xf4] sm:$0xff]
        %v2207 = vld [vmem:[%s1793 + $0xfc] sm:$0xff]
        %v2208 = vld [vmem:[%s1793 + $0x10c] sm:$0xff]
        %v2209 = vld [vmem:[%s1793 + $0x114] sm:$0xff]
        %v2210 = vld [vmem:[%s1793 + $0x124] sm:$0xff]
        %v2211 = vld [vmem:[%s1793 + $0x12c] sm:$0xff]
        %v2212 = vld [vmem:[%s1793 + $0x13c] sm:$0xff]
        %v2213 = vld [vmem:[%s1793 + $0x144] sm:$0xff]
        %v2214 = vld [vmem:[%s1793 + $0x154] sm:$0xff]
        %v2215 = vld [vmem:[%s1793 + $0x15c] sm:$0xff]
        %v2216 = vld [vmem:[%s1793 + $0x16c] sm:$0xff]
        %v2217 = vld [vmem:[%s1793 + $0x174] sm:$0xff]
        %v2218 = vld [vmem:[#allocation6 + $0x12] sm:$0x1]
        %v2219 = vperm.slane %v2218, 0
        %v2220 = vmul.f32 %v2186, %v2219
        %v2221 = vmul.f32 %v2187, %v2219
        %v2222 = vmul.f32 %v2188, %v2219
        %v2223 = vmul.f32 %v2189, %v2219
        %v2224 = vmul.f32 %v2190, %v2219
        %v2225 = vmul.f32 %v2191, %v2219
        %v2226 = vmul.f32 %v2192, %v2219
        %v2227 = vmul.f32 %v2193, %v2219
        %v2228 = vmul.f32 %v2194, %v2219
        %v2229 = vmul.f32 %v2195, %v2219
        %v2230 = vmul.f32 %v2196, %v2219
        %v2231 = vmul.f32 %v2197, %v2219
        %v2232 = vmul.f32 %v2198, %v2219
        %v2233 = vmul.f32 %v2199, %v2219
        %v2234 = vmul.f32 %v2200, %v2219
        %v2235 = vmul.f32 %v2201, %v2219
        %v2236 = vmul.f32 %v2202, %v2219
        %v2237 = vmul.f32 %v2203, %v2219
        %v2238 = vmul.f32 %v2204, %v2219
        %v2239 = vmul.f32 %v2205, %v2219
        %v2240 = vmul.f32 %v2206, %v2219
        %v2241 = vmul.f32 %v2207, %v2219
        %v2242 = vmul.f32 %v2208, %v2219
        %v2243 = vmul.f32 %v2209, %v2219
        %v2244 = vmul.f32 %v2210, %v2219
        %v2245 = vmul.f32 %v2211, %v2219
        %v2246 = vmul.f32 %v2212, %v2219
        %v2247 = vmul.f32 %v2213, %v2219
        %v2248 = vmul.f32 %v2214, %v2219
        %v2249 = vmul.f32 %v2215, %v2219
        %v2250 = vmul.f32 %v2216, %v2219
        %v2251 = vmul.f32 %v2217, %v2219
        %v2252 = vadd.f32 %v2154, %v2220
        %v2253 = vadd.f32 %v2155, %v2221
        %v2254 = vadd.f32 %v2156, %v2222
        %v2255 = vadd.f32 %v2157, %v2223
        %v2256 = vadd.f32 %v2158, %v2224
        %v2257 = vadd.f32 %v2159, %v2225
        %v2258 = vadd.f32 %v2160, %v2226
        %v2259 = vadd.f32 %v2161, %v2227
        %v2260 = vadd.f32 %v2162, %v2228
        %v2261 = vadd.f32 %v2163, %v2229
        %v2262 = vadd.f32 %v2164, %v2230
        %v2263 = vadd.f32 %v2165, %v2231
        %v2264 = vadd.f32 %v2166, %v2232
        %v2265 = vadd.f32 %v2167, %v2233
        %v2266 = vadd.f32 %v2168, %v2234
        %v2267 = vadd.f32 %v2169, %v2235
        %v2268 = vadd.f32 %v2170, %v2236
        %v2269 = vadd.f32 %v2171, %v2237
        %v2270 = vadd.f32 %v2172, %v2238
        %v2271 = vadd.f32 %v2173, %v2239
        %v2272 = vadd.f32 %v2174, %v2240
        %v2273 = vadd.f32 %v2175, %v2241
        %v2274 = vadd.f32 %v2176, %v2242
        %v2275 = vadd.f32 %v2177, %v2243
        %v2276 = vadd.f32 %v2178, %v2244
        %v2277 = vadd.f32 %v2179, %v2245
        %v2278 = vadd.f32 %v2180, %v2246
        %v2279 = vadd.f32 %v2181, %v2247
        %v2280 = vadd.f32 %v2182, %v2248
        %v2281 = vadd.f32 %v2183, %v2249
        %v2282 = vadd.f32 %v2184, %v2250
        %v2283 = vadd.f32 %v2185, %v2251
        %v2284 = vld [vmem:[%s1793 + $0x5] sm:$0xff]
        %v2285 = vld [vmem:[%s1793 + $0xd] sm:$0xff]
        %v2286 = vld [vmem:[%s1793 + $0x1d] sm:$0xff]
        %v2287 = vld [vmem:[%s1793 + $0x25] sm:$0xff]
        %v2288 = vld [vmem:[%s1793 + $0x35] sm:$0xff]
        %v2289 = vld [vmem:[%s1793 + $0x3d] sm:$0xff]
        %v2290 = vld [vmem:[%s1793 + $0x4d] sm:$0xff]
        %v2291 = vld [vmem:[%s1793 + $0x55] sm:$0xff]
        %v2292 = vld [vmem:[%s1793 + $0x65] sm:$0xff]
        %v2293 = vld [vmem:[%s1793 + $0x6d] sm:$0xff]
        %v2294 = vld [vmem:[%s1793 + $0x7d] sm:$0xff]
        %v2295 = vld [vmem:[%s1793 + $0x85] sm:$0xff]
        %v2296 = vld [vmem:[%s1793 + $0x95] sm:$0xff]
        %v2297 = vld [vmem:[%s1793 + $0x9d] sm:$0xff]
        %v2298 = vld [vmem:[%s1793 + $0xad] sm:$0xff]
        %v2299 = vld [vmem:[%s1793 + $0xb5] sm:$0xff]
        %v2300 = vld [vmem:[%s1793 + $0xc5] sm:$0xff]
        %v2301 = vld [vmem:[%s1793 + $0xcd] sm:$0xff]
        %v2302 = vld [vmem:[%s1793 + $0xdd] sm:$0xff]
        %v2303 = vld [vmem:[%s1793 + $0xe5] sm:$0xff]
        %v2304 = vld [vmem:[%s1793 + $0xf5] sm:$0xff]
        %v2305 = vld [vmem:[%s1793 + $0xfd] sm:$0xff]
        %v2306 = vld [vmem:[%s1793 + $0x10d] sm:$0xff]
        %v2307 = vld [vmem:[%s1793 + $0x115] sm:$0xff]
        %v2308 = vld [vmem:[%s1793 + $0x125] sm:$0xff]
        %v2309 = vld [vmem:[%s1793 + $0x12d] sm:$0xff]
        %v2310 = vld [vmem:[%s1793 + $0x13d] sm:$0xff]
        %v2311 = vld [vmem:[%s1793 + $0x145] sm:$0xff]
        %v2312 = vld [vmem:[%s1793 + $0x155] sm:$0xff]
        %v2313 = vld [vmem:[%s1793 + $0x15d] sm:$0xff]
        %v2314 = vld [vmem:[%s1793 + $0x16d] sm:$0xff]
        %v2315 = vld [vmem:[%s1793 + $0x175] sm:$0xff]
        %v2316 = vld [vmem:[#allocation6 + $0x13] sm:$0x1]
        %v2317 = vperm.slane %v2316, 0
        %v2318 = vmul.f32 %v2284, %v2317
        %v2319 = vmul.f32 %v2285, %v2317
        %v2320 = vmul.f32 %v2286, %v2317
        %v2321 = vmul.f32 %v2287, %v2317
        %v2322 = vmul.f32 %v2288, %v2317
        %v2323 = vmul.f32 %v2289, %v2317
        %v2324 = vmul.f32 %v2290, %v2317
        %v2325 = vmul.f32 %v2291, %v2317
        %v2326 = vmul.f32 %v2292, %v2317
        %v2327 = vmul.f32 %v2293, %v2317
        %v2328 = vmul.f32 %v2294, %v2317
        %v2329 = vmul.f32 %v2295, %v2317
        %v2330 = vmul.f32 %v2296, %v2317
        %v2331 = vmul.f32 %v2297, %v2317
        %v2332 = vmul.f32 %v2298, %v2317
        %v2333 = vmul.f32 %v2299, %v2317
        %v2334 = vmul.f32 %v2300, %v2317
        %v2335 = vmul.f32 %v2301, %v2317
        %v2336 = vmul.f32 %v2302, %v2317
        %v2337 = vmul.f32 %v2303, %v2317
        %v2338 = vmul.f32 %v2304, %v2317
        %v2339 = vmul.f32 %v2305, %v2317
        %v2340 = vmul.f32 %v2306, %v2317
        %v2341 = vmul.f32 %v2307, %v2317
        %v2342 = vmul.f32 %v2308, %v2317
        %v2343 = vmul.f32 %v2309, %v2317
        %v2344 = vmul.f32 %v2310, %v2317
        %v2345 = vmul.f32 %v2311, %v2317
        %v2346 = vmul.f32 %v2312, %v2317
        %v2347 = vmul.f32 %v2313, %v2317
        %v2348 = vmul.f32 %v2314, %v2317
        %v2349 = vmul.f32 %v2315, %v2317
        %v2350 = vadd.f32 %v2252, %v2318
        %v2351 = vadd.f32 %v2253, %v2319
        %v2352 = vadd.f32 %v2254, %v2320
        %v2353 = vadd.f32 %v2255, %v2321
        %v2354 = vadd.f32 %v2256, %v2322
        %v2355 = vadd.f32 %v2257, %v2323
        %v2356 = vadd.f32 %v2258, %v2324
        %v2357 = vadd.f32 %v2259, %v2325
        %v2358 = vadd.f32 %v2260, %v2326
        %v2359 = vadd.f32 %v2261, %v2327
        %v2360 = vadd.f32 %v2262, %v2328
        %v2361 = vadd.f32 %v2263, %v2329
        %v2362 = vadd.f32 %v2264, %v2330
        %v2363 = vadd.f32 %v2265, %v2331
        %v2364 = vadd.f32 %v2266, %v2332
        %v2365 = vadd.f32 %v2267, %v2333
        %v2366 = vadd.f32 %v2268, %v2334
        %v2367 = vadd.f32 %v2269, %v2335
        %v2368 = vadd.f32 %v2270, %v2336
        %v2369 = vadd.f32 %v2271, %v2337
        %v2370 = vadd.f32 %v2272, %v2338
        %v2371 = vadd.f32 %v2273, %v2339
        %v2372 = vadd.f32 %v2274, %v2340
        %v2373 = vadd.f32 %v2275, %v2341
        %v2374 = vadd.f32 %v2276, %v2342
        %v2375 = vadd.f32 %v2277, %v2343
        %v2376 = vadd.f32 %v2278, %v2344
        %v2377 = vadd.f32 %v2279, %v2345
        %v2378 = vadd.f32 %v2280, %v2346
        %v2379 = vadd.f32 %v2281, %v2347
        %v2380 = vadd.f32 %v2282, %v2348
        %v2381 = vadd.f32 %v2283, %v2349
        %v2382 = vld [vmem:[%s1793 + $0x6] sm:$0xff]
        %v2383 = vld [vmem:[%s1793 + $0xe] sm:$0xff]
        %v2384 = vld [vmem:[%s1793 + $0x1e] sm:$0xff]
        %v2385 = vld [vmem:[%s1793 + $0x26] sm:$0xff]
        %v2386 = vld [vmem:[%s1793 + $0x36] sm:$0xff]
        %v2387 = vld [vmem:[%s1793 + $0x3e] sm:$0xff]
        %v2388 = vld [vmem:[%s1793 + $0x4e] sm:$0xff]
        %v2389 = vld [vmem:[%s1793 + $0x56] sm:$0xff]
        %v2390 = vld [vmem:[%s1793 + $0x66] sm:$0xff]
        %v2391 = vld [vmem:[%s1793 + $0x6e] sm:$0xff]
        %v2392 = vld [vmem:[%s1793 + $0x7e] sm:$0xff]
        %v2393 = vld [vmem:[%s1793 + $0x86] sm:$0xff]
        %v2394 = vld [vmem:[%s1793 + $0x96] sm:$0xff]
        %v2395 = vld [vmem:[%s1793 + $0x9e] sm:$0xff]
        %v2396 = vld [vmem:[%s1793 + $0xae] sm:$0xff]
        %v2397 = vld [vmem:[%s1793 + $0xb6] sm:$0xff]
        %v2398 = vld [vmem:[%s1793 + $0xc6] sm:$0xff]
        %v2399 = vld [vmem:[%s1793 + $0xce] sm:$0xff]
        %v2400 = vld [vmem:[%s1793 + $0xde] sm:$0xff]
        %v2401 = vld [vmem:[%s1793 + $0xe6] sm:$0xff]
        %v2402 = vld [vmem:[%s1793 + $0xf6] sm:$0xff]
        %v2403 = vld [vmem:[%s1793 + $0xfe] sm:$0xff]
        %v2404 = vld [vmem:[%s1793 + $0x10e] sm:$0xff]
        %v2405 = vld [vmem:[%s1793 + $0x116] sm:$0xff]
        %v2406 = vld [vmem:[%s1793 + $0x126] sm:$0xff]
        %v2407 = vld [vmem:[%s1793 + $0x12e] sm:$0xff]
        %v2408 = vld [vmem:[%s1793 + $0x13e] sm:$0xff]
        %v2409 = vld [vmem:[%s1793 + $0x146] sm:$0xff]
        %v2410 = vld [vmem:[%s1793 + $0x156] sm:$0xff]
        %v2411 = vld [vmem:[%s1793 + $0x15e] sm:$0xff]
        %v2412 = vld [vmem:[%s1793 + $0x16e] sm:$0xff]
        %v2413 = vld [vmem:[%s1793 + $0x176] sm:$0xff]
        %v2414 = vld [vmem:[#allocation6 + $0x14] sm:$0x1]
        %v2415 = vperm.slane %v2414, 0
        %v2416 = vmul.f32 %v2382, %v2415
        %v2417 = vmul.f32 %v2383, %v2415
        %v2418 = vmul.f32 %v2384, %v2415
        %v2419 = vmul.f32 %v2385, %v2415
        %v2420 = vmul.f32 %v2386, %v2415
        %v2421 = vmul.f32 %v2387, %v2415
        %v2422 = vmul.f32 %v2388, %v2415
        %v2423 = vmul.f32 %v2389, %v2415
        %v2424 = vmul.f32 %v2390, %v2415
        %v2425 = vmul.f32 %v2391, %v2415
        %v2426 = vmul.f32 %v2392, %v2415
        %v2427 = vmul.f32 %v2393, %v2415
        %v2428 = vmul.f32 %v2394, %v2415
        %v2429 = vmul.f32 %v2395, %v2415
        %v2430 = vmul.f32 %v2396, %v2415
        %v2431 = vmul.f32 %v2397, %v2415
        %v2432 = vmul.f32 %v2398, %v2415
        %v2433 = vmul.f32 %v2399, %v2415
        %v2434 = vmul.f32 %v2400, %v2415
        %v2435 = vmul.f32 %v2401, %v2415
        %v2436 = vmul.f32 %v2402, %v2415
        %v2437 = vmul.f32 %v2403, %v2415
        %v2438 = vmul.f32 %v2404, %v2415
        %v2439 = vmul.f32 %v2405, %v2415
        %v2440 = vmul.f32 %v2406, %v2415
        %v2441 = vmul.f32 %v2407, %v2415
        %v2442 = vmul.f32 %v2408, %v2415
        %v2443 = vmul.f32 %v2409, %v2415
        %v2444 = vmul.f32 %v2410, %v2415
        %v2445 = vmul.f32 %v2411, %v2415
        %v2446 = vmul.f32 %v2412, %v2415
        %v2447 = vmul.f32 %v2413, %v2415
        %v2448 = vadd.f32 %v2350, %v2416
        %v2449 = vadd.f32 %v2351, %v2417
        %v2450 = vadd.f32 %v2352, %v2418
        %v2451 = vadd.f32 %v2353, %v2419
        %v2452 = vadd.f32 %v2354, %v2420
        %v2453 = vadd.f32 %v2355, %v2421
        %v2454 = vadd.f32 %v2356, %v2422
        %v2455 = vadd.f32 %v2357, %v2423
        %v2456 = vadd.f32 %v2358, %v2424
        %v2457 = vadd.f32 %v2359, %v2425
        %v2458 = vadd.f32 %v2360, %v2426
        %v2459 = vadd.f32 %v2361, %v2427
        %v2460 = vadd.f32 %v2362, %v2428
        %v2461 = vadd.f32 %v2363, %v2429
        %v2462 = vadd.f32 %v2364, %v2430
        %v2463 = vadd.f32 %v2365, %v2431
        %v2464 = vadd.f32 %v2366, %v2432
        %v2465 = vadd.f32 %v2367, %v2433
        %v2466 = vadd.f32 %v2368, %v2434
        %v2467 = vadd.f32 %v2369, %v2435
        %v2468 = vadd.f32 %v2370, %v2436
        %v2469 = vadd.f32 %v2371, %v2437
        %v2470 = vadd.f32 %v2372, %v2438
        %v2471 = vadd.f32 %v2373, %v2439
        %v2472 = vadd.f32 %v2374, %v2440
        %v2473 = vadd.f32 %v2375, %v2441
        %v2474 = vadd.f32 %v2376, %v2442
        %v2475 = vadd.f32 %v2377, %v2443
        %v2476 = vadd.f32 %v2378, %v2444
        %v2477 = vadd.f32 %v2379, %v2445
        %v2478 = vadd.f32 %v2380, %v2446
        %v2479 = vadd.f32 %v2381, %v2447
        %v2480 = vld [vmem:[%s355] sm:$0xff]
        %v2481 = vld [vmem:[%s355 + $0x8] sm:$0xff]
        %v2482 = vld [vmem:[%s355 + $0x18] sm:$0xff]
        %v2483 = vld [vmem:[%s355 + $0x20] sm:$0xff]
        %v2484 = vld [vmem:[%s355 + $0x30] sm:$0xff]
        %v2485 = vld [vmem:[%s355 + $0x38] sm:$0xff]
        %v2486 = vld [vmem:[%s355 + $0x48] sm:$0xff]
        %v2487 = vld [vmem:[%s355 + $0x50] sm:$0xff]
        %v2488 = vld [vmem:[%s355 + $0x60] sm:$0xff]
        %v2489 = vld [vmem:[%s355 + $0x68] sm:$0xff]
        %v2490 = vld [vmem:[%s355 + $0x78] sm:$0xff]
        %v2491 = vld [vmem:[%s355 + $0x80] sm:$0xff]
        %v2492 = vld [vmem:[%s355 + $0x90] sm:$0xff]
        %v2493 = vld [vmem:[%s355 + $0x98] sm:$0xff]
        %v2494 = vld [vmem:[%s355 + $0xa8] sm:$0xff]
        %v2495 = vld [vmem:[%s355 + $0xb0] sm:$0xff]
        %v2496 = vld [vmem:[%s355 + $0xc0] sm:$0xff]
        %v2497 = vld [vmem:[%s355 + $0xc8] sm:$0xff]
        %v2498 = vld [vmem:[%s355 + $0xd8] sm:$0xff]
        %v2499 = vld [vmem:[%s355 + $0xe0] sm:$0xff]
        %v2500 = vld [vmem:[%s355 + $0xf0] sm:$0xff]
        %v2501 = vld [vmem:[%s355 + $0xf8] sm:$0xff]
        %v2502 = vld [vmem:[%s355 + $0x108] sm:$0xff]
        %v2503 = vld [vmem:[%s355 + $0x110] sm:$0xff]
        %v2504 = vld [vmem:[%s355 + $0x120] sm:$0xff]
        %v2505 = vld [vmem:[%s355 + $0x128] sm:$0xff]
        %v2506 = vld [vmem:[%s355 + $0x138] sm:$0xff]
        %v2507 = vld [vmem:[%s355 + $0x140] sm:$0xff]
        %v2508 = vld [vmem:[%s355 + $0x150] sm:$0xff]
        %v2509 = vld [vmem:[%s355 + $0x158] sm:$0xff]
        %v2510 = vld [vmem:[%s355 + $0x168] sm:$0xff]
        %v2511 = vld [vmem:[%s355 + $0x170] sm:$0xff]
        %v2512 = vld [vmem:[#allocation6 + $0x15] sm:$0x1]
        %v2513 = vperm.slane %v2512, 0
        %v2514 = vmul.f32 %v2480, %v2513
        %v2515 = vmul.f32 %v2481, %v2513
        %v2516 = vmul.f32 %v2482, %v2513
        %v2517 = vmul.f32 %v2483, %v2513
        %v2518 = vmul.f32 %v2484, %v2513
        %v2519 = vmul.f32 %v2485, %v2513
        %v2520 = vmul.f32 %v2486, %v2513
        %v2521 = vmul.f32 %v2487, %v2513
        %v2522 = vmul.f32 %v2488, %v2513
        %v2523 = vmul.f32 %v2489, %v2513
        %v2524 = vmul.f32 %v2490, %v2513
        %v2525 = vmul.f32 %v2491, %v2513
        %v2526 = vmul.f32 %v2492, %v2513
        %v2527 = vmul.f32 %v2493, %v2513
        %v2528 = vmul.f32 %v2494, %v2513
        %v2529 = vmul.f32 %v2495, %v2513
        %v2530 = vmul.f32 %v2496, %v2513
        %v2531 = vmul.f32 %v2497, %v2513
        %v2532 = vmul.f32 %v2498, %v2513
        %v2533 = vmul.f32 %v2499, %v2513
        %v2534 = vmul.f32 %v2500, %v2513
        %v2535 = vmul.f32 %v2501, %v2513
        %v2536 = vmul.f32 %v2502, %v2513
        %v2537 = vmul.f32 %v2503, %v2513
        %v2538 = vmul.f32 %v2504, %v2513
        %v2539 = vmul.f32 %v2505, %v2513
        %v2540 = vmul.f32 %v2506, %v2513
        %v2541 = vmul.f32 %v2507, %v2513
        %v2542 = vmul.f32 %v2508, %v2513
        %v2543 = vmul.f32 %v2509, %v2513
        %v2544 = vmul.f32 %v2510, %v2513
        %v2545 = vmul.f32 %v2511, %v2513
        %v2546 = vadd.f32 %v2448, %v2514
        %v2547 = vadd.f32 %v2449, %v2515
        %v2548 = vadd.f32 %v2450, %v2516
        %v2549 = vadd.f32 %v2451, %v2517
        %v2550 = vadd.f32 %v2452, %v2518
        %v2551 = vadd.f32 %v2453, %v2519
        %v2552 = vadd.f32 %v2454, %v2520
        %v2553 = vadd.f32 %v2455, %v2521
        %v2554 = vadd.f32 %v2456, %v2522
        %v2555 = vadd.f32 %v2457, %v2523
        %v2556 = vadd.f32 %v2458, %v2524
        %v2557 = vadd.f32 %v2459, %v2525
        %v2558 = vadd.f32 %v2460, %v2526
        %v2559 = vadd.f32 %v2461, %v2527
        %v2560 = vadd.f32 %v2462, %v2528
        %v2561 = vadd.f32 %v2463, %v2529
        %v2562 = vadd.f32 %v2464, %v2530
        %v2563 = vadd.f32 %v2465, %v2531
        %v2564 = vadd.f32 %v2466, %v2532
        %v2565 = vadd.f32 %v2467, %v2533
        %v2566 = vadd.f32 %v2468, %v2534
        %v2567 = vadd.f32 %v2469, %v2535
        %v2568 = vadd.f32 %v2470, %v2536
        %v2569 = vadd.f32 %v2471, %v2537
        %v2570 = vadd.f32 %v2472, %v2538
        %v2571 = vadd.f32 %v2473, %v2539
        %v2572 = vadd.f32 %v2474, %v2540
        %v2573 = vadd.f32 %v2475, %v2541
        %v2574 = vadd.f32 %v2476, %v2542
        %v2575 = vadd.f32 %v2477, %v2543
        %v2576 = vadd.f32 %v2478, %v2544
        %v2577 = vadd.f32 %v2479, %v2545
        %v2578 = vld [vmem:[%s355 + $0x1] sm:$0xff]
        %v2579 = vld [vmem:[%s355 + $0x9] sm:$0xff]
        %v2580 = vld [vmem:[%s355 + $0x19] sm:$0xff]
        %v2581 = vld [vmem:[%s355 + $0x21] sm:$0xff]
        %v2582 = vld [vmem:[%s355 + $0x31] sm:$0xff]
        %v2583 = vld [vmem:[%s355 + $0x39] sm:$0xff]
        %v2584 = vld [vmem:[%s355 + $0x49] sm:$0xff]
        %v2585 = vld [vmem:[%s355 + $0x51] sm:$0xff]
        %v2586 = vld [vmem:[%s355 + $0x61] sm:$0xff]
        %v2587 = vld [vmem:[%s355 + $0x69] sm:$0xff]
        %v2588 = vld [vmem:[%s355 + $0x79] sm:$0xff]
        %v2589 = vld [vmem:[%s355 + $0x81] sm:$0xff]
        %v2590 = vld [vmem:[%s355 + $0x91] sm:$0xff]
        %v2591 = vld [vmem:[%s355 + $0x99] sm:$0xff]
        %v2592 = vld [vmem:[%s355 + $0xa9] sm:$0xff]
        %v2593 = vld [vmem:[%s355 + $0xb1] sm:$0xff]
        %v2594 = vld [vmem:[%s355 + $0xc1] sm:$0xff]
        %v2595 = vld [vmem:[%s355 + $0xc9] sm:$0xff]
        %v2596 = vld [vmem:[%s355 + $0xd9] sm:$0xff]
        %v2597 = vld [vmem:[%s355 + $0xe1] sm:$0xff]
        %v2598 = vld [vmem:[%s355 + $0xf1] sm:$0xff]
        %v2599 = vld [vmem:[%s355 + $0xf9] sm:$0xff]
        %v2600 = vld [vmem:[%s355 + $0x109] sm:$0xff]
        %v2601 = vld [vmem:[%s355 + $0x111] sm:$0xff]
        %v2602 = vld [vmem:[%s355 + $0x121] sm:$0xff]
        %v2603 = vld [vmem:[%s355 + $0x129] sm:$0xff]
        %v2604 = vld [vmem:[%s355 + $0x139] sm:$0xff]
        %v2605 = vld [vmem:[%s355 + $0x141] sm:$0xff]
        %v2606 = vld [vmem:[%s355 + $0x151] sm:$0xff]
        %v2607 = vld [vmem:[%s355 + $0x159] sm:$0xff]
        %v2608 = vld [vmem:[%s355 + $0x169] sm:$0xff]
        %v2609 = vld [vmem:[%s355 + $0x171] sm:$0xff]
        %v2610 = vld [vmem:[#allocation6 + $0x16] sm:$0x1]
        %v2611 = vperm.slane %v2610, 0
        %v2612 = vmul.f32 %v2578, %v2611
        %v2613 = vmul.f32 %v2579, %v2611
        %v2614 = vmul.f32 %v2580, %v2611
        %v2615 = vmul.f32 %v2581, %v2611
        %v2616 = vmul.f32 %v2582, %v2611
        %v2617 = vmul.f32 %v2583, %v2611
        %v2618 = vmul.f32 %v2584, %v2611
        %v2619 = vmul.f32 %v2585, %v2611
        %v2620 = vmul.f32 %v2586, %v2611
        %v2621 = vmul.f32 %v2587, %v2611
        %v2622 = vmul.f32 %v2588, %v2611
        %v2623 = vmul.f32 %v2589, %v2611
        %v2624 = vmul.f32 %v2590, %v2611
        %v2625 = vmul.f32 %v2591, %v2611
        %v2626 = vmul.f32 %v2592, %v2611
        %v2627 = vmul.f32 %v2593, %v2611
        %v2628 = vmul.f32 %v2594, %v2611
        %v2629 = vmul.f32 %v2595, %v2611
        %v2630 = vmul.f32 %v2596, %v2611
        %v2631 = vmul.f32 %v2597, %v2611
        %v2632 = vmul.f32 %v2598, %v2611
        %v2633 = vmul.f32 %v2599, %v2611
        %v2634 = vmul.f32 %v2600, %v2611
        %v2635 = vmul.f32 %v2601, %v2611
        %v2636 = vmul.f32 %v2602, %v2611
        %v2637 = vmul.f32 %v2603, %v2611
        %v2638 = vmul.f32 %v2604, %v2611
        %v2639 = vmul.f32 %v2605, %v2611
        %v2640 = vmul.f32 %v2606, %v2611
        %v2641 = vmul.f32 %v2607, %v2611
        %v2642 = vmul.f32 %v2608, %v2611
        %v2643 = vmul.f32 %v2609, %v2611
        %v2644 = vadd.f32 %v2546, %v2612
        %v2645 = vadd.f32 %v2547, %v2613
        %v2646 = vadd.f32 %v2548, %v2614
        %v2647 = vadd.f32 %v2549, %v2615
        %v2648 = vadd.f32 %v2550, %v2616
        %v2649 = vadd.f32 %v2551, %v2617
        %v2650 = vadd.f32 %v2552, %v2618
        %v2651 = vadd.f32 %v2553, %v2619
        %v2652 = vadd.f32 %v2554, %v2620
        %v2653 = vadd.f32 %v2555, %v2621
        %v2654 = vadd.f32 %v2556, %v2622
        %v2655 = vadd.f32 %v2557, %v2623
        %v2656 = vadd.f32 %v2558, %v2624
        %v2657 = vadd.f32 %v2559, %v2625
        %v2658 = vadd.f32 %v2560, %v2626
        %v2659 = vadd.f32 %v2561, %v2627
        %v2660 = vadd.f32 %v2562, %v2628
        %v2661 = vadd.f32 %v2563, %v2629
        %v2662 = vadd.f32 %v2564, %v2630
        %v2663 = vadd.f32 %v2565, %v2631
        %v2664 = vadd.f32 %v2566, %v2632
        %v2665 = vadd.f32 %v2567, %v2633
        %v2666 = vadd.f32 %v2568, %v2634
        %v2667 = vadd.f32 %v2569, %v2635
        %v2668 = vadd.f32 %v2570, %v2636
        %v2669 = vadd.f32 %v2571, %v2637
        %v2670 = vadd.f32 %v2572, %v2638
        %v2671 = vadd.f32 %v2573, %v2639
        %v2672 = vadd.f32 %v2574, %v2640
        %v2673 = vadd.f32 %v2575, %v2641
        %v2674 = vadd.f32 %v2576, %v2642
        %v2675 = vadd.f32 %v2577, %v2643
        %v2676 = vld [vmem:[%s355 + $0x2] sm:$0xff]
        %v2677 = vld [vmem:[%s355 + $0xa] sm:$0xff]
        %v2678 = vld [vmem:[%s355 + $0x1a] sm:$0xff]
        %v2679 = vld [vmem:[%s355 + $0x22] sm:$0xff]
        %v2680 = vld [vmem:[%s355 + $0x32] sm:$0xff]
        %v2681 = vld [vmem:[%s355 + $0x3a] sm:$0xff]
        %v2682 = vld [vmem:[%s355 + $0x4a] sm:$0xff]
        %v2683 = vld [vmem:[%s355 + $0x52] sm:$0xff]
        %v2684 = vld [vmem:[%s355 + $0x62] sm:$0xff]
        %v2685 = vld [vmem:[%s355 + $0x6a] sm:$0xff]
        %v2686 = vld [vmem:[%s355 + $0x7a] sm:$0xff]
        %v2687 = vld [vmem:[%s355 + $0x82] sm:$0xff]
        %v2688 = vld [vmem:[%s355 + $0x92] sm:$0xff]
        %v2689 = vld [vmem:[%s355 + $0x9a] sm:$0xff]
        %v2690 = vld [vmem:[%s355 + $0xaa] sm:$0xff]
        %v2691 = vld [vmem:[%s355 + $0xb2] sm:$0xff]
        %v2692 = vld [vmem:[%s355 + $0xc2] sm:$0xff]
        %v2693 = vld [vmem:[%s355 + $0xca] sm:$0xff]
        %v2694 = vld [vmem:[%s355 + $0xda] sm:$0xff]
        %v2695 = vld [vmem:[%s355 + $0xe2] sm:$0xff]
        %v2696 = vld [vmem:[%s355 + $0xf2] sm:$0xff]
        %v2697 = vld [vmem:[%s355 + $0xfa] sm:$0xff]
        %v2698 = vld [vmem:[%s355 + $0x10a] sm:$0xff]
        %v2699 = vld [vmem:[%s355 + $0x112] sm:$0xff]
        %v2700 = vld [vmem:[%s355 + $0x122] sm:$0xff]
        %v2701 = vld [vmem:[%s355 + $0x12a] sm:$0xff]
        %v2702 = vld [vmem:[%s355 + $0x13a] sm:$0xff]
        %v2703 = vld [vmem:[%s355 + $0x142] sm:$0xff]
        %v2704 = vld [vmem:[%s355 + $0x152] sm:$0xff]
        %v2705 = vld [vmem:[%s355 + $0x15a] sm:$0xff]
        %v2706 = vld [vmem:[%s355 + $0x16a] sm:$0xff]
        %v2707 = vld [vmem:[%s355 + $0x172] sm:$0xff]
        %v2708 = vld [vmem:[#allocation6 + $0x17] sm:$0x1]
        %v2709 = vperm.slane %v2708, 0
        %v2710 = vmul.f32 %v2676, %v2709
        %v2711 = vmul.f32 %v2677, %v2709
        %v2712 = vmul.f32 %v2678, %v2709
        %v2713 = vmul.f32 %v2679, %v2709
        %v2714 = vmul.f32 %v2680, %v2709
        %v2715 = vmul.f32 %v2681, %v2709
        %v2716 = vmul.f32 %v2682, %v2709
        %v2717 = vmul.f32 %v2683, %v2709
        %v2718 = vmul.f32 %v2684, %v2709
        %v2719 = vmul.f32 %v2685, %v2709
        %v2720 = vmul.f32 %v2686, %v2709
        %v2721 = vmul.f32 %v2687, %v2709
        %v2722 = vmul.f32 %v2688, %v2709
        %v2723 = vmul.f32 %v2689, %v2709
        %v2724 = vmul.f32 %v2690, %v2709
        %v2725 = vmul.f32 %v2691, %v2709
        %v2726 = vmul.f32 %v2692, %v2709
        %v2727 = vmul.f32 %v2693, %v2709
        %v2728 = vmul.f32 %v2694, %v2709
        %v2729 = vmul.f32 %v2695, %v2709
        %v2730 = vmul.f32 %v2696, %v2709
        %v2731 = vmul.f32 %v2697, %v2709
        %v2732 = vmul.f32 %v2698, %v2709
        %v2733 = vmul.f32 %v2699, %v2709
        %v2734 = vmul.f32 %v2700, %v2709
        %v2735 = vmul.f32 %v2701, %v2709
        %v2736 = vmul.f32 %v2702, %v2709
        %v2737 = vmul.f32 %v2703, %v2709
        %v2738 = vmul.f32 %v2704, %v2709
        %v2739 = vmul.f32 %v2705, %v2709
        %v2740 = vmul.f32 %v2706, %v2709
        %v2741 = vmul.f32 %v2707, %v2709
        %v2742 = vadd.f32 %v2644, %v2710
        %v2743 = vadd.f32 %v2645, %v2711
        %v2744 = vadd.f32 %v2646, %v2712
        %v2745 = vadd.f32 %v2647, %v2713
        %v2746 = vadd.f32 %v2648, %v2714
        %v2747 = vadd.f32 %v2649, %v2715
        %v2748 = vadd.f32 %v2650, %v2716
        %v2749 = vadd.f32 %v2651, %v2717
        %v2750 = vadd.f32 %v2652, %v2718
        %v2751 = vadd.f32 %v2653, %v2719
        %v2752 = vadd.f32 %v2654, %v2720
        %v2753 = vadd.f32 %v2655, %v2721
        %v2754 = vadd.f32 %v2656, %v2722
        %v2755 = vadd.f32 %v2657, %v2723
        %v2756 = vadd.f32 %v2658, %v2724
        %v2757 = vadd.f32 %v2659, %v2725
        %v2758 = vadd.f32 %v2660, %v2726
        %v2759 = vadd.f32 %v2661, %v2727
        %v2760 = vadd.f32 %v2662, %v2728
        %v2761 = vadd.f32 %v2663, %v2729
        %v2762 = vadd.f32 %v2664, %v2730
        %v2763 = vadd.f32 %v2665, %v2731
        %v2764 = vadd.f32 %v2666, %v2732
        %v2765 = vadd.f32 %v2667, %v2733
        %v2766 = vadd.f32 %v2668, %v2734
        %v2767 = vadd.f32 %v2669, %v2735
        %v2768 = vadd.f32 %v2670, %v2736
        %v2769 = vadd.f32 %v2671, %v2737
        %v2770 = vadd.f32 %v2672, %v2738
        %v2771 = vadd.f32 %v2673, %v2739
        %v2772 = vadd.f32 %v2674, %v2740
        %v2773 = vadd.f32 %v2675, %v2741
        %v2774 = vld [vmem:[%s355 + $0x3] sm:$0xff]
        %v2775 = vld [vmem:[%s355 + $0xb] sm:$0xff]
        %v2776 = vld [vmem:[%s355 + $0x1b] sm:$0xff]
        %v2777 = vld [vmem:[%s355 + $0x23] sm:$0xff]
        %v2778 = vld [vmem:[%s355 + $0x33] sm:$0xff]
        %v2779 = vld [vmem:[%s355 + $0x3b] sm:$0xff]
        %v2780 = vld [vmem:[%s355 + $0x4b] sm:$0xff]
        %v2781 = vld [vmem:[%s355 + $0x53] sm:$0xff]
        %v2782 = vld [vmem:[%s355 + $0x63] sm:$0xff]
        %v2783 = vld [vmem:[%s355 + $0x6b] sm:$0xff]
        %v2784 = vld [vmem:[%s355 + $0x7b] sm:$0xff]
        %v2785 = vld [vmem:[%s355 + $0x83] sm:$0xff]
        %v2786 = vld [vmem:[%s355 + $0x93] sm:$0xff]
        %v2787 = vld [vmem:[%s355 + $0x9b] sm:$0xff]
        %v2788 = vld [vmem:[%s355 + $0xab] sm:$0xff]
        %v2789 = vld [vmem:[%s355 + $0xb3] sm:$0xff]
        %v2790 = vld [vmem:[%s355 + $0xc3] sm:$0xff]
        %v2791 = vld [vmem:[%s355 + $0xcb] sm:$0xff]
        %v2792 = vld [vmem:[%s355 + $0xdb] sm:$0xff]
        %v2793 = vld [vmem:[%s355 + $0xe3] sm:$0xff]
        %v2794 = vld [vmem:[%s355 + $0xf3] sm:$0xff]
        %v2795 = vld [vmem:[%s355 + $0xfb] sm:$0xff]
        %v2796 = vld [vmem:[%s355 + $0x10b] sm:$0xff]
        %v2797 = vld [vmem:[%s355 + $0x113] sm:$0xff]
        %v2798 = vld [vmem:[%s355 + $0x123] sm:$0xff]
        %v2799 = vld [vmem:[%s355 + $0x12b] sm:$0xff]
        %v2800 = vld [vmem:[%s355 + $0x13b] sm:$0xff]
        %v2801 = vld [vmem:[%s355 + $0x143] sm:$0xff]
        %v2802 = vld [vmem:[%s355 + $0x153] sm:$0xff]
        %v2803 = vld [vmem:[%s355 + $0x15b] sm:$0xff]
        %v2804 = vld [vmem:[%s355 + $0x16b] sm:$0xff]
        %v2805 = vld [vmem:[%s355 + $0x173] sm:$0xff]
        %v2806 = vld [vmem:[#allocation6 + $0x18] sm:$0x1]
        %v2807 = vperm.slane %v2806, 0
        %v2808 = vmul.f32 %v2774, %v2807
        %v2809 = vmul.f32 %v2775, %v2807
        %v2810 = vmul.f32 %v2776, %v2807
        %v2811 = vmul.f32 %v2777, %v2807
        %v2812 = vmul.f32 %v2778, %v2807
        %v2813 = vmul.f32 %v2779, %v2807
        %v2814 = vmul.f32 %v2780, %v2807
        %v2815 = vmul.f32 %v2781, %v2807
        %v2816 = vmul.f32 %v2782, %v2807
        %v2817 = vmul.f32 %v2783, %v2807
        %v2818 = vmul.f32 %v2784, %v2807
        %v2819 = vmul.f32 %v2785, %v2807
        %v2820 = vmul.f32 %v2786, %v2807
        %v2821 = vmul.f32 %v2787, %v2807
        %v2822 = vmul.f32 %v2788, %v2807
        %v2823 = vmul.f32 %v2789, %v2807
        %v2824 = vmul.f32 %v2790, %v2807
        %v2825 = vmul.f32 %v2791, %v2807
        %v2826 = vmul.f32 %v2792, %v2807
        %v2827 = vmul.f32 %v2793, %v2807
        %v2828 = vmul.f32 %v2794, %v2807
        %v2829 = vmul.f32 %v2795, %v2807
        %v2830 = vmul.f32 %v2796, %v2807
        %v2831 = vmul.f32 %v2797, %v2807
        %v2832 = vmul.f32 %v2798, %v2807
        %v2833 = vmul.f32 %v2799, %v2807
        %v2834 = vmul.f32 %v2800, %v2807
        %v2835 = vmul.f32 %v2801, %v2807
        %v2836 = vmul.f32 %v2802, %v2807
        %v2837 = vmul.f32 %v2803, %v2807
        %v2838 = vmul.f32 %v2804, %v2807
        %v2839 = vmul.f32 %v2805, %v2807
        %v2840 = vadd.f32 %v2742, %v2808
        %v2841 = vadd.f32 %v2743, %v2809
        %v2842 = vadd.f32 %v2744, %v2810
        %v2843 = vadd.f32 %v2745, %v2811
        %v2844 = vadd.f32 %v2746, %v2812
        %v2845 = vadd.f32 %v2747, %v2813
        %v2846 = vadd.f32 %v2748, %v2814
        %v2847 = vadd.f32 %v2749, %v2815
        %v2848 = vadd.f32 %v2750, %v2816
        %v2849 = vadd.f32 %v2751, %v2817
        %v2850 = vadd.f32 %v2752, %v2818
        %v2851 = vadd.f32 %v2753, %v2819
        %v2852 = vadd.f32 %v2754, %v2820
        %v2853 = vadd.f32 %v2755, %v2821
        %v2854 = vadd.f32 %v2756, %v2822
        %v2855 = vadd.f32 %v2757, %v2823
        %v2856 = vadd.f32 %v2758, %v2824
        %v2857 = vadd.f32 %v2759, %v2825
        %v2858 = vadd.f32 %v2760, %v2826
        %v2859 = vadd.f32 %v2761, %v2827
        %v2860 = vadd.f32 %v2762, %v2828
        %v2861 = vadd.f32 %v2763, %v2829
        %v2862 = vadd.f32 %v2764, %v2830
        %v2863 = vadd.f32 %v2765, %v2831
        %v2864 = vadd.f32 %v2766, %v2832
        %v2865 = vadd.f32 %v2767, %v2833
        %v2866 = vadd.f32 %v2768, %v2834
        %v2867 = vadd.f32 %v2769, %v2835
        %v2868 = vadd.f32 %v2770, %v2836
        %v2869 = vadd.f32 %v2771, %v2837
        %v2870 = vadd.f32 %v2772, %v2838
        %v2871 = vadd.f32 %v2773, %v2839
        %v2872 = vld [vmem:[%s355 + $0x4] sm:$0xff]
        %v2873 = vld [vmem:[%s355 + $0xc] sm:$0xff]
        %v2874 = vld [vmem:[%s355 + $0x1c] sm:$0xff]
        %v2875 = vld [vmem:[%s355 + $0x24] sm:$0xff]
        %v2876 = vld [vmem:[%s355 + $0x34] sm:$0xff]
        %v2877 = vld [vmem:[%s355 + $0x3c] sm:$0xff]
        %v2878 = vld [vmem:[%s355 + $0x4c] sm:$0xff]
        %v2879 = vld [vmem:[%s355 + $0x54] sm:$0xff]
        %v2880 = vld [vmem:[%s355 + $0x64] sm:$0xff]
        %v2881 = vld [vmem:[%s355 + $0x6c] sm:$0xff]
        %v2882 = vld [vmem:[%s355 + $0x7c] sm:$0xff]
        %v2883 = vld [vmem:[%s355 + $0x84] sm:$0xff]
        %v2884 = vld [vmem:[%s355 + $0x94] sm:$0xff]
        %v2885 = vld [vmem:[%s355 + $0x9c] sm:$0xff]
        %v2886 = vld [vmem:[%s355 + $0xac] sm:$0xff]
        %v2887 = vld [vmem:[%s355 + $0xb4] sm:$0xff]
        %v2888 = vld [vmem:[%s355 + $0xc4] sm:$0xff]
        %v2889 = vld [vmem:[%s355 + $0xcc] sm:$0xff]
        %v2890 = vld [vmem:[%s355 + $0xdc] sm:$0xff]
        %v2891 = vld [vmem:[%s355 + $0xe4] sm:$0xff]
        %v2892 = vld [vmem:[%s355 + $0xf4] sm:$0xff]
        %v2893 = vld [vmem:[%s355 + $0xfc] sm:$0xff]
        %v2894 = vld [vmem:[%s355 + $0x10c] sm:$0xff]
        %v2895 = vld [vmem:[%s355 + $0x114] sm:$0xff]
        %v2896 = vld [vmem:[%s355 + $0x124] sm:$0xff]
        %v2897 = vld [vmem:[%s355 + $0x12c] sm:$0xff]
        %v2898 = vld [vmem:[%s355 + $0x13c] sm:$0xff]
        %v2899 = vld [vmem:[%s355 + $0x144] sm:$0xff]
        %v2900 = vld [vmem:[%s355 + $0x154] sm:$0xff]
        %v2901 = vld [vmem:[%s355 + $0x15c] sm:$0xff]
        %v2902 = vld [vmem:[%s355 + $0x16c] sm:$0xff]
        %v2903 = vld [vmem:[%s355 + $0x174] sm:$0xff]
        %v2904 = vld [vmem:[#allocation6 + $0x19] sm:$0x1]
        %v2905 = vperm.slane %v2904, 0
        %v2906 = vmul.f32 %v2872, %v2905
        %v2907 = vmul.f32 %v2873, %v2905
        %v2908 = vmul.f32 %v2874, %v2905
        %v2909 = vmul.f32 %v2875, %v2905
        %v2910 = vmul.f32 %v2876, %v2905
        %v2911 = vmul.f32 %v2877, %v2905
        %v2912 = vmul.f32 %v2878, %v2905
        %v2913 = vmul.f32 %v2879, %v2905
        %v2914 = vmul.f32 %v2880, %v2905
        %v2915 = vmul.f32 %v2881, %v2905
        %v2916 = vmul.f32 %v2882, %v2905
        %v2917 = vmul.f32 %v2883, %v2905
        %v2918 = vmul.f32 %v2884, %v2905
        %v2919 = vmul.f32 %v2885, %v2905
        %v2920 = vmul.f32 %v2886, %v2905
        %v2921 = vmul.f32 %v2887, %v2905
        %v2922 = vmul.f32 %v2888, %v2905
        %v2923 = vmul.f32 %v2889, %v2905
        %v2924 = vmul.f32 %v2890, %v2905
        %v2925 = vmul.f32 %v2891, %v2905
        %v2926 = vmul.f32 %v2892, %v2905
        %v2927 = vmul.f32 %v2893, %v2905
        %v2928 = vmul.f32 %v2894, %v2905
        %v2929 = vmul.f32 %v2895, %v2905
        %v2930 = vmul.f32 %v2896, %v2905
        %v2931 = vmul.f32 %v2897, %v2905
        %v2932 = vmul.f32 %v2898, %v2905
        %v2933 = vmul.f32 %v2899, %v2905
        %v2934 = vmul.f32 %v2900, %v2905
        %v2935 = vmul.f32 %v2901, %v2905
        %v2936 = vmul.f32 %v2902, %v2905
        %v2937 = vmul.f32 %v2903, %v2905
        %v2938 = vadd.f32 %v2840, %v2906
        %v2939 = vadd.f32 %v2841, %v2907
        %v2940 = vadd.f32 %v2842, %v2908
        %v2941 = vadd.f32 %v2843, %v2909
        %v2942 = vadd.f32 %v2844, %v2910
        %v2943 = vadd.f32 %v2845, %v2911
        %v2944 = vadd.f32 %v2846, %v2912
        %v2945 = vadd.f32 %v2847, %v2913
        %v2946 = vadd.f32 %v2848, %v2914
        %v2947 = vadd.f32 %v2849, %v2915
        %v2948 = vadd.f32 %v2850, %v2916
        %v2949 = vadd.f32 %v2851, %v2917
        %v2950 = vadd.f32 %v2852, %v2918
        %v2951 = vadd.f32 %v2853, %v2919
        %v2952 = vadd.f32 %v2854, %v2920
        %v2953 = vadd.f32 %v2855, %v2921
        %v2954 = vadd.f32 %v2856, %v2922
        %v2955 = vadd.f32 %v2857, %v2923
        %v2956 = vadd.f32 %v2858, %v2924
        %v2957 = vadd.f32 %v2859, %v2925
        %v2958 = vadd.f32 %v2860, %v2926
        %v2959 = vadd.f32 %v2861, %v2927
        %v2960 = vadd.f32 %v2862, %v2928
        %v2961 = vadd.f32 %v2863, %v2929
        %v2962 = vadd.f32 %v2864, %v2930
        %v2963 = vadd.f32 %v2865, %v2931
        %v2964 = vadd.f32 %v2866, %v2932
        %v2965 = vadd.f32 %v2867, %v2933
        %v2966 = vadd.f32 %v2868, %v2934
        %v2967 = vadd.f32 %v2869, %v2935
        %v2968 = vadd.f32 %v2870, %v2936
        %v2969 = vadd.f32 %v2871, %v2937
        %v2970 = vld [vmem:[%s355 + $0x5] sm:$0xff]
        %v2971 = vld [vmem:[%s355 + $0xd] sm:$0xff]
        %v2972 = vld [vmem:[%s355 + $0x1d] sm:$0xff]
        %v2973 = vld [vmem:[%s355 + $0x25] sm:$0xff]
        %v2974 = vld [vmem:[%s355 + $0x35] sm:$0xff]
        %v2975 = vld [vmem:[%s355 + $0x3d] sm:$0xff]
        %v2976 = vld [vmem:[%s355 + $0x4d] sm:$0xff]
        %v2977 = vld [vmem:[%s355 + $0x55] sm:$0xff]
        %v2978 = vld [vmem:[%s355 + $0x65] sm:$0xff]
        %v2979 = vld [vmem:[%s355 + $0x6d] sm:$0xff]
        %v2980 = vld [vmem:[%s355 + $0x7d] sm:$0xff]
        %v2981 = vld [vmem:[%s355 + $0x85] sm:$0xff]
        %v2982 = vld [vmem:[%s355 + $0x95] sm:$0xff]
        %v2983 = vld [vmem:[%s355 + $0x9d] sm:$0xff]
        %v2984 = vld [vmem:[%s355 + $0xad] sm:$0xff]
        %v2985 = vld [vmem:[%s355 + $0xb5] sm:$0xff]
        %v2986 = vld [vmem:[%s355 + $0xc5] sm:$0xff]
        %v2987 = vld [vmem:[%s355 + $0xcd] sm:$0xff]
        %v2988 = vld [vmem:[%s355 + $0xdd] sm:$0xff]
        %v2989 = vld [vmem:[%s355 + $0xe5] sm:$0xff]
        %v2990 = vld [vmem:[%s355 + $0xf5] sm:$0xff]
        %v2991 = vld [vmem:[%s355 + $0xfd] sm:$0xff]
        %v2992 = vld [vmem:[%s355 + $0x10d] sm:$0xff]
        %v2993 = vld [vmem:[%s355 + $0x115] sm:$0xff]
        %v2994 = vld [vmem:[%s355 + $0x125] sm:$0xff]
        %v2995 = vld [vmem:[%s355 + $0x12d] sm:$0xff]
        %v2996 = vld [vmem:[%s355 + $0x13d] sm:$0xff]
        %v2997 = vld [vmem:[%s355 + $0x145] sm:$0xff]
        %v2998 = vld [vmem:[%s355 + $0x155] sm:$0xff]
        %v2999 = vld [vmem:[%s355 + $0x15d] sm:$0xff]
        %v3000 = vld [vmem:[%s355 + $0x16d] sm:$0xff]
        %v3001 = vld [vmem:[%s355 + $0x175] sm:$0xff]
        %v3002 = vld [vmem:[#allocation6 + $0x1a] sm:$0x1]
        %v3003 = vperm.slane %v3002, 0
        %v3004 = vmul.f32 %v2970, %v3003
        %v3005 = vmul.f32 %v2971, %v3003
        %v3006 = vmul.f32 %v2972, %v3003
        %v3007 = vmul.f32 %v2973, %v3003
        %v3008 = vmul.f32 %v2974, %v3003
        %v3009 = vmul.f32 %v2975, %v3003
        %v3010 = vmul.f32 %v2976, %v3003
        %v3011 = vmul.f32 %v2977, %v3003
        %v3012 = vmul.f32 %v2978, %v3003
        %v3013 = vmul.f32 %v2979, %v3003
        %v3014 = vmul.f32 %v2980, %v3003
        %v3015 = vmul.f32 %v2981, %v3003
        %v3016 = vmul.f32 %v2982, %v3003
        %v3017 = vmul.f32 %v2983, %v3003
        %v3018 = vmul.f32 %v2984, %v3003
        %v3019 = vmul.f32 %v2985, %v3003
        %v3020 = vmul.f32 %v2986, %v3003
        %v3021 = vmul.f32 %v2987, %v3003
        %v3022 = vmul.f32 %v2988, %v3003
        %v3023 = vmul.f32 %v2989, %v3003
        %v3024 = vmul.f32 %v2990, %v3003
        %v3025 = vmul.f32 %v2991, %v3003
        %v3026 = vmul.f32 %v2992, %v3003
        %v3027 = vmul.f32 %v2993, %v3003
        %v3028 = vmul.f32 %v2994, %v3003
        %v3029 = vmul.f32 %v2995, %v3003
        %v3030 = vmul.f32 %v2996, %v3003
        %v3031 = vmul.f32 %v2997, %v3003
        %v3032 = vmul.f32 %v2998, %v3003
        %v3033 = vmul.f32 %v2999, %v3003
        %v3034 = vmul.f32 %v3000, %v3003
        %v3035 = vmul.f32 %v3001, %v3003
        %v3036 = vadd.f32 %v2938, %v3004
        %v3037 = vadd.f32 %v2939, %v3005
        %v3038 = vadd.f32 %v2940, %v3006
        %v3039 = vadd.f32 %v2941, %v3007
        %v3040 = vadd.f32 %v2942, %v3008
        %v3041 = vadd.f32 %v2943, %v3009
        %v3042 = vadd.f32 %v2944, %v3010
        %v3043 = vadd.f32 %v2945, %v3011
        %v3044 = vadd.f32 %v2946, %v3012
        %v3045 = vadd.f32 %v2947, %v3013
        %v3046 = vadd.f32 %v2948, %v3014
        %v3047 = vadd.f32 %v2949, %v3015
        %v3048 = vadd.f32 %v2950, %v3016
        %v3049 = vadd.f32 %v2951, %v3017
        %v3050 = vadd.f32 %v2952, %v3018
        %v3051 = vadd.f32 %v2953, %v3019
        %v3052 = vadd.f32 %v2954, %v3020
        %v3053 = vadd.f32 %v2955, %v3021
        %v3054 = vadd.f32 %v2956, %v3022
        %v3055 = vadd.f32 %v2957, %v3023
        %v3056 = vadd.f32 %v2958, %v3024
        %v3057 = vadd.f32 %v2959, %v3025
        %v3058 = vadd.f32 %v2960, %v3026
        %v3059 = vadd.f32 %v2961, %v3027
        %v3060 = vadd.f32 %v2962, %v3028
        %v3061 = vadd.f32 %v2963, %v3029
        %v3062 = vadd.f32 %v2964, %v3030
        %v3063 = vadd.f32 %v2965, %v3031
        %v3064 = vadd.f32 %v2966, %v3032
        %v3065 = vadd.f32 %v2967, %v3033
        %v3066 = vadd.f32 %v2968, %v3034
        %v3067 = vadd.f32 %v2969, %v3035
        %v3068 = vld [vmem:[%s355 + $0x6] sm:$0xff]
        %v3069 = vld [vmem:[%s355 + $0xe] sm:$0xff]
        %v3070 = vld [vmem:[%s355 + $0x1e] sm:$0xff]
        %v3071 = vld [vmem:[%s355 + $0x26] sm:$0xff]
        %v3072 = vld [vmem:[%s355 + $0x36] sm:$0xff]
        %v3073 = vld [vmem:[%s355 + $0x3e] sm:$0xff]
        %v3074 = vld [vmem:[%s355 + $0x4e] sm:$0xff]
        %v3075 = vld [vmem:[%s355 + $0x56] sm:$0xff]
        %v3076 = vld [vmem:[%s355 + $0x66] sm:$0xff]
        %v3077 = vld [vmem:[%s355 + $0x6e] sm:$0xff]
        %v3078 = vld [vmem:[%s355 + $0x7e] sm:$0xff]
        %v3079 = vld [vmem:[%s355 + $0x86] sm:$0xff]
        %v3080 = vld [vmem:[%s355 + $0x96] sm:$0xff]
        %v3081 = vld [vmem:[%s355 + $0x9e] sm:$0xff]
        %v3082 = vld [vmem:[%s355 + $0xae] sm:$0xff]
        %v3083 = vld [vmem:[%s355 + $0xb6] sm:$0xff]
        %v3084 = vld [vmem:[%s355 + $0xc6] sm:$0xff]
        %v3085 = vld [vmem:[%s355 + $0xce] sm:$0xff]
        %v3086 = vld [vmem:[%s355 + $0xde] sm:$0xff]
        %v3087 = vld [vmem:[%s355 + $0xe6] sm:$0xff]
        %v3088 = vld [vmem:[%s355 + $0xf6] sm:$0xff]
        %v3089 = vld [vmem:[%s355 + $0xfe] sm:$0xff]
        %v3090 = vld [vmem:[%s355 + $0x10e] sm:$0xff]
        %v3091 = vld [vmem:[%s355 + $0x116] sm:$0xff]
        %v3092 = vld [vmem:[%s355 + $0x126] sm:$0xff]
        %v3093 = vld [vmem:[%s355 + $0x12e] sm:$0xff]
        %v3094 = vld [vmem:[%s355 + $0x13e] sm:$0xff]
        %v3095 = vld [vmem:[%s355 + $0x146] sm:$0xff]
        %v3096 = vld [vmem:[%s355 + $0x156] sm:$0xff]
        %v3097 = vld [vmem:[%s355 + $0x15e] sm:$0xff]
        %v3098 = vld [vmem:[%s355 + $0x16e] sm:$0xff]
        %v3099 = vld [vmem:[%s355 + $0x176] sm:$0xff]
        %v3100 = vld [vmem:[#allocation6 + $0x1b] sm:$0x1]
        %v3101 = vperm.slane %v3100, 0
        %v3102 = vmul.f32 %v3068, %v3101
        %v3103 = vmul.f32 %v3069, %v3101
        %v3104 = vmul.f32 %v3070, %v3101
        %v3105 = vmul.f32 %v3071, %v3101
        %v3106 = vmul.f32 %v3072, %v3101
        %v3107 = vmul.f32 %v3073, %v3101
        %v3108 = vmul.f32 %v3074, %v3101
        %v3109 = vmul.f32 %v3075, %v3101
        %v3110 = vmul.f32 %v3076, %v3101
        %v3111 = vmul.f32 %v3077, %v3101
        %v3112 = vmul.f32 %v3078, %v3101
        %v3113 = vmul.f32 %v3079, %v3101
        %v3114 = vmul.f32 %v3080, %v3101
        %v3115 = vmul.f32 %v3081, %v3101
        %v3116 = vmul.f32 %v3082, %v3101
        %v3117 = vmul.f32 %v3083, %v3101
        %v3118 = vmul.f32 %v3084, %v3101
        %v3119 = vmul.f32 %v3085, %v3101
        %v3120 = vmul.f32 %v3086, %v3101
        %v3121 = vmul.f32 %v3087, %v3101
        %v3122 = vmul.f32 %v3088, %v3101
        %v3123 = vmul.f32 %v3089, %v3101
        %v3124 = vmul.f32 %v3090, %v3101
        %v3125 = vmul.f32 %v3091, %v3101
        %v3126 = vmul.f32 %v3092, %v3101
        %v3127 = vmul.f32 %v3093, %v3101
        %v3128 = vmul.f32 %v3094, %v3101
        %v3129 = vmul.f32 %v3095, %v3101
        %v3130 = vmul.f32 %v3096, %v3101
        %v3131 = vmul.f32 %v3097, %v3101
        %v3132 = vmul.f32 %v3098, %v3101
        %v3133 = vmul.f32 %v3099, %v3101
        %v3134 = vadd.f32 %v3036, %v3102
        %v3135 = vadd.f32 %v3037, %v3103
        %v3136 = vadd.f32 %v3038, %v3104
        %v3137 = vadd.f32 %v3039, %v3105
        %v3138 = vadd.f32 %v3040, %v3106
        %v3139 = vadd.f32 %v3041, %v3107
        %v3140 = vadd.f32 %v3042, %v3108
        %v3141 = vadd.f32 %v3043, %v3109
        %v3142 = vadd.f32 %v3044, %v3110
        %v3143 = vadd.f32 %v3045, %v3111
        %v3144 = vadd.f32 %v3046, %v3112
        %v3145 = vadd.f32 %v3047, %v3113
        %v3146 = vadd.f32 %v3048, %v3114
        %v3147 = vadd.f32 %v3049, %v3115
        %v3148 = vadd.f32 %v3050, %v3116
        %v3149 = vadd.f32 %v3051, %v3117
        %v3150 = vadd.f32 %v3052, %v3118
        %v3151 = vadd.f32 %v3053, %v3119
        %v3152 = vadd.f32 %v3054, %v3120
        %v3153 = vadd.f32 %v3055, %v3121
        %v3154 = vadd.f32 %v3056, %v3122
        %v3155 = vadd.f32 %v3057, %v3123
        %v3156 = vadd.f32 %v3058, %v3124
        %v3157 = vadd.f32 %v3059, %v3125
        %v3158 = vadd.f32 %v3060, %v3126
        %v3159 = vadd.f32 %v3061, %v3127
        %v3160 = vadd.f32 %v3062, %v3128
        %v3161 = vadd.f32 %v3063, %v3129
        %v3162 = vadd.f32 %v3064, %v3130
        %v3163 = vadd.f32 %v3065, %v3131
        %v3164 = vadd.f32 %v3066, %v3132
        %v3165 = vadd.f32 %v3067, %v3133
        %s3166 = scalar_lea.vmem [#allocation2], 96
        %v3167 = vld [vmem:[%s3166] sm:$0xff]
        %v3168 = vld [vmem:[%s3166 + $0x8] sm:$0xff]
        %v3169 = vld [vmem:[%s3166 + $0x18] sm:$0xff]
        %v3170 = vld [vmem:[%s3166 + $0x20] sm:$0xff]
        %v3171 = vld [vmem:[%s3166 + $0x30] sm:$0xff]
        %v3172 = vld [vmem:[%s3166 + $0x38] sm:$0xff]
        %v3173 = vld [vmem:[%s3166 + $0x48] sm:$0xff]
        %v3174 = vld [vmem:[%s3166 + $0x50] sm:$0xff]
        %v3175 = vld [vmem:[%s3166 + $0x60] sm:$0xff]
        %v3176 = vld [vmem:[%s3166 + $0x68] sm:$0xff]
        %v3177 = vld [vmem:[%s3166 + $0x78] sm:$0xff]
        %v3178 = vld [vmem:[%s3166 + $0x80] sm:$0xff]
        %v3179 = vld [vmem:[%s3166 + $0x90] sm:$0xff]
        %v3180 = vld [vmem:[%s3166 + $0x98] sm:$0xff]
        %v3181 = vld [vmem:[%s3166 + $0xa8] sm:$0xff]
        %v3182 = vld [vmem:[%s3166 + $0xb0] sm:$0xff]
        %v3183 = vld [vmem:[%s3166 + $0xc0] sm:$0xff]
        %v3184 = vld [vmem:[%s3166 + $0xc8] sm:$0xff]
        %v3185 = vld [vmem:[%s3166 + $0xd8] sm:$0xff]
        %v3186 = vld [vmem:[%s3166 + $0xe0] sm:$0xff]
        %v3187 = vld [vmem:[%s3166 + $0xf0] sm:$0xff]
        %v3188 = vld [vmem:[%s3166 + $0xf8] sm:$0xff]
        %v3189 = vld [vmem:[%s3166 + $0x108] sm:$0xff]
        %v3190 = vld [vmem:[%s3166 + $0x110] sm:$0xff]
        %v3191 = vld [vmem:[%s3166 + $0x120] sm:$0xff]
        %v3192 = vld [vmem:[%s3166 + $0x128] sm:$0xff]
        %v3193 = vld [vmem:[%s3166 + $0x138] sm:$0xff]
        %v3194 = vld [vmem:[%s3166 + $0x140] sm:$0xff]
        %v3195 = vld [vmem:[%s3166 + $0x150] sm:$0xff]
        %v3196 = vld [vmem:[%s3166 + $0x158] sm:$0xff]
        %v3197 = vld [vmem:[%s3166 + $0x168] sm:$0xff]
        %v3198 = vld [vmem:[%s3166 + $0x170] sm:$0xff]
        %v3199 = vld [vmem:[#allocation6 + $0x1c] sm:$0x1]
        %v3200 = vperm.slane %v3199, 0
        %v3201 = vmul.f32 %v3167, %v3200
        %v3202 = vmul.f32 %v3168, %v3200
        %v3203 = vmul.f32 %v3169, %v3200
        %v3204 = vmul.f32 %v3170, %v3200
        %v3205 = vmul.f32 %v3171, %v3200
        %v3206 = vmul.f32 %v3172, %v3200
        %v3207 = vmul.f32 %v3173, %v3200
        %v3208 = vmul.f32 %v3174, %v3200
        %v3209 = vmul.f32 %v3175, %v3200
        %v3210 = vmul.f32 %v3176, %v3200
        %v3211 = vmul.f32 %v3177, %v3200
        %v3212 = vmul.f32 %v3178, %v3200
        %v3213 = vmul.f32 %v3179, %v3200
        %v3214 = vmul.f32 %v3180, %v3200
        %v3215 = vmul.f32 %v3181, %v3200
        %v3216 = vmul.f32 %v3182, %v3200
        %v3217 = vmul.f32 %v3183, %v3200
        %v3218 = vmul.f32 %v3184, %v3200
        %v3219 = vmul.f32 %v3185, %v3200
        %v3220 = vmul.f32 %v3186, %v3200
        %v3221 = vmul.f32 %v3187, %v3200
        %v3222 = vmul.f32 %v3188, %v3200
        %v3223 = vmul.f32 %v3189, %v3200
        %v3224 = vmul.f32 %v3190, %v3200
        %v3225 = vmul.f32 %v3191, %v3200
        %v3226 = vmul.f32 %v3192, %v3200
        %v3227 = vmul.f32 %v3193, %v3200
        %v3228 = vmul.f32 %v3194, %v3200
        %v3229 = vmul.f32 %v3195, %v3200
        %v3230 = vmul.f32 %v3196, %v3200
        %v3231 = vmul.f32 %v3197, %v3200
        %v3232 = vmul.f32 %v3198, %v3200
        %v3233 = vadd.f32 %v3134, %v3201
        %v3234 = vadd.f32 %v3135, %v3202
        %v3235 = vadd.f32 %v3136, %v3203
        %v3236 = vadd.f32 %v3137, %v3204
        %v3237 = vadd.f32 %v3138, %v3205
        %v3238 = vadd.f32 %v3139, %v3206
        %v3239 = vadd.f32 %v3140, %v3207
        %v3240 = vadd.f32 %v3141, %v3208
        %v3241 = vadd.f32 %v3142, %v3209
        %v3242 = vadd.f32 %v3143, %v3210
        %v3243 = vadd.f32 %v3144, %v3211
        %v3244 = vadd.f32 %v3145, %v3212
        %v3245 = vadd.f32 %v3146, %v3213
        %v3246 = vadd.f32 %v3147, %v3214
        %v3247 = vadd.f32 %v3148, %v3215
        %v3248 = vadd.f32 %v3149, %v3216
        %v3249 = vadd.f32 %v3150, %v3217
        %v3250 = vadd.f32 %v3151, %v3218
        %v3251 = vadd.f32 %v3152, %v3219
        %v3252 = vadd.f32 %v3153, %v3220
        %v3253 = vadd.f32 %v3154, %v3221
        %v3254 = vadd.f32 %v3155, %v3222
        %v3255 = vadd.f32 %v3156, %v3223
        %v3256 = vadd.f32 %v3157, %v3224
        %v3257 = vadd.f32 %v3158, %v3225
        %v3258 = vadd.f32 %v3159, %v3226
        %v3259 = vadd.f32 %v3160, %v3227
        %v3260 = vadd.f32 %v3161, %v3228
        %v3261 = vadd.f32 %v3162, %v3229
        %v3262 = vadd.f32 %v3163, %v3230
        %v3263 = vadd.f32 %v3164, %v3231
        %v3264 = vadd.f32 %v3165, %v3232
        %v3265 = vld [vmem:[%s3166 + $0x1] sm:$0xff]
        %v3266 = vld [vmem:[%s3166 + $0x9] sm:$0xff]
        %v3267 = vld [vmem:[%s3166 + $0x19] sm:$0xff]
        %v3268 = vld [vmem:[%s3166 + $0x21] sm:$0xff]
        %v3269 = vld [vmem:[%s3166 + $0x31] sm:$0xff]
        %v3270 = vld [vmem:[%s3166 + $0x39] sm:$0xff]
        %v3271 = vld [vmem:[%s3166 + $0x49] sm:$0xff]
        %v3272 = vld [vmem:[%s3166 + $0x51] sm:$0xff]
        %v3273 = vld [vmem:[%s3166 + $0x61] sm:$0xff]
        %v3274 = vld [vmem:[%s3166 + $0x69] sm:$0xff]
        %v3275 = vld [vmem:[%s3166 + $0x79] sm:$0xff]
        %v3276 = vld [vmem:[%s3166 + $0x81] sm:$0xff]
        %v3277 = vld [vmem:[%s3166 + $0x91] sm:$0xff]
        %v3278 = vld [vmem:[%s3166 + $0x99] sm:$0xff]
        %v3279 = vld [vmem:[%s3166 + $0xa9] sm:$0xff]
        %v3280 = vld [vmem:[%s3166 + $0xb1] sm:$0xff]
        %v3281 = vld [vmem:[%s3166 + $0xc1] sm:$0xff]
        %v3282 = vld [vmem:[%s3166 + $0xc9] sm:$0xff]
        %v3283 = vld [vmem:[%s3166 + $0xd9] sm:$0xff]
        %v3284 = vld [vmem:[%s3166 + $0xe1] sm:$0xff]
        %v3285 = vld [vmem:[%s3166 + $0xf1] sm:$0xff]
        %v3286 = vld [vmem:[%s3166 + $0xf9] sm:$0xff]
        %v3287 = vld [vmem:[%s3166 + $0x109] sm:$0xff]
        %v3288 = vld [vmem:[%s3166 + $0x111] sm:$0xff]
        %v3289 = vld [vmem:[%s3166 + $0x121] sm:$0xff]
        %v3290 = vld [vmem:[%s3166 + $0x129] sm:$0xff]
        %v3291 = vld [vmem:[%s3166 + $0x139] sm:$0xff]
        %v3292 = vld [vmem:[%s3166 + $0x141] sm:$0xff]
        %v3293 = vld [vmem:[%s3166 + $0x151] sm:$0xff]
        %v3294 = vld [vmem:[%s3166 + $0x159] sm:$0xff]
        %v3295 = vld [vmem:[%s3166 + $0x169] sm:$0xff]
        %v3296 = vld [vmem:[%s3166 + $0x171] sm:$0xff]
        %v3297 = vld [vmem:[#allocation6 + $0x1d] sm:$0x1]
        %v3298 = vperm.slane %v3297, 0
        %v3299 = vmul.f32 %v3265, %v3298
        %v3300 = vmul.f32 %v3266, %v3298
        %v3301 = vmul.f32 %v3267, %v3298
        %v3302 = vmul.f32 %v3268, %v3298
        %v3303 = vmul.f32 %v3269, %v3298
        %v3304 = vmul.f32 %v3270, %v3298
        %v3305 = vmul.f32 %v3271, %v3298
        %v3306 = vmul.f32 %v3272, %v3298
        %v3307 = vmul.f32 %v3273, %v3298
        %v3308 = vmul.f32 %v3274, %v3298
        %v3309 = vmul.f32 %v3275, %v3298
        %v3310 = vmul.f32 %v3276, %v3298
        %v3311 = vmul.f32 %v3277, %v3298
        %v3312 = vmul.f32 %v3278, %v3298
        %v3313 = vmul.f32 %v3279, %v3298
        %v3314 = vmul.f32 %v3280, %v3298
        %v3315 = vmul.f32 %v3281, %v3298
        %v3316 = vmul.f32 %v3282, %v3298
        %v3317 = vmul.f32 %v3283, %v3298
        %v3318 = vmul.f32 %v3284, %v3298
        %v3319 = vmul.f32 %v3285, %v3298
        %v3320 = vmul.f32 %v3286, %v3298
        %v3321 = vmul.f32 %v3287, %v3298
        %v3322 = vmul.f32 %v3288, %v3298
        %v3323 = vmul.f32 %v3289, %v3298
        %v3324 = vmul.f32 %v3290, %v3298
        %v3325 = vmul.f32 %v3291, %v3298
        %v3326 = vmul.f32 %v3292, %v3298
        %v3327 = vmul.f32 %v3293, %v3298
        %v3328 = vmul.f32 %v3294, %v3298
        %v3329 = vmul.f32 %v3295, %v3298
        %v3330 = vmul.f32 %v3296, %v3298
        %v3331 = vadd.f32 %v3233, %v3299
        %v3332 = vadd.f32 %v3234, %v3300
        %v3333 = vadd.f32 %v3235, %v3301
        %v3334 = vadd.f32 %v3236, %v3302
        %v3335 = vadd.f32 %v3237, %v3303
        %v3336 = vadd.f32 %v3238, %v3304
        %v3337 = vadd.f32 %v3239, %v3305
        %v3338 = vadd.f32 %v3240, %v3306
        %v3339 = vadd.f32 %v3241, %v3307
        %v3340 = vadd.f32 %v3242, %v3308
        %v3341 = vadd.f32 %v3243, %v3309
        %v3342 = vadd.f32 %v3244, %v3310
        %v3343 = vadd.f32 %v3245, %v3311
        %v3344 = vadd.f32 %v3246, %v3312
        %v3345 = vadd.f32 %v3247, %v3313
        %v3346 = vadd.f32 %v3248, %v3314
        %v3347 = vadd.f32 %v3249, %v3315
        %v3348 = vadd.f32 %v3250, %v3316
        %v3349 = vadd.f32 %v3251, %v3317
        %v3350 = vadd.f32 %v3252, %v3318
        %v3351 = vadd.f32 %v3253, %v3319
        %v3352 = vadd.f32 %v3254, %v3320
        %v3353 = vadd.f32 %v3255, %v3321
        %v3354 = vadd.f32 %v3256, %v3322
        %v3355 = vadd.f32 %v3257, %v3323
        %v3356 = vadd.f32 %v3258, %v3324
        %v3357 = vadd.f32 %v3259, %v3325
        %v3358 = vadd.f32 %v3260, %v3326
        %v3359 = vadd.f32 %v3261, %v3327
        %v3360 = vadd.f32 %v3262, %v3328
        %v3361 = vadd.f32 %v3263, %v3329
        %v3362 = vadd.f32 %v3264, %v3330
        %v3363 = vld [vmem:[%s3166 + $0x2] sm:$0xff]
        %v3364 = vld [vmem:[%s3166 + $0xa] sm:$0xff]
        %v3365 = vld [vmem:[%s3166 + $0x1a] sm:$0xff]
        %v3366 = vld [vmem:[%s3166 + $0x22] sm:$0xff]
        %v3367 = vld [vmem:[%s3166 + $0x32] sm:$0xff]
        %v3368 = vld [vmem:[%s3166 + $0x3a] sm:$0xff]
        %v3369 = vld [vmem:[%s3166 + $0x4a] sm:$0xff]
        %v3370 = vld [vmem:[%s3166 + $0x52] sm:$0xff]
        %v3371 = vld [vmem:[%s3166 + $0x62] sm:$0xff]
        %v3372 = vld [vmem:[%s3166 + $0x6a] sm:$0xff]
        %v3373 = vld [vmem:[%s3166 + $0x7a] sm:$0xff]
        %v3374 = vld [vmem:[%s3166 + $0x82] sm:$0xff]
        %v3375 = vld [vmem:[%s3166 + $0x92] sm:$0xff]
        %v3376 = vld [vmem:[%s3166 + $0x9a] sm:$0xff]
        %v3377 = vld [vmem:[%s3166 + $0xaa] sm:$0xff]
        %v3378 = vld [vmem:[%s3166 + $0xb2] sm:$0xff]
        %v3379 = vld [vmem:[%s3166 + $0xc2] sm:$0xff]
        %v3380 = vld [vmem:[%s3166 + $0xca] sm:$0xff]
        %v3381 = vld [vmem:[%s3166 + $0xda] sm:$0xff]
        %v3382 = vld [vmem:[%s3166 + $0xe2] sm:$0xff]
        %v3383 = vld [vmem:[%s3166 + $0xf2] sm:$0xff]
        %v3384 = vld [vmem:[%s3166 + $0xfa] sm:$0xff]
        %v3385 = vld [vmem:[%s3166 + $0x10a] sm:$0xff]
        %v3386 = vld [vmem:[%s3166 + $0x112] sm:$0xff]
        %v3387 = vld [vmem:[%s3166 + $0x122] sm:$0xff]
        %v3388 = vld [vmem:[%s3166 + $0x12a] sm:$0xff]
        %v3389 = vld [vmem:[%s3166 + $0x13a] sm:$0xff]
        %v3390 = vld [vmem:[%s3166 + $0x142] sm:$0xff]
        %v3391 = vld [vmem:[%s3166 + $0x152] sm:$0xff]
        %v3392 = vld [vmem:[%s3166 + $0x15a] sm:$0xff]
        %v3393 = vld [vmem:[%s3166 + $0x16a] sm:$0xff]
        %v3394 = vld [vmem:[%s3166 + $0x172] sm:$0xff]
        %v3395 = vld [vmem:[#allocation6 + $0x1e] sm:$0x1]
        %v3396 = vperm.slane %v3395, 0
        %v3397 = vmul.f32 %v3363, %v3396
        %v3398 = vmul.f32 %v3364, %v3396
        %v3399 = vmul.f32 %v3365, %v3396
        %v3400 = vmul.f32 %v3366, %v3396
        %v3401 = vmul.f32 %v3367, %v3396
        %v3402 = vmul.f32 %v3368, %v3396
        %v3403 = vmul.f32 %v3369, %v3396
        %v3404 = vmul.f32 %v3370, %v3396
        %v3405 = vmul.f32 %v3371, %v3396
        %v3406 = vmul.f32 %v3372, %v3396
        %v3407 = vmul.f32 %v3373, %v3396
        %v3408 = vmul.f32 %v3374, %v3396
        %v3409 = vmul.f32 %v3375, %v3396
        %v3410 = vmul.f32 %v3376, %v3396
        %v3411 = vmul.f32 %v3377, %v3396
        %v3412 = vmul.f32 %v3378, %v3396
        %v3413 = vmul.f32 %v3379, %v3396
        %v3414 = vmul.f32 %v3380, %v3396
        %v3415 = vmul.f32 %v3381, %v3396
        %v3416 = vmul.f32 %v3382, %v3396
        %v3417 = vmul.f32 %v3383, %v3396
        %v3418 = vmul.f32 %v3384, %v3396
        %v3419 = vmul.f32 %v3385, %v3396
        %v3420 = vmul.f32 %v3386, %v3396
        %v3421 = vmul.f32 %v3387, %v3396
        %v3422 = vmul.f32 %v3388, %v3396
        %v3423 = vmul.f32 %v3389, %v3396
        %v3424 = vmul.f32 %v3390, %v3396
        %v3425 = vmul.f32 %v3391, %v3396
        %v3426 = vmul.f32 %v3392, %v3396
        %v3427 = vmul.f32 %v3393, %v3396
        %v3428 = vmul.f32 %v3394, %v3396
        %v3429 = vadd.f32 %v3331, %v3397
        %v3430 = vadd.f32 %v3332, %v3398
        %v3431 = vadd.f32 %v3333, %v3399
        %v3432 = vadd.f32 %v3334, %v3400
        %v3433 = vadd.f32 %v3335, %v3401
        %v3434 = vadd.f32 %v3336, %v3402
        %v3435 = vadd.f32 %v3337, %v3403
        %v3436 = vadd.f32 %v3338, %v3404
        %v3437 = vadd.f32 %v3339, %v3405
        %v3438 = vadd.f32 %v3340, %v3406
        %v3439 = vadd.f32 %v3341, %v3407
        %v3440 = vadd.f32 %v3342, %v3408
        %v3441 = vadd.f32 %v3343, %v3409
        %v3442 = vadd.f32 %v3344, %v3410
        %v3443 = vadd.f32 %v3345, %v3411
        %v3444 = vadd.f32 %v3346, %v3412
        %v3445 = vadd.f32 %v3347, %v3413
        %v3446 = vadd.f32 %v3348, %v3414
        %v3447 = vadd.f32 %v3349, %v3415
        %v3448 = vadd.f32 %v3350, %v3416
        %v3449 = vadd.f32 %v3351, %v3417
        %v3450 = vadd.f32 %v3352, %v3418
        %v3451 = vadd.f32 %v3353, %v3419
        %v3452 = vadd.f32 %v3354, %v3420
        %v3453 = vadd.f32 %v3355, %v3421
        %v3454 = vadd.f32 %v3356, %v3422
        %v3455 = vadd.f32 %v3357, %v3423
        %v3456 = vadd.f32 %v3358, %v3424
        %v3457 = vadd.f32 %v3359, %v3425
        %v3458 = vadd.f32 %v3360, %v3426
        %v3459 = vadd.f32 %v3361, %v3427
        %v3460 = vadd.f32 %v3362, %v3428
        %v3461 = vld [vmem:[%s3166 + $0x3] sm:$0xff]
        %v3462 = vld [vmem:[%s3166 + $0xb] sm:$0xff]
        %v3463 = vld [vmem:[%s3166 + $0x1b] sm:$0xff]
        %v3464 = vld [vmem:[%s3166 + $0x23] sm:$0xff]
        %v3465 = vld [vmem:[%s3166 + $0x33] sm:$0xff]
        %v3466 = vld [vmem:[%s3166 + $0x3b] sm:$0xff]
        %v3467 = vld [vmem:[%s3166 + $0x4b] sm:$0xff]
        %v3468 = vld [vmem:[%s3166 + $0x53] sm:$0xff]
        %v3469 = vld [vmem:[%s3166 + $0x63] sm:$0xff]
        %v3470 = vld [vmem:[%s3166 + $0x6b] sm:$0xff]
        %v3471 = vld [vmem:[%s3166 + $0x7b] sm:$0xff]
        %v3472 = vld [vmem:[%s3166 + $0x83] sm:$0xff]
        %v3473 = vld [vmem:[%s3166 + $0x93] sm:$0xff]
        %v3474 = vld [vmem:[%s3166 + $0x9b] sm:$0xff]
        %v3475 = vld [vmem:[%s3166 + $0xab] sm:$0xff]
        %v3476 = vld [vmem:[%s3166 + $0xb3] sm:$0xff]
        %v3477 = vld [vmem:[%s3166 + $0xc3] sm:$0xff]
        %v3478 = vld [vmem:[%s3166 + $0xcb] sm:$0xff]
        %v3479 = vld [vmem:[%s3166 + $0xdb] sm:$0xff]
        %v3480 = vld [vmem:[%s3166 + $0xe3] sm:$0xff]
        %v3481 = vld [vmem:[%s3166 + $0xf3] sm:$0xff]
        %v3482 = vld [vmem:[%s3166 + $0xfb] sm:$0xff]
        %v3483 = vld [vmem:[%s3166 + $0x10b] sm:$0xff]
        %v3484 = vld [vmem:[%s3166 + $0x113] sm:$0xff]
        %v3485 = vld [vmem:[%s3166 + $0x123] sm:$0xff]
        %v3486 = vld [vmem:[%s3166 + $0x12b] sm:$0xff]
        %v3487 = vld [vmem:[%s3166 + $0x13b] sm:$0xff]
        %v3488 = vld [vmem:[%s3166 + $0x143] sm:$0xff]
        %v3489 = vld [vmem:[%s3166 + $0x153] sm:$0xff]
        %v3490 = vld [vmem:[%s3166 + $0x15b] sm:$0xff]
        %v3491 = vld [vmem:[%s3166 + $0x16b] sm:$0xff]
        %v3492 = vld [vmem:[%s3166 + $0x173] sm:$0xff]
        %v3493 = vld [vmem:[#allocation6 + $0x1f] sm:$0x1]
        %v3494 = vperm.slane %v3493, 0
        %v3495 = vmul.f32 %v3461, %v3494
        %v3496 = vmul.f32 %v3462, %v3494
        %v3497 = vmul.f32 %v3463, %v3494
        %v3498 = vmul.f32 %v3464, %v3494
        %v3499 = vmul.f32 %v3465, %v3494
        %v3500 = vmul.f32 %v3466, %v3494
        %v3501 = vmul.f32 %v3467, %v3494
        %v3502 = vmul.f32 %v3468, %v3494
        %v3503 = vmul.f32 %v3469, %v3494
        %v3504 = vmul.f32 %v3470, %v3494
        %v3505 = vmul.f32 %v3471, %v3494
        %v3506 = vmul.f32 %v3472, %v3494
        %v3507 = vmul.f32 %v3473, %v3494
        %v3508 = vmul.f32 %v3474, %v3494
        %v3509 = vmul.f32 %v3475, %v3494
        %v3510 = vmul.f32 %v3476, %v3494
        %v3511 = vmul.f32 %v3477, %v3494
        %v3512 = vmul.f32 %v3478, %v3494
        %v3513 = vmul.f32 %v3479, %v3494
        %v3514 = vmul.f32 %v3480, %v3494
        %v3515 = vmul.f32 %v3481, %v3494
        %v3516 = vmul.f32 %v3482, %v3494
        %v3517 = vmul.f32 %v3483, %v3494
        %v3518 = vmul.f32 %v3484, %v3494
        %v3519 = vmul.f32 %v3485, %v3494
        %v3520 = vmul.f32 %v3486, %v3494
        %v3521 = vmul.f32 %v3487, %v3494
        %v3522 = vmul.f32 %v3488, %v3494
        %v3523 = vmul.f32 %v3489, %v3494
        %v3524 = vmul.f32 %v3490, %v3494
        %v3525 = vmul.f32 %v3491, %v3494
        %v3526 = vmul.f32 %v3492, %v3494
        %v3527 = vadd.f32 %v3429, %v3495
        %v3528 = vadd.f32 %v3430, %v3496
        %v3529 = vadd.f32 %v3431, %v3497
        %v3530 = vadd.f32 %v3432, %v3498
        %v3531 = vadd.f32 %v3433, %v3499
        %v3532 = vadd.f32 %v3434, %v3500
        %v3533 = vadd.f32 %v3435, %v3501
        %v3534 = vadd.f32 %v3436, %v3502
        %v3535 = vadd.f32 %v3437, %v3503
        %v3536 = vadd.f32 %v3438, %v3504
        %v3537 = vadd.f32 %v3439, %v3505
        %v3538 = vadd.f32 %v3440, %v3506
        %v3539 = vadd.f32 %v3441, %v3507
        %v3540 = vadd.f32 %v3442, %v3508
        %v3541 = vadd.f32 %v3443, %v3509
        %v3542 = vadd.f32 %v3444, %v3510
        %v3543 = vadd.f32 %v3445, %v3511
        %v3544 = vadd.f32 %v3446, %v3512
        %v3545 = vadd.f32 %v3447, %v3513
        %v3546 = vadd.f32 %v3448, %v3514
        %v3547 = vadd.f32 %v3449, %v3515
        %v3548 = vadd.f32 %v3450, %v3516
        %v3549 = vadd.f32 %v3451, %v3517
        %v3550 = vadd.f32 %v3452, %v3518
        %v3551 = vadd.f32 %v3453, %v3519
        %v3552 = vadd.f32 %v3454, %v3520
        %v3553 = vadd.f32 %v3455, %v3521
        %v3554 = vadd.f32 %v3456, %v3522
        %v3555 = vadd.f32 %v3457, %v3523
        %v3556 = vadd.f32 %v3458, %v3524
        %v3557 = vadd.f32 %v3459, %v3525
        %v3558 = vadd.f32 %v3460, %v3526
        %v3559 = vld [vmem:[%s3166 + $0x4] sm:$0xff]
        %v3560 = vld [vmem:[%s3166 + $0xc] sm:$0xff]
        %v3561 = vld [vmem:[%s3166 + $0x1c] sm:$0xff]
        %v3562 = vld [vmem:[%s3166 + $0x24] sm:$0xff]
        %v3563 = vld [vmem:[%s3166 + $0x34] sm:$0xff]
        %v3564 = vld [vmem:[%s3166 + $0x3c] sm:$0xff]
        %v3565 = vld [vmem:[%s3166 + $0x4c] sm:$0xff]
        %v3566 = vld [vmem:[%s3166 + $0x54] sm:$0xff]
        %v3567 = vld [vmem:[%s3166 + $0x64] sm:$0xff]
        %v3568 = vld [vmem:[%s3166 + $0x6c] sm:$0xff]
        %v3569 = vld [vmem:[%s3166 + $0x7c] sm:$0xff]
        %v3570 = vld [vmem:[%s3166 + $0x84] sm:$0xff]
        %v3571 = vld [vmem:[%s3166 + $0x94] sm:$0xff]
        %v3572 = vld [vmem:[%s3166 + $0x9c] sm:$0xff]
        %v3573 = vld [vmem:[%s3166 + $0xac] sm:$0xff]
        %v3574 = vld [vmem:[%s3166 + $0xb4] sm:$0xff]
        %v3575 = vld [vmem:[%s3166 + $0xc4] sm:$0xff]
        %v3576 = vld [vmem:[%s3166 + $0xcc] sm:$0xff]
        %v3577 = vld [vmem:[%s3166 + $0xdc] sm:$0xff]
        %v3578 = vld [vmem:[%s3166 + $0xe4] sm:$0xff]
        %v3579 = vld [vmem:[%s3166 + $0xf4] sm:$0xff]
        %v3580 = vld [vmem:[%s3166 + $0xfc] sm:$0xff]
        %v3581 = vld [vmem:[%s3166 + $0x10c] sm:$0xff]
        %v3582 = vld [vmem:[%s3166 + $0x114] sm:$0xff]
        %v3583 = vld [vmem:[%s3166 + $0x124] sm:$0xff]
        %v3584 = vld [vmem:[%s3166 + $0x12c] sm:$0xff]
        %v3585 = vld [vmem:[%s3166 + $0x13c] sm:$0xff]
        %v3586 = vld [vmem:[%s3166 + $0x144] sm:$0xff]
        %v3587 = vld [vmem:[%s3166 + $0x154] sm:$0xff]
        %v3588 = vld [vmem:[%s3166 + $0x15c] sm:$0xff]
        %v3589 = vld [vmem:[%s3166 + $0x16c] sm:$0xff]
        %v3590 = vld [vmem:[%s3166 + $0x174] sm:$0xff]
        %v3591 = vld [vmem:[#allocation6 + $0x20] sm:$0x1]
        %v3592 = vperm.slane %v3591, 0
        %v3593 = vmul.f32 %v3559, %v3592
        %v3594 = vmul.f32 %v3560, %v3592
        %v3595 = vmul.f32 %v3561, %v3592
        %v3596 = vmul.f32 %v3562, %v3592
        %v3597 = vmul.f32 %v3563, %v3592
        %v3598 = vmul.f32 %v3564, %v3592
        %v3599 = vmul.f32 %v3565, %v3592
        %v3600 = vmul.f32 %v3566, %v3592
        %v3601 = vmul.f32 %v3567, %v3592
        %v3602 = vmul.f32 %v3568, %v3592
        %v3603 = vmul.f32 %v3569, %v3592
        %v3604 = vmul.f32 %v3570, %v3592
        %v3605 = vmul.f32 %v3571, %v3592
        %v3606 = vmul.f32 %v3572, %v3592
        %v3607 = vmul.f32 %v3573, %v3592
        %v3608 = vmul.f32 %v3574, %v3592
        %v3609 = vmul.f32 %v3575, %v3592
        %v3610 = vmul.f32 %v3576, %v3592
        %v3611 = vmul.f32 %v3577, %v3592
        %v3612 = vmul.f32 %v3578, %v3592
        %v3613 = vmul.f32 %v3579, %v3592
        %v3614 = vmul.f32 %v3580, %v3592
        %v3615 = vmul.f32 %v3581, %v3592
        %v3616 = vmul.f32 %v3582, %v3592
        %v3617 = vmul.f32 %v3583, %v3592
        %v3618 = vmul.f32 %v3584, %v3592
        %v3619 = vmul.f32 %v3585, %v3592
        %v3620 = vmul.f32 %v3586, %v3592
        %v3621 = vmul.f32 %v3587, %v3592
        %v3622 = vmul.f32 %v3588, %v3592
        %v3623 = vmul.f32 %v3589, %v3592
        %v3624 = vmul.f32 %v3590, %v3592
        %v3625 = vadd.f32 %v3527, %v3593
        %v3626 = vadd.f32 %v3528, %v3594
        %v3627 = vadd.f32 %v3529, %v3595
        %v3628 = vadd.f32 %v3530, %v3596
        %v3629 = vadd.f32 %v3531, %v3597
        %v3630 = vadd.f32 %v3532, %v3598
        %v3631 = vadd.f32 %v3533, %v3599
        %v3632 = vadd.f32 %v3534, %v3600
        %v3633 = vadd.f32 %v3535, %v3601
        %v3634 = vadd.f32 %v3536, %v3602
        %v3635 = vadd.f32 %v3537, %v3603
        %v3636 = vadd.f32 %v3538, %v3604
        %v3637 = vadd.f32 %v3539, %v3605
        %v3638 = vadd.f32 %v3540, %v3606
        %v3639 = vadd.f32 %v3541, %v3607
        %v3640 = vadd.f32 %v3542, %v3608
        %v3641 = vadd.f32 %v3543, %v3609
        %v3642 = vadd.f32 %v3544, %v3610
        %v3643 = vadd.f32 %v3545, %v3611
        %v3644 = vadd.f32 %v3546, %v3612
        %v3645 = vadd.f32 %v3547, %v3613
        %v3646 = vadd.f32 %v3548, %v3614
        %v3647 = vadd.f32 %v3549, %v3615
        %v3648 = vadd.f32 %v3550, %v3616
        %v3649 = vadd.f32 %v3551, %v3617
        %v3650 = vadd.f32 %v3552, %v3618
        %v3651 = vadd.f32 %v3553, %v3619
        %v3652 = vadd.f32 %v3554, %v3620
        %v3653 = vadd.f32 %v3555, %v3621
        %v3654 = vadd.f32 %v3556, %v3622
        %v3655 = vadd.f32 %v3557, %v3623
        %v3656 = vadd.f32 %v3558, %v3624
        %v3657 = vld [vmem:[%s3166 + $0x5] sm:$0xff]
        %v3658 = vld [vmem:[%s3166 + $0xd] sm:$0xff]
        %v3659 = vld [vmem:[%s3166 + $0x1d] sm:$0xff]
        %v3660 = vld [vmem:[%s3166 + $0x25] sm:$0xff]
        %v3661 = vld [vmem:[%s3166 + $0x35] sm:$0xff]
        %v3662 = vld [vmem:[%s3166 + $0x3d] sm:$0xff]
        %v3663 = vld [vmem:[%s3166 + $0x4d] sm:$0xff]
        %v3664 = vld [vmem:[%s3166 + $0x55] sm:$0xff]
        %v3665 = vld [vmem:[%s3166 + $0x65] sm:$0xff]
        %v3666 = vld [vmem:[%s3166 + $0x6d] sm:$0xff]
        %v3667 = vld [vmem:[%s3166 + $0x7d] sm:$0xff]
        %v3668 = vld [vmem:[%s3166 + $0x85] sm:$0xff]
        %v3669 = vld [vmem:[%s3166 + $0x95] sm:$0xff]
        %v3670 = vld [vmem:[%s3166 + $0x9d] sm:$0xff]
        %v3671 = vld [vmem:[%s3166 + $0xad] sm:$0xff]
        %v3672 = vld [vmem:[%s3166 + $0xb5] sm:$0xff]
        %v3673 = vld [vmem:[%s3166 + $0xc5] sm:$0xff]
        %v3674 = vld [vmem:[%s3166 + $0xcd] sm:$0xff]
        %v3675 = vld [vmem:[%s3166 + $0xdd] sm:$0xff]
        %v3676 = vld [vmem:[%s3166 + $0xe5] sm:$0xff]
        %v3677 = vld [vmem:[%s3166 + $0xf5] sm:$0xff]
        %v3678 = vld [vmem:[%s3166 + $0xfd] sm:$0xff]
        %v3679 = vld [vmem:[%s3166 + $0x10d] sm:$0xff]
        %v3680 = vld [vmem:[%s3166 + $0x115] sm:$0xff]
        %v3681 = vld [vmem:[%s3166 + $0x125] sm:$0xff]
        %v3682 = vld [vmem:[%s3166 + $0x12d] sm:$0xff]
        %v3683 = vld [vmem:[%s3166 + $0x13d] sm:$0xff]
        %v3684 = vld [vmem:[%s3166 + $0x145] sm:$0xff]
        %v3685 = vld [vmem:[%s3166 + $0x155] sm:$0xff]
        %v3686 = vld [vmem:[%s3166 + $0x15d] sm:$0xff]
        %v3687 = vld [vmem:[%s3166 + $0x16d] sm:$0xff]
        %v3688 = vld [vmem:[%s3166 + $0x175] sm:$0xff]
        %v3689 = vld [vmem:[#allocation6 + $0x21] sm:$0x1]
        %v3690 = vperm.slane %v3689, 0
        %v3691 = vmul.f32 %v3657, %v3690
        %v3692 = vmul.f32 %v3658, %v3690
        %v3693 = vmul.f32 %v3659, %v3690
        %v3694 = vmul.f32 %v3660, %v3690
        %v3695 = vmul.f32 %v3661, %v3690
        %v3696 = vmul.f32 %v3662, %v3690
        %v3697 = vmul.f32 %v3663, %v3690
        %v3698 = vmul.f32 %v3664, %v3690
        %v3699 = vmul.f32 %v3665, %v3690
        %v3700 = vmul.f32 %v3666, %v3690
        %v3701 = vmul.f32 %v3667, %v3690
        %v3702 = vmul.f32 %v3668, %v3690
        %v3703 = vmul.f32 %v3669, %v3690
        %v3704 = vmul.f32 %v3670, %v3690
        %v3705 = vmul.f32 %v3671, %v3690
        %v3706 = vmul.f32 %v3672, %v3690
        %v3707 = vmul.f32 %v3673, %v3690
        %v3708 = vmul.f32 %v3674, %v3690
        %v3709 = vmul.f32 %v3675, %v3690
        %v3710 = vmul.f32 %v3676, %v3690
        %v3711 = vmul.f32 %v3677, %v3690
        %v3712 = vmul.f32 %v3678, %v3690
        %v3713 = vmul.f32 %v3679, %v3690
        %v3714 = vmul.f32 %v3680, %v3690
        %v3715 = vmul.f32 %v3681, %v3690
        %v3716 = vmul.f32 %v3682, %v3690
        %v3717 = vmul.f32 %v3683, %v3690
        %v3718 = vmul.f32 %v3684, %v3690
        %v3719 = vmul.f32 %v3685, %v3690
        %v3720 = vmul.f32 %v3686, %v3690
        %v3721 = vmul.f32 %v3687, %v3690
        %v3722 = vmul.f32 %v3688, %v3690
        %v3723 = vadd.f32 %v3625, %v3691
        %v3724 = vadd.f32 %v3626, %v3692
        %v3725 = vadd.f32 %v3627, %v3693
        %v3726 = vadd.f32 %v3628, %v3694
        %v3727 = vadd.f32 %v3629, %v3695
        %v3728 = vadd.f32 %v3630, %v3696
        %v3729 = vadd.f32 %v3631, %v3697
        %v3730 = vadd.f32 %v3632, %v3698
        %v3731 = vadd.f32 %v3633, %v3699
        %v3732 = vadd.f32 %v3634, %v3700
        %v3733 = vadd.f32 %v3635, %v3701
        %v3734 = vadd.f32 %v3636, %v3702
        %v3735 = vadd.f32 %v3637, %v3703
        %v3736 = vadd.f32 %v3638, %v3704
        %v3737 = vadd.f32 %v3639, %v3705
        %v3738 = vadd.f32 %v3640, %v3706
        %v3739 = vadd.f32 %v3641, %v3707
        %v3740 = vadd.f32 %v3642, %v3708
        %v3741 = vadd.f32 %v3643, %v3709
        %v3742 = vadd.f32 %v3644, %v3710
        %v3743 = vadd.f32 %v3645, %v3711
        %v3744 = vadd.f32 %v3646, %v3712
        %v3745 = vadd.f32 %v3647, %v3713
        %v3746 = vadd.f32 %v3648, %v3714
        %v3747 = vadd.f32 %v3649, %v3715
        %v3748 = vadd.f32 %v3650, %v3716
        %v3749 = vadd.f32 %v3651, %v3717
        %v3750 = vadd.f32 %v3652, %v3718
        %v3751 = vadd.f32 %v3653, %v3719
        %v3752 = vadd.f32 %v3654, %v3720
        %v3753 = vadd.f32 %v3655, %v3721
        %v3754 = vadd.f32 %v3656, %v3722
        %v3755 = vld [vmem:[%s3166 + $0x6] sm:$0xff]
        %v3756 = vld [vmem:[%s3166 + $0xe] sm:$0xff]
        %v3757 = vld [vmem:[%s3166 + $0x1e] sm:$0xff]
        %v3758 = vld [vmem:[%s3166 + $0x26] sm:$0xff]
        %v3759 = vld [vmem:[%s3166 + $0x36] sm:$0xff]
        %v3760 = vld [vmem:[%s3166 + $0x3e] sm:$0xff]
        %v3761 = vld [vmem:[%s3166 + $0x4e] sm:$0xff]
        %v3762 = vld [vmem:[%s3166 + $0x56] sm:$0xff]
        %v3763 = vld [vmem:[%s3166 + $0x66] sm:$0xff]
        %v3764 = vld [vmem:[%s3166 + $0x6e] sm:$0xff]
        %v3765 = vld [vmem:[%s3166 + $0x7e] sm:$0xff]
        %v3766 = vld [vmem:[%s3166 + $0x86] sm:$0xff]
        %v3767 = vld [vmem:[%s3166 + $0x96] sm:$0xff]
        %v3768 = vld [vmem:[%s3166 + $0x9e] sm:$0xff]
        %v3769 = vld [vmem:[%s3166 + $0xae] sm:$0xff]
        %v3770 = vld [vmem:[%s3166 + $0xb6] sm:$0xff]
        %v3771 = vld [vmem:[%s3166 + $0xc6] sm:$0xff]
        %v3772 = vld [vmem:[%s3166 + $0xce] sm:$0xff]
        %v3773 = vld [vmem:[%s3166 + $0xde] sm:$0xff]
        %v3774 = vld [vmem:[%s3166 + $0xe6] sm:$0xff]
        %v3775 = vld [vmem:[%s3166 + $0xf6] sm:$0xff]
        %v3776 = vld [vmem:[%s3166 + $0xfe] sm:$0xff]
        %v3777 = vld [vmem:[%s3166 + $0x10e] sm:$0xff]
        %v3778 = vld [vmem:[%s3166 + $0x116] sm:$0xff]
        %v3779 = vld [vmem:[%s3166 + $0x126] sm:$0xff]
        %v3780 = vld [vmem:[%s3166 + $0x12e] sm:$0xff]
        %v3781 = vld [vmem:[%s3166 + $0x13e] sm:$0xff]
        %v3782 = vld [vmem:[%s3166 + $0x146] sm:$0xff]
        %v3783 = vld [vmem:[%s3166 + $0x156] sm:$0xff]
        %v3784 = vld [vmem:[%s3166 + $0x15e] sm:$0xff]
        %v3785 = vld [vmem:[%s3166 + $0x16e] sm:$0xff]
        %v3786 = vld [vmem:[%s3166 + $0x176] sm:$0xff]
        %v3787 = vld [vmem:[#allocation6 + $0x22] sm:$0x1]
        %v3788 = vperm.slane %v3787, 0
        %v3789 = vmul.f32 %v3755, %v3788
        %v3790 = vmul.f32 %v3756, %v3788
        %v3791 = vmul.f32 %v3757, %v3788
        %v3792 = vmul.f32 %v3758, %v3788
        %v3793 = vmul.f32 %v3759, %v3788
        %v3794 = vmul.f32 %v3760, %v3788
        %v3795 = vmul.f32 %v3761, %v3788
        %v3796 = vmul.f32 %v3762, %v3788
        %v3797 = vmul.f32 %v3763, %v3788
        %v3798 = vmul.f32 %v3764, %v3788
        %v3799 = vmul.f32 %v3765, %v3788
        %v3800 = vmul.f32 %v3766, %v3788
        %v3801 = vmul.f32 %v3767, %v3788
        %v3802 = vmul.f32 %v3768, %v3788
        %v3803 = vmul.f32 %v3769, %v3788
        %v3804 = vmul.f32 %v3770, %v3788
        %v3805 = vmul.f32 %v3771, %v3788
        %v3806 = vmul.f32 %v3772, %v3788
        %v3807 = vmul.f32 %v3773, %v3788
        %v3808 = vmul.f32 %v3774, %v3788
        %v3809 = vmul.f32 %v3775, %v3788
        %v3810 = vmul.f32 %v3776, %v3788
        %v3811 = vmul.f32 %v3777, %v3788
        %v3812 = vmul.f32 %v3778, %v3788
        %v3813 = vmul.f32 %v3779, %v3788
        %v3814 = vmul.f32 %v3780, %v3788
        %v3815 = vmul.f32 %v3781, %v3788
        %v3816 = vmul.f32 %v3782, %v3788
        %v3817 = vmul.f32 %v3783, %v3788
        %v3818 = vmul.f32 %v3784, %v3788
        %v3819 = vmul.f32 %v3785, %v3788
        %v3820 = vmul.f32 %v3786, %v3788
        %v3821 = vadd.f32 %v3723, %v3789
        %v3822 = vadd.f32 %v3724, %v3790
        %v3823 = vadd.f32 %v3725, %v3791
        %v3824 = vadd.f32 %v3726, %v3792
        %v3825 = vadd.f32 %v3727, %v3793
        %v3826 = vadd.f32 %v3728, %v3794
        %v3827 = vadd.f32 %v3729, %v3795
        %v3828 = vadd.f32 %v3730, %v3796
        %v3829 = vadd.f32 %v3731, %v3797
        %v3830 = vadd.f32 %v3732, %v3798
        %v3831 = vadd.f32 %v3733, %v3799
        %v3832 = vadd.f32 %v3734, %v3800
        %v3833 = vadd.f32 %v3735, %v3801
        %v3834 = vadd.f32 %v3736, %v3802
        %v3835 = vadd.f32 %v3737, %v3803
        %v3836 = vadd.f32 %v3738, %v3804
        %v3837 = vadd.f32 %v3739, %v3805
        %v3838 = vadd.f32 %v3740, %v3806
        %v3839 = vadd.f32 %v3741, %v3807
        %v3840 = vadd.f32 %v3742, %v3808
        %v3841 = vadd.f32 %v3743, %v3809
        %v3842 = vadd.f32 %v3744, %v3810
        %v3843 = vadd.f32 %v3745, %v3811
        %v3844 = vadd.f32 %v3746, %v3812
        %v3845 = vadd.f32 %v3747, %v3813
        %v3846 = vadd.f32 %v3748, %v3814
        %v3847 = vadd.f32 %v3749, %v3815
        %v3848 = vadd.f32 %v3750, %v3816
        %v3849 = vadd.f32 %v3751, %v3817
        %v3850 = vadd.f32 %v3752, %v3818
        %v3851 = vadd.f32 %v3753, %v3819
        %v3852 = vadd.f32 %v3754, %v3820
        %s3853 = scalar_lea.vmem [#allocation2], 120
        %v3854 = vld [vmem:[%s3853] sm:$0xff]
        %v3855 = vld [vmem:[%s3853 + $0x8] sm:$0xff]
        %v3856 = vld [vmem:[%s3853 + $0x18] sm:$0xff]
        %v3857 = vld [vmem:[%s3853 + $0x20] sm:$0xff]
        %v3858 = vld [vmem:[%s3853 + $0x30] sm:$0xff]
        %v3859 = vld [vmem:[%s3853 + $0x38] sm:$0xff]
        %v3860 = vld [vmem:[%s3853 + $0x48] sm:$0xff]
        %v3861 = vld [vmem:[%s3853 + $0x50] sm:$0xff]
        %v3862 = vld [vmem:[%s3853 + $0x60] sm:$0xff]
        %v3863 = vld [vmem:[%s3853 + $0x68] sm:$0xff]
        %v3864 = vld [vmem:[%s3853 + $0x78] sm:$0xff]
        %v3865 = vld [vmem:[%s3853 + $0x80] sm:$0xff]
        %v3866 = vld [vmem:[%s3853 + $0x90] sm:$0xff]
        %v3867 = vld [vmem:[%s3853 + $0x98] sm:$0xff]
        %v3868 = vld [vmem:[%s3853 + $0xa8] sm:$0xff]
        %v3869 = vld [vmem:[%s3853 + $0xb0] sm:$0xff]
        %v3870 = vld [vmem:[%s3853 + $0xc0] sm:$0xff]
        %v3871 = vld [vmem:[%s3853 + $0xc8] sm:$0xff]
        %v3872 = vld [vmem:[%s3853 + $0xd8] sm:$0xff]
        %v3873 = vld [vmem:[%s3853 + $0xe0] sm:$0xff]
        %v3874 = vld [vmem:[%s3853 + $0xf0] sm:$0xff]
        %v3875 = vld [vmem:[%s3853 + $0xf8] sm:$0xff]
        %v3876 = vld [vmem:[%s3853 + $0x108] sm:$0xff]
        %v3877 = vld [vmem:[%s3853 + $0x110] sm:$0xff]
        %v3878 = vld [vmem:[%s3853 + $0x120] sm:$0xff]
        %v3879 = vld [vmem:[%s3853 + $0x128] sm:$0xff]
        %v3880 = vld [vmem:[%s3853 + $0x138] sm:$0xff]
        %v3881 = vld [vmem:[%s3853 + $0x140] sm:$0xff]
        %v3882 = vld [vmem:[%s3853 + $0x150] sm:$0xff]
        %v3883 = vld [vmem:[%s3853 + $0x158] sm:$0xff]
        %v3884 = vld [vmem:[%s3853 + $0x168] sm:$0xff]
        %v3885 = vld [vmem:[%s3853 + $0x170] sm:$0xff]
        %v3886 = vld [vmem:[#allocation6 + $0x23] sm:$0x1]
        %v3887 = vperm.slane %v3886, 0
        %v3888 = vmul.f32 %v3854, %v3887
        %v3889 = vmul.f32 %v3855, %v3887
        %v3890 = vmul.f32 %v3856, %v3887
        %v3891 = vmul.f32 %v3857, %v3887
        %v3892 = vmul.f32 %v3858, %v3887
        %v3893 = vmul.f32 %v3859, %v3887
        %v3894 = vmul.f32 %v3860, %v3887
        %v3895 = vmul.f32 %v3861, %v3887
        %v3896 = vmul.f32 %v3862, %v3887
        %v3897 = vmul.f32 %v3863, %v3887
        %v3898 = vmul.f32 %v3864, %v3887
        %v3899 = vmul.f32 %v3865, %v3887
        %v3900 = vmul.f32 %v3866, %v3887
        %v3901 = vmul.f32 %v3867, %v3887
        %v3902 = vmul.f32 %v3868, %v3887
        %v3903 = vmul.f32 %v3869, %v3887
        %v3904 = vmul.f32 %v3870, %v3887
        %v3905 = vmul.f32 %v3871, %v3887
        %v3906 = vmul.f32 %v3872, %v3887
        %v3907 = vmul.f32 %v3873, %v3887
        %v3908 = vmul.f32 %v3874, %v3887
        %v3909 = vmul.f32 %v3875, %v3887
        %v3910 = vmul.f32 %v3876, %v3887
        %v3911 = vmul.f32 %v3877, %v3887
        %v3912 = vmul.f32 %v3878, %v3887
        %v3913 = vmul.f32 %v3879, %v3887
        %v3914 = vmul.f32 %v3880, %v3887
        %v3915 = vmul.f32 %v3881, %v3887
        %v3916 = vmul.f32 %v3882, %v3887
        %v3917 = vmul.f32 %v3883, %v3887
        %v3918 = vmul.f32 %v3884, %v3887
        %v3919 = vmul.f32 %v3885, %v3887
        %v3920 = vadd.f32 %v3821, %v3888
        %v3921 = vadd.f32 %v3822, %v3889
        %v3922 = vadd.f32 %v3823, %v3890
        %v3923 = vadd.f32 %v3824, %v3891
        %v3924 = vadd.f32 %v3825, %v3892
        %v3925 = vadd.f32 %v3826, %v3893
        %v3926 = vadd.f32 %v3827, %v3894
        %v3927 = vadd.f32 %v3828, %v3895
        %v3928 = vadd.f32 %v3829, %v3896
        %v3929 = vadd.f32 %v3830, %v3897
        %v3930 = vadd.f32 %v3831, %v3898
        %v3931 = vadd.f32 %v3832, %v3899
        %v3932 = vadd.f32 %v3833, %v3900
        %v3933 = vadd.f32 %v3834, %v3901
        %v3934 = vadd.f32 %v3835, %v3902
        %v3935 = vadd.f32 %v3836, %v3903
        %v3936 = vadd.f32 %v3837, %v3904
        %v3937 = vadd.f32 %v3838, %v3905
        %v3938 = vadd.f32 %v3839, %v3906
        %v3939 = vadd.f32 %v3840, %v3907
        %v3940 = vadd.f32 %v3841, %v3908
        %v3941 = vadd.f32 %v3842, %v3909
        %v3942 = vadd.f32 %v3843, %v3910
        %v3943 = vadd.f32 %v3844, %v3911
        %v3944 = vadd.f32 %v3845, %v3912
        %v3945 = vadd.f32 %v3846, %v3913
        %v3946 = vadd.f32 %v3847, %v3914
        %v3947 = vadd.f32 %v3848, %v3915
        %v3948 = vadd.f32 %v3849, %v3916
        %v3949 = vadd.f32 %v3850, %v3917
        %v3950 = vadd.f32 %v3851, %v3918
        %v3951 = vadd.f32 %v3852, %v3919
        %v3952 = vld [vmem:[%s3853 + $0x1] sm:$0xff]
        %v3953 = vld [vmem:[%s3853 + $0x9] sm:$0xff]
        %v3954 = vld [vmem:[%s3853 + $0x19] sm:$0xff]
        %v3955 = vld [vmem:[%s3853 + $0x21] sm:$0xff]
        %v3956 = vld [vmem:[%s3853 + $0x31] sm:$0xff]
        %v3957 = vld [vmem:[%s3853 + $0x39] sm:$0xff]
        %v3958 = vld [vmem:[%s3853 + $0x49] sm:$0xff]
        %v3959 = vld [vmem:[%s3853 + $0x51] sm:$0xff]
        %v3960 = vld [vmem:[%s3853 + $0x61] sm:$0xff]
        %v3961 = vld [vmem:[%s3853 + $0x69] sm:$0xff]
        %v3962 = vld [vmem:[%s3853 + $0x79] sm:$0xff]
        %v3963 = vld [vmem:[%s3853 + $0x81] sm:$0xff]
        %v3964 = vld [vmem:[%s3853 + $0x91] sm:$0xff]
        %v3965 = vld [vmem:[%s3853 + $0x99] sm:$0xff]
        %v3966 = vld [vmem:[%s3853 + $0xa9] sm:$0xff]
        %v3967 = vld [vmem:[%s3853 + $0xb1] sm:$0xff]
        %v3968 = vld [vmem:[%s3853 + $0xc1] sm:$0xff]
        %v3969 = vld [vmem:[%s3853 + $0xc9] sm:$0xff]
        %v3970 = vld [vmem:[%s3853 + $0xd9] sm:$0xff]
        %v3971 = vld [vmem:[%s3853 + $0xe1] sm:$0xff]
        %v3972 = vld [vmem:[%s3853 + $0xf1] sm:$0xff]
        %v3973 = vld [vmem:[%s3853 + $0xf9] sm:$0xff]
        %v3974 = vld [vmem:[%s3853 + $0x109] sm:$0xff]
        %v3975 = vld [vmem:[%s3853 + $0x111] sm:$0xff]
        %v3976 = vld [vmem:[%s3853 + $0x121] sm:$0xff]
        %v3977 = vld [vmem:[%s3853 + $0x129] sm:$0xff]
        %v3978 = vld [vmem:[%s3853 + $0x139] sm:$0xff]
        %v3979 = vld [vmem:[%s3853 + $0x141] sm:$0xff]
        %v3980 = vld [vmem:[%s3853 + $0x151] sm:$0xff]
        %v3981 = vld [vmem:[%s3853 + $0x159] sm:$0xff]
        %v3982 = vld [vmem:[%s3853 + $0x169] sm:$0xff]
        %v3983 = vld [vmem:[%s3853 + $0x171] sm:$0xff]
        %v3984 = vld [vmem:[#allocation6 + $0x24] sm:$0x1]
        %v3985 = vperm.slane %v3984, 0
        %v3986 = vmul.f32 %v3952, %v3985
        %v3987 = vmul.f32 %v3953, %v3985
        %v3988 = vmul.f32 %v3954, %v3985
        %v3989 = vmul.f32 %v3955, %v3985
        %v3990 = vmul.f32 %v3956, %v3985
        %v3991 = vmul.f32 %v3957, %v3985
        %v3992 = vmul.f32 %v3958, %v3985
        %v3993 = vmul.f32 %v3959, %v3985
        %v3994 = vmul.f32 %v3960, %v3985
        %v3995 = vmul.f32 %v3961, %v3985
        %v3996 = vmul.f32 %v3962, %v3985
        %v3997 = vmul.f32 %v3963, %v3985
        %v3998 = vmul.f32 %v3964, %v3985
        %v3999 = vmul.f32 %v3965, %v3985
        %v4000 = vmul.f32 %v3966, %v3985
        %v4001 = vmul.f32 %v3967, %v3985
        %v4002 = vmul.f32 %v3968, %v3985
        %v4003 = vmul.f32 %v3969, %v3985
        %v4004 = vmul.f32 %v3970, %v3985
        %v4005 = vmul.f32 %v3971, %v3985
        %v4006 = vmul.f32 %v3972, %v3985
        %v4007 = vmul.f32 %v3973, %v3985
        %v4008 = vmul.f32 %v3974, %v3985
        %v4009 = vmul.f32 %v3975, %v3985
        %v4010 = vmul.f32 %v3976, %v3985
        %v4011 = vmul.f32 %v3977, %v3985
        %v4012 = vmul.f32 %v3978, %v3985
        %v4013 = vmul.f32 %v3979, %v3985
        %v4014 = vmul.f32 %v3980, %v3985
        %v4015 = vmul.f32 %v3981, %v3985
        %v4016 = vmul.f32 %v3982, %v3985
        %v4017 = vmul.f32 %v3983, %v3985
        %v4018 = vadd.f32 %v3920, %v3986
        %v4019 = vadd.f32 %v3921, %v3987
        %v4020 = vadd.f32 %v3922, %v3988
        %v4021 = vadd.f32 %v3923, %v3989
        %v4022 = vadd.f32 %v3924, %v3990
        %v4023 = vadd.f32 %v3925, %v3991
        %v4024 = vadd.f32 %v3926, %v3992
        %v4025 = vadd.f32 %v3927, %v3993
        %v4026 = vadd.f32 %v3928, %v3994
        %v4027 = vadd.f32 %v3929, %v3995
        %v4028 = vadd.f32 %v3930, %v3996
        %v4029 = vadd.f32 %v3931, %v3997
        %v4030 = vadd.f32 %v3932, %v3998
        %v4031 = vadd.f32 %v3933, %v3999
        %v4032 = vadd.f32 %v3934, %v4000
        %v4033 = vadd.f32 %v3935, %v4001
        %v4034 = vadd.f32 %v3936, %v4002
        %v4035 = vadd.f32 %v3937, %v4003
        %v4036 = vadd.f32 %v3938, %v4004
        %v4037 = vadd.f32 %v3939, %v4005
        %v4038 = vadd.f32 %v3940, %v4006
        %v4039 = vadd.f32 %v3941, %v4007
        %v4040 = vadd.f32 %v3942, %v4008
        %v4041 = vadd.f32 %v3943, %v4009
        %v4042 = vadd.f32 %v3944, %v4010
        %v4043 = vadd.f32 %v3945, %v4011
        %v4044 = vadd.f32 %v3946, %v4012
        %v4045 = vadd.f32 %v3947, %v4013
        %v4046 = vadd.f32 %v3948, %v4014
        %v4047 = vadd.f32 %v3949, %v4015
        %v4048 = vadd.f32 %v3950, %v4016
        %v4049 = vadd.f32 %v3951, %v4017
        %v4050 = vld [vmem:[%s3853 + $0x2] sm:$0xff]
        %v4051 = vld [vmem:[%s3853 + $0xa] sm:$0xff]
        %v4052 = vld [vmem:[%s3853 + $0x1a] sm:$0xff]
        %v4053 = vld [vmem:[%s3853 + $0x22] sm:$0xff]
        %v4054 = vld [vmem:[%s3853 + $0x32] sm:$0xff]
        %v4055 = vld [vmem:[%s3853 + $0x3a] sm:$0xff]
        %v4056 = vld [vmem:[%s3853 + $0x4a] sm:$0xff]
        %v4057 = vld [vmem:[%s3853 + $0x52] sm:$0xff]
        %v4058 = vld [vmem:[%s3853 + $0x62] sm:$0xff]
        %v4059 = vld [vmem:[%s3853 + $0x6a] sm:$0xff]
        %v4060 = vld [vmem:[%s3853 + $0x7a] sm:$0xff]
        %v4061 = vld [vmem:[%s3853 + $0x82] sm:$0xff]
        %v4062 = vld [vmem:[%s3853 + $0x92] sm:$0xff]
        %v4063 = vld [vmem:[%s3853 + $0x9a] sm:$0xff]
        %v4064 = vld [vmem:[%s3853 + $0xaa] sm:$0xff]
        %v4065 = vld [vmem:[%s3853 + $0xb2] sm:$0xff]
        %v4066 = vld [vmem:[%s3853 + $0xc2] sm:$0xff]
        %v4067 = vld [vmem:[%s3853 + $0xca] sm:$0xff]
        %v4068 = vld [vmem:[%s3853 + $0xda] sm:$0xff]
        %v4069 = vld [vmem:[%s3853 + $0xe2] sm:$0xff]
        %v4070 = vld [vmem:[%s3853 + $0xf2] sm:$0xff]
        %v4071 = vld [vmem:[%s3853 + $0xfa] sm:$0xff]
        %v4072 = vld [vmem:[%s3853 + $0x10a] sm:$0xff]
        %v4073 = vld [vmem:[%s3853 + $0x112] sm:$0xff]
        %v4074 = vld [vmem:[%s3853 + $0x122] sm:$0xff]
        %v4075 = vld [vmem:[%s3853 + $0x12a] sm:$0xff]
        %v4076 = vld [vmem:[%s3853 + $0x13a] sm:$0xff]
        %v4077 = vld [vmem:[%s3853 + $0x142] sm:$0xff]
        %v4078 = vld [vmem:[%s3853 + $0x152] sm:$0xff]
        %v4079 = vld [vmem:[%s3853 + $0x15a] sm:$0xff]
        %v4080 = vld [vmem:[%s3853 + $0x16a] sm:$0xff]
        %v4081 = vld [vmem:[%s3853 + $0x172] sm:$0xff]
        %v4082 = vld [vmem:[#allocation6 + $0x25] sm:$0x1]
        %v4083 = vperm.slane %v4082, 0
        %v4084 = vmul.f32 %v4050, %v4083
        %v4085 = vmul.f32 %v4051, %v4083
        %v4086 = vmul.f32 %v4052, %v4083
        %v4087 = vmul.f32 %v4053, %v4083
        %v4088 = vmul.f32 %v4054, %v4083
        %v4089 = vmul.f32 %v4055, %v4083
        %v4090 = vmul.f32 %v4056, %v4083
        %v4091 = vmul.f32 %v4057, %v4083
        %v4092 = vmul.f32 %v4058, %v4083
        %v4093 = vmul.f32 %v4059, %v4083
        %v4094 = vmul.f32 %v4060, %v4083
        %v4095 = vmul.f32 %v4061, %v4083
        %v4096 = vmul.f32 %v4062, %v4083
        %v4097 = vmul.f32 %v4063, %v4083
        %v4098 = vmul.f32 %v4064, %v4083
        %v4099 = vmul.f32 %v4065, %v4083
        %v4100 = vmul.f32 %v4066, %v4083
        %v4101 = vmul.f32 %v4067, %v4083
        %v4102 = vmul.f32 %v4068, %v4083
        %v4103 = vmul.f32 %v4069, %v4083
        %v4104 = vmul.f32 %v4070, %v4083
        %v4105 = vmul.f32 %v4071, %v4083
        %v4106 = vmul.f32 %v4072, %v4083
        %v4107 = vmul.f32 %v4073, %v4083
        %v4108 = vmul.f32 %v4074, %v4083
        %v4109 = vmul.f32 %v4075, %v4083
        %v4110 = vmul.f32 %v4076, %v4083
        %v4111 = vmul.f32 %v4077, %v4083
        %v4112 = vmul.f32 %v4078, %v4083
        %v4113 = vmul.f32 %v4079, %v4083
        %v4114 = vmul.f32 %v4080, %v4083
        %v4115 = vmul.f32 %v4081, %v4083
        %v4116 = vadd.f32 %v4018, %v4084
        %v4117 = vadd.f32 %v4019, %v4085
        %v4118 = vadd.f32 %v4020, %v4086
        %v4119 = vadd.f32 %v4021, %v4087
        %v4120 = vadd.f32 %v4022, %v4088
        %v4121 = vadd.f32 %v4023, %v4089
        %v4122 = vadd.f32 %v4024, %v4090
        %v4123 = vadd.f32 %v4025, %v4091
        %v4124 = vadd.f32 %v4026, %v4092
        %v4125 = vadd.f32 %v4027, %v4093
        %v4126 = vadd.f32 %v4028, %v4094
        %v4127 = vadd.f32 %v4029, %v4095
        %v4128 = vadd.f32 %v4030, %v4096
        %v4129 = vadd.f32 %v4031, %v4097
        %v4130 = vadd.f32 %v4032, %v4098
        %v4131 = vadd.f32 %v4033, %v4099
        %v4132 = vadd.f32 %v4034, %v4100
        %v4133 = vadd.f32 %v4035, %v4101
        %v4134 = vadd.f32 %v4036, %v4102
        %v4135 = vadd.f32 %v4037, %v4103
        %v4136 = vadd.f32 %v4038, %v4104
        %v4137 = vadd.f32 %v4039, %v4105
        %v4138 = vadd.f32 %v4040, %v4106
        %v4139 = vadd.f32 %v4041, %v4107
        %v4140 = vadd.f32 %v4042, %v4108
        %v4141 = vadd.f32 %v4043, %v4109
        %v4142 = vadd.f32 %v4044, %v4110
        %v4143 = vadd.f32 %v4045, %v4111
        %v4144 = vadd.f32 %v4046, %v4112
        %v4145 = vadd.f32 %v4047, %v4113
        %v4146 = vadd.f32 %v4048, %v4114
        %v4147 = vadd.f32 %v4049, %v4115
        %v4148 = vld [vmem:[%s3853 + $0x3] sm:$0xff]
        %v4149 = vld [vmem:[%s3853 + $0xb] sm:$0xff]
        %v4150 = vld [vmem:[%s3853 + $0x1b] sm:$0xff]
        %v4151 = vld [vmem:[%s3853 + $0x23] sm:$0xff]
        %v4152 = vld [vmem:[%s3853 + $0x33] sm:$0xff]
        %v4153 = vld [vmem:[%s3853 + $0x3b] sm:$0xff]
        %v4154 = vld [vmem:[%s3853 + $0x4b] sm:$0xff]
        %v4155 = vld [vmem:[%s3853 + $0x53] sm:$0xff]
        %v4156 = vld [vmem:[%s3853 + $0x63] sm:$0xff]
        %v4157 = vld [vmem:[%s3853 + $0x6b] sm:$0xff]
        %v4158 = vld [vmem:[%s3853 + $0x7b] sm:$0xff]
        %v4159 = vld [vmem:[%s3853 + $0x83] sm:$0xff]
        %v4160 = vld [vmem:[%s3853 + $0x93] sm:$0xff]
        %v4161 = vld [vmem:[%s3853 + $0x9b] sm:$0xff]
        %v4162 = vld [vmem:[%s3853 + $0xab] sm:$0xff]
        %v4163 = vld [vmem:[%s3853 + $0xb3] sm:$0xff]
        %v4164 = vld [vmem:[%s3853 + $0xc3] sm:$0xff]
        %v4165 = vld [vmem:[%s3853 + $0xcb] sm:$0xff]
        %v4166 = vld [vmem:[%s3853 + $0xdb] sm:$0xff]
        %v4167 = vld [vmem:[%s3853 + $0xe3] sm:$0xff]
        %v4168 = vld [vmem:[%s3853 + $0xf3] sm:$0xff]
        %v4169 = vld [vmem:[%s3853 + $0xfb] sm:$0xff]
        %v4170 = vld [vmem:[%s3853 + $0x10b] sm:$0xff]
        %v4171 = vld [vmem:[%s3853 + $0x113] sm:$0xff]
        %v4172 = vld [vmem:[%s3853 + $0x123] sm:$0xff]
        %v4173 = vld [vmem:[%s3853 + $0x12b] sm:$0xff]
        %v4174 = vld [vmem:[%s3853 + $0x13b] sm:$0xff]
        %v4175 = vld [vmem:[%s3853 + $0x143] sm:$0xff]
        %v4176 = vld [vmem:[%s3853 + $0x153] sm:$0xff]
        %v4177 = vld [vmem:[%s3853 + $0x15b] sm:$0xff]
        %v4178 = vld [vmem:[%s3853 + $0x16b] sm:$0xff]
        %v4179 = vld [vmem:[%s3853 + $0x173] sm:$0xff]
        %v4180 = vld [vmem:[#allocation6 + $0x26] sm:$0x1]
        %v4181 = vperm.slane %v4180, 0
        %v4182 = vmul.f32 %v4148, %v4181
        %v4183 = vmul.f32 %v4149, %v4181
        %v4184 = vmul.f32 %v4150, %v4181
        %v4185 = vmul.f32 %v4151, %v4181
        %v4186 = vmul.f32 %v4152, %v4181
        %v4187 = vmul.f32 %v4153, %v4181
        %v4188 = vmul.f32 %v4154, %v4181
        %v4189 = vmul.f32 %v4155, %v4181
        %v4190 = vmul.f32 %v4156, %v4181
        %v4191 = vmul.f32 %v4157, %v4181
        %v4192 = vmul.f32 %v4158, %v4181
        %v4193 = vmul.f32 %v4159, %v4181
        %v4194 = vmul.f32 %v4160, %v4181
        %v4195 = vmul.f32 %v4161, %v4181
        %v4196 = vmul.f32 %v4162, %v4181
        %v4197 = vmul.f32 %v4163, %v4181
        %v4198 = vmul.f32 %v4164, %v4181
        %v4199 = vmul.f32 %v4165, %v4181
        %v4200 = vmul.f32 %v4166, %v4181
        %v4201 = vmul.f32 %v4167, %v4181
        %v4202 = vmul.f32 %v4168, %v4181
        %v4203 = vmul.f32 %v4169, %v4181
        %v4204 = vmul.f32 %v4170, %v4181
        %v4205 = vmul.f32 %v4171, %v4181
        %v4206 = vmul.f32 %v4172, %v4181
        %v4207 = vmul.f32 %v4173, %v4181
        %v4208 = vmul.f32 %v4174, %v4181
        %v4209 = vmul.f32 %v4175, %v4181
        %v4210 = vmul.f32 %v4176, %v4181
        %v4211 = vmul.f32 %v4177, %v4181
        %v4212 = vmul.f32 %v4178, %v4181
        %v4213 = vmul.f32 %v4179, %v4181
        %v4214 = vadd.f32 %v4116, %v4182
        %v4215 = vadd.f32 %v4117, %v4183
        %v4216 = vadd.f32 %v4118, %v4184
        %v4217 = vadd.f32 %v4119, %v4185
        %v4218 = vadd.f32 %v4120, %v4186
        %v4219 = vadd.f32 %v4121, %v4187
        %v4220 = vadd.f32 %v4122, %v4188
        %v4221 = vadd.f32 %v4123, %v4189
        %v4222 = vadd.f32 %v4124, %v4190
        %v4223 = vadd.f32 %v4125, %v4191
        %v4224 = vadd.f32 %v4126, %v4192
        %v4225 = vadd.f32 %v4127, %v4193
        %v4226 = vadd.f32 %v4128, %v4194
        %v4227 = vadd.f32 %v4129, %v4195
        %v4228 = vadd.f32 %v4130, %v4196
        %v4229 = vadd.f32 %v4131, %v4197
        %v4230 = vadd.f32 %v4132, %v4198
        %v4231 = vadd.f32 %v4133, %v4199
        %v4232 = vadd.f32 %v4134, %v4200
        %v4233 = vadd.f32 %v4135, %v4201
        %v4234 = vadd.f32 %v4136, %v4202
        %v4235 = vadd.f32 %v4137, %v4203
        %v4236 = vadd.f32 %v4138, %v4204
        %v4237 = vadd.f32 %v4139, %v4205
        %v4238 = vadd.f32 %v4140, %v4206
        %v4239 = vadd.f32 %v4141, %v4207
        %v4240 = vadd.f32 %v4142, %v4208
        %v4241 = vadd.f32 %v4143, %v4209
        %v4242 = vadd.f32 %v4144, %v4210
        %v4243 = vadd.f32 %v4145, %v4211
        %v4244 = vadd.f32 %v4146, %v4212
        %v4245 = vadd.f32 %v4147, %v4213
        %v4246 = vld [vmem:[%s3853 + $0x4] sm:$0xff]
        %v4247 = vld [vmem:[%s3853 + $0xc] sm:$0xff]
        %v4248 = vld [vmem:[%s3853 + $0x1c] sm:$0xff]
        %v4249 = vld [vmem:[%s3853 + $0x24] sm:$0xff]
        %v4250 = vld [vmem:[%s3853 + $0x34] sm:$0xff]
        %v4251 = vld [vmem:[%s3853 + $0x3c] sm:$0xff]
        %v4252 = vld [vmem:[%s3853 + $0x4c] sm:$0xff]
        %v4253 = vld [vmem:[%s3853 + $0x54] sm:$0xff]
        %v4254 = vld [vmem:[%s3853 + $0x64] sm:$0xff]
        %v4255 = vld [vmem:[%s3853 + $0x6c] sm:$0xff]
        %v4256 = vld [vmem:[%s3853 + $0x7c] sm:$0xff]
        %v4257 = vld [vmem:[%s3853 + $0x84] sm:$0xff]
        %v4258 = vld [vmem:[%s3853 + $0x94] sm:$0xff]
        %v4259 = vld [vmem:[%s3853 + $0x9c] sm:$0xff]
        %v4260 = vld [vmem:[%s3853 + $0xac] sm:$0xff]
        %v4261 = vld [vmem:[%s3853 + $0xb4] sm:$0xff]
        %v4262 = vld [vmem:[%s3853 + $0xc4] sm:$0xff]
        %v4263 = vld [vmem:[%s3853 + $0xcc] sm:$0xff]
        %v4264 = vld [vmem:[%s3853 + $0xdc] sm:$0xff]
        %v4265 = vld [vmem:[%s3853 + $0xe4] sm:$0xff]
        %v4266 = vld [vmem:[%s3853 + $0xf4] sm:$0xff]
        %v4267 = vld [vmem:[%s3853 + $0xfc] sm:$0xff]
        %v4268 = vld [vmem:[%s3853 + $0x10c] sm:$0xff]
        %v4269 = vld [vmem:[%s3853 + $0x114] sm:$0xff]
        %v4270 = vld [vmem:[%s3853 + $0x124] sm:$0xff]
        %v4271 = vld [vmem:[%s3853 + $0x12c] sm:$0xff]
        %v4272 = vld [vmem:[%s3853 + $0x13c] sm:$0xff]
        %v4273 = vld [vmem:[%s3853 + $0x144] sm:$0xff]
        %v4274 = vld [vmem:[%s3853 + $0x154] sm:$0xff]
        %v4275 = vld [vmem:[%s3853 + $0x15c] sm:$0xff]
        %v4276 = vld [vmem:[%s3853 + $0x16c] sm:$0xff]
        %v4277 = vld [vmem:[%s3853 + $0x174] sm:$0xff]
        %v4278 = vld [vmem:[#allocation6 + $0x27] sm:$0x1]
        %v4279 = vperm.slane %v4278, 0
        %v4280 = vmul.f32 %v4246, %v4279
        %v4281 = vmul.f32 %v4247, %v4279
        %v4282 = vmul.f32 %v4248, %v4279
        %v4283 = vmul.f32 %v4249, %v4279
        %v4284 = vmul.f32 %v4250, %v4279
        %v4285 = vmul.f32 %v4251, %v4279
        %v4286 = vmul.f32 %v4252, %v4279
        %v4287 = vmul.f32 %v4253, %v4279
        %v4288 = vmul.f32 %v4254, %v4279
        %v4289 = vmul.f32 %v4255, %v4279
        %v4290 = vmul.f32 %v4256, %v4279
        %v4291 = vmul.f32 %v4257, %v4279
        %v4292 = vmul.f32 %v4258, %v4279
        %v4293 = vmul.f32 %v4259, %v4279
        %v4294 = vmul.f32 %v4260, %v4279
        %v4295 = vmul.f32 %v4261, %v4279
        %v4296 = vmul.f32 %v4262, %v4279
        %v4297 = vmul.f32 %v4263, %v4279
        %v4298 = vmul.f32 %v4264, %v4279
        %v4299 = vmul.f32 %v4265, %v4279
        %v4300 = vmul.f32 %v4266, %v4279
        %v4301 = vmul.f32 %v4267, %v4279
        %v4302 = vmul.f32 %v4268, %v4279
        %v4303 = vmul.f32 %v4269, %v4279
        %v4304 = vmul.f32 %v4270, %v4279
        %v4305 = vmul.f32 %v4271, %v4279
        %v4306 = vmul.f32 %v4272, %v4279
        %v4307 = vmul.f32 %v4273, %v4279
        %v4308 = vmul.f32 %v4274, %v4279
        %v4309 = vmul.f32 %v4275, %v4279
        %v4310 = vmul.f32 %v4276, %v4279
        %v4311 = vmul.f32 %v4277, %v4279
        %v4312 = vadd.f32 %v4214, %v4280
        %v4313 = vadd.f32 %v4215, %v4281
        %v4314 = vadd.f32 %v4216, %v4282
        %v4315 = vadd.f32 %v4217, %v4283
        %v4316 = vadd.f32 %v4218, %v4284
        %v4317 = vadd.f32 %v4219, %v4285
        %v4318 = vadd.f32 %v4220, %v4286
        %v4319 = vadd.f32 %v4221, %v4287
        %v4320 = vadd.f32 %v4222, %v4288
        %v4321 = vadd.f32 %v4223, %v4289
        %v4322 = vadd.f32 %v4224, %v4290
        %v4323 = vadd.f32 %v4225, %v4291
        %v4324 = vadd.f32 %v4226, %v4292
        %v4325 = vadd.f32 %v4227, %v4293
        %v4326 = vadd.f32 %v4228, %v4294
        %v4327 = vadd.f32 %v4229, %v4295
        %v4328 = vadd.f32 %v4230, %v4296
        %v4329 = vadd.f32 %v4231, %v4297
        %v4330 = vadd.f32 %v4232, %v4298
        %v4331 = vadd.f32 %v4233, %v4299
        %v4332 = vadd.f32 %v4234, %v4300
        %v4333 = vadd.f32 %v4235, %v4301
        %v4334 = vadd.f32 %v4236, %v4302
        %v4335 = vadd.f32 %v4237, %v4303
        %v4336 = vadd.f32 %v4238, %v4304
        %v4337 = vadd.f32 %v4239, %v4305
        %v4338 = vadd.f32 %v4240, %v4306
        %v4339 = vadd.f32 %v4241, %v4307
        %v4340 = vadd.f32 %v4242, %v4308
        %v4341 = vadd.f32 %v4243, %v4309
        %v4342 = vadd.f32 %v4244, %v4310
        %v4343 = vadd.f32 %v4245, %v4311
        %v4344 = vld [vmem:[%s3853 + $0x5] sm:$0xff]
        %v4345 = vld [vmem:[%s3853 + $0xd] sm:$0xff]
        %v4346 = vld [vmem:[%s3853 + $0x1d] sm:$0xff]
        %v4347 = vld [vmem:[%s3853 + $0x25] sm:$0xff]
        %v4348 = vld [vmem:[%s3853 + $0x35] sm:$0xff]
        %v4349 = vld [vmem:[%s3853 + $0x3d] sm:$0xff]
        %v4350 = vld [vmem:[%s3853 + $0x4d] sm:$0xff]
        %v4351 = vld [vmem:[%s3853 + $0x55] sm:$0xff]
        %v4352 = vld [vmem:[%s3853 + $0x65] sm:$0xff]
        %v4353 = vld [vmem:[%s3853 + $0x6d] sm:$0xff]
        %v4354 = vld [vmem:[%s3853 + $0x7d] sm:$0xff]
        %v4355 = vld [vmem:[%s3853 + $0x85] sm:$0xff]
        %v4356 = vld [vmem:[%s3853 + $0x95] sm:$0xff]
        %v4357 = vld [vmem:[%s3853 + $0x9d] sm:$0xff]
        %v4358 = vld [vmem:[%s3853 + $0xad] sm:$0xff]
        %v4359 = vld [vmem:[%s3853 + $0xb5] sm:$0xff]
        %v4360 = vld [vmem:[%s3853 + $0xc5] sm:$0xff]
        %v4361 = vld [vmem:[%s3853 + $0xcd] sm:$0xff]
        %v4362 = vld [vmem:[%s3853 + $0xdd] sm:$0xff]
        %v4363 = vld [vmem:[%s3853 + $0xe5] sm:$0xff]
        %v4364 = vld [vmem:[%s3853 + $0xf5] sm:$0xff]
        %v4365 = vld [vmem:[%s3853 + $0xfd] sm:$0xff]
        %v4366 = vld [vmem:[%s3853 + $0x10d] sm:$0xff]
        %v4367 = vld [vmem:[%s3853 + $0x115] sm:$0xff]
        %v4368 = vld [vmem:[%s3853 + $0x125] sm:$0xff]
        %v4369 = vld [vmem:[%s3853 + $0x12d] sm:$0xff]
        %v4370 = vld [vmem:[%s3853 + $0x13d] sm:$0xff]
        %v4371 = vld [vmem:[%s3853 + $0x145] sm:$0xff]
        %v4372 = vld [vmem:[%s3853 + $0x155] sm:$0xff]
        %v4373 = vld [vmem:[%s3853 + $0x15d] sm:$0xff]
        %v4374 = vld [vmem:[%s3853 + $0x16d] sm:$0xff]
        %v4375 = vld [vmem:[%s3853 + $0x175] sm:$0xff]
        %v4376 = vld [vmem:[#allocation6 + $0x28] sm:$0x1]
        %v4377 = vperm.slane %v4376, 0
        %v4378 = vmul.f32 %v4344, %v4377
        %v4379 = vmul.f32 %v4345, %v4377
        %v4380 = vmul.f32 %v4346, %v4377
        %v4381 = vmul.f32 %v4347, %v4377
        %v4382 = vmul.f32 %v4348, %v4377
        %v4383 = vmul.f32 %v4349, %v4377
        %v4384 = vmul.f32 %v4350, %v4377
        %v4385 = vmul.f32 %v4351, %v4377
        %v4386 = vmul.f32 %v4352, %v4377
        %v4387 = vmul.f32 %v4353, %v4377
        %v4388 = vmul.f32 %v4354, %v4377
        %v4389 = vmul.f32 %v4355, %v4377
        %v4390 = vmul.f32 %v4356, %v4377
        %v4391 = vmul.f32 %v4357, %v4377
        %v4392 = vmul.f32 %v4358, %v4377
        %v4393 = vmul.f32 %v4359, %v4377
        %v4394 = vmul.f32 %v4360, %v4377
        %v4395 = vmul.f32 %v4361, %v4377
        %v4396 = vmul.f32 %v4362, %v4377
        %v4397 = vmul.f32 %v4363, %v4377
        %v4398 = vmul.f32 %v4364, %v4377
        %v4399 = vmul.f32 %v4365, %v4377
        %v4400 = vmul.f32 %v4366, %v4377
        %v4401 = vmul.f32 %v4367, %v4377
        %v4402 = vmul.f32 %v4368, %v4377
        %v4403 = vmul.f32 %v4369, %v4377
        %v4404 = vmul.f32 %v4370, %v4377
        %v4405 = vmul.f32 %v4371, %v4377
        %v4406 = vmul.f32 %v4372, %v4377
        %v4407 = vmul.f32 %v4373, %v4377
        %v4408 = vmul.f32 %v4374, %v4377
        %v4409 = vmul.f32 %v4375, %v4377
        %v4410 = vadd.f32 %v4312, %v4378
        %v4411 = vadd.f32 %v4313, %v4379
        %v4412 = vadd.f32 %v4314, %v4380
        %v4413 = vadd.f32 %v4315, %v4381
        %v4414 = vadd.f32 %v4316, %v4382
        %v4415 = vadd.f32 %v4317, %v4383
        %v4416 = vadd.f32 %v4318, %v4384
        %v4417 = vadd.f32 %v4319, %v4385
        %v4418 = vadd.f32 %v4320, %v4386
        %v4419 = vadd.f32 %v4321, %v4387
        %v4420 = vadd.f32 %v4322, %v4388
        %v4421 = vadd.f32 %v4323, %v4389
        %v4422 = vadd.f32 %v4324, %v4390
        %v4423 = vadd.f32 %v4325, %v4391
        %v4424 = vadd.f32 %v4326, %v4392
        %v4425 = vadd.f32 %v4327, %v4393
        %v4426 = vadd.f32 %v4328, %v4394
        %v4427 = vadd.f32 %v4329, %v4395
        %v4428 = vadd.f32 %v4330, %v4396
        %v4429 = vadd.f32 %v4331, %v4397
        %v4430 = vadd.f32 %v4332, %v4398
        %v4431 = vadd.f32 %v4333, %v4399
        %v4432 = vadd.f32 %v4334, %v4400
        %v4433 = vadd.f32 %v4335, %v4401
        %v4434 = vadd.f32 %v4336, %v4402
        %v4435 = vadd.f32 %v4337, %v4403
        %v4436 = vadd.f32 %v4338, %v4404
        %v4437 = vadd.f32 %v4339, %v4405
        %v4438 = vadd.f32 %v4340, %v4406
        %v4439 = vadd.f32 %v4341, %v4407
        %v4440 = vadd.f32 %v4342, %v4408
        %v4441 = vadd.f32 %v4343, %v4409
        %v4442 = vld [vmem:[%s3853 + $0x6] sm:$0xff]
        %v4443 = vld [vmem:[%s3853 + $0xe] sm:$0xff]
        %v4444 = vld [vmem:[%s3853 + $0x1e] sm:$0xff]
        %v4445 = vld [vmem:[%s3853 + $0x26] sm:$0xff]
        %v4446 = vld [vmem:[%s3853 + $0x36] sm:$0xff]
        %v4447 = vld [vmem:[%s3853 + $0x3e] sm:$0xff]
        %v4448 = vld [vmem:[%s3853 + $0x4e] sm:$0xff]
        %v4449 = vld [vmem:[%s3853 + $0x56] sm:$0xff]
        %v4450 = vld [vmem:[%s3853 + $0x66] sm:$0xff]
        %v4451 = vld [vmem:[%s3853 + $0x6e] sm:$0xff]
        %v4452 = vld [vmem:[%s3853 + $0x7e] sm:$0xff]
        %v4453 = vld [vmem:[%s3853 + $0x86] sm:$0xff]
        %v4454 = vld [vmem:[%s3853 + $0x96] sm:$0xff]
        %v4455 = vld [vmem:[%s3853 + $0x9e] sm:$0xff]
        %v4456 = vld [vmem:[%s3853 + $0xae] sm:$0xff]
        %v4457 = vld [vmem:[%s3853 + $0xb6] sm:$0xff]
        %v4458 = vld [vmem:[%s3853 + $0xc6] sm:$0xff]
        %v4459 = vld [vmem:[%s3853 + $0xce] sm:$0xff]
        %v4460 = vld [vmem:[%s3853 + $0xde] sm:$0xff]
        %v4461 = vld [vmem:[%s3853 + $0xe6] sm:$0xff]
        %v4462 = vld [vmem:[%s3853 + $0xf6] sm:$0xff]
        %v4463 = vld [vmem:[%s3853 + $0xfe] sm:$0xff]
        %v4464 = vld [vmem:[%s3853 + $0x10e] sm:$0xff]
        %v4465 = vld [vmem:[%s3853 + $0x116] sm:$0xff]
        %v4466 = vld [vmem:[%s3853 + $0x126] sm:$0xff]
        %v4467 = vld [vmem:[%s3853 + $0x12e] sm:$0xff]
        %v4468 = vld [vmem:[%s3853 + $0x13e] sm:$0xff]
        %v4469 = vld [vmem:[%s3853 + $0x146] sm:$0xff]
        %v4470 = vld [vmem:[%s3853 + $0x156] sm:$0xff]
        %v4471 = vld [vmem:[%s3853 + $0x15e] sm:$0xff]
        %v4472 = vld [vmem:[%s3853 + $0x16e] sm:$0xff]
        %v4473 = vld [vmem:[%s3853 + $0x176] sm:$0xff]
        %v4474 = vld [vmem:[#allocation6 + $0x29] sm:$0x1]
        %v4475 = vperm.slane %v4474, 0
        %v4476 = vmul.f32 %v4442, %v4475
        %v4477 = vmul.f32 %v4443, %v4475
        %v4478 = vmul.f32 %v4444, %v4475
        %v4479 = vmul.f32 %v4445, %v4475
        %v4480 = vmul.f32 %v4446, %v4475
        %v4481 = vmul.f32 %v4447, %v4475
        %v4482 = vmul.f32 %v4448, %v4475
        %v4483 = vmul.f32 %v4449, %v4475
        %v4484 = vmul.f32 %v4450, %v4475
        %v4485 = vmul.f32 %v4451, %v4475
        %v4486 = vmul.f32 %v4452, %v4475
        %v4487 = vmul.f32 %v4453, %v4475
        %v4488 = vmul.f32 %v4454, %v4475
        %v4489 = vmul.f32 %v4455, %v4475
        %v4490 = vmul.f32 %v4456, %v4475
        %v4491 = vmul.f32 %v4457, %v4475
        %v4492 = vmul.f32 %v4458, %v4475
        %v4493 = vmul.f32 %v4459, %v4475
        %v4494 = vmul.f32 %v4460, %v4475
        %v4495 = vmul.f32 %v4461, %v4475
        %v4496 = vmul.f32 %v4462, %v4475
        %v4497 = vmul.f32 %v4463, %v4475
        %v4498 = vmul.f32 %v4464, %v4475
        %v4499 = vmul.f32 %v4465, %v4475
        %v4500 = vmul.f32 %v4466, %v4475
        %v4501 = vmul.f32 %v4467, %v4475
        %v4502 = vmul.f32 %v4468, %v4475
        %v4503 = vmul.f32 %v4469, %v4475
        %v4504 = vmul.f32 %v4470, %v4475
        %v4505 = vmul.f32 %v4471, %v4475
        %v4506 = vmul.f32 %v4472, %v4475
        %v4507 = vmul.f32 %v4473, %v4475
        %v4508 = vadd.f32 %v4410, %v4476
        %v4509 = vadd.f32 %v4411, %v4477
        %v4510 = vadd.f32 %v4412, %v4478
        %v4511 = vadd.f32 %v4413, %v4479
        %v4512 = vadd.f32 %v4414, %v4480
        %v4513 = vadd.f32 %v4415, %v4481
        %v4514 = vadd.f32 %v4416, %v4482
        %v4515 = vadd.f32 %v4417, %v4483
        %v4516 = vadd.f32 %v4418, %v4484
        %v4517 = vadd.f32 %v4419, %v4485
        %v4518 = vadd.f32 %v4420, %v4486
        %v4519 = vadd.f32 %v4421, %v4487
        %v4520 = vadd.f32 %v4422, %v4488
        %v4521 = vadd.f32 %v4423, %v4489
        %v4522 = vadd.f32 %v4424, %v4490
        %v4523 = vadd.f32 %v4425, %v4491
        %v4524 = vadd.f32 %v4426, %v4492
        %v4525 = vadd.f32 %v4427, %v4493
        %v4526 = vadd.f32 %v4428, %v4494
        %v4527 = vadd.f32 %v4429, %v4495
        %v4528 = vadd.f32 %v4430, %v4496
        %v4529 = vadd.f32 %v4431, %v4497
        %v4530 = vadd.f32 %v4432, %v4498
        %v4531 = vadd.f32 %v4433, %v4499
        %v4532 = vadd.f32 %v4434, %v4500
        %v4533 = vadd.f32 %v4435, %v4501
        %v4534 = vadd.f32 %v4436, %v4502
        %v4535 = vadd.f32 %v4437, %v4503
        %v4536 = vadd.f32 %v4438, %v4504
        %v4537 = vadd.f32 %v4439, %v4505
        %v4538 = vadd.f32 %v4440, %v4506
        %v4539 = vadd.f32 %v4441, %v4507
        %s4540 = scalar_lea.vmem [#allocation2], 144
        %v4541 = vld [vmem:[%s4540] sm:$0xff]
        %v4542 = vld [vmem:[%s4540 + $0x8] sm:$0xff]
        %v4543 = vld [vmem:[%s4540 + $0x18] sm:$0xff]
        %v4544 = vld [vmem:[%s4540 + $0x20] sm:$0xff]
        %v4545 = vld [vmem:[%s4540 + $0x30] sm:$0xff]
        %v4546 = vld [vmem:[%s4540 + $0x38] sm:$0xff]
        %v4547 = vld [vmem:[%s4540 + $0x48] sm:$0xff]
        %v4548 = vld [vmem:[%s4540 + $0x50] sm:$0xff]
        %v4549 = vld [vmem:[%s4540 + $0x60] sm:$0xff]
        %v4550 = vld [vmem:[%s4540 + $0x68] sm:$0xff]
        %v4551 = vld [vmem:[%s4540 + $0x78] sm:$0xff]
        %v4552 = vld [vmem:[%s4540 + $0x80] sm:$0xff]
        %v4553 = vld [vmem:[%s4540 + $0x90] sm:$0xff]
        %v4554 = vld [vmem:[%s4540 + $0x98] sm:$0xff]
        %v4555 = vld [vmem:[%s4540 + $0xa8] sm:$0xff]
        %v4556 = vld [vmem:[%s4540 + $0xb0] sm:$0xff]
        %v4557 = vld [vmem:[%s4540 + $0xc0] sm:$0xff]
        %v4558 = vld [vmem:[%s4540 + $0xc8] sm:$0xff]
        %v4559 = vld [vmem:[%s4540 + $0xd8] sm:$0xff]
        %v4560 = vld [vmem:[%s4540 + $0xe0] sm:$0xff]
        %v4561 = vld [vmem:[%s4540 + $0xf0] sm:$0xff]
        %v4562 = vld [vmem:[%s4540 + $0xf8] sm:$0xff]
        %v4563 = vld [vmem:[%s4540 + $0x108] sm:$0xff]
        %v4564 = vld [vmem:[%s4540 + $0x110] sm:$0xff]
        %v4565 = vld [vmem:[%s4540 + $0x120] sm:$0xff]
        %v4566 = vld [vmem:[%s4540 + $0x128] sm:$0xff]
        %v4567 = vld [vmem:[%s4540 + $0x138] sm:$0xff]
        %v4568 = vld [vmem:[%s4540 + $0x140] sm:$0xff]
        %v4569 = vld [vmem:[%s4540 + $0x150] sm:$0xff]
        %v4570 = vld [vmem:[%s4540 + $0x158] sm:$0xff]
        %v4571 = vld [vmem:[%s4540 + $0x168] sm:$0xff]
        %v4572 = vld [vmem:[%s4540 + $0x170] sm:$0xff]
        %v4573 = vld [vmem:[#allocation6 + $0x2a] sm:$0x1]
        %v4574 = vperm.slane %v4573, 0
        %v4575 = vmul.f32 %v4541, %v4574
        %v4576 = vmul.f32 %v4542, %v4574
        %v4577 = vmul.f32 %v4543, %v4574
        %v4578 = vmul.f32 %v4544, %v4574
        %v4579 = vmul.f32 %v4545, %v4574
        %v4580 = vmul.f32 %v4546, %v4574
        %v4581 = vmul.f32 %v4547, %v4574
        %v4582 = vmul.f32 %v4548, %v4574
        %v4583 = vmul.f32 %v4549, %v4574
        %v4584 = vmul.f32 %v4550, %v4574
        %v4585 = vmul.f32 %v4551, %v4574
        %v4586 = vmul.f32 %v4552, %v4574
        %v4587 = vmul.f32 %v4553, %v4574
        %v4588 = vmul.f32 %v4554, %v4574
        %v4589 = vmul.f32 %v4555, %v4574
        %v4590 = vmul.f32 %v4556, %v4574
        %v4591 = vmul.f32 %v4557, %v4574
        %v4592 = vmul.f32 %v4558, %v4574
        %v4593 = vmul.f32 %v4559, %v4574
        %v4594 = vmul.f32 %v4560, %v4574
        %v4595 = vmul.f32 %v4561, %v4574
        %v4596 = vmul.f32 %v4562, %v4574
        %v4597 = vmul.f32 %v4563, %v4574
        %v4598 = vmul.f32 %v4564, %v4574
        %v4599 = vmul.f32 %v4565, %v4574
        %v4600 = vmul.f32 %v4566, %v4574
        %v4601 = vmul.f32 %v4567, %v4574
        %v4602 = vmul.f32 %v4568, %v4574
        %v4603 = vmul.f32 %v4569, %v4574
        %v4604 = vmul.f32 %v4570, %v4574
        %v4605 = vmul.f32 %v4571, %v4574
        %v4606 = vmul.f32 %v4572, %v4574
        %v4607 = vadd.f32 %v4508, %v4575
        %v4608 = vadd.f32 %v4509, %v4576
        %v4609 = vadd.f32 %v4510, %v4577
        %v4610 = vadd.f32 %v4511, %v4578
        %v4611 = vadd.f32 %v4512, %v4579
        %v4612 = vadd.f32 %v4513, %v4580
        %v4613 = vadd.f32 %v4514, %v4581
        %v4614 = vadd.f32 %v4515, %v4582
        %v4615 = vadd.f32 %v4516, %v4583
        %v4616 = vadd.f32 %v4517, %v4584
        %v4617 = vadd.f32 %v4518, %v4585
        %v4618 = vadd.f32 %v4519, %v4586
        %v4619 = vadd.f32 %v4520, %v4587
        %v4620 = vadd.f32 %v4521, %v4588
        %v4621 = vadd.f32 %v4522, %v4589
        %v4622 = vadd.f32 %v4523, %v4590
        %v4623 = vadd.f32 %v4524, %v4591
        %v4624 = vadd.f32 %v4525, %v4592
        %v4625 = vadd.f32 %v4526, %v4593
        %v4626 = vadd.f32 %v4527, %v4594
        %v4627 = vadd.f32 %v4528, %v4595
        %v4628 = vadd.f32 %v4529, %v4596
        %v4629 = vadd.f32 %v4530, %v4597
        %v4630 = vadd.f32 %v4531, %v4598
        %v4631 = vadd.f32 %v4532, %v4599
        %v4632 = vadd.f32 %v4533, %v4600
        %v4633 = vadd.f32 %v4534, %v4601
        %v4634 = vadd.f32 %v4535, %v4602
        %v4635 = vadd.f32 %v4536, %v4603
        %v4636 = vadd.f32 %v4537, %v4604
        %v4637 = vadd.f32 %v4538, %v4605
        %v4638 = vadd.f32 %v4539, %v4606
        %v4639 = vld [vmem:[%s4540 + $0x1] sm:$0xff]
        %v4640 = vld [vmem:[%s4540 + $0x9] sm:$0xff]
        %v4641 = vld [vmem:[%s4540 + $0x19] sm:$0xff]
        %v4642 = vld [vmem:[%s4540 + $0x21] sm:$0xff]
        %v4643 = vld [vmem:[%s4540 + $0x31] sm:$0xff]
        %v4644 = vld [vmem:[%s4540 + $0x39] sm:$0xff]
        %v4645 = vld [vmem:[%s4540 + $0x49] sm:$0xff]
        %v4646 = vld [vmem:[%s4540 + $0x51] sm:$0xff]
        %v4647 = vld [vmem:[%s4540 + $0x61] sm:$0xff]
        %v4648 = vld [vmem:[%s4540 + $0x69] sm:$0xff]
        %v4649 = vld [vmem:[%s4540 + $0x79] sm:$0xff]
        %v4650 = vld [vmem:[%s4540 + $0x81] sm:$0xff]
        %v4651 = vld [vmem:[%s4540 + $0x91] sm:$0xff]
        %v4652 = vld [vmem:[%s4540 + $0x99] sm:$0xff]
        %v4653 = vld [vmem:[%s4540 + $0xa9] sm:$0xff]
        %v4654 = vld [vmem:[%s4540 + $0xb1] sm:$0xff]
        %v4655 = vld [vmem:[%s4540 + $0xc1] sm:$0xff]
        %v4656 = vld [vmem:[%s4540 + $0xc9] sm:$0xff]
        %v4657 = vld [vmem:[%s4540 + $0xd9] sm:$0xff]
        %v4658 = vld [vmem:[%s4540 + $0xe1] sm:$0xff]
        %v4659 = vld [vmem:[%s4540 + $0xf1] sm:$0xff]
        %v4660 = vld [vmem:[%s4540 + $0xf9] sm:$0xff]
        %v4661 = vld [vmem:[%s4540 + $0x109] sm:$0xff]
        %v4662 = vld [vmem:[%s4540 + $0x111] sm:$0xff]
        %v4663 = vld [vmem:[%s4540 + $0x121] sm:$0xff]
        %v4664 = vld [vmem:[%s4540 + $0x129] sm:$0xff]
        %v4665 = vld [vmem:[%s4540 + $0x139] sm:$0xff]
        %v4666 = vld [vmem:[%s4540 + $0x141] sm:$0xff]
        %v4667 = vld [vmem:[%s4540 + $0x151] sm:$0xff]
        %v4668 = vld [vmem:[%s4540 + $0x159] sm:$0xff]
        %v4669 = vld [vmem:[%s4540 + $0x169] sm:$0xff]
        %v4670 = vld [vmem:[%s4540 + $0x171] sm:$0xff]
        %v4671 = vld [vmem:[#allocation6 + $0x2b] sm:$0x1]
        %v4672 = vperm.slane %v4671, 0
        %v4673 = vmul.f32 %v4639, %v4672
        %v4674 = vmul.f32 %v4640, %v4672
        %v4675 = vmul.f32 %v4641, %v4672
        %v4676 = vmul.f32 %v4642, %v4672
        %v4677 = vmul.f32 %v4643, %v4672
        %v4678 = vmul.f32 %v4644, %v4672
        %v4679 = vmul.f32 %v4645, %v4672
        %v4680 = vmul.f32 %v4646, %v4672
        %v4681 = vmul.f32 %v4647, %v4672
        %v4682 = vmul.f32 %v4648, %v4672
        %v4683 = vmul.f32 %v4649, %v4672
        %v4684 = vmul.f32 %v4650, %v4672
        %v4685 = vmul.f32 %v4651, %v4672
        %v4686 = vmul.f32 %v4652, %v4672
        %v4687 = vmul.f32 %v4653, %v4672
        %v4688 = vmul.f32 %v4654, %v4672
        %v4689 = vmul.f32 %v4655, %v4672
        %v4690 = vmul.f32 %v4656, %v4672
        %v4691 = vmul.f32 %v4657, %v4672
        %v4692 = vmul.f32 %v4658, %v4672
        %v4693 = vmul.f32 %v4659, %v4672
        %v4694 = vmul.f32 %v4660, %v4672
        %v4695 = vmul.f32 %v4661, %v4672
        %v4696 = vmul.f32 %v4662, %v4672
        %v4697 = vmul.f32 %v4663, %v4672
        %v4698 = vmul.f32 %v4664, %v4672
        %v4699 = vmul.f32 %v4665, %v4672
        %v4700 = vmul.f32 %v4666, %v4672
        %v4701 = vmul.f32 %v4667, %v4672
        %v4702 = vmul.f32 %v4668, %v4672
        %v4703 = vmul.f32 %v4669, %v4672
        %v4704 = vmul.f32 %v4670, %v4672
        %v4705 = vadd.f32 %v4607, %v4673
        %v4706 = vadd.f32 %v4608, %v4674
        %v4707 = vadd.f32 %v4609, %v4675
        %v4708 = vadd.f32 %v4610, %v4676
        %v4709 = vadd.f32 %v4611, %v4677
        %v4710 = vadd.f32 %v4612, %v4678
        %v4711 = vadd.f32 %v4613, %v4679
        %v4712 = vadd.f32 %v4614, %v4680
        %v4713 = vadd.f32 %v4615, %v4681
        %v4714 = vadd.f32 %v4616, %v4682
        %v4715 = vadd.f32 %v4617, %v4683
        %v4716 = vadd.f32 %v4618, %v4684
        %v4717 = vadd.f32 %v4619, %v4685
        %v4718 = vadd.f32 %v4620, %v4686
        %v4719 = vadd.f32 %v4621, %v4687
        %v4720 = vadd.f32 %v4622, %v4688
        %v4721 = vadd.f32 %v4623, %v4689
        %v4722 = vadd.f32 %v4624, %v4690
        %v4723 = vadd.f32 %v4625, %v4691
        %v4724 = vadd.f32 %v4626, %v4692
        %v4725 = vadd.f32 %v4627, %v4693
        %v4726 = vadd.f32 %v4628, %v4694
        %v4727 = vadd.f32 %v4629, %v4695
        %v4728 = vadd.f32 %v4630, %v4696
        %v4729 = vadd.f32 %v4631, %v4697
        %v4730 = vadd.f32 %v4632, %v4698
        %v4731 = vadd.f32 %v4633, %v4699
        %v4732 = vadd.f32 %v4634, %v4700
        %v4733 = vadd.f32 %v4635, %v4701
        %v4734 = vadd.f32 %v4636, %v4702
        %v4735 = vadd.f32 %v4637, %v4703
        %v4736 = vadd.f32 %v4638, %v4704
        %v4737 = vld [vmem:[%s4540 + $0x2] sm:$0xff]
        %v4738 = vld [vmem:[%s4540 + $0xa] sm:$0xff]
        %v4739 = vld [vmem:[%s4540 + $0x1a] sm:$0xff]
        %v4740 = vld [vmem:[%s4540 + $0x22] sm:$0xff]
        %v4741 = vld [vmem:[%s4540 + $0x32] sm:$0xff]
        %v4742 = vld [vmem:[%s4540 + $0x3a] sm:$0xff]
        %v4743 = vld [vmem:[%s4540 + $0x4a] sm:$0xff]
        %v4744 = vld [vmem:[%s4540 + $0x52] sm:$0xff]
        %v4745 = vld [vmem:[%s4540 + $0x62] sm:$0xff]
        %v4746 = vld [vmem:[%s4540 + $0x6a] sm:$0xff]
        %v4747 = vld [vmem:[%s4540 + $0x7a] sm:$0xff]
        %v4748 = vld [vmem:[%s4540 + $0x82] sm:$0xff]
        %v4749 = vld [vmem:[%s4540 + $0x92] sm:$0xff]
        %v4750 = vld [vmem:[%s4540 + $0x9a] sm:$0xff]
        %v4751 = vld [vmem:[%s4540 + $0xaa] sm:$0xff]
        %v4752 = vld [vmem:[%s4540 + $0xb2] sm:$0xff]
        %v4753 = vld [vmem:[%s4540 + $0xc2] sm:$0xff]
        %v4754 = vld [vmem:[%s4540 + $0xca] sm:$0xff]
        %v4755 = vld [vmem:[%s4540 + $0xda] sm:$0xff]
        %v4756 = vld [vmem:[%s4540 + $0xe2] sm:$0xff]
        %v4757 = vld [vmem:[%s4540 + $0xf2] sm:$0xff]
        %v4758 = vld [vmem:[%s4540 + $0xfa] sm:$0xff]
        %v4759 = vld [vmem:[%s4540 + $0x10a] sm:$0xff]
        %v4760 = vld [vmem:[%s4540 + $0x112] sm:$0xff]
        %v4761 = vld [vmem:[%s4540 + $0x122] sm:$0xff]
        %v4762 = vld [vmem:[%s4540 + $0x12a] sm:$0xff]
        %v4763 = vld [vmem:[%s4540 + $0x13a] sm:$0xff]
        %v4764 = vld [vmem:[%s4540 + $0x142] sm:$0xff]
        %v4765 = vld [vmem:[%s4540 + $0x152] sm:$0xff]
        %v4766 = vld [vmem:[%s4540 + $0x15a] sm:$0xff]
        %v4767 = vld [vmem:[%s4540 + $0x16a] sm:$0xff]
        %v4768 = vld [vmem:[%s4540 + $0x172] sm:$0xff]
        %v4769 = vld [vmem:[#allocation6 + $0x2c] sm:$0x1]
        %v4770 = vperm.slane %v4769, 0
        %v4771 = vmul.f32 %v4737, %v4770
        %v4772 = vmul.f32 %v4738, %v4770
        %v4773 = vmul.f32 %v4739, %v4770
        %v4774 = vmul.f32 %v4740, %v4770
        %v4775 = vmul.f32 %v4741, %v4770
        %v4776 = vmul.f32 %v4742, %v4770
        %v4777 = vmul.f32 %v4743, %v4770
        %v4778 = vmul.f32 %v4744, %v4770
        %v4779 = vmul.f32 %v4745, %v4770
        %v4780 = vmul.f32 %v4746, %v4770
        %v4781 = vmul.f32 %v4747, %v4770
        %v4782 = vmul.f32 %v4748, %v4770
        %v4783 = vmul.f32 %v4749, %v4770
        %v4784 = vmul.f32 %v4750, %v4770
        %v4785 = vmul.f32 %v4751, %v4770
        %v4786 = vmul.f32 %v4752, %v4770
        %v4787 = vmul.f32 %v4753, %v4770
        %v4788 = vmul.f32 %v4754, %v4770
        %v4789 = vmul.f32 %v4755, %v4770
        %v4790 = vmul.f32 %v4756, %v4770
        %v4791 = vmul.f32 %v4757, %v4770
        %v4792 = vmul.f32 %v4758, %v4770
        %v4793 = vmul.f32 %v4759, %v4770
        %v4794 = vmul.f32 %v4760, %v4770
        %v4795 = vmul.f32 %v4761, %v4770
        %v4796 = vmul.f32 %v4762, %v4770
        %v4797 = vmul.f32 %v4763, %v4770
        %v4798 = vmul.f32 %v4764, %v4770
        %v4799 = vmul.f32 %v4765, %v4770
        %v4800 = vmul.f32 %v4766, %v4770
        %v4801 = vmul.f32 %v4767, %v4770
        %v4802 = vmul.f32 %v4768, %v4770
        %v4803 = vadd.f32 %v4705, %v4771
        %v4804 = vadd.f32 %v4706, %v4772
        %v4805 = vadd.f32 %v4707, %v4773
        %v4806 = vadd.f32 %v4708, %v4774
        %v4807 = vadd.f32 %v4709, %v4775
        %v4808 = vadd.f32 %v4710, %v4776
        %v4809 = vadd.f32 %v4711, %v4777
        %v4810 = vadd.f32 %v4712, %v4778
        %v4811 = vadd.f32 %v4713, %v4779
        %v4812 = vadd.f32 %v4714, %v4780
        %v4813 = vadd.f32 %v4715, %v4781
        %v4814 = vadd.f32 %v4716, %v4782
        %v4815 = vadd.f32 %v4717, %v4783
        %v4816 = vadd.f32 %v4718, %v4784
        %v4817 = vadd.f32 %v4719, %v4785
        %v4818 = vadd.f32 %v4720, %v4786
        %v4819 = vadd.f32 %v4721, %v4787
        %v4820 = vadd.f32 %v4722, %v4788
        %v4821 = vadd.f32 %v4723, %v4789
        %v4822 = vadd.f32 %v4724, %v4790
        %v4823 = vadd.f32 %v4725, %v4791
        %v4824 = vadd.f32 %v4726, %v4792
        %v4825 = vadd.f32 %v4727, %v4793
        %v4826 = vadd.f32 %v4728, %v4794
        %v4827 = vadd.f32 %v4729, %v4795
        %v4828 = vadd.f32 %v4730, %v4796
        %v4829 = vadd.f32 %v4731, %v4797
        %v4830 = vadd.f32 %v4732, %v4798
        %v4831 = vadd.f32 %v4733, %v4799
        %v4832 = vadd.f32 %v4734, %v4800
        %v4833 = vadd.f32 %v4735, %v4801
        %v4834 = vadd.f32 %v4736, %v4802
        %v4835 = vld [vmem:[%s4540 + $0x3] sm:$0xff]
        %v4836 = vld [vmem:[%s4540 + $0xb] sm:$0xff]
        %v4837 = vld [vmem:[%s4540 + $0x1b] sm:$0xff]
        %v4838 = vld [vmem:[%s4540 + $0x23] sm:$0xff]
        %v4839 = vld [vmem:[%s4540 + $0x33] sm:$0xff]
        %v4840 = vld [vmem:[%s4540 + $0x3b] sm:$0xff]
        %v4841 = vld [vmem:[%s4540 + $0x4b] sm:$0xff]
        %v4842 = vld [vmem:[%s4540 + $0x53] sm:$0xff]
        %v4843 = vld [vmem:[%s4540 + $0x63] sm:$0xff]
        %v4844 = vld [vmem:[%s4540 + $0x6b] sm:$0xff]
        %v4845 = vld [vmem:[%s4540 + $0x7b] sm:$0xff]
        %v4846 = vld [vmem:[%s4540 + $0x83] sm:$0xff]
        %v4847 = vld [vmem:[%s4540 + $0x93] sm:$0xff]
        %v4848 = vld [vmem:[%s4540 + $0x9b] sm:$0xff]
        %v4849 = vld [vmem:[%s4540 + $0xab] sm:$0xff]
        %v4850 = vld [vmem:[%s4540 + $0xb3] sm:$0xff]
        %v4851 = vld [vmem:[%s4540 + $0xc3] sm:$0xff]
        %v4852 = vld [vmem:[%s4540 + $0xcb] sm:$0xff]
        %v4853 = vld [vmem:[%s4540 + $0xdb] sm:$0xff]
        %v4854 = vld [vmem:[%s4540 + $0xe3] sm:$0xff]
        %v4855 = vld [vmem:[%s4540 + $0xf3] sm:$0xff]
        %v4856 = vld [vmem:[%s4540 + $0xfb] sm:$0xff]
        %v4857 = vld [vmem:[%s4540 + $0x10b] sm:$0xff]
        %v4858 = vld [vmem:[%s4540 + $0x113] sm:$0xff]
        %v4859 = vld [vmem:[%s4540 + $0x123] sm:$0xff]
        %v4860 = vld [vmem:[%s4540 + $0x12b] sm:$0xff]
        %v4861 = vld [vmem:[%s4540 + $0x13b] sm:$0xff]
        %v4862 = vld [vmem:[%s4540 + $0x143] sm:$0xff]
        %v4863 = vld [vmem:[%s4540 + $0x153] sm:$0xff]
        %v4864 = vld [vmem:[%s4540 + $0x15b] sm:$0xff]
        %v4865 = vld [vmem:[%s4540 + $0x16b] sm:$0xff]
        %v4866 = vld [vmem:[%s4540 + $0x173] sm:$0xff]
        %v4867 = vld [vmem:[#allocation6 + $0x2d] sm:$0x1]
        %v4868 = vperm.slane %v4867, 0
        %v4869 = vmul.f32 %v4835, %v4868
        %v4870 = vmul.f32 %v4836, %v4868
        %v4871 = vmul.f32 %v4837, %v4868
        %v4872 = vmul.f32 %v4838, %v4868
        %v4873 = vmul.f32 %v4839, %v4868
        %v4874 = vmul.f32 %v4840, %v4868
        %v4875 = vmul.f32 %v4841, %v4868
        %v4876 = vmul.f32 %v4842, %v4868
        %v4877 = vmul.f32 %v4843, %v4868
        %v4878 = vmul.f32 %v4844, %v4868
        %v4879 = vmul.f32 %v4845, %v4868
        %v4880 = vmul.f32 %v4846, %v4868
        %v4881 = vmul.f32 %v4847, %v4868
        %v4882 = vmul.f32 %v4848, %v4868
        %v4883 = vmul.f32 %v4849, %v4868
        %v4884 = vmul.f32 %v4850, %v4868
        %v4885 = vmul.f32 %v4851, %v4868
        %v4886 = vmul.f32 %v4852, %v4868
        %v4887 = vmul.f32 %v4853, %v4868
        %v4888 = vmul.f32 %v4854, %v4868
        %v4889 = vmul.f32 %v4855, %v4868
        %v4890 = vmul.f32 %v4856, %v4868
        %v4891 = vmul.f32 %v4857, %v4868
        %v4892 = vmul.f32 %v4858, %v4868
        %v4893 = vmul.f32 %v4859, %v4868
        %v4894 = vmul.f32 %v4860, %v4868
        %v4895 = vmul.f32 %v4861, %v4868
        %v4896 = vmul.f32 %v4862, %v4868
        %v4897 = vmul.f32 %v4863, %v4868
        %v4898 = vmul.f32 %v4864, %v4868
        %v4899 = vmul.f32 %v4865, %v4868
        %v4900 = vmul.f32 %v4866, %v4868
        %v4901 = vadd.f32 %v4803, %v4869
        %v4902 = vadd.f32 %v4804, %v4870
        %v4903 = vadd.f32 %v4805, %v4871
        %v4904 = vadd.f32 %v4806, %v4872
        %v4905 = vadd.f32 %v4807, %v4873
        %v4906 = vadd.f32 %v4808, %v4874
        %v4907 = vadd.f32 %v4809, %v4875
        %v4908 = vadd.f32 %v4810, %v4876
        %v4909 = vadd.f32 %v4811, %v4877
        %v4910 = vadd.f32 %v4812, %v4878
        %v4911 = vadd.f32 %v4813, %v4879
        %v4912 = vadd.f32 %v4814, %v4880
        %v4913 = vadd.f32 %v4815, %v4881
        %v4914 = vadd.f32 %v4816, %v4882
        %v4915 = vadd.f32 %v4817, %v4883
        %v4916 = vadd.f32 %v4818, %v4884
        %v4917 = vadd.f32 %v4819, %v4885
        %v4918 = vadd.f32 %v4820, %v4886
        %v4919 = vadd.f32 %v4821, %v4887
        %v4920 = vadd.f32 %v4822, %v4888
        %v4921 = vadd.f32 %v4823, %v4889
        %v4922 = vadd.f32 %v4824, %v4890
        %v4923 = vadd.f32 %v4825, %v4891
        %v4924 = vadd.f32 %v4826, %v4892
        %v4925 = vadd.f32 %v4827, %v4893
        %v4926 = vadd.f32 %v4828, %v4894
        %v4927 = vadd.f32 %v4829, %v4895
        %v4928 = vadd.f32 %v4830, %v4896
        %v4929 = vadd.f32 %v4831, %v4897
        %v4930 = vadd.f32 %v4832, %v4898
        %v4931 = vadd.f32 %v4833, %v4899
        %v4932 = vadd.f32 %v4834, %v4900
        %v4933 = vld [vmem:[%s4540 + $0x4] sm:$0xff]
        %v4934 = vld [vmem:[%s4540 + $0xc] sm:$0xff]
        %v4935 = vld [vmem:[%s4540 + $0x1c] sm:$0xff]
        %v4936 = vld [vmem:[%s4540 + $0x24] sm:$0xff]
        %v4937 = vld [vmem:[%s4540 + $0x34] sm:$0xff]
        %v4938 = vld [vmem:[%s4540 + $0x3c] sm:$0xff]
        %v4939 = vld [vmem:[%s4540 + $0x4c] sm:$0xff]
        %v4940 = vld [vmem:[%s4540 + $0x54] sm:$0xff]
        %v4941 = vld [vmem:[%s4540 + $0x64] sm:$0xff]
        %v4942 = vld [vmem:[%s4540 + $0x6c] sm:$0xff]
        %v4943 = vld [vmem:[%s4540 + $0x7c] sm:$0xff]
        %v4944 = vld [vmem:[%s4540 + $0x84] sm:$0xff]
        %v4945 = vld [vmem:[%s4540 + $0x94] sm:$0xff]
        %v4946 = vld [vmem:[%s4540 + $0x9c] sm:$0xff]
        %v4947 = vld [vmem:[%s4540 + $0xac] sm:$0xff]
        %v4948 = vld [vmem:[%s4540 + $0xb4] sm:$0xff]
        %v4949 = vld [vmem:[%s4540 + $0xc4] sm:$0xff]
        %v4950 = vld [vmem:[%s4540 + $0xcc] sm:$0xff]
        %v4951 = vld [vmem:[%s4540 + $0xdc] sm:$0xff]
        %v4952 = vld [vmem:[%s4540 + $0xe4] sm:$0xff]
        %v4953 = vld [vmem:[%s4540 + $0xf4] sm:$0xff]
        %v4954 = vld [vmem:[%s4540 + $0xfc] sm:$0xff]
        %v4955 = vld [vmem:[%s4540 + $0x10c] sm:$0xff]
        %v4956 = vld [vmem:[%s4540 + $0x114] sm:$0xff]
        %v4957 = vld [vmem:[%s4540 + $0x124] sm:$0xff]
        %v4958 = vld [vmem:[%s4540 + $0x12c] sm:$0xff]
        %v4959 = vld [vmem:[%s4540 + $0x13c] sm:$0xff]
        %v4960 = vld [vmem:[%s4540 + $0x144] sm:$0xff]
        %v4961 = vld [vmem:[%s4540 + $0x154] sm:$0xff]
        %v4962 = vld [vmem:[%s4540 + $0x15c] sm:$0xff]
        %v4963 = vld [vmem:[%s4540 + $0x16c] sm:$0xff]
        %v4964 = vld [vmem:[%s4540 + $0x174] sm:$0xff]
        %v4965 = vld [vmem:[#allocation6 + $0x2e] sm:$0x1]
        %v4966 = vperm.slane %v4965, 0
        %v4967 = vmul.f32 %v4933, %v4966
        %v4968 = vmul.f32 %v4934, %v4966
        %v4969 = vmul.f32 %v4935, %v4966
        %v4970 = vmul.f32 %v4936, %v4966
        %v4971 = vmul.f32 %v4937, %v4966
        %v4972 = vmul.f32 %v4938, %v4966
        %v4973 = vmul.f32 %v4939, %v4966
        %v4974 = vmul.f32 %v4940, %v4966
        %v4975 = vmul.f32 %v4941, %v4966
        %v4976 = vmul.f32 %v4942, %v4966
        %v4977 = vmul.f32 %v4943, %v4966
        %v4978 = vmul.f32 %v4944, %v4966
        %v4979 = vmul.f32 %v4945, %v4966
        %v4980 = vmul.f32 %v4946, %v4966
        %v4981 = vmul.f32 %v4947, %v4966
        %v4982 = vmul.f32 %v4948, %v4966
        %v4983 = vmul.f32 %v4949, %v4966
        %v4984 = vmul.f32 %v4950, %v4966
        %v4985 = vmul.f32 %v4951, %v4966
        %v4986 = vmul.f32 %v4952, %v4966
        %v4987 = vmul.f32 %v4953, %v4966
        %v4988 = vmul.f32 %v4954, %v4966
        %v4989 = vmul.f32 %v4955, %v4966
        %v4990 = vmul.f32 %v4956, %v4966
        %v4991 = vmul.f32 %v4957, %v4966
        %v4992 = vmul.f32 %v4958, %v4966
        %v4993 = vmul.f32 %v4959, %v4966
        %v4994 = vmul.f32 %v4960, %v4966
        %v4995 = vmul.f32 %v4961, %v4966
        %v4996 = vmul.f32 %v4962, %v4966
        %v4997 = vmul.f32 %v4963, %v4966
        %v4998 = vmul.f32 %v4964, %v4966
        %v4999 = vadd.f32 %v4901, %v4967
        %v5000 = vadd.f32 %v4902, %v4968
        %v5001 = vadd.f32 %v4903, %v4969
        %v5002 = vadd.f32 %v4904, %v4970
        %v5003 = vadd.f32 %v4905, %v4971
        %v5004 = vadd.f32 %v4906, %v4972
        %v5005 = vadd.f32 %v4907, %v4973
        %v5006 = vadd.f32 %v4908, %v4974
        %v5007 = vadd.f32 %v4909, %v4975
        %v5008 = vadd.f32 %v4910, %v4976
        %v5009 = vadd.f32 %v4911, %v4977
        %v5010 = vadd.f32 %v4912, %v4978
        %v5011 = vadd.f32 %v4913, %v4979
        %v5012 = vadd.f32 %v4914, %v4980
        %v5013 = vadd.f32 %v4915, %v4981
        %v5014 = vadd.f32 %v4916, %v4982
        %v5015 = vadd.f32 %v4917, %v4983
        %v5016 = vadd.f32 %v4918, %v4984
        %v5017 = vadd.f32 %v4919, %v4985
        %v5018 = vadd.f32 %v4920, %v4986
        %v5019 = vadd.f32 %v4921, %v4987
        %v5020 = vadd.f32 %v4922, %v4988
        %v5021 = vadd.f32 %v4923, %v4989
        %v5022 = vadd.f32 %v4924, %v4990
        %v5023 = vadd.f32 %v4925, %v4991
        %v5024 = vadd.f32 %v4926, %v4992
        %v5025 = vadd.f32 %v4927, %v4993
        %v5026 = vadd.f32 %v4928, %v4994
        %v5027 = vadd.f32 %v4929, %v4995
        %v5028 = vadd.f32 %v4930, %v4996
        %v5029 = vadd.f32 %v4931, %v4997
        %v5030 = vadd.f32 %v4932, %v4998
        %v5031 = vld [vmem:[%s4540 + $0x5] sm:$0xff]
        %v5032 = vld [vmem:[%s4540 + $0xd] sm:$0xff]
        %v5033 = vld [vmem:[%s4540 + $0x1d] sm:$0xff]
        %v5034 = vld [vmem:[%s4540 + $0x25] sm:$0xff]
        %v5035 = vld [vmem:[%s4540 + $0x35] sm:$0xff]
        %v5036 = vld [vmem:[%s4540 + $0x3d] sm:$0xff]
        %v5037 = vld [vmem:[%s4540 + $0x4d] sm:$0xff]
        %v5038 = vld [vmem:[%s4540 + $0x55] sm:$0xff]
        %v5039 = vld [vmem:[%s4540 + $0x65] sm:$0xff]
        %v5040 = vld [vmem:[%s4540 + $0x6d] sm:$0xff]
        %v5041 = vld [vmem:[%s4540 + $0x7d] sm:$0xff]
        %v5042 = vld [vmem:[%s4540 + $0x85] sm:$0xff]
        %v5043 = vld [vmem:[%s4540 + $0x95] sm:$0xff]
        %v5044 = vld [vmem:[%s4540 + $0x9d] sm:$0xff]
        %v5045 = vld [vmem:[%s4540 + $0xad] sm:$0xff]
        %v5046 = vld [vmem:[%s4540 + $0xb5] sm:$0xff]
        %v5047 = vld [vmem:[%s4540 + $0xc5] sm:$0xff]
        %v5048 = vld [vmem:[%s4540 + $0xcd] sm:$0xff]
        %v5049 = vld [vmem:[%s4540 + $0xdd] sm:$0xff]
        %v5050 = vld [vmem:[%s4540 + $0xe5] sm:$0xff]
        %v5051 = vld [vmem:[%s4540 + $0xf5] sm:$0xff]
        %v5052 = vld [vmem:[%s4540 + $0xfd] sm:$0xff]
        %v5053 = vld [vmem:[%s4540 + $0x10d] sm:$0xff]
        %v5054 = vld [vmem:[%s4540 + $0x115] sm:$0xff]
        %v5055 = vld [vmem:[%s4540 + $0x125] sm:$0xff]
        %v5056 = vld [vmem:[%s4540 + $0x12d] sm:$0xff]
        %v5057 = vld [vmem:[%s4540 + $0x13d] sm:$0xff]
        %v5058 = vld [vmem:[%s4540 + $0x145] sm:$0xff]
        %v5059 = vld [vmem:[%s4540 + $0x155] sm:$0xff]
        %v5060 = vld [vmem:[%s4540 + $0x15d] sm:$0xff]
        %v5061 = vld [vmem:[%s4540 + $0x16d] sm:$0xff]
        %v5062 = vld [vmem:[%s4540 + $0x175] sm:$0xff]
        %v5063 = vld [vmem:[#allocation6 + $0x2f] sm:$0x1]
        %v5064 = vperm.slane %v5063, 0
        %v5065 = vmul.f32 %v5031, %v5064
        %v5066 = vmul.f32 %v5032, %v5064
        %v5067 = vmul.f32 %v5033, %v5064
        %v5068 = vmul.f32 %v5034, %v5064
        %v5069 = vmul.f32 %v5035, %v5064
        %v5070 = vmul.f32 %v5036, %v5064
        %v5071 = vmul.f32 %v5037, %v5064
        %v5072 = vmul.f32 %v5038, %v5064
        %v5073 = vmul.f32 %v5039, %v5064
        %v5074 = vmul.f32 %v5040, %v5064
        %v5075 = vmul.f32 %v5041, %v5064
        %v5076 = vmul.f32 %v5042, %v5064
        %v5077 = vmul.f32 %v5043, %v5064
        %v5078 = vmul.f32 %v5044, %v5064
        %v5079 = vmul.f32 %v5045, %v5064
        %v5080 = vmul.f32 %v5046, %v5064
        %v5081 = vmul.f32 %v5047, %v5064
        %v5082 = vmul.f32 %v5048, %v5064
        %v5083 = vmul.f32 %v5049, %v5064
        %v5084 = vmul.f32 %v5050, %v5064
        %v5085 = vmul.f32 %v5051, %v5064
        %v5086 = vmul.f32 %v5052, %v5064
        %v5087 = vmul.f32 %v5053, %v5064
        %v5088 = vmul.f32 %v5054, %v5064
        %v5089 = vmul.f32 %v5055, %v5064
        %v5090 = vmul.f32 %v5056, %v5064
        %v5091 = vmul.f32 %v5057, %v5064
        %v5092 = vmul.f32 %v5058, %v5064
        %v5093 = vmul.f32 %v5059, %v5064
        %v5094 = vmul.f32 %v5060, %v5064
        %v5095 = vmul.f32 %v5061, %v5064
        %v5096 = vmul.f32 %v5062, %v5064
        %v5097 = vadd.f32 %v4999, %v5065
        %v5098 = vadd.f32 %v5000, %v5066
        %v5099 = vadd.f32 %v5001, %v5067
        %v5100 = vadd.f32 %v5002, %v5068
        %v5101 = vadd.f32 %v5003, %v5069
        %v5102 = vadd.f32 %v5004, %v5070
        %v5103 = vadd.f32 %v5005, %v5071
        %v5104 = vadd.f32 %v5006, %v5072
        %v5105 = vadd.f32 %v5007, %v5073
        %v5106 = vadd.f32 %v5008, %v5074
        %v5107 = vadd.f32 %v5009, %v5075
        %v5108 = vadd.f32 %v5010, %v5076
        %v5109 = vadd.f32 %v5011, %v5077
        %v5110 = vadd.f32 %v5012, %v5078
        %v5111 = vadd.f32 %v5013, %v5079
        %v5112 = vadd.f32 %v5014, %v5080
        %v5113 = vadd.f32 %v5015, %v5081
        %v5114 = vadd.f32 %v5016, %v5082
        %v5115 = vadd.f32 %v5017, %v5083
        %v5116 = vadd.f32 %v5018, %v5084
        %v5117 = vadd.f32 %v5019, %v5085
        %v5118 = vadd.f32 %v5020, %v5086
        %v5119 = vadd.f32 %v5021, %v5087
        %v5120 = vadd.f32 %v5022, %v5088
        %v5121 = vadd.f32 %v5023, %v5089
        %v5122 = vadd.f32 %v5024, %v5090
        %v5123 = vadd.f32 %v5025, %v5091
        %v5124 = vadd.f32 %v5026, %v5092
        %v5125 = vadd.f32 %v5027, %v5093
        %v5126 = vadd.f32 %v5028, %v5094
        %v5127 = vadd.f32 %v5029, %v5095
        %v5128 = vadd.f32 %v5030, %v5096
        %v5129 = vld [vmem:[%s4540 + $0x6] sm:$0xff]
        %v5130 = vld [vmem:[%s4540 + $0xe] sm:$0xff]
        %v5131 = vld [vmem:[%s4540 + $0x1e] sm:$0xff]
        %v5132 = vld [vmem:[%s4540 + $0x26] sm:$0xff]
        %v5133 = vld [vmem:[%s4540 + $0x36] sm:$0xff]
        %v5134 = vld [vmem:[%s4540 + $0x3e] sm:$0xff]
        %v5135 = vld [vmem:[%s4540 + $0x4e] sm:$0xff]
        %v5136 = vld [vmem:[%s4540 + $0x56] sm:$0xff]
        %v5137 = vld [vmem:[%s4540 + $0x66] sm:$0xff]
        %v5138 = vld [vmem:[%s4540 + $0x6e] sm:$0xff]
        %v5139 = vld [vmem:[%s4540 + $0x7e] sm:$0xff]
        %v5140 = vld [vmem:[%s4540 + $0x86] sm:$0xff]
        %v5141 = vld [vmem:[%s4540 + $0x96] sm:$0xff]
        %v5142 = vld [vmem:[%s4540 + $0x9e] sm:$0xff]
        %v5143 = vld [vmem:[%s4540 + $0xae] sm:$0xff]
        %v5144 = vld [vmem:[%s4540 + $0xb6] sm:$0xff]
        %v5145 = vld [vmem:[%s4540 + $0xc6] sm:$0xff]
        %v5146 = vld [vmem:[%s4540 + $0xce] sm:$0xff]
        %v5147 = vld [vmem:[%s4540 + $0xde] sm:$0xff]
        %v5148 = vld [vmem:[%s4540 + $0xe6] sm:$0xff]
        %v5149 = vld [vmem:[%s4540 + $0xf6] sm:$0xff]
        %v5150 = vld [vmem:[%s4540 + $0xfe] sm:$0xff]
        %v5151 = vld [vmem:[%s4540 + $0x10e] sm:$0xff]
        %v5152 = vld [vmem:[%s4540 + $0x116] sm:$0xff]
        %v5153 = vld [vmem:[%s4540 + $0x126] sm:$0xff]
        %v5154 = vld [vmem:[%s4540 + $0x12e] sm:$0xff]
        %v5155 = vld [vmem:[%s4540 + $0x13e] sm:$0xff]
        %v5156 = vld [vmem:[%s4540 + $0x146] sm:$0xff]
        %v5157 = vld [vmem:[%s4540 + $0x156] sm:$0xff]
        %v5158 = vld [vmem:[%s4540 + $0x15e] sm:$0xff]
        %v5159 = vld [vmem:[%s4540 + $0x16e] sm:$0xff]
        %v5160 = vld [vmem:[%s4540 + $0x176] sm:$0xff]
        %v5161 = vld [vmem:[#allocation6 + $0x30] sm:$0x1]
        %v5162 = vperm.slane %v5161, 0
        %v5163 = vmul.f32 %v5129, %v5162
        %v5164 = vmul.f32 %v5130, %v5162
        %v5165 = vmul.f32 %v5131, %v5162
        %v5166 = vmul.f32 %v5132, %v5162
        %v5167 = vmul.f32 %v5133, %v5162
        %v5168 = vmul.f32 %v5134, %v5162
        %v5169 = vmul.f32 %v5135, %v5162
        %v5170 = vmul.f32 %v5136, %v5162
        %v5171 = vmul.f32 %v5137, %v5162
        %v5172 = vmul.f32 %v5138, %v5162
        %v5173 = vmul.f32 %v5139, %v5162
        %v5174 = vmul.f32 %v5140, %v5162
        %v5175 = vmul.f32 %v5141, %v5162
        %v5176 = vmul.f32 %v5142, %v5162
        %v5177 = vmul.f32 %v5143, %v5162
        %v5178 = vmul.f32 %v5144, %v5162
        %v5179 = vmul.f32 %v5145, %v5162
        %v5180 = vmul.f32 %v5146, %v5162
        %v5181 = vmul.f32 %v5147, %v5162
        %v5182 = vmul.f32 %v5148, %v5162
        %v5183 = vmul.f32 %v5149, %v5162
        %v5184 = vmul.f32 %v5150, %v5162
        %v5185 = vmul.f32 %v5151, %v5162
        %v5186 = vmul.f32 %v5152, %v5162
        %v5187 = vmul.f32 %v5153, %v5162
        %v5188 = vmul.f32 %v5154, %v5162
        %v5189 = vmul.f32 %v5155, %v5162
        %v5190 = vmul.f32 %v5156, %v5162
        %v5191 = vmul.f32 %v5157, %v5162
        %v5192 = vmul.f32 %v5158, %v5162
        %v5193 = vmul.f32 %v5159, %v5162
        %v5194 = vmul.f32 %v5160, %v5162
        %v5195 = vadd.f32 %v5097, %v5163
        %v5196 = vadd.f32 %v5098, %v5164
        %v5197 = vadd.f32 %v5099, %v5165
        %v5198 = vadd.f32 %v5100, %v5166
        %v5199 = vadd.f32 %v5101, %v5167
        %v5200 = vadd.f32 %v5102, %v5168
        %v5201 = vadd.f32 %v5103, %v5169
        %v5202 = vadd.f32 %v5104, %v5170
        %v5203 = vadd.f32 %v5105, %v5171
        %v5204 = vadd.f32 %v5106, %v5172
        %v5205 = vadd.f32 %v5107, %v5173
        %v5206 = vadd.f32 %v5108, %v5174
        %v5207 = vadd.f32 %v5109, %v5175
        %v5208 = vadd.f32 %v5110, %v5176
        %v5209 = vadd.f32 %v5111, %v5177
        %v5210 = vadd.f32 %v5112, %v5178
        %v5211 = vadd.f32 %v5113, %v5179
        %v5212 = vadd.f32 %v5114, %v5180
        %v5213 = vadd.f32 %v5115, %v5181
        %v5214 = vadd.f32 %v5116, %v5182
        %v5215 = vadd.f32 %v5117, %v5183
        %v5216 = vadd.f32 %v5118, %v5184
        %v5217 = vadd.f32 %v5119, %v5185
        %v5218 = vadd.f32 %v5120, %v5186
        %v5219 = vadd.f32 %v5121, %v5187
        %v5220 = vadd.f32 %v5122, %v5188
        %v5221 = vadd.f32 %v5123, %v5189
        %v5222 = vadd.f32 %v5124, %v5190
        %v5223 = vadd.f32 %v5125, %v5191
        %v5224 = vadd.f32 %v5126, %v5192
        %v5225 = vadd.f32 %v5127, %v5193
        %v5226 = vadd.f32 %v5128, %v5194
        %v5227 = vld [vmem:[#allocation8] sm:$0x1]
        %v5228 = vperm.slane %v5227, 0
        %v5229 = vadd.f32 %v5195, %v5228
        %v5230 = vadd.f32 %v5196, %v5228
        %v5231 = vadd.f32 %v5197, %v5228
        %v5232 = vadd.f32 %v5198, %v5228
        %v5233 = vadd.f32 %v5199, %v5228
        %v5234 = vadd.f32 %v5200, %v5228
        %v5235 = vadd.f32 %v5201, %v5228
        %v5236 = vadd.f32 %v5202, %v5228
        %v5237 = vadd.f32 %v5203, %v5228
        %v5238 = vadd.f32 %v5204, %v5228
        %v5239 = vadd.f32 %v5205, %v5228
        %v5240 = vadd.f32 %v5206, %v5228
        %v5241 = vadd.f32 %v5207, %v5228
        %v5242 = vadd.f32 %v5208, %v5228
        %v5243 = vadd.f32 %v5209, %v5228
        %v5244 = vadd.f32 %v5210, %v5228
        %v5245 = vadd.f32 %v5211, %v5228
        %v5246 = vadd.f32 %v5212, %v5228
        %v5247 = vadd.f32 %v5213, %v5228
        %v5248 = vadd.f32 %v5214, %v5228
        %v5249 = vadd.f32 %v5215, %v5228
        %v5250 = vadd.f32 %v5216, %v5228
        %v5251 = vadd.f32 %v5217, %v5228
        %v5252 = vadd.f32 %v5218, %v5228
        %v5253 = vadd.f32 %v5219, %v5228
        %v5254 = vadd.f32 %v5220, %v5228
        %v5255 = vadd.f32 %v5221, %v5228
        %v5256 = vadd.f32 %v5222, %v5228
        %v5257 = vadd.f32 %v5223, %v5228
        %v5258 = vadd.f32 %v5224, %v5228
        %v5259 = vadd.f32 %v5225, %v5228
        %v5260 = vadd.f32 %v5226, %v5228
        %5261 = vadd.xlane.f32.xlu0 %v5229
        %v5262 = vpop.xlane.xlu0 %5261
        %5263 = vadd.xlane.f32.xlu0 %v5230
        %v5264 = vpop.xlane.xlu0 %5263
        %5265 = vadd.xlane.f32.xlu0 %v5231
        %v5266 = vpop.xlane.xlu0 %5265
        %5267 = vadd.xlane.f32.xlu0 %v5232
        %v5268 = vpop.xlane.xlu0 %5267
        %5269 = vadd.xlane.f32.xlu0 %v5233
        %v5270 = vpop.xlane.xlu0 %5269
        %5271 = vadd.xlane.f32.xlu0 %v5234
        %v5272 = vpop.xlane.xlu0 %5271
        %5273 = vadd.xlane.f32.xlu0 %v5235
        %v5274 = vpop.xlane.xlu0 %5273
        %5275 = vadd.xlane.f32.xlu0 %v5236
        %v5276 = vpop.xlane.xlu0 %5275
        %5277 = vadd.xlane.f32.xlu0 %v5237
        %v5278 = vpop.xlane.xlu0 %5277
        %5279 = vadd.xlane.f32.xlu0 %v5238
        %v5280 = vpop.xlane.xlu0 %5279
        %5281 = vadd.xlane.f32.xlu0 %v5239
        %v5282 = vpop.xlane.xlu0 %5281
        %5283 = vadd.xlane.f32.xlu0 %v5240
        %v5284 = vpop.xlane.xlu0 %5283
        %5285 = vadd.xlane.f32.xlu0 %v5241
        %v5286 = vpop.xlane.xlu0 %5285
        %5287 = vadd.xlane.f32.xlu0 %v5242
        %v5288 = vpop.xlane.xlu0 %5287
        %5289 = vadd.xlane.f32.xlu0 %v5243
        %v5290 = vpop.xlane.xlu0 %5289
        %5291 = vadd.xlane.f32.xlu0 %v5244
        %v5292 = vpop.xlane.xlu0 %5291
        %5293 = vadd.xlane.f32.xlu0 %v5245
        %v5294 = vpop.xlane.xlu0 %5293
        %5295 = vadd.xlane.f32.xlu0 %v5246
        %v5296 = vpop.xlane.xlu0 %5295
        %5297 = vadd.xlane.f32.xlu0 %v5247
        %v5298 = vpop.xlane.xlu0 %5297
        %5299 = vadd.xlane.f32.xlu0 %v5248
        %v5300 = vpop.xlane.xlu0 %5299
        %5301 = vadd.xlane.f32.xlu0 %v5249
        %v5302 = vpop.xlane.xlu0 %5301
        %5303 = vadd.xlane.f32.xlu0 %v5250
        %v5304 = vpop.xlane.xlu0 %5303
        %5305 = vadd.xlane.f32.xlu0 %v5251
        %v5306 = vpop.xlane.xlu0 %5305
        %5307 = vadd.xlane.f32.xlu0 %v5252
        %v5308 = vpop.xlane.xlu0 %5307
        %5309 = vadd.xlane.f32.xlu0 %v5253
        %v5310 = vpop.xlane.xlu0 %5309
        %5311 = vadd.xlane.f32.xlu0 %v5254
        %v5312 = vpop.xlane.xlu0 %5311
        %5313 = vadd.xlane.f32.xlu0 %v5255
        %v5314 = vpop.xlane.xlu0 %5313
        %5315 = vadd.xlane.f32.xlu0 %v5256
        %v5316 = vpop.xlane.xlu0 %5315
        %5317 = vadd.xlane.f32.xlu0 %v5257
        %v5318 = vpop.xlane.xlu0 %5317
        %5319 = vadd.xlane.f32.xlu0 %v5258
        %v5320 = vpop.xlane.xlu0 %5319
        %5321 = vadd.xlane.f32.xlu0 %v5259
        %v5322 = vpop.xlane.xlu0 %5321
        %5323 = vadd.xlane.f32.xlu0 %v5260
        %v5324 = vpop.xlane.xlu0 %5323
        %v5325 = vmul.f32 %v5262, 0.25
        %v5326 = vmul.f32 %v5264, 0.25
        %v5327 = vmul.f32 %v5266, 0.25
        %v5328 = vmul.f32 %v5268, 0.25
        %v5329 = vmul.f32 %v5270, 0.25
        %v5330 = vmul.f32 %v5272, 0.25
        %v5331 = vmul.f32 %v5274, 0.25
        %v5332 = vmul.f32 %v5276, 0.25
        %v5333 = vmul.f32 %v5278, 0.25
        %v5334 = vmul.f32 %v5280, 0.25
        %v5335 = vmul.f32 %v5282, 0.25
        %v5336 = vmul.f32 %v5284, 0.25
        %v5337 = vmul.f32 %v5286, 0.25
        %v5338 = vmul.f32 %v5288, 0.25
        %v5339 = vmul.f32 %v5290, 0.25
        %v5340 = vmul.f32 %v5292, 0.25
        %v5341 = vmul.f32 %v5294, 0.25
        %v5342 = vmul.f32 %v5296, 0.25
        %v5343 = vmul.f32 %v5298, 0.25
        %v5344 = vmul.f32 %v5300, 0.25
        %v5345 = vmul.f32 %v5302, 0.25
        %v5346 = vmul.f32 %v5304, 0.25
        %v5347 = vmul.f32 %v5306, 0.25
        %v5348 = vmul.f32 %v5308, 0.25
        %v5349 = vmul.f32 %v5310, 0.25
        %v5350 = vmul.f32 %v5312, 0.25
        %v5351 = vmul.f32 %v5314, 0.25
        %v5352 = vmul.f32 %v5316, 0.25
        %v5353 = vmul.f32 %v5318, 0.25
        %v5354 = vmul.f32 %v5320, 0.25
        %v5355 = vmul.f32 %v5322, 0.25
        %v5356 = vmul.f32 %v5324, 0.25
        %v5357 = vsub.f32 %v5229, %v5325
        %v5358 = vsub.f32 %v5230, %v5326
        %v5359 = vsub.f32 %v5231, %v5327
        %v5360 = vsub.f32 %v5232, %v5328
        %v5361 = vsub.f32 %v5233, %v5329
        %v5362 = vsub.f32 %v5234, %v5330
        %v5363 = vsub.f32 %v5235, %v5331
        %v5364 = vsub.f32 %v5236, %v5332
        %v5365 = vsub.f32 %v5237, %v5333
        %v5366 = vsub.f32 %v5238, %v5334
        %v5367 = vsub.f32 %v5239, %v5335
        %v5368 = vsub.f32 %v5240, %v5336
        %v5369 = vsub.f32 %v5241, %v5337
        %v5370 = vsub.f32 %v5242, %v5338
        %v5371 = vsub.f32 %v5243, %v5339
        %v5372 = vsub.f32 %v5244, %v5340
        %v5373 = vsub.f32 %v5245, %v5341
        %v5374 = vsub.f32 %v5246, %v5342
        %v5375 = vsub.f32 %v5247, %v5343
        %v5376 = vsub.f32 %v5248, %v5344
        %v5377 = vsub.f32 %v5249, %v5345
        %v5378 = vsub.f32 %v5250, %v5346
        %v5379 = vsub.f32 %v5251, %v5347
        %v5380 = vsub.f32 %v5252, %v5348
        %v5381 = vsub.f32 %v5253, %v5349
        %v5382 = vsub.f32 %v5254, %v5350
        %v5383 = vsub.f32 %v5255, %v5351
        %v5384 = vsub.f32 %v5256, %v5352
        %v5385 = vsub.f32 %v5257, %v5353
        %v5386 = vsub.f32 %v5258, %v5354
        %v5387 = vsub.f32 %v5259, %v5355
        %v5388 = vsub.f32 %v5260, %v5356
        %v5389 = vld [vmem:[#allocation8 + $0x4] sm:$0x1]
        %v5390 = vperm.slane %v5389, 0
        %v5391 = vmul.f32 %v5357, %v5390
        %v5392 = vmul.f32 %v5358, %v5390
        %v5393 = vmul.f32 %v5359, %v5390
        %v5394 = vmul.f32 %v5360, %v5390
        %v5395 = vmul.f32 %v5361, %v5390
        %v5396 = vmul.f32 %v5362, %v5390
        %v5397 = vmul.f32 %v5363, %v5390
        %v5398 = vmul.f32 %v5364, %v5390
        %v5399 = vmul.f32 %v5365, %v5390
        %v5400 = vmul.f32 %v5366, %v5390
        %v5401 = vmul.f32 %v5367, %v5390
        %v5402 = vmul.f32 %v5368, %v5390
        %v5403 = vmul.f32 %v5369, %v5390
        %v5404 = vmul.f32 %v5370, %v5390
        %v5405 = vmul.f32 %v5371, %v5390
        %v5406 = vmul.f32 %v5372, %v5390
        %v5407 = vmul.f32 %v5373, %v5390
        %v5408 = vmul.f32 %v5374, %v5390
        %v5409 = vmul.f32 %v5375, %v5390
        %v5410 = vmul.f32 %v5376, %v5390
        %v5411 = vmul.f32 %v5377, %v5390
        %v5412 = vmul.f32 %v5378, %v5390
        %v5413 = vmul.f32 %v5379, %v5390
        %v5414 = vmul.f32 %v5380, %v5390
        %v5415 = vmul.f32 %v5381, %v5390
        %v5416 = vmul.f32 %v5382, %v5390
        %v5417 = vmul.f32 %v5383, %v5390
        %v5418 = vmul.f32 %v5384, %v5390
        %v5419 = vmul.f32 %v5385, %v5390
        %v5420 = vmul.f32 %v5386, %v5390
        %v5421 = vmul.f32 %v5387, %v5390
        %v5422 = vmul.f32 %v5388, %v5390
        %v5423 = vmul.f32 %v5391, %v5391
        %v5424 = vmul.f32 %v5392, %v5392
        %v5425 = vmul.f32 %v5393, %v5393
        %v5426 = vmul.f32 %v5394, %v5394
        %v5427 = vmul.f32 %v5395, %v5395
        %v5428 = vmul.f32 %v5396, %v5396
        %v5429 = vmul.f32 %v5397, %v5397
        %v5430 = vmul.f32 %v5398, %v5398
        %v5431 = vmul.f32 %v5399, %v5399
        %v5432 = vmul.f32 %v5400, %v5400
        %v5433 = vmul.f32 %v5401, %v5401
        %v5434 = vmul.f32 %v5402, %v5402
        %v5435 = vmul.f32 %v5403, %v5403
        %v5436 = vmul.f32 %v5404, %v5404
        %v5437 = vmul.f32 %v5405, %v5405
        %v5438 = vmul.f32 %v5406, %v5406
        %v5439 = vmul.f32 %v5407, %v5407
        %v5440 = vmul.f32 %v5408, %v5408
        %v5441 = vmul.f32 %v5409, %v5409
        %v5442 = vmul.f32 %v5410, %v5410
        %v5443 = vmul.f32 %v5411, %v5411
        %v5444 = vmul.f32 %v5412, %v5412
        %v5445 = vmul.f32 %v5413, %v5413
        %v5446 = vmul.f32 %v5414, %v5414
        %v5447 = vmul.f32 %v5415, %v5415
        %v5448 = vmul.f32 %v5416, %v5416
        %v5449 = vmul.f32 %v5417, %v5417
        %v5450 = vmul.f32 %v5418, %v5418
        %v5451 = vmul.f32 %v5419, %v5419
        %v5452 = vmul.f32 %v5420, %v5420
        %v5453 = vmul.f32 %v5421, %v5421
        %v5454 = vmul.f32 %v5422, %v5422
        %5455 = vadd.xlane.f32.xlu0 %v5423
        %v5456 = vpop.xlane.xlu0 %5455
        %5457 = vadd.xlane.f32.xlu0 %v5424
        %v5458 = vpop.xlane.xlu0 %5457
        %5459 = vadd.xlane.f32.xlu0 %v5425
        %v5460 = vpop.xlane.xlu0 %5459
        %5461 = vadd.xlane.f32.xlu0 %v5426
        %v5462 = vpop.xlane.xlu0 %5461
        %5463 = vadd.xlane.f32.xlu0 %v5427
        %v5464 = vpop.xlane.xlu0 %5463
        %5465 = vadd.xlane.f32.xlu0 %v5428
        %v5466 = vpop.xlane.xlu0 %5465
        %5467 = vadd.xlane.f32.xlu0 %v5429
        %v5468 = vpop.xlane.xlu0 %5467
        %5469 = vadd.xlane.f32.xlu0 %v5430
        %v5470 = vpop.xlane.xlu0 %5469
        %5471 = vadd.xlane.f32.xlu0 %v5431
        %v5472 = vpop.xlane.xlu0 %5471
        %5473 = vadd.xlane.f32.xlu0 %v5432
        %v5474 = vpop.xlane.xlu0 %5473
        %5475 = vadd.xlane.f32.xlu0 %v5433
        %v5476 = vpop.xlane.xlu0 %5475
        %5477 = vadd.xlane.f32.xlu0 %v5434
        %v5478 = vpop.xlane.xlu0 %5477
        %5479 = vadd.xlane.f32.xlu0 %v5435
        %v5480 = vpop.xlane.xlu0 %5479
        %5481 = vadd.xlane.f32.xlu0 %v5436
        %v5482 = vpop.xlane.xlu0 %5481
        %5483 = vadd.xlane.f32.xlu0 %v5437
        %v5484 = vpop.xlane.xlu0 %5483
        %5485 = vadd.xlane.f32.xlu0 %v5438
        %v5486 = vpop.xlane.xlu0 %5485
        %5487 = vadd.xlane.f32.xlu0 %v5439
        %v5488 = vpop.xlane.xlu0 %5487
        %5489 = vadd.xlane.f32.xlu0 %v5440
        %v5490 = vpop.xlane.xlu0 %5489
        %5491 = vadd.xlane.f32.xlu0 %v5441
        %v5492 = vpop.xlane.xlu0 %5491
        %5493 = vadd.xlane.f32.xlu0 %v5442
        %v5494 = vpop.xlane.xlu0 %5493
        %5495 = vadd.xlane.f32.xlu0 %v5443
        %v5496 = vpop.xlane.xlu0 %5495
        %5497 = vadd.xlane.f32.xlu0 %v5444
        %v5498 = vpop.xlane.xlu0 %5497
        %5499 = vadd.xlane.f32.xlu0 %v5445
        %v5500 = vpop.xlane.xlu0 %5499
        %5501 = vadd.xlane.f32.xlu0 %v5446
        %v5502 = vpop.xlane.xlu0 %5501
        %5503 = vadd.xlane.f32.xlu0 %v5447
        %v5504 = vpop.xlane.xlu0 %5503
        %5505 = vadd.xlane.f32.xlu0 %v5448
        %v5506 = vpop.xlane.xlu0 %5505
        %5507 = vadd.xlane.f32.xlu0 %v5449
        %v5508 = vpop.xlane.xlu0 %5507
        %5509 = vadd.xlane.f32.xlu0 %v5450
        %v5510 = vpop.xlane.xlu0 %5509
        %5511 = vadd.xlane.f32.xlu0 %v5451
        %v5512 = vpop.xlane.xlu0 %5511
        %5513 = vadd.xlane.f32.xlu0 %v5452
        %v5514 = vpop.xlane.xlu0 %5513
        %5515 = vadd.xlane.f32.xlu0 %v5453
        %v5516 = vpop.xlane.xlu0 %5515
        %5517 = vadd.xlane.f32.xlu0 %v5454
        %v5518 = vpop.xlane.xlu0 %5517
        %v5519 = vmul.f32 %v5456, 0.25
        %v5520 = vmul.f32 %v5458, 0.25
        %v5521 = vmul.f32 %v5460, 0.25
        %v5522 = vmul.f32 %v5462, 0.25
        %v5523 = vmul.f32 %v5464, 0.25
        %v5524 = vmul.f32 %v5466, 0.25
        %v5525 = vmul.f32 %v5468, 0.25
        %v5526 = vmul.f32 %v5470, 0.25
        %v5527 = vmul.f32 %v5472, 0.25
        %v5528 = vmul.f32 %v5474, 0.25
        %v5529 = vmul.f32 %v5476, 0.25
        %v5530 = vmul.f32 %v5478, 0.25
        %v5531 = vmul.f32 %v5480, 0.25
        %v5532 = vmul.f32 %v5482, 0.25
        %v5533 = vmul.f32 %v5484, 0.25
        %v5534 = vmul.f32 %v5486, 0.25
        %v5535 = vmul.f32 %v5488, 0.25
        %v5536 = vmul.f32 %v5490, 0.25
        %v5537 = vmul.f32 %v5492, 0.25
        %v5538 = vmul.f32 %v5494, 0.25
        %v5539 = vmul.f32 %v5496, 0.25
        %v5540 = vmul.f32 %v5498, 0.25
        %v5541 = vmul.f32 %v5500, 0.25
        %v5542 = vmul.f32 %v5502, 0.25
        %v5543 = vmul.f32 %v5504, 0.25
        %v5544 = vmul.f32 %v5506, 0.25
        %v5545 = vmul.f32 %v5508, 0.25
        %v5546 = vmul.f32 %v5510, 0.25
        %v5547 = vmul.f32 %v5512, 0.25
        %v5548 = vmul.f32 %v5514, 0.25
        %v5549 = vmul.f32 %v5516, 0.25
        %v5550 = vmul.f32 %v5518, 0.25
        %v5551 = vadd.f32 %v5519, 1e-06
        %v5552 = vadd.f32 %v5520, 1e-06
        %v5553 = vadd.f32 %v5521, 1e-06
        %v5554 = vadd.f32 %v5522, 1e-06
        %v5555 = vadd.f32 %v5523, 1e-06
        %v5556 = vadd.f32 %v5524, 1e-06
        %v5557 = vadd.f32 %v5525, 1e-06
        %v5558 = vadd.f32 %v5526, 1e-06
        %v5559 = vadd.f32 %v5527, 1e-06
        %v5560 = vadd.f32 %v5528, 1e-06
        %v5561 = vadd.f32 %v5529, 1e-06
        %v5562 = vadd.f32 %v5530, 1e-06
        %v5563 = vadd.f32 %v5531, 1e-06
        %v5564 = vadd.f32 %v5532, 1e-06
        %v5565 = vadd.f32 %v5533, 1e-06
        %v5566 = vadd.f32 %v5534, 1e-06
        %v5567 = vadd.f32 %v5535, 1e-06
        %v5568 = vadd.f32 %v5536, 1e-06
        %v5569 = vadd.f32 %v5537, 1e-06
        %v5570 = vadd.f32 %v5538, 1e-06
        %v5571 = vadd.f32 %v5539, 1e-06
        %v5572 = vadd.f32 %v5540, 1e-06
        %v5573 = vadd.f32 %v5541, 1e-06
        %v5574 = vadd.f32 %v5542, 1e-06
        %v5575 = vadd.f32 %v5543, 1e-06
        %v5576 = vadd.f32 %v5544, 1e-06
        %v5577 = vadd.f32 %v5545, 1e-06
        %v5578 = vadd.f32 %v5546, 1e-06
        %v5579 = vadd.f32 %v5547, 1e-06
        %v5580 = vadd.f32 %v5548, 1e-06
        %v5581 = vadd.f32 %v5549, 1e-06
        %v5582 = vadd.f32 %v5550, 1e-06
        %v5583 = vrsqrt.pop %v5551
        %v5584 = vmul.f32 %v5583, %v5551
        %v5585 = vmul.f32 %v5584, %v5583
        %v5586 = vmul.f32 0.5, %v5585
        %v5587 = vsub.f32 1.5, %v5586
        %v5588 = vmul.f32 %v5583, %v5587
        %vm5589 = vweird.f32 %v5551
        %vm5590 = vweird.f32 %v5583
        %vm5591 = vmor %vm5589, %vm5590
        %v5592 = vsel %vm5591, %v5583, %v5588
        %v5593 = vrsqrt.pop %v5552
        %v5594 = vmul.f32 %v5593, %v5552
        %v5595 = vmul.f32 %v5594, %v5593
        %v5596 = vmul.f32 0.5, %v5595
        %v5597 = vsub.f32 1.5, %v5596
        %v5598 = vmul.f32 %v5593, %v5597
        %vm5599 = vweird.f32 %v5552
        %vm5600 = vweird.f32 %v5593
        %vm5601 = vmor %vm5599, %vm5600
        %v5602 = vsel %vm5601, %v5593, %v5598
        %v5603 = vrsqrt.pop %v5553
        %v5604 = vmul.f32 %v5603, %v5553
        %v5605 = vmul.f32 %v5604, %v5603
        %v5606 = vmul.f32 0.5, %v5605
        %v5607 = vsub.f32 1.5, %v5606
        %v5608 = vmul.f32 %v5603, %v5607
        %vm5609 = vweird.f32 %v5553
        %vm5610 = vweird.f32 %v5603
        %vm5611 = vmor %vm5609, %vm5610
        %v5612 = vsel %vm5611, %v5603, %v5608
        %v5613 = vrsqrt.pop %v5554
        %v5614 = vmul.f32 %v5613, %v5554
        %v5615 = vmul.f32 %v5614, %v5613
        %v5616 = vmul.f32 0.5, %v5615
        %v5617 = vsub.f32 1.5, %v5616
        %v5618 = vmul.f32 %v5613, %v5617
        %vm5619 = vweird.f32 %v5554
        %vm5620 = vweird.f32 %v5613
        %vm5621 = vmor %vm5619, %vm5620
        %v5622 = vsel %vm5621, %v5613, %v5618
        %v5623 = vrsqrt.pop %v5555
        %v5624 = vmul.f32 %v5623, %v5555
        %v5625 = vmul.f32 %v5624, %v5623
        %v5626 = vmul.f32 0.5, %v5625
        %v5627 = vsub.f32 1.5, %v5626
        %v5628 = vmul.f32 %v5623, %v5627
        %vm5629 = vweird.f32 %v5555
        %vm5630 = vweird.f32 %v5623
        %vm5631 = vmor %vm5629, %vm5630
        %v5632 = vsel %vm5631, %v5623, %v5628
        %v5633 = vrsqrt.pop %v5556
        %v5634 = vmul.f32 %v5633, %v5556
        %v5635 = vmul.f32 %v5634, %v5633
        %v5636 = vmul.f32 0.5, %v5635
        %v5637 = vsub.f32 1.5, %v5636
        %v5638 = vmul.f32 %v5633, %v5637
        %vm5639 = vweird.f32 %v5556
        %vm5640 = vweird.f32 %v5633
        %vm5641 = vmor %vm5639, %vm5640
        %v5642 = vsel %vm5641, %v5633, %v5638
        %v5643 = vrsqrt.pop %v5557
        %v5644 = vmul.f32 %v5643, %v5557
        %v5645 = vmul.f32 %v5644, %v5643
        %v5646 = vmul.f32 0.5, %v5645
        %v5647 = vsub.f32 1.5, %v5646
        %v5648 = vmul.f32 %v5643, %v5647
        %vm5649 = vweird.f32 %v5557
        %vm5650 = vweird.f32 %v5643
        %vm5651 = vmor %vm5649, %vm5650
        %v5652 = vsel %vm5651, %v5643, %v5648
        %v5653 = vrsqrt.pop %v5558
        %v5654 = vmul.f32 %v5653, %v5558
        %v5655 = vmul.f32 %v5654, %v5653
        %v5656 = vmul.f32 0.5, %v5655
        %v5657 = vsub.f32 1.5, %v5656
        %v5658 = vmul.f32 %v5653, %v5657
        %vm5659 = vweird.f32 %v5558
        %vm5660 = vweird.f32 %v5653
        %vm5661 = vmor %vm5659, %vm5660
        %v5662 = vsel %vm5661, %v5653, %v5658
        %v5663 = vrsqrt.pop %v5559
        %v5664 = vmul.f32 %v5663, %v5559
        %v5665 = vmul.f32 %v5664, %v5663
        %v5666 = vmul.f32 0.5, %v5665
        %v5667 = vsub.f32 1.5, %v5666
        %v5668 = vmul.f32 %v5663, %v5667
        %vm5669 = vweird.f32 %v5559
        %vm5670 = vweird.f32 %v5663
        %vm5671 = vmor %vm5669, %vm5670
        %v5672 = vsel %vm5671, %v5663, %v5668
        %v5673 = vrsqrt.pop %v5560
        %v5674 = vmul.f32 %v5673, %v5560
        %v5675 = vmul.f32 %v5674, %v5673
        %v5676 = vmul.f32 0.5, %v5675
        %v5677 = vsub.f32 1.5, %v5676
        %v5678 = vmul.f32 %v5673, %v5677
        %vm5679 = vweird.f32 %v5560
        %vm5680 = vweird.f32 %v5673
        %vm5681 = vmor %vm5679, %vm5680
        %v5682 = vsel %vm5681, %v5673, %v5678
        %v5683 = vrsqrt.pop %v5561
        %v5684 = vmul.f32 %v5683, %v5561
        %v5685 = vmul.f32 %v5684, %v5683
        %v5686 = vmul.f32 0.5, %v5685
        %v5687 = vsub.f32 1.5, %v5686
        %v5688 = vmul.f32 %v5683, %v5687
        %vm5689 = vweird.f32 %v5561
        %vm5690 = vweird.f32 %v5683
        %vm5691 = vmor %vm5689, %vm5690
        %v5692 = vsel %vm5691, %v5683, %v5688
        %v5693 = vrsqrt.pop %v5562
        %v5694 = vmul.f32 %v5693, %v5562
        %v5695 = vmul.f32 %v5694, %v5693
        %v5696 = vmul.f32 0.5, %v5695
        %v5697 = vsub.f32 1.5, %v5696
        %v5698 = vmul.f32 %v5693, %v5697
        %vm5699 = vweird.f32 %v5562
        %vm5700 = vweird.f32 %v5693
        %vm5701 = vmor %vm5699, %vm5700
        %v5702 = vsel %vm5701, %v5693, %v5698
        %v5703 = vrsqrt.pop %v5563
        %v5704 = vmul.f32 %v5703, %v5563
        %v5705 = vmul.f32 %v5704, %v5703
        %v5706 = vmul.f32 0.5, %v5705
        %v5707 = vsub.f32 1.5, %v5706
        %v5708 = vmul.f32 %v5703, %v5707
        %vm5709 = vweird.f32 %v5563
        %vm5710 = vweird.f32 %v5703
        %vm5711 = vmor %vm5709, %vm5710
        %v5712 = vsel %vm5711, %v5703, %v5708
        %v5713 = vrsqrt.pop %v5564
        %v5714 = vmul.f32 %v5713, %v5564
        %v5715 = vmul.f32 %v5714, %v5713
        %v5716 = vmul.f32 0.5, %v5715
        %v5717 = vsub.f32 1.5, %v5716
        %v5718 = vmul.f32 %v5713, %v5717
        %vm5719 = vweird.f32 %v5564
        %vm5720 = vweird.f32 %v5713
        %vm5721 = vmor %vm5719, %vm5720
        %v5722 = vsel %vm5721, %v5713, %v5718
        %v5723 = vrsqrt.pop %v5565
        %v5724 = vmul.f32 %v5723, %v5565
        %v5725 = vmul.f32 %v5724, %v5723
        %v5726 = vmul.f32 0.5, %v5725
        %v5727 = vsub.f32 1.5, %v5726
        %v5728 = vmul.f32 %v5723, %v5727
        %vm5729 = vweird.f32 %v5565
        %vm5730 = vweird.f32 %v5723
        %vm5731 = vmor %vm5729, %vm5730
        %v5732 = vsel %vm5731, %v5723, %v5728
        %v5733 = vrsqrt.pop %v5566
        %v5734 = vmul.f32 %v5733, %v5566
        %v5735 = vmul.f32 %v5734, %v5733
        %v5736 = vmul.f32 0.5, %v5735
        %v5737 = vsub.f32 1.5, %v5736
        %v5738 = vmul.f32 %v5733, %v5737
        %vm5739 = vweird.f32 %v5566
        %vm5740 = vweird.f32 %v5733
        %vm5741 = vmor %vm5739, %vm5740
        %v5742 = vsel %vm5741, %v5733, %v5738
        %v5743 = vrsqrt.pop %v5567
        %v5744 = vmul.f32 %v5743, %v5567
        %v5745 = vmul.f32 %v5744, %v5743
        %v5746 = vmul.f32 0.5, %v5745
        %v5747 = vsub.f32 1.5, %v5746
        %v5748 = vmul.f32 %v5743, %v5747
        %vm5749 = vweird.f32 %v5567
        %vm5750 = vweird.f32 %v5743
        %vm5751 = vmor %vm5749, %vm5750
        %v5752 = vsel %vm5751, %v5743, %v5748
        %v5753 = vrsqrt.pop %v5568
        %v5754 = vmul.f32 %v5753, %v5568
        %v5755 = vmul.f32 %v5754, %v5753
        %v5756 = vmul.f32 0.5, %v5755
        %v5757 = vsub.f32 1.5, %v5756
        %v5758 = vmul.f32 %v5753, %v5757
        %vm5759 = vweird.f32 %v5568
        %vm5760 = vweird.f32 %v5753
        %vm5761 = vmor %vm5759, %vm5760
        %v5762 = vsel %vm5761, %v5753, %v5758
        %v5763 = vrsqrt.pop %v5569
        %v5764 = vmul.f32 %v5763, %v5569
        %v5765 = vmul.f32 %v5764, %v5763
        %v5766 = vmul.f32 0.5, %v5765
        %v5767 = vsub.f32 1.5, %v5766
        %v5768 = vmul.f32 %v5763, %v5767
        %vm5769 = vweird.f32 %v5569
        %vm5770 = vweird.f32 %v5763
        %vm5771 = vmor %vm5769, %vm5770
        %v5772 = vsel %vm5771, %v5763, %v5768
        %v5773 = vrsqrt.pop %v5570
        %v5774 = vmul.f32 %v5773, %v5570
        %v5775 = vmul.f32 %v5774, %v5773
        %v5776 = vmul.f32 0.5, %v5775
        %v5777 = vsub.f32 1.5, %v5776
        %v5778 = vmul.f32 %v5773, %v5777
        %vm5779 = vweird.f32 %v5570
        %vm5780 = vweird.f32 %v5773
        %vm5781 = vmor %vm5779, %vm5780
        %v5782 = vsel %vm5781, %v5773, %v5778
        %v5783 = vrsqrt.pop %v5571
        %v5784 = vmul.f32 %v5783, %v5571
        %v5785 = vmul.f32 %v5784, %v5783
        %v5786 = vmul.f32 0.5, %v5785
        %v5787 = vsub.f32 1.5, %v5786
        %v5788 = vmul.f32 %v5783, %v5787
        %vm5789 = vweird.f32 %v5571
        %vm5790 = vweird.f32 %v5783
        %vm5791 = vmor %vm5789, %vm5790
        %v5792 = vsel %vm5791, %v5783, %v5788
        %v5793 = vrsqrt.pop %v5572
        %v5794 = vmul.f32 %v5793, %v5572
        %v5795 = vmul.f32 %v5794, %v5793
        %v5796 = vmul.f32 0.5, %v5795
        %v5797 = vsub.f32 1.5, %v5796
        %v5798 = vmul.f32 %v5793, %v5797
        %vm5799 = vweird.f32 %v5572
        %vm5800 = vweird.f32 %v5793
        %vm5801 = vmor %vm5799, %vm5800
        %v5802 = vsel %vm5801, %v5793, %v5798
        %v5803 = vrsqrt.pop %v5573
        %v5804 = vmul.f32 %v5803, %v5573
        %v5805 = vmul.f32 %v5804, %v5803
        %v5806 = vmul.f32 0.5, %v5805
        %v5807 = vsub.f32 1.5, %v5806
        %v5808 = vmul.f32 %v5803, %v5807
        %vm5809 = vweird.f32 %v5573
        %vm5810 = vweird.f32 %v5803
        %vm5811 = vmor %vm5809, %vm5810
        %v5812 = vsel %vm5811, %v5803, %v5808
        %v5813 = vrsqrt.pop %v5574
        %v5814 = vmul.f32 %v5813, %v5574
        %v5815 = vmul.f32 %v5814, %v5813
        %v5816 = vmul.f32 0.5, %v5815
        %v5817 = vsub.f32 1.5, %v5816
        %v5818 = vmul.f32 %v5813, %v5817
        %vm5819 = vweird.f32 %v5574
        %vm5820 = vweird.f32 %v5813
        %vm5821 = vmor %vm5819, %vm5820
        %v5822 = vsel %vm5821, %v5813, %v5818
        %v5823 = vrsqrt.pop %v5575
        %v5824 = vmul.f32 %v5823, %v5575
        %v5825 = vmul.f32 %v5824, %v5823
        %v5826 = vmul.f32 0.5, %v5825
        %v5827 = vsub.f32 1.5, %v5826
        %v5828 = vmul.f32 %v5823, %v5827
        %vm5829 = vweird.f32 %v5575
        %vm5830 = vweird.f32 %v5823
        %vm5831 = vmor %vm5829, %vm5830
        %v5832 = vsel %vm5831, %v5823, %v5828
        %v5833 = vrsqrt.pop %v5576
        %v5834 = vmul.f32 %v5833, %v5576
        %v5835 = vmul.f32 %v5834, %v5833
        %v5836 = vmul.f32 0.5, %v5835
        %v5837 = vsub.f32 1.5, %v5836
        %v5838 = vmul.f32 %v5833, %v5837
        %vm5839 = vweird.f32 %v5576
        %vm5840 = vweird.f32 %v5833
        %vm5841 = vmor %vm5839, %vm5840
        %v5842 = vsel %vm5841, %v5833, %v5838
        %v5843 = vrsqrt.pop %v5577
        %v5844 = vmul.f32 %v5843, %v5577
        %v5845 = vmul.f32 %v5844, %v5843
        %v5846 = vmul.f32 0.5, %v5845
        %v5847 = vsub.f32 1.5, %v5846
        %v5848 = vmul.f32 %v5843, %v5847
        %vm5849 = vweird.f32 %v5577
        %vm5850 = vweird.f32 %v5843
        %vm5851 = vmor %vm5849, %vm5850
        %v5852 = vsel %vm5851, %v5843, %v5848
        %v5853 = vrsqrt.pop %v5578
        %v5854 = vmul.f32 %v5853, %v5578
        %v5855 = vmul.f32 %v5854, %v5853
        %v5856 = vmul.f32 0.5, %v5855
        %v5857 = vsub.f32 1.5, %v5856
        %v5858 = vmul.f32 %v5853, %v5857
        %vm5859 = vweird.f32 %v5578
        %vm5860 = vweird.f32 %v5853
        %vm5861 = vmor %vm5859, %vm5860
        %v5862 = vsel %vm5861, %v5853, %v5858
        %v5863 = vrsqrt.pop %v5579
        %v5864 = vmul.f32 %v5863, %v5579
        %v5865 = vmul.f32 %v5864, %v5863
        %v5866 = vmul.f32 0.5, %v5865
        %v5867 = vsub.f32 1.5, %v5866
        %v5868 = vmul.f32 %v5863, %v5867
        %vm5869 = vweird.f32 %v5579
        %vm5870 = vweird.f32 %v5863
        %vm5871 = vmor %vm5869, %vm5870
        %v5872 = vsel %vm5871, %v5863, %v5868
        %v5873 = vrsqrt.pop %v5580
        %v5874 = vmul.f32 %v5873, %v5580
        %v5875 = vmul.f32 %v5874, %v5873
        %v5876 = vmul.f32 0.5, %v5875
        %v5877 = vsub.f32 1.5, %v5876
        %v5878 = vmul.f32 %v5873, %v5877
        %vm5879 = vweird.f32 %v5580
        %vm5880 = vweird.f32 %v5873
        %vm5881 = vmor %vm5879, %vm5880
        %v5882 = vsel %vm5881, %v5873, %v5878
        %v5883 = vrsqrt.pop %v5581
        %v5884 = vmul.f32 %v5883, %v5581
        %v5885 = vmul.f32 %v5884, %v5883
        %v5886 = vmul.f32 0.5, %v5885
        %v5887 = vsub.f32 1.5, %v5886
        %v5888 = vmul.f32 %v5883, %v5887
        %vm5889 = vweird.f32 %v5581
        %vm5890 = vweird.f32 %v5883
        %vm5891 = vmor %vm5889, %vm5890
        %v5892 = vsel %vm5891, %v5883, %v5888
        %v5893 = vrsqrt.pop %v5582
        %v5894 = vmul.f32 %v5893, %v5582
        %v5895 = vmul.f32 %v5894, %v5893
        %v5896 = vmul.f32 0.5, %v5895
        %v5897 = vsub.f32 1.5, %v5896
        %v5898 = vmul.f32 %v5893, %v5897
        %vm5899 = vweird.f32 %v5582
        %vm5900 = vweird.f32 %v5893
        %vm5901 = vmor %vm5899, %vm5900
        %v5902 = vsel %vm5901, %v5893, %v5898
        %v5903 = vmul.f32 %v5391, %v5592
        %v5904 = vmul.f32 %v5392, %v5602
        %v5905 = vmul.f32 %v5393, %v5612
        %v5906 = vmul.f32 %v5394, %v5622
        %v5907 = vmul.f32 %v5395, %v5632
        %v5908 = vmul.f32 %v5396, %v5642
        %v5909 = vmul.f32 %v5397, %v5652
        %v5910 = vmul.f32 %v5398, %v5662
        %v5911 = vmul.f32 %v5399, %v5672
        %v5912 = vmul.f32 %v5400, %v5682
        %v5913 = vmul.f32 %v5401, %v5692
        %v5914 = vmul.f32 %v5402, %v5702
        %v5915 = vmul.f32 %v5403, %v5712
        %v5916 = vmul.f32 %v5404, %v5722
        %v5917 = vmul.f32 %v5405, %v5732
        %v5918 = vmul.f32 %v5406, %v5742
        %v5919 = vmul.f32 %v5407, %v5752
        %v5920 = vmul.f32 %v5408, %v5762
        %v5921 = vmul.f32 %v5409, %v5772
        %v5922 = vmul.f32 %v5410, %v5782
        %v5923 = vmul.f32 %v5411, %v5792
        %v5924 = vmul.f32 %v5412, %v5802
        %v5925 = vmul.f32 %v5413, %v5812
        %v5926 = vmul.f32 %v5414, %v5822
        %v5927 = vmul.f32 %v5415, %v5832
        %v5928 = vmul.f32 %v5416, %v5842
        %v5929 = vmul.f32 %v5417, %v5852
        %v5930 = vmul.f32 %v5418, %v5862
        %v5931 = vmul.f32 %v5419, %v5872
        %v5932 = vmul.f32 %v5420, %v5882
        %v5933 = vmul.f32 %v5421, %v5892
        %v5934 = vmul.f32 %v5422, %v5902
        %v5935 = vld [vmem:[#allocation8 + $0x1] sm:$0x1]
        %v5936 = vperm.slane %v5935, 0
        %v5937 = vmul.f32 %v5903, %v5936
        %v5938 = vmul.f32 %v5904, %v5936
        %v5939 = vmul.f32 %v5905, %v5936
        %v5940 = vmul.f32 %v5906, %v5936
        %v5941 = vmul.f32 %v5907, %v5936
        %v5942 = vmul.f32 %v5908, %v5936
        %v5943 = vmul.f32 %v5909, %v5936
        %v5944 = vmul.f32 %v5910, %v5936
        %v5945 = vmul.f32 %v5911, %v5936
        %v5946 = vmul.f32 %v5912, %v5936
        %v5947 = vmul.f32 %v5913, %v5936
        %v5948 = vmul.f32 %v5914, %v5936
        %v5949 = vmul.f32 %v5915, %v5936
        %v5950 = vmul.f32 %v5916, %v5936
        %v5951 = vmul.f32 %v5917, %v5936
        %v5952 = vmul.f32 %v5918, %v5936
        %v5953 = vmul.f32 %v5919, %v5936
        %v5954 = vmul.f32 %v5920, %v5936
        %v5955 = vmul.f32 %v5921, %v5936
        %v5956 = vmul.f32 %v5922, %v5936
        %v5957 = vmul.f32 %v5923, %v5936
        %v5958 = vmul.f32 %v5924, %v5936
        %v5959 = vmul.f32 %v5925, %v5936
        %v5960 = vmul.f32 %v5926, %v5936
        %v5961 = vmul.f32 %v5927, %v5936
        %v5962 = vmul.f32 %v5928, %v5936
        %v5963 = vmul.f32 %v5929, %v5936
        %v5964 = vmul.f32 %v5930, %v5936
        %v5965 = vmul.f32 %v5931, %v5936
        %v5966 = vmul.f32 %v5932, %v5936
        %v5967 = vmul.f32 %v5933, %v5936
        %v5968 = vmul.f32 %v5934, %v5936
        %v5969 = vld [vmem:[#allocation8 + $0x2] sm:$0x1]
        %v5970 = vperm.slane %v5969, 0
        %v5971 = vadd.f32 %v5937, %v5970
        %v5972 = vadd.f32 %v5938, %v5970
        %v5973 = vadd.f32 %v5939, %v5970
        %v5974 = vadd.f32 %v5940, %v5970
        %v5975 = vadd.f32 %v5941, %v5970
        %v5976 = vadd.f32 %v5942, %v5970
        %v5977 = vadd.f32 %v5943, %v5970
        %v5978 = vadd.f32 %v5944, %v5970
        %v5979 = vadd.f32 %v5945, %v5970
        %v5980 = vadd.f32 %v5946, %v5970
        %v5981 = vadd.f32 %v5947, %v5970
        %v5982 = vadd.f32 %v5948, %v5970
        %v5983 = vadd.f32 %v5949, %v5970
        %v5984 = vadd.f32 %v5950, %v5970
        %v5985 = vadd.f32 %v5951, %v5970
        %v5986 = vadd.f32 %v5952, %v5970
        %v5987 = vadd.f32 %v5953, %v5970
        %v5988 = vadd.f32 %v5954, %v5970
        %v5989 = vadd.f32 %v5955, %v5970
        %v5990 = vadd.f32 %v5956, %v5970
        %v5991 = vadd.f32 %v5957, %v5970
        %v5992 = vadd.f32 %v5958, %v5970
        %v5993 = vadd.f32 %v5959, %v5970
        %v5994 = vadd.f32 %v5960, %v5970
        %v5995 = vadd.f32 %v5961, %v5970
        %v5996 = vadd.f32 %v5962, %v5970
        %v5997 = vadd.f32 %v5963, %v5970
        %v5998 = vadd.f32 %v5964, %v5970
        %v5999 = vadd.f32 %v5965, %v5970
        %v6000 = vadd.f32 %v5966, %v5970
        %v6001 = vadd.f32 %v5967, %v5970
        %v6002 = vadd.f32 %v5968, %v5970
        %v6003 = vpack.c.bf16 %v5972, %v5971
        %v6004 = vpack.c.bf16 %v5974, %v5973
        %v6005 = vpack.c.bf16 %v5976, %v5975
        %v6006 = vpack.c.bf16 %v5978, %v5977
        %v6007 = vpack.c.bf16 %v5980, %v5979
        %v6008 = vpack.c.bf16 %v5982, %v5981
        %v6009 = vpack.c.bf16 %v5984, %v5983
        %v6010 = vpack.c.bf16 %v5986, %v5985
        %v6011 = vpack.c.bf16 %v5988, %v5987
        %v6012 = vpack.c.bf16 %v5990, %v5989
        %v6013 = vpack.c.bf16 %v5992, %v5991
        %v6014 = vpack.c.bf16 %v5994, %v5993
        %v6015 = vpack.c.bf16 %v5996, %v5995
        %v6016 = vpack.c.bf16 %v5998, %v5997
        %v6017 = vpack.c.bf16 %v6000, %v5999
        %v6018 = vpack.c.bf16 %v6002, %v6001
        %v6019 = vld [vmem:[#allocation9] sm:$0xf]
        %v6020 = vld [vmem:[#allocation9 + $0x4] sm:$0xf]
        %v6021 = vld [vmem:[#allocation9 + $0x8] sm:$0xf]
        %v6022 = vld [vmem:[#allocation9 + $0xc] sm:$0xf]
        %v6023 = vld [vmem:[#allocation9 + $0x10] sm:$0xf]
        %v6024 = vld [vmem:[#allocation9 + $0x14] sm:$0xf]
        %v6025 = vld [vmem:[#allocation9 + $0x18] sm:$0xf]
        %v6026 = vld [vmem:[#allocation9 + $0x1c] sm:$0xf]
        %v6027 = vld [vmem:[#allocation9 + $0x20] sm:$0xf]
        %v6028 = vld [vmem:[#allocation9 + $0x24] sm:$0xf]
        %v6029 = vld [vmem:[#allocation9 + $0x28] sm:$0xf]
        %v6030 = vld [vmem:[#allocation9 + $0x2c] sm:$0xf]
        %v6031 = vld [vmem:[#allocation9 + $0x30] sm:$0xf]
        %v6032 = vld [vmem:[#allocation9 + $0x34] sm:$0xf]
        %v6033 = vld [vmem:[#allocation9 + $0x38] sm:$0xf]
        %v6034 = vld [vmem:[#allocation9 + $0x3c] sm:$0xf]
        %v6035 = vld [vmem:[%s4] sm:$0x1]
        %v6037 = vperm.slane %v6035, 0
        %v6055 = vunpack.c.l.b16 %v6019
        %v6056 = vunpack.c.l.b16 %v6020
        %v6057 = vunpack.c.l.b16 %v6021
        %v6058 = vunpack.c.l.b16 %v6022
        %v6059 = vunpack.c.l.b16 %v6023
        %v6060 = vunpack.c.l.b16 %v6024
        %v6061 = vunpack.c.l.b16 %v6025
        %v6062 = vunpack.c.l.b16 %v6026
        %v6063 = vunpack.c.l.b16 %v6027
        %v6064 = vunpack.c.l.b16 %v6028
        %v6065 = vunpack.c.l.b16 %v6029
        %v6066 = vunpack.c.l.b16 %v6030
        %v6067 = vunpack.c.l.b16 %v6031
        %v6068 = vunpack.c.l.b16 %v6032
        %v6069 = vunpack.c.l.b16 %v6033
        %v6070 = vunpack.c.l.b16 %v6034
        %v6071 = vpack.c.b16 %v6056, %v6055
        %v6072 = vpack.c.b16 %v6058, %v6057
        %v6073 = vpack.c.b16 %v6060, %v6059
        %v6074 = vpack.c.b16 %v6062, %v6061
        %v6075 = vpack.c.b16 %v6064, %v6063
        %v6076 = vpack.c.b16 %v6066, %v6065
        %v6077 = vpack.c.b16 %v6068, %v6067
        %v6078 = vpack.c.b16 %v6070, %v6069
        %6087 = vmatpush.bf16.msra.mxu0 %v6078
        %6088 = vmatpush.bf16.msra.mxu0 %v6077
        %6089 = vmatpush.bf16.msra.mxu0 %v6076
        %6090 = vmatpush.bf16.msra.mxu0 %v6075
        %6091 = vmatpush.bf16.msra.mxu0 %v6074
        %6092 = vmatpush.bf16.msra.mxu0 %v6073
        %6093 = vmatpush.bf16.msra.mxu0 %v6072
        %6094 = vmatpush.bf16.msra.mxu0 %v6071
        %6095 = vmatmul.bf16.gmra.mxu0 %v6003
        %v6096 = vpop.f32.mrf.mxu0
        %v6097 = vadd.f32 %v6037, %v6096
        %v6098 = vpop.f32.mrf.mxu0
        %v6099 = vadd.f32 %v6037, %v6098
        %6100 = vmatmul.bf16.gmra.mxu0 %v6004
        %v6101 = vpop.f32.mrf.mxu0
        %v6102 = vadd.f32 %v6037, %v6101
        %v6103 = vpop.f32.mrf.mxu0
        %v6104 = vadd.f32 %v6037, %v6103
        %6105 = vmatmul.bf16.gmra.mxu0 %v6005
        %v6106 = vpop.f32.mrf.mxu0
        %v6107 = vadd.f32 %v6037, %v6106
        %v6108 = vpop.f32.mrf.mxu0
        %v6109 = vadd.f32 %v6037, %v6108
        %6110 = vmatmul.bf16.gmra.mxu0 %v6006
        %v6111 = vpop.f32.mrf.mxu0
        %v6112 = vadd.f32 %v6037, %v6111
        %v6113 = vpop.f32.mrf.mxu0
        %v6114 = vadd.f32 %v6037, %v6113
        %6115 = vmatmul.bf16.gmra.mxu0 %v6007
        %v6116 = vpop.f32.mrf.mxu0
        %v6117 = vadd.f32 %v6037, %v6116
        %v6118 = vpop.f32.mrf.mxu0
        %v6119 = vadd.f32 %v6037, %v6118
        %6120 = vmatmul.bf16.gmra.mxu0 %v6008
        %v6121 = vpop.f32.mrf.mxu0
        %v6122 = vadd.f32 %v6037, %v6121
        %v6123 = vpop.f32.mrf.mxu0
        %v6124 = vadd.f32 %v6037, %v6123
        %6125 = vmatmul.bf16.gmra.mxu0 %v6009
        %v6126 = vpop.f32.mrf.mxu0
        %v6127 = vadd.f32 %v6037, %v6126
        %v6128 = vpop.f32.mrf.mxu0
        %v6129 = vadd.f32 %v6037, %v6128
        %6130 = vmatmul.bf16.gmra.mxu0 %v6010
        %v6131 = vpop.f32.mrf.mxu0
        %v6132 = vadd.f32 %v6037, %v6131
        %v6133 = vpop.f32.mrf.mxu0
        %v6134 = vadd.f32 %v6037, %v6133
        %6135 = vmatmul.bf16.gmra.mxu0 %v6011
        %v6136 = vpop.f32.mrf.mxu0
        %v6137 = vadd.f32 %v6037, %v6136
        %v6138 = vpop.f32.mrf.mxu0
        %v6139 = vadd.f32 %v6037, %v6138
        %6140 = vmatmul.bf16.gmra.mxu0 %v6012
        %v6141 = vpop.f32.mrf.mxu0
        %v6142 = vadd.f32 %v6037, %v6141
        %v6143 = vpop.f32.mrf.mxu0
        %v6144 = vadd.f32 %v6037, %v6143
        %6145 = vmatmul.bf16.gmra.mxu0 %v6013
        %v6146 = vpop.f32.mrf.mxu0
        %v6147 = vadd.f32 %v6037, %v6146
        %v6148 = vpop.f32.mrf.mxu0
        %v6149 = vadd.f32 %v6037, %v6148
        %6150 = vmatmul.bf16.gmra.mxu0 %v6014
        %v6151 = vpop.f32.mrf.mxu0
        %v6152 = vadd.f32 %v6037, %v6151
        %v6153 = vpop.f32.mrf.mxu0
        %v6154 = vadd.f32 %v6037, %v6153
        %6155 = vmatmul.bf16.gmra.mxu0 %v6015
        %v6156 = vpop.f32.mrf.mxu0
        %v6157 = vadd.f32 %v6037, %v6156
        %v6158 = vpop.f32.mrf.mxu0
        %v6159 = vadd.f32 %v6037, %v6158
        %6160 = vmatmul.bf16.gmra.mxu0 %v6016
        %v6161 = vpop.f32.mrf.mxu0
        %v6162 = vadd.f32 %v6037, %v6161
        %v6163 = vpop.f32.mrf.mxu0
        %v6164 = vadd.f32 %v6037, %v6163
        %6165 = vmatmul.bf16.gmra.mxu0 %v6017
        %v6166 = vpop.f32.mrf.mxu0
        %v6167 = vadd.f32 %v6037, %v6166
        %v6168 = vpop.f32.mrf.mxu0
        %v6169 = vadd.f32 %v6037, %v6168
        %6170 = vmatmul.bf16.gmra.mxu0 %v6018
        %v6171 = vpop.f32.mrf.mxu0
        %v6172 = vadd.f32 %v6037, %v6171
        %v6173 = vpop.f32.mrf.mxu0
        %v6174 = vadd.f32 %v6037, %v6173
        %6175 = vdwg.mxu0
        %v6176 = vmul.f32 %v6097, 0.5
        %v6177 = vmul.f32 %v6099, 0.5
        %v6178 = vmul.f32 %v6102, 0.5
        %v6179 = vmul.f32 %v6104, 0.5
        %v6180 = vmul.f32 %v6107, 0.5
        %v6181 = vmul.f32 %v6109, 0.5
        %v6182 = vmul.f32 %v6112, 0.5
        %v6183 = vmul.f32 %v6114, 0.5
        %v6184 = vmul.f32 %v6117, 0.5
        %v6185 = vmul.f32 %v6119, 0.5
        %v6186 = vmul.f32 %v6122, 0.5
        %v6187 = vmul.f32 %v6124, 0.5
        %v6188 = vmul.f32 %v6127, 0.5
        %v6189 = vmul.f32 %v6129, 0.5
        %v6190 = vmul.f32 %v6132, 0.5
        %v6191 = vmul.f32 %v6134, 0.5
        %v6192 = vmul.f32 %v6137, 0.5
        %v6193 = vmul.f32 %v6139, 0.5
        %v6194 = vmul.f32 %v6142, 0.5
        %v6195 = vmul.f32 %v6144, 0.5
        %v6196 = vmul.f32 %v6147, 0.5
        %v6197 = vmul.f32 %v6149, 0.5
        %v6198 = vmul.f32 %v6152, 0.5
        %v6199 = vmul.f32 %v6154, 0.5
        %v6200 = vmul.f32 %v6157, 0.5
        %v6201 = vmul.f32 %v6159, 0.5
        %v6202 = vmul.f32 %v6162, 0.5
        %v6203 = vmul.f32 %v6164, 0.5
        %v6204 = vmul.f32 %v6167, 0.5
        %v6205 = vmul.f32 %v6169, 0.5
        %v6206 = vmul.f32 %v6172, 0.5
        %v6207 = vmul.f32 %v6174, 0.5
        %v6208 = vmul.f32 %v6097, 0.70710677
        %v6209 = vmul.f32 %v6099, 0.70710677
        %v6210 = vmul.f32 %v6102, 0.70710677
        %v6211 = vmul.f32 %v6104, 0.70710677
        %v6212 = vmul.f32 %v6107, 0.70710677
        %v6213 = vmul.f32 %v6109, 0.70710677
        %v6214 = vmul.f32 %v6112, 0.70710677
        %v6215 = vmul.f32 %v6114, 0.70710677
        %v6216 = vmul.f32 %v6117, 0.70710677
        %v6217 = vmul.f32 %v6119, 0.70710677
        %v6218 = vmul.f32 %v6122, 0.70710677
        %v6219 = vmul.f32 %v6124, 0.70710677
        %v6220 = vmul.f32 %v6127, 0.70710677
        %v6221 = vmul.f32 %v6129, 0.70710677
        %v6222 = vmul.f32 %v6132, 0.70710677
        %v6223 = vmul.f32 %v6134, 0.70710677
        %v6224 = vmul.f32 %v6137, 0.70710677
        %v6225 = vmul.f32 %v6139, 0.70710677
        %v6226 = vmul.f32 %v6142, 0.70710677
        %v6227 = vmul.f32 %v6144, 0.70710677
        %v6228 = vmul.f32 %v6147, 0.70710677
        %v6229 = vmul.f32 %v6149, 0.70710677
        %v6230 = vmul.f32 %v6152, 0.70710677
        %v6231 = vmul.f32 %v6154, 0.70710677
        %v6232 = vmul.f32 %v6157, 0.70710677
        %v6233 = vmul.f32 %v6159, 0.70710677
        %v6234 = vmul.f32 %v6162, 0.70710677
        %v6235 = vmul.f32 %v6164, 0.70710677
        %v6236 = vmul.f32 %v6167, 0.70710677
        %v6237 = vmul.f32 %v6169, 0.70710677
        %v6238 = vmul.f32 %v6172, 0.70710677
        %v6239 = vmul.f32 %v6174, 0.70710677
        %vm6240 = vcmp.lt.f32.partialorder %v6208, 0.0
        %vm6241 = vcmp.lt.f32.partialorder %v6209, 0.0
        %vm6242 = vcmp.lt.f32.partialorder %v6210, 0.0
        %vm6243 = vcmp.lt.f32.partialorder %v6211, 0.0
        %vm6244 = vcmp.lt.f32.partialorder %v6212, 0.0
        %vm6245 = vcmp.lt.f32.partialorder %v6213, 0.0
        %vm6246 = vcmp.lt.f32.partialorder %v6214, 0.0
        %vm6247 = vcmp.lt.f32.partialorder %v6215, 0.0
        %vm6248 = vcmp.lt.f32.partialorder %v6216, 0.0
        %vm6249 = vcmp.lt.f32.partialorder %v6217, 0.0
        %vm6250 = vcmp.lt.f32.partialorder %v6218, 0.0
        %vm6251 = vcmp.lt.f32.partialorder %v6219, 0.0
        %vm6252 = vcmp.lt.f32.partialorder %v6220, 0.0
        %vm6253 = vcmp.lt.f32.partialorder %v6221, 0.0
        %vm6254 = vcmp.lt.f32.partialorder %v6222, 0.0
        %vm6255 = vcmp.lt.f32.partialorder %v6223, 0.0
        %vm6256 = vcmp.lt.f32.partialorder %v6224, 0.0
        %vm6257 = vcmp.lt.f32.partialorder %v6225, 0.0
        %vm6258 = vcmp.lt.f32.partialorder %v6226, 0.0
        %vm6259 = vcmp.lt.f32.partialorder %v6227, 0.0
        %vm6260 = vcmp.lt.f32.partialorder %v6228, 0.0
        %vm6261 = vcmp.lt.f32.partialorder %v6229, 0.0
        %vm6262 = vcmp.lt.f32.partialorder %v6230, 0.0
        %vm6263 = vcmp.lt.f32.partialorder %v6231, 0.0
        %vm6264 = vcmp.lt.f32.partialorder %v6232, 0.0
        %vm6265 = vcmp.lt.f32.partialorder %v6233, 0.0
        %vm6266 = vcmp.lt.f32.partialorder %v6234, 0.0
        %vm6267 = vcmp.lt.f32.partialorder %v6235, 0.0
        %vm6268 = vcmp.lt.f32.partialorder %v6236, 0.0
        %vm6269 = vcmp.lt.f32.partialorder %v6237, 0.0
        %vm6270 = vcmp.lt.f32.partialorder %v6238, 0.0
        %vm6271 = vcmp.lt.f32.partialorder %v6239, 0.0
        %v6272 = vsel %vm6240, -1.0, 1.0
        %v6273 = vsel %vm6241, -1.0, 1.0
        %v6274 = vsel %vm6242, -1.0, 1.0
        %v6275 = vsel %vm6243, -1.0, 1.0
        %v6276 = vsel %vm6244, -1.0, 1.0
        %v6277 = vsel %vm6245, -1.0, 1.0
        %v6278 = vsel %vm6246, -1.0, 1.0
        %v6279 = vsel %vm6247, -1.0, 1.0
        %v6280 = vsel %vm6248, -1.0, 1.0
        %v6281 = vsel %vm6249, -1.0, 1.0
        %v6282 = vsel %vm6250, -1.0, 1.0
        %v6283 = vsel %vm6251, -1.0, 1.0
        %v6284 = vsel %vm6252, -1.0, 1.0
        %v6285 = vsel %vm6253, -1.0, 1.0
        %v6286 = vsel %vm6254, -1.0, 1.0
        %v6287 = vsel %vm6255, -1.0, 1.0
        %v6288 = vsel %vm6256, -1.0, 1.0
        %v6289 = vsel %vm6257, -1.0, 1.0
        %v6290 = vsel %vm6258, -1.0, 1.0
        %v6291 = vsel %vm6259, -1.0, 1.0
        %v6292 = vsel %vm6260, -1.0, 1.0
        %v6293 = vsel %vm6261, -1.0, 1.0
        %v6294 = vsel %vm6262, -1.0, 1.0
        %v6295 = vsel %vm6263, -1.0, 1.0
        %v6296 = vsel %vm6264, -1.0, 1.0
        %v6297 = vsel %vm6265, -1.0, 1.0
        %v6298 = vsel %vm6266, -1.0, 1.0
        %v6299 = vsel %vm6267, -1.0, 1.0
        %v6300 = vsel %vm6268, -1.0, 1.0
        %v6301 = vsel %vm6269, -1.0, 1.0
        %v6302 = vsel %vm6270, -1.0, 1.0
        %v6303 = vsel %vm6271, -1.0, 1.0
        %v6304 = vand.u32 2147483647, %v6208
        %v6305 = vand.u32 2147483647, %v6209
        %v6306 = vand.u32 2147483647, %v6210
        %v6307 = vand.u32 2147483647, %v6211
        %v6308 = vand.u32 2147483647, %v6212
        %v6309 = vand.u32 2147483647, %v6213
        %v6310 = vand.u32 2147483647, %v6214
        %v6311 = vand.u32 2147483647, %v6215
        %v6312 = vand.u32 2147483647, %v6216
        %v6313 = vand.u32 2147483647, %v6217
        %v6314 = vand.u32 2147483647, %v6218
        %v6315 = vand.u32 2147483647, %v6219
        %v6316 = vand.u32 2147483647, %v6220
        %v6317 = vand.u32 2147483647, %v6221
        %v6318 = vand.u32 2147483647, %v6222
        %v6319 = vand.u32 2147483647, %v6223
        %v6320 = vand.u32 2147483647, %v6224
        %v6321 = vand.u32 2147483647, %v6225
        %v6322 = vand.u32 2147483647, %v6226
        %v6323 = vand.u32 2147483647, %v6227
        %v6324 = vand.u32 2147483647, %v6228
        %v6325 = vand.u32 2147483647, %v6229
        %v6326 = vand.u32 2147483647, %v6230
        %v6327 = vand.u32 2147483647, %v6231
        %v6328 = vand.u32 2147483647, %v6232
        %v6329 = vand.u32 2147483647, %v6233
        %v6330 = vand.u32 2147483647, %v6234
        %v6331 = vand.u32 2147483647, %v6235
        %v6332 = vand.u32 2147483647, %v6236
        %v6333 = vand.u32 2147483647, %v6237
        %v6334 = vand.u32 2147483647, %v6238
        %v6335 = vand.u32 2147483647, %v6239
        %v6336 = vmul.f32 %v6304, 0.3275911
        %v6337 = vmul.f32 %v6305, 0.3275911
        %v6338 = vmul.f32 %v6306, 0.3275911
        %v6339 = vmul.f32 %v6307, 0.3275911
        %v6340 = vmul.f32 %v6308, 0.3275911
        %v6341 = vmul.f32 %v6309, 0.3275911
        %v6342 = vmul.f32 %v6310, 0.3275911
        %v6343 = vmul.f32 %v6311, 0.3275911
        %v6344 = vmul.f32 %v6312, 0.3275911
        %v6345 = vmul.f32 %v6313, 0.3275911
        %v6346 = vmul.f32 %v6314, 0.3275911
        %v6347 = vmul.f32 %v6315, 0.3275911
        %v6348 = vmul.f32 %v6316, 0.3275911
        %v6349 = vmul.f32 %v6317, 0.3275911
        %v6350 = vmul.f32 %v6318, 0.3275911
        %v6351 = vmul.f32 %v6319, 0.3275911
        %v6352 = vmul.f32 %v6320, 0.3275911
        %v6353 = vmul.f32 %v6321, 0.3275911
        %v6354 = vmul.f32 %v6322, 0.3275911
        %v6355 = vmul.f32 %v6323, 0.3275911
        %v6356 = vmul.f32 %v6324, 0.3275911
        %v6357 = vmul.f32 %v6325, 0.3275911
        %v6358 = vmul.f32 %v6326, 0.3275911
        %v6359 = vmul.f32 %v6327, 0.3275911
        %v6360 = vmul.f32 %v6328, 0.3275911
        %v6361 = vmul.f32 %v6329, 0.3275911
        %v6362 = vmul.f32 %v6330, 0.3275911
        %v6363 = vmul.f32 %v6331, 0.3275911
        %v6364 = vmul.f32 %v6332, 0.3275911
        %v6365 = vmul.f32 %v6333, 0.3275911
        %v6366 = vmul.f32 %v6334, 0.3275911
        %v6367 = vmul.f32 %v6335, 0.3275911
        %v6368 = vadd.f32 %v6336, 1.0
        %v6369 = vadd.f32 %v6337, 1.0
        %v6370 = vadd.f32 %v6338, 1.0
        %v6371 = vadd.f32 %v6339, 1.0
        %v6372 = vadd.f32 %v6340, 1.0
        %v6373 = vadd.f32 %v6341, 1.0
        %v6374 = vadd.f32 %v6342, 1.0
        %v6375 = vadd.f32 %v6343, 1.0
        %v6376 = vadd.f32 %v6344, 1.0
        %v6377 = vadd.f32 %v6345, 1.0
        %v6378 = vadd.f32 %v6346, 1.0
        %v6379 = vadd.f32 %v6347, 1.0
        %v6380 = vadd.f32 %v6348, 1.0
        %v6381 = vadd.f32 %v6349, 1.0
        %v6382 = vadd.f32 %v6350, 1.0
        %v6383 = vadd.f32 %v6351, 1.0
        %v6384 = vadd.f32 %v6352, 1.0
        %v6385 = vadd.f32 %v6353, 1.0
        %v6386 = vadd.f32 %v6354, 1.0
        %v6387 = vadd.f32 %v6355, 1.0
        %v6388 = vadd.f32 %v6356, 1.0
        %v6389 = vadd.f32 %v6357, 1.0
        %v6390 = vadd.f32 %v6358, 1.0
        %v6391 = vadd.f32 %v6359, 1.0
        %v6392 = vadd.f32 %v6360, 1.0
        %v6393 = vadd.f32 %v6361, 1.0
        %v6394 = vadd.f32 %v6362, 1.0
        %v6395 = vadd.f32 %v6363, 1.0
        %v6396 = vadd.f32 %v6364, 1.0
        %v6397 = vadd.f32 %v6365, 1.0
        %v6398 = vadd.f32 %v6366, 1.0
        %v6399 = vadd.f32 %v6367, 1.0
        %v6400 = vrcp.pop %v6368
        %v6401 = vrcp.pop %v6369
        %v6402 = vrcp.pop %v6370
        %v6403 = vrcp.pop %v6371
        %v6404 = vrcp.pop %v6372
        %v6405 = vrcp.pop %v6373
        %v6406 = vrcp.pop %v6374
        %v6407 = vrcp.pop %v6375
        %v6408 = vrcp.pop %v6376
        %v6409 = vrcp.pop %v6377
        %v6410 = vrcp.pop %v6378
        %v6411 = vrcp.pop %v6379
        %v6412 = vrcp.pop %v6380
        %v6413 = vrcp.pop %v6381
        %v6414 = vrcp.pop %v6382
        %v6415 = vrcp.pop %v6383
        %v6416 = vrcp.pop %v6384
        %v6417 = vrcp.pop %v6385
        %v6418 = vrcp.pop %v6386
        %v6419 = vrcp.pop %v6387
        %v6420 = vrcp.pop %v6388
        %v6421 = vrcp.pop %v6389
        %v6422 = vrcp.pop %v6390
        %v6423 = vrcp.pop %v6391
        %v6424 = vrcp.pop %v6392
        %v6425 = vrcp.pop %v6393
        %v6426 = vrcp.pop %v6394
        %v6427 = vrcp.pop %v6395
        %v6428 = vrcp.pop %v6396
        %v6429 = vrcp.pop %v6397
        %v6430 = vrcp.pop %v6398
        %v6431 = vrcp.pop %v6399
        %v6432 = vmul.f32 %v6400, 1.0614054
        %v6433 = vmul.f32 %v6401, 1.0614054
        %v6434 = vmul.f32 %v6402, 1.0614054
        %v6435 = vmul.f32 %v6403, 1.0614054
        %v6436 = vmul.f32 %v6404, 1.0614054
        %v6437 = vmul.f32 %v6405, 1.0614054
        %v6438 = vmul.f32 %v6406, 1.0614054
        %v6439 = vmul.f32 %v6407, 1.0614054
        %v6440 = vmul.f32 %v6408, 1.0614054
        %v6441 = vmul.f32 %v6409, 1.0614054
        %v6442 = vmul.f32 %v6410, 1.0614054
        %v6443 = vmul.f32 %v6411, 1.0614054
        %v6444 = vmul.f32 %v6412, 1.0614054
        %v6445 = vmul.f32 %v6413, 1.0614054
        %v6446 = vmul.f32 %v6414, 1.0614054
        %v6447 = vmul.f32 %v6415, 1.0614054
        %v6448 = vmul.f32 %v6416, 1.0614054
        %v6449 = vmul.f32 %v6417, 1.0614054
        %v6450 = vmul.f32 %v6418, 1.0614054
        %v6451 = vmul.f32 %v6419, 1.0614054
        %v6452 = vmul.f32 %v6420, 1.0614054
        %v6453 = vmul.f32 %v6421, 1.0614054
        %v6454 = vmul.f32 %v6422, 1.0614054
        %v6455 = vmul.f32 %v6423, 1.0614054
        %v6456 = vmul.f32 %v6424, 1.0614054
        %v6457 = vmul.f32 %v6425, 1.0614054
        %v6458 = vmul.f32 %v6426, 1.0614054
        %v6459 = vmul.f32 %v6427, 1.0614054
        %v6460 = vmul.f32 %v6428, 1.0614054
        %v6461 = vmul.f32 %v6429, 1.0614054
        %v6462 = vmul.f32 %v6430, 1.0614054
        %v6463 = vmul.f32 %v6431, 1.0614054
        %v6464 = vadd.f32 %v6432, -1.4531521
        %v6465 = vadd.f32 %v6433, -1.4531521
        %v6466 = vadd.f32 %v6434, -1.4531521
        %v6467 = vadd.f32 %v6435, -1.4531521
        %v6468 = vadd.f32 %v6436, -1.4531521
        %v6469 = vadd.f32 %v6437, -1.4531521
        %v6470 = vadd.f32 %v6438, -1.4531521
        %v6471 = vadd.f32 %v6439, -1.4531521
        %v6472 = vadd.f32 %v6440, -1.4531521
        %v6473 = vadd.f32 %v6441, -1.4531521
        %v6474 = vadd.f32 %v6442, -1.4531521
        %v6475 = vadd.f32 %v6443, -1.4531521
        %v6476 = vadd.f32 %v6444, -1.4531521
        %v6477 = vadd.f32 %v6445, -1.4531521
        %v6478 = vadd.f32 %v6446, -1.4531521
        %v6479 = vadd.f32 %v6447, -1.4531521
        %v6480 = vadd.f32 %v6448, -1.4531521
        %v6481 = vadd.f32 %v6449, -1.4531521
        %v6482 = vadd.f32 %v6450, -1.4531521
        %v6483 = vadd.f32 %v6451, -1.4531521
        %v6484 = vadd.f32 %v6452, -1.4531521
        %v6485 = vadd.f32 %v6453, -1.4531521
        %v6486 = vadd.f32 %v6454, -1.4531521
        %v6487 = vadd.f32 %v6455, -1.4531521
        %v6488 = vadd.f32 %v6456, -1.4531521
        %v6489 = vadd.f32 %v6457, -1.4531521
        %v6490 = vadd.f32 %v6458, -1.4531521
        %v6491 = vadd.f32 %v6459, -1.4531521
        %v6492 = vadd.f32 %v6460, -1.4531521
        %v6493 = vadd.f32 %v6461, -1.4531521
        %v6494 = vadd.f32 %v6462, -1.4531521
        %v6495 = vadd.f32 %v6463, -1.4531521
        %v6496 = vmul.f32 %v6464, %v6400
        %v6497 = vmul.f32 %v6465, %v6401
        %v6498 = vmul.f32 %v6466, %v6402
        %v6499 = vmul.f32 %v6467, %v6403
        %v6500 = vmul.f32 %v6468, %v6404
        %v6501 = vmul.f32 %v6469, %v6405
        %v6502 = vmul.f32 %v6470, %v6406
        %v6503 = vmul.f32 %v6471, %v6407
        %v6504 = vmul.f32 %v6472, %v6408
        %v6505 = vmul.f32 %v6473, %v6409
        %v6506 = vmul.f32 %v6474, %v6410
        %v6507 = vmul.f32 %v6475, %v6411
        %v6508 = vmul.f32 %v6476, %v6412
        %v6509 = vmul.f32 %v6477, %v6413
        %v6510 = vmul.f32 %v6478, %v6414
        %v6511 = vmul.f32 %v6479, %v6415
        %v6512 = vmul.f32 %v6480, %v6416
        %v6513 = vmul.f32 %v6481, %v6417
        %v6514 = vmul.f32 %v6482, %v6418
        %v6515 = vmul.f32 %v6483, %v6419
        %v6516 = vmul.f32 %v6484, %v6420
        %v6517 = vmul.f32 %v6485, %v6421
        %v6518 = vmul.f32 %v6486, %v6422
        %v6519 = vmul.f32 %v6487, %v6423
        %v6520 = vmul.f32 %v6488, %v6424
        %v6521 = vmul.f32 %v6489, %v6425
        %v6522 = vmul.f32 %v6490, %v6426
        %v6523 = vmul.f32 %v6491, %v6427
        %v6524 = vmul.f32 %v6492, %v6428
        %v6525 = vmul.f32 %v6493, %v6429
        %v6526 = vmul.f32 %v6494, %v6430
        %v6527 = vmul.f32 %v6495, %v6431
        %v6528 = vadd.f32 %v6496, 1.4214138
        %v6529 = vadd.f32 %v6497, 1.4214138
        %v6530 = vadd.f32 %v6498, 1.4214138
        %v6531 = vadd.f32 %v6499, 1.4214138
        %v6532 = vadd.f32 %v6500, 1.4214138
        %v6533 = vadd.f32 %v6501, 1.4214138
        %v6534 = vadd.f32 %v6502, 1.4214138
        %v6535 = vadd.f32 %v6503, 1.4214138
        %v6536 = vadd.f32 %v6504, 1.4214138
        %v6537 = vadd.f32 %v6505, 1.4214138
        %v6538 = vadd.f32 %v6506, 1.4214138
        %v6539 = vadd.f32 %v6507, 1.4214138
        %v6540 = vadd.f32 %v6508, 1.4214138
        %v6541 = vadd.f32 %v6509, 1.4214138
        %v6542 = vadd.f32 %v6510, 1.4214138
        %v6543 = vadd.f32 %v6511, 1.4214138
        %v6544 = vadd.f32 %v6512, 1.4214138
        %v6545 = vadd.f32 %v6513, 1.4214138
        %v6546 = vadd.f32 %v6514, 1.4214138
        %v6547 = vadd.f32 %v6515, 1.4214138
        %v6548 = vadd.f32 %v6516, 1.4214138
        %v6549 = vadd.f32 %v6517, 1.4214138
        %v6550 = vadd.f32 %v6518, 1.4214138
        %v6551 = vadd.f32 %v6519, 1.4214138
        %v6552 = vadd.f32 %v6520, 1.4214138
        %v6553 = vadd.f32 %v6521, 1.4214138
        %v6554 = vadd.f32 %v6522, 1.4214138
        %v6555 = vadd.f32 %v6523, 1.4214138
        %v6556 = vadd.f32 %v6524, 1.4214138
        %v6557 = vadd.f32 %v6525, 1.4214138
        %v6558 = vadd.f32 %v6526, 1.4214138
        %v6559 = vadd.f32 %v6527, 1.4214138
        %v6560 = vmul.f32 %v6528, %v6400
        %v6561 = vmul.f32 %v6529, %v6401
        %v6562 = vmul.f32 %v6530, %v6402
        %v6563 = vmul.f32 %v6531, %v6403
        %v6564 = vmul.f32 %v6532, %v6404
        %v6565 = vmul.f32 %v6533, %v6405
        %v6566 = vmul.f32 %v6534, %v6406
        %v6567 = vmul.f32 %v6535, %v6407
        %v6568 = vmul.f32 %v6536, %v6408
        %v6569 = vmul.f32 %v6537, %v6409
        %v6570 = vmul.f32 %v6538, %v6410
        %v6571 = vmul.f32 %v6539, %v6411
        %v6572 = vmul.f32 %v6540, %v6412
        %v6573 = vmul.f32 %v6541, %v6413
        %v6574 = vmul.f32 %v6542, %v6414
        %v6575 = vmul.f32 %v6543, %v6415
        %v6576 = vmul.f32 %v6544, %v6416
        %v6577 = vmul.f32 %v6545, %v6417
        %v6578 = vmul.f32 %v6546, %v6418
        %v6579 = vmul.f32 %v6547, %v6419
        %v6580 = vmul.f32 %v6548, %v6420
        %v6581 = vmul.f32 %v6549, %v6421
        %v6582 = vmul.f32 %v6550, %v6422
        %v6583 = vmul.f32 %v6551, %v6423
        %v6584 = vmul.f32 %v6552, %v6424
        %v6585 = vmul.f32 %v6553, %v6425
        %v6586 = vmul.f32 %v6554, %v6426
        %v6587 = vmul.f32 %v6555, %v6427
        %v6588 = vmul.f32 %v6556, %v6428
        %v6589 = vmul.f32 %v6557, %v6429
        %v6590 = vmul.f32 %v6558, %v6430
        %v6591 = vmul.f32 %v6559, %v6431
        %v6592 = vadd.f32 %v6560, -0.28449672
        %v6593 = vadd.f32 %v6561, -0.28449672
        %v6594 = vadd.f32 %v6562, -0.28449672
        %v6595 = vadd.f32 %v6563, -0.28449672
        %v6596 = vadd.f32 %v6564, -0.28449672
        %v6597 = vadd.f32 %v6565, -0.28449672
        %v6598 = vadd.f32 %v6566, -0.28449672
        %v6599 = vadd.f32 %v6567, -0.28449672
        %v6600 = vadd.f32 %v6568, -0.28449672
        %v6601 = vadd.f32 %v6569, -0.28449672
        %v6602 = vadd.f32 %v6570, -0.28449672
        %v6603 = vadd.f32 %v6571, -0.28449672
        %v6604 = vadd.f32 %v6572, -0.28449672
        %v6605 = vadd.f32 %v6573, -0.28449672
        %v6606 = vadd.f32 %v6574, -0.28449672
        %v6607 = vadd.f32 %v6575, -0.28449672
        %v6608 = vadd.f32 %v6576, -0.28449672
        %v6609 = vadd.f32 %v6577, -0.28449672
        %v6610 = vadd.f32 %v6578, -0.28449672
        %v6611 = vadd.f32 %v6579, -0.28449672
        %v6612 = vadd.f32 %v6580, -0.28449672
        %v6613 = vadd.f32 %v6581, -0.28449672
        %v6614 = vadd.f32 %v6582, -0.28449672
        %v6615 = vadd.f32 %v6583, -0.28449672
        %v6616 = vadd.f32 %v6584, -0.28449672
        %v6617 = vadd.f32 %v6585, -0.28449672
        %v6618 = vadd.f32 %v6586, -0.28449672
        %v6619 = vadd.f32 %v6587, -0.28449672
        %v6620 = vadd.f32 %v6588, -0.28449672
        %v6621 = vadd.f32 %v6589, -0.28449672
        %v6622 = vadd.f32 %v6590, -0.28449672
        %v6623 = vadd.f32 %v6591, -0.28449672
        %v6624 = vmul.f32 %v6592, %v6400
        %v6625 = vmul.f32 %v6593, %v6401
        %v6626 = vmul.f32 %v6594, %v6402
        %v6627 = vmul.f32 %v6595, %v6403
        %v6628 = vmul.f32 %v6596, %v6404
        %v6629 = vmul.f32 %v6597, %v6405
        %v6630 = vmul.f32 %v6598, %v6406
        %v6631 = vmul.f32 %v6599, %v6407
        %v6632 = vmul.f32 %v6600, %v6408
        %v6633 = vmul.f32 %v6601, %v6409
        %v6634 = vmul.f32 %v6602, %v6410
        %v6635 = vmul.f32 %v6603, %v6411
        %v6636 = vmul.f32 %v6604, %v6412
        %v6637 = vmul.f32 %v6605, %v6413
        %v6638 = vmul.f32 %v6606, %v6414
        %v6639 = vmul.f32 %v6607, %v6415
        %v6640 = vmul.f32 %v6608, %v6416
        %v6641 = vmul.f32 %v6609, %v6417
        %v6642 = vmul.f32 %v6610, %v6418
        %v6643 = vmul.f32 %v6611, %v6419
        %v6644 = vmul.f32 %v6612, %v6420
        %v6645 = vmul.f32 %v6613, %v6421
        %v6646 = vmul.f32 %v6614, %v6422
        %v6647 = vmul.f32 %v6615, %v6423
        %v6648 = vmul.f32 %v6616, %v6424
        %v6649 = vmul.f32 %v6617, %v6425
        %v6650 = vmul.f32 %v6618, %v6426
        %v6651 = vmul.f32 %v6619, %v6427
        %v6652 = vmul.f32 %v6620, %v6428
        %v6653 = vmul.f32 %v6621, %v6429
        %v6654 = vmul.f32 %v6622, %v6430
        %v6655 = vmul.f32 %v6623, %v6431
        %v6656 = vadd.f32 %v6624, 0.2548296
        %v6657 = vadd.f32 %v6625, 0.2548296
        %v6658 = vadd.f32 %v6626, 0.2548296
        %v6659 = vadd.f32 %v6627, 0.2548296
        %v6660 = vadd.f32 %v6628, 0.2548296
        %v6661 = vadd.f32 %v6629, 0.2548296
        %v6662 = vadd.f32 %v6630, 0.2548296
        %v6663 = vadd.f32 %v6631, 0.2548296
        %v6664 = vadd.f32 %v6632, 0.2548296
        %v6665 = vadd.f32 %v6633, 0.2548296
        %v6666 = vadd.f32 %v6634, 0.2548296
        %v6667 = vadd.f32 %v6635, 0.2548296
        %v6668 = vadd.f32 %v6636, 0.2548296
        %v6669 = vadd.f32 %v6637, 0.2548296
        %v6670 = vadd.f32 %v6638, 0.2548296
        %v6671 = vadd.f32 %v6639, 0.2548296
        %v6672 = vadd.f32 %v6640, 0.2548296
        %v6673 = vadd.f32 %v6641, 0.2548296
        %v6674 = vadd.f32 %v6642, 0.2548296
        %v6675 = vadd.f32 %v6643, 0.2548296
        %v6676 = vadd.f32 %v6644, 0.2548296
        %v6677 = vadd.f32 %v6645, 0.2548296
        %v6678 = vadd.f32 %v6646, 0.2548296
        %v6679 = vadd.f32 %v6647, 0.2548296
        %v6680 = vadd.f32 %v6648, 0.2548296
        %v6681 = vadd.f32 %v6649, 0.2548296
        %v6682 = vadd.f32 %v6650, 0.2548296
        %v6683 = vadd.f32 %v6651, 0.2548296
        %v6684 = vadd.f32 %v6652, 0.2548296
        %v6685 = vadd.f32 %v6653, 0.2548296
        %v6686 = vadd.f32 %v6654, 0.2548296
        %v6687 = vadd.f32 %v6655, 0.2548296
        %v6688 = vmul.f32 %v6656, %v6400
        %v6689 = vmul.f32 %v6657, %v6401
        %v6690 = vmul.f32 %v6658, %v6402
        %v6691 = vmul.f32 %v6659, %v6403
        %v6692 = vmul.f32 %v6660, %v6404
        %v6693 = vmul.f32 %v6661, %v6405
        %v6694 = vmul.f32 %v6662, %v6406
        %v6695 = vmul.f32 %v6663, %v6407
        %v6696 = vmul.f32 %v6664, %v6408
        %v6697 = vmul.f32 %v6665, %v6409
        %v6698 = vmul.f32 %v6666, %v6410
        %v6699 = vmul.f32 %v6667, %v6411
        %v6700 = vmul.f32 %v6668, %v6412
        %v6701 = vmul.f32 %v6669, %v6413
        %v6702 = vmul.f32 %v6670, %v6414
        %v6703 = vmul.f32 %v6671, %v6415
        %v6704 = vmul.f32 %v6672, %v6416
        %v6705 = vmul.f32 %v6673, %v6417
        %v6706 = vmul.f32 %v6674, %v6418
        %v6707 = vmul.f32 %v6675, %v6419
        %v6708 = vmul.f32 %v6676, %v6420
        %v6709 = vmul.f32 %v6677, %v6421
        %v6710 = vmul.f32 %v6678, %v6422
        %v6711 = vmul.f32 %v6679, %v6423
        %v6712 = vmul.f32 %v6680, %v6424
        %v6713 = vmul.f32 %v6681, %v6425
        %v6714 = vmul.f32 %v6682, %v6426
        %v6715 = vmul.f32 %v6683, %v6427
        %v6716 = vmul.f32 %v6684, %v6428
        %v6717 = vmul.f32 %v6685, %v6429
        %v6718 = vmul.f32 %v6686, %v6430
        %v6719 = vmul.f32 %v6687, %v6431
        %v6720 = vsub.f32 0.0, %v6304
        %v6721 = vsub.f32 0.0, %v6305
        %v6722 = vsub.f32 0.0, %v6306
        %v6723 = vsub.f32 0.0, %v6307
        %v6724 = vsub.f32 0.0, %v6308
        %v6725 = vsub.f32 0.0, %v6309
        %v6726 = vsub.f32 0.0, %v6310
        %v6727 = vsub.f32 0.0, %v6311
        %v6728 = vsub.f32 0.0, %v6312
        %v6729 = vsub.f32 0.0, %v6313
        %v6730 = vsub.f32 0.0, %v6314
        %v6731 = vsub.f32 0.0, %v6315
        %v6732 = vsub.f32 0.0, %v6316
        %v6733 = vsub.f32 0.0, %v6317
        %v6734 = vsub.f32 0.0, %v6318
        %v6735 = vsub.f32 0.0, %v6319
        %v6736 = vsub.f32 0.0, %v6320
        %v6737 = vsub.f32 0.0, %v6321
        %v6738 = vsub.f32 0.0, %v6322
        %v6739 = vsub.f32 0.0, %v6323
        %v6740 = vsub.f32 0.0, %v6324
        %v6741 = vsub.f32 0.0, %v6325
        %v6742 = vsub.f32 0.0, %v6326
        %v6743 = vsub.f32 0.0, %v6327
        %v6744 = vsub.f32 0.0, %v6328
        %v6745 = vsub.f32 0.0, %v6329
        %v6746 = vsub.f32 0.0, %v6330
        %v6747 = vsub.f32 0.0, %v6331
        %v6748 = vsub.f32 0.0, %v6332
        %v6749 = vsub.f32 0.0, %v6333
        %v6750 = vsub.f32 0.0, %v6334
        %v6751 = vsub.f32 0.0, %v6335
        %v6752 = vmul.f32 %v6720, %v6304
        %v6753 = vmul.f32 %v6721, %v6305
        %v6754 = vmul.f32 %v6722, %v6306
        %v6755 = vmul.f32 %v6723, %v6307
        %v6756 = vmul.f32 %v6724, %v6308
        %v6757 = vmul.f32 %v6725, %v6309
        %v6758 = vmul.f32 %v6726, %v6310
        %v6759 = vmul.f32 %v6727, %v6311
        %v6760 = vmul.f32 %v6728, %v6312
        %v6761 = vmul.f32 %v6729, %v6313
        %v6762 = vmul.f32 %v6730, %v6314
        %v6763 = vmul.f32 %v6731, %v6315
        %v6764 = vmul.f32 %v6732, %v6316
        %v6765 = vmul.f32 %v6733, %v6317
        %v6766 = vmul.f32 %v6734, %v6318
        %v6767 = vmul.f32 %v6735, %v6319
        %v6768 = vmul.f32 %v6736, %v6320
        %v6769 = vmul.f32 %v6737, %v6321
        %v6770 = vmul.f32 %v6738, %v6322
        %v6771 = vmul.f32 %v6739, %v6323
        %v6772 = vmul.f32 %v6740, %v6324
        %v6773 = vmul.f32 %v6741, %v6325
        %v6774 = vmul.f32 %v6742, %v6326
        %v6775 = vmul.f32 %v6743, %v6327
        %v6776 = vmul.f32 %v6744, %v6328
        %v6777 = vmul.f32 %v6745, %v6329
        %v6778 = vmul.f32 %v6746, %v6330
        %v6779 = vmul.f32 %v6747, %v6331
        %v6780 = vmul.f32 %v6748, %v6332
        %v6781 = vmul.f32 %v6749, %v6333
        %v6782 = vmul.f32 %v6750, %v6334
        %v6783 = vmul.f32 %v6751, %v6335
        %v6784 = vmul.f32 %v6752, 1.442695
        %v6785 = vpow.pop %v6784
        %v6786 = vmul.f32 %v6753, 1.442695
        %v6787 = vpow.pop %v6786
        %v6788 = vmul.f32 %v6754, 1.442695
        %v6789 = vpow.pop %v6788
        %v6790 = vmul.f32 %v6755, 1.442695
        %v6791 = vpow.pop %v6790
        %v6792 = vmul.f32 %v6756, 1.442695
        %v6793 = vpow.pop %v6792
        %v6794 = vmul.f32 %v6757, 1.442695
        %v6795 = vpow.pop %v6794
        %v6796 = vmul.f32 %v6758, 1.442695
        %v6797 = vpow.pop %v6796
        %v6798 = vmul.f32 %v6759, 1.442695
        %v6799 = vpow.pop %v6798
        %v6800 = vmul.f32 %v6760, 1.442695
        %v6801 = vpow.pop %v6800
        %v6802 = vmul.f32 %v6761, 1.442695
        %v6803 = vpow.pop %v6802
        %v6804 = vmul.f32 %v6762, 1.442695
        %v6805 = vpow.pop %v6804
        %v6806 = vmul.f32 %v6763, 1.442695
        %v6807 = vpow.pop %v6806
        %v6808 = vmul.f32 %v6764, 1.442695
        %v6809 = vpow.pop %v6808
        %v6810 = vmul.f32 %v6765, 1.442695
        %v6811 = vpow.pop %v6810
        %v6812 = vmul.f32 %v6766, 1.442695
        %v6813 = vpow.pop %v6812
        %v6814 = vmul.f32 %v6767, 1.442695
        %v6815 = vpow.pop %v6814
        %v6816 = vmul.f32 %v6768, 1.442695
        %v6817 = vpow.pop %v6816
        %v6818 = vmul.f32 %v6769, 1.442695
        %v6819 = vpow.pop %v6818
        %v6820 = vmul.f32 %v6770, 1.442695
        %v6821 = vpow.pop %v6820
        %v6822 = vmul.f32 %v6771, 1.442695
        %v6823 = vpow.pop %v6822
        %v6824 = vmul.f32 %v6772, 1.442695
        %v6825 = vpow.pop %v6824
        %v6826 = vmul.f32 %v6773, 1.442695
        %v6827 = vpow.pop %v6826
        %v6828 = vmul.f32 %v6774, 1.442695
        %v6829 = vpow.pop %v6828
        %v6830 = vmul.f32 %v6775, 1.442695
        %v6831 = vpow.pop %v6830
        %v6832 = vmul.f32 %v6776, 1.442695
        %v6833 = vpow.pop %v6832
        %v6834 = vmul.f32 %v6777, 1.442695
        %v6835 = vpow.pop %v6834
        %v6836 = vmul.f32 %v6778, 1.442695
        %v6837 = vpow.pop %v6836
        %v6838 = vmul.f32 %v6779, 1.442695
        %v6839 = vpow.pop %v6838
        %v6840 = vmul.f32 %v6780, 1.442695
        %v6841 = vpow.pop %v6840
        %v6842 = vmul.f32 %v6781, 1.442695
        %v6843 = vpow.pop %v6842
        %v6844 = vmul.f32 %v6782, 1.442695
        %v6845 = vpow.pop %v6844
        %v6846 = vmul.f32 %v6783, 1.442695
        %v6847 = vpow.pop %v6846
        %v6848 = vmul.f32 %v6688, %v6785
        %v6849 = vmul.f32 %v6689, %v6787
        %v6850 = vmul.f32 %v6690, %v6789
        %v6851 = vmul.f32 %v6691, %v6791
        %v6852 = vmul.f32 %v6692, %v6793
        %v6853 = vmul.f32 %v6693, %v6795
        %v6854 = vmul.f32 %v6694, %v6797
        %v6855 = vmul.f32 %v6695, %v6799
        %v6856 = vmul.f32 %v6696, %v6801
        %v6857 = vmul.f32 %v6697, %v6803
        %v6858 = vmul.f32 %v6698, %v6805
        %v6859 = vmul.f32 %v6699, %v6807
        %v6860 = vmul.f32 %v6700, %v6809
        %v6861 = vmul.f32 %v6701, %v6811
        %v6862 = vmul.f32 %v6702, %v6813
        %v6863 = vmul.f32 %v6703, %v6815
        %v6864 = vmul.f32 %v6704, %v6817
        %v6865 = vmul.f32 %v6705, %v6819
        %v6866 = vmul.f32 %v6706, %v6821
        %v6867 = vmul.f32 %v6707, %v6823
        %v6868 = vmul.f32 %v6708, %v6825
        %v6869 = vmul.f32 %v6709, %v6827
        %v6870 = vmul.f32 %v6710, %v6829
        %v6871 = vmul.f32 %v6711, %v6831
        %v6872 = vmul.f32 %v6712, %v6833
        %v6873 = vmul.f32 %v6713, %v6835
        %v6874 = vmul.f32 %v6714, %v6837
        %v6875 = vmul.f32 %v6715, %v6839
        %v6876 = vmul.f32 %v6716, %v6841
        %v6877 = vmul.f32 %v6717, %v6843
        %v6878 = vmul.f32 %v6718, %v6845
        %v6879 = vmul.f32 %v6719, %v6847
        %v6880 = vsub.f32 1.0, %v6848
        %v6881 = vsub.f32 1.0, %v6849
        %v6882 = vsub.f32 1.0, %v6850
        %v6883 = vsub.f32 1.0, %v6851
        %v6884 = vsub.f32 1.0, %v6852
        %v6885 = vsub.f32 1.0, %v6853
        %v6886 = vsub.f32 1.0, %v6854
        %v6887 = vsub.f32 1.0, %v6855
        %v6888 = vsub.f32 1.0, %v6856
        %v6889 = vsub.f32 1.0, %v6857
        %v6890 = vsub.f32 1.0, %v6858
        %v6891 = vsub.f32 1.0, %v6859
        %v6892 = vsub.f32 1.0, %v6860
        %v6893 = vsub.f32 1.0, %v6861
        %v6894 = vsub.f32 1.0, %v6862
        %v6895 = vsub.f32 1.0, %v6863
        %v6896 = vsub.f32 1.0, %v6864
        %v6897 = vsub.f32 1.0, %v6865
        %v6898 = vsub.f32 1.0, %v6866
        %v6899 = vsub.f32 1.0, %v6867
        %v6900 = vsub.f32 1.0, %v6868
        %v6901 = vsub.f32 1.0, %v6869
        %v6902 = vsub.f32 1.0, %v6870
        %v6903 = vsub.f32 1.0, %v6871
        %v6904 = vsub.f32 1.0, %v6872
        %v6905 = vsub.f32 1.0, %v6873
        %v6906 = vsub.f32 1.0, %v6874
        %v6907 = vsub.f32 1.0, %v6875
        %v6908 = vsub.f32 1.0, %v6876
        %v6909 = vsub.f32 1.0, %v6877
        %v6910 = vsub.f32 1.0, %v6878
        %v6911 = vsub.f32 1.0, %v6879
        %v6912 = vmul.f32 %v6272, %v6880
        %v6913 = vmul.f32 %v6273, %v6881
        %v6914 = vmul.f32 %v6274, %v6882
        %v6915 = vmul.f32 %v6275, %v6883
        %v6916 = vmul.f32 %v6276, %v6884
        %v6917 = vmul.f32 %v6277, %v6885
        %v6918 = vmul.f32 %v6278, %v6886
        %v6919 = vmul.f32 %v6279, %v6887
        %v6920 = vmul.f32 %v6280, %v6888
        %v6921 = vmul.f32 %v6281, %v6889
        %v6922 = vmul.f32 %v6282, %v6890
        %v6923 = vmul.f32 %v6283, %v6891
        %v6924 = vmul.f32 %v6284, %v6892
        %v6925 = vmul.f32 %v6285, %v6893
        %v6926 = vmul.f32 %v6286, %v6894
        %v6927 = vmul.f32 %v6287, %v6895
        %v6928 = vmul.f32 %v6288, %v6896
        %v6929 = vmul.f32 %v6289, %v6897
        %v6930 = vmul.f32 %v6290, %v6898
        %v6931 = vmul.f32 %v6291, %v6899
        %v6932 = vmul.f32 %v6292, %v6900
        %v6933 = vmul.f32 %v6293, %v6901
        %v6934 = vmul.f32 %v6294, %v6902
        %v6935 = vmul.f32 %v6295, %v6903
        %v6936 = vmul.f32 %v6296, %v6904
        %v6937 = vmul.f32 %v6297, %v6905
        %v6938 = vmul.f32 %v6298, %v6906
        %v6939 = vmul.f32 %v6299, %v6907
        %v6940 = vmul.f32 %v6300, %v6908
        %v6941 = vmul.f32 %v6301, %v6909
        %v6942 = vmul.f32 %v6302, %v6910
        %v6943 = vmul.f32 %v6303, %v6911
        %v6944 = vadd.f32 %v6912, 1.0
        %v6945 = vadd.f32 %v6913, 1.0
        %v6946 = vadd.f32 %v6914, 1.0
        %v6947 = vadd.f32 %v6915, 1.0
        %v6948 = vadd.f32 %v6916, 1.0
        %v6949 = vadd.f32 %v6917, 1.0
        %v6950 = vadd.f32 %v6918, 1.0
        %v6951 = vadd.f32 %v6919, 1.0
        %v6952 = vadd.f32 %v6920, 1.0
        %v6953 = vadd.f32 %v6921, 1.0
        %v6954 = vadd.f32 %v6922, 1.0
        %v6955 = vadd.f32 %v6923, 1.0
        %v6956 = vadd.f32 %v6924, 1.0
        %v6957 = vadd.f32 %v6925, 1.0
        %v6958 = vadd.f32 %v6926, 1.0
        %v6959 = vadd.f32 %v6927, 1.0
        %v6960 = vadd.f32 %v6928, 1.0
        %v6961 = vadd.f32 %v6929, 1.0
        %v6962 = vadd.f32 %v6930, 1.0
        %v6963 = vadd.f32 %v6931, 1.0
        %v6964 = vadd.f32 %v6932, 1.0
        %v6965 = vadd.f32 %v6933, 1.0
        %v6966 = vadd.f32 %v6934, 1.0
        %v6967 = vadd.f32 %v6935, 1.0
        %v6968 = vadd.f32 %v6936, 1.0
        %v6969 = vadd.f32 %v6937, 1.0
        %v6970 = vadd.f32 %v6938, 1.0
        %v6971 = vadd.f32 %v6939, 1.0
        %v6972 = vadd.f32 %v6940, 1.0
        %v6973 = vadd.f32 %v6941, 1.0
        %v6974 = vadd.f32 %v6942, 1.0
        %v6975 = vadd.f32 %v6943, 1.0
        %v6976 = vmul.f32 %v6176, %v6944
        %v6977 = vmul.f32 %v6177, %v6945
        %v6978 = vmul.f32 %v6178, %v6946
        %v6979 = vmul.f32 %v6179, %v6947
        %v6980 = vmul.f32 %v6180, %v6948
        %v6981 = vmul.f32 %v6181, %v6949
        %v6982 = vmul.f32 %v6182, %v6950
        %v6983 = vmul.f32 %v6183, %v6951
        %v6984 = vmul.f32 %v6184, %v6952
        %v6985 = vmul.f32 %v6185, %v6953
        %v6986 = vmul.f32 %v6186, %v6954
        %v6987 = vmul.f32 %v6187, %v6955
        %v6988 = vmul.f32 %v6188, %v6956
        %v6989 = vmul.f32 %v6189, %v6957
        %v6990 = vmul.f32 %v6190, %v6958
        %v6991 = vmul.f32 %v6191, %v6959
        %v6992 = vmul.f32 %v6192, %v6960
        %v6993 = vmul.f32 %v6193, %v6961
        %v6994 = vmul.f32 %v6194, %v6962
        %v6995 = vmul.f32 %v6195, %v6963
        %v6996 = vmul.f32 %v6196, %v6964
        %v6997 = vmul.f32 %v6197, %v6965
        %v6998 = vmul.f32 %v6198, %v6966
        %v6999 = vmul.f32 %v6199, %v6967
        %v7000 = vmul.f32 %v6200, %v6968
        %v7001 = vmul.f32 %v6201, %v6969
        %v7002 = vmul.f32 %v6202, %v6970
        %v7003 = vmul.f32 %v6203, %v6971
        %v7004 = vmul.f32 %v6204, %v6972
        %v7005 = vmul.f32 %v6205, %v6973
        %v7006 = vmul.f32 %v6206, %v6974
        %v7007 = vmul.f32 %v6207, %v6975
        %v7008 = vpack.c.bf16 %v6977, %v6976
        %v7009 = vpack.c.bf16 %v6979, %v6978
        %v7010 = vpack.c.bf16 %v6981, %v6980
        %v7011 = vpack.c.bf16 %v6983, %v6982
        %v7012 = vpack.c.bf16 %v6985, %v6984
        %v7013 = vpack.c.bf16 %v6987, %v6986
        %v7014 = vpack.c.bf16 %v6989, %v6988
        %v7015 = vpack.c.bf16 %v6991, %v6990
        %v7016 = vpack.c.bf16 %v6993, %v6992
        %v7017 = vpack.c.bf16 %v6995, %v6994
        %v7018 = vpack.c.bf16 %v6997, %v6996
        %v7019 = vpack.c.bf16 %v6999, %v6998
        %v7020 = vpack.c.bf16 %v7001, %v7000
        %v7021 = vpack.c.bf16 %v7003, %v7002
        %v7022 = vpack.c.bf16 %v7005, %v7004
        %v7023 = vpack.c.bf16 %v7007, %v7006
        %v7024 = vld [vmem:[#allocation11] sm:$0xf]
        %v7025 = vld [vmem:[#allocation11 + $0x4] sm:$0xf]
        %v7026 = vld [vmem:[#allocation11 + $0x8] sm:$0xf]
        %v7027 = vld [vmem:[#allocation11 + $0xc] sm:$0xf]
        %v7028 = vld [vmem:[#allocation11 + $0x10] sm:$0xf]
        %v7029 = vld [vmem:[#allocation11 + $0x14] sm:$0xf]
        %v7030 = vld [vmem:[#allocation11 + $0x18] sm:$0xf]
        %v7031 = vld [vmem:[#allocation11 + $0x1c] sm:$0xf]
        %v7032 = vld [vmem:[#allocation11 + $0x20] sm:$0xf]
        %v7033 = vld [vmem:[#allocation11 + $0x24] sm:$0xf]
        %v7034 = vld [vmem:[#allocation11 + $0x28] sm:$0xf]
        %v7035 = vld [vmem:[#allocation11 + $0x2c] sm:$0xf]
        %v7036 = vld [vmem:[#allocation11 + $0x30] sm:$0xf]
        %v7037 = vld [vmem:[#allocation11 + $0x34] sm:$0xf]
        %v7038 = vld [vmem:[#allocation11 + $0x38] sm:$0xf]
        %v7039 = vld [vmem:[#allocation11 + $0x3c] sm:$0xf]
        %v7040 = vld [vmem:[#allocation8 + $0x3] sm:$0x1]
        %v7041 = vperm.slane %v7040, 0
        %v7058 = vunpack.c.l.b16 %v7024
        %v7059 = vunpack.c.l.b16 %v7025
        %v7060 = vunpack.c.l.b16 %v7026
        %v7061 = vunpack.c.l.b16 %v7027
        %v7062 = vunpack.c.l.b16 %v7028
        %v7063 = vunpack.c.l.b16 %v7029
        %v7064 = vunpack.c.l.b16 %v7030
        %v7065 = vunpack.c.l.b16 %v7031
        %v7066 = vunpack.c.l.b16 %v7032
        %v7067 = vunpack.c.l.b16 %v7033
        %v7068 = vunpack.c.l.b16 %v7034
        %v7069 = vunpack.c.l.b16 %v7035
        %v7070 = vunpack.c.l.b16 %v7036
        %v7071 = vunpack.c.l.b16 %v7037
        %v7072 = vunpack.c.l.b16 %v7038
        %v7073 = vunpack.c.l.b16 %v7039
        %v7074 = vpack.c.b16 %v7059, %v7058
        %v7075 = vpack.c.b16 %v7061, %v7060
        %v7076 = vpack.c.b16 %v7063, %v7062
        %v7077 = vpack.c.b16 %v7065, %v7064
        %v7078 = vpack.c.b16 %v7067, %v7066
        %v7079 = vpack.c.b16 %v7069, %v7068
        %v7080 = vpack.c.b16 %v7071, %v7070
        %v7081 = vpack.c.b16 %v7073, %v7072
        %7090 = vmatpush.bf16.msra.mxu0 %v7081
        %7091 = vmatpush.bf16.msra.mxu0 %v7080
        %7092 = vmatpush.bf16.msra.mxu0 %v7079
        %7093 = vmatpush.bf16.msra.mxu0 %v7078
        %7094 = vmatpush.bf16.msra.mxu0 %v7077
        %7095 = vmatpush.bf16.msra.mxu0 %v7076
        %7096 = vmatpush.bf16.msra.mxu0 %v7075
        %7097 = vmatpush.bf16.msra.mxu0 %v7074
        %7098 = vmatmul.bf16.gmra.mxu0 %v7008
        %v7099 = vpop.f32.mrf.mxu0
        %v7100 = vadd.f32 %v7041, %v7099
        %v7101 = vpop.f32.mrf.mxu0
        %v7102 = vadd.f32 %v7041, %v7101
        %7103 = vmatmul.bf16.gmra.mxu0 %v7009
        %v7104 = vpop.f32.mrf.mxu0
        %v7105 = vadd.f32 %v7041, %v7104
        %v7106 = vpop.f32.mrf.mxu0
        %v7107 = vadd.f32 %v7041, %v7106
        %7108 = vmatmul.bf16.gmra.mxu0 %v7010
        %v7109 = vpop.f32.mrf.mxu0
        %v7110 = vadd.f32 %v7041, %v7109
        %v7111 = vpop.f32.mrf.mxu0
        %v7112 = vadd.f32 %v7041, %v7111
        %7113 = vmatmul.bf16.gmra.mxu0 %v7011
        %v7114 = vpop.f32.mrf.mxu0
        %v7115 = vadd.f32 %v7041, %v7114
        %v7116 = vpop.f32.mrf.mxu0
        %v7117 = vadd.f32 %v7041, %v7116
        %7118 = vmatmul.bf16.gmra.mxu0 %v7012
        %v7119 = vpop.f32.mrf.mxu0
        %v7120 = vadd.f32 %v7041, %v7119
        %v7121 = vpop.f32.mrf.mxu0
        %v7122 = vadd.f32 %v7041, %v7121
        %7123 = vmatmul.bf16.gmra.mxu0 %v7013
        %v7124 = vpop.f32.mrf.mxu0
        %v7125 = vadd.f32 %v7041, %v7124
        %v7126 = vpop.f32.mrf.mxu0
        %v7127 = vadd.f32 %v7041, %v7126
        %7128 = vmatmul.bf16.gmra.mxu0 %v7014
        %v7129 = vpop.f32.mrf.mxu0
        %v7130 = vadd.f32 %v7041, %v7129
        %v7131 = vpop.f32.mrf.mxu0
        %v7132 = vadd.f32 %v7041, %v7131
        %7133 = vmatmul.bf16.gmra.mxu0 %v7015
        %v7134 = vpop.f32.mrf.mxu0
        %v7135 = vadd.f32 %v7041, %v7134
        %v7136 = vpop.f32.mrf.mxu0
        %v7137 = vadd.f32 %v7041, %v7136
        %7138 = vmatmul.bf16.gmra.mxu0 %v7016
        %v7139 = vpop.f32.mrf.mxu0
        %v7140 = vadd.f32 %v7041, %v7139
        %v7141 = vpop.f32.mrf.mxu0
        %v7142 = vadd.f32 %v7041, %v7141
        %7143 = vmatmul.bf16.gmra.mxu0 %v7017
        %v7144 = vpop.f32.mrf.mxu0
        %v7145 = vadd.f32 %v7041, %v7144
        %v7146 = vpop.f32.mrf.mxu0
        %v7147 = vadd.f32 %v7041, %v7146
        %7148 = vmatmul.bf16.gmra.mxu0 %v7018
        %v7149 = vpop.f32.mrf.mxu0
        %v7150 = vadd.f32 %v7041, %v7149
        %v7151 = vpop.f32.mrf.mxu0
        %v7152 = vadd.f32 %v7041, %v7151
        %7153 = vmatmul.bf16.gmra.mxu0 %v7019
        %v7154 = vpop.f32.mrf.mxu0
        %v7155 = vadd.f32 %v7041, %v7154
        %v7156 = vpop.f32.mrf.mxu0
        %v7157 = vadd.f32 %v7041, %v7156
        %7158 = vmatmul.bf16.gmra.mxu0 %v7020
        %v7159 = vpop.f32.mrf.mxu0
        %v7160 = vadd.f32 %v7041, %v7159
        %v7161 = vpop.f32.mrf.mxu0
        %v7162 = vadd.f32 %v7041, %v7161
        %7163 = vmatmul.bf16.gmra.mxu0 %v7021
        %v7164 = vpop.f32.mrf.mxu0
        %v7165 = vadd.f32 %v7041, %v7164
        %v7166 = vpop.f32.mrf.mxu0
        %v7167 = vadd.f32 %v7041, %v7166
        %7168 = vmatmul.bf16.gmra.mxu0 %v7022
        %v7169 = vpop.f32.mrf.mxu0
        %v7170 = vadd.f32 %v7041, %v7169
        %v7171 = vpop.f32.mrf.mxu0
        %v7172 = vadd.f32 %v7041, %v7171
        %7173 = vmatmul.bf16.gmra.mxu0 %v7023
        %v7174 = vpop.f32.mrf.mxu0
        %v7175 = vadd.f32 %v7041, %v7174
        %v7176 = vpop.f32.mrf.mxu0
        %v7177 = vadd.f32 %v7041, %v7176
        %7178 = vdwg.mxu0
        %v7179 = vld [vmem:[%s286] sm:$0xff]
        %v7180 = vld [vmem:[%s286 + $0x8] sm:$0xff]
        %v7181 = vld [vmem:[%s286 + $0x10] sm:$0xff]
        %v7182 = vld [vmem:[%s286 + $0x18] sm:$0xff]
        %v7183 = vld [vmem:[%s286 + $0x20] sm:$0xff]
        %v7184 = vld [vmem:[%s286 + $0x28] sm:$0xff]
        %v7185 = vld [vmem:[%s286 + $0x30] sm:$0xff]
        %v7186 = vld [vmem:[%s286 + $0x38] sm:$0xff]
        %v7187 = vld [vmem:[%s286 + $0x40] sm:$0xff]
        %v7188 = vld [vmem:[%s286 + $0x48] sm:$0xff]
        %v7189 = vld [vmem:[%s286 + $0x50] sm:$0xff]
        %v7190 = vld [vmem:[%s286 + $0x58] sm:$0xff]
        %v7191 = vld [vmem:[%s286 + $0x60] sm:$0xff]
        %v7192 = vld [vmem:[%s286 + $0x68] sm:$0xff]
        %v7193 = vld [vmem:[%s286 + $0x70] sm:$0xff]
        %v7194 = vld [vmem:[%s286 + $0x78] sm:$0xff]
        %v7195 = vld [vmem:[%s286 + $0x80] sm:$0xff]
        %v7196 = vld [vmem:[%s286 + $0x88] sm:$0xff]
        %v7197 = vld [vmem:[%s286 + $0x90] sm:$0xff]
        %v7198 = vld [vmem:[%s286 + $0x98] sm:$0xff]
        %v7199 = vld [vmem:[%s286 + $0xa0] sm:$0xff]
        %v7200 = vld [vmem:[%s286 + $0xa8] sm:$0xff]
        %v7201 = vld [vmem:[%s286 + $0xb0] sm:$0xff]
        %v7202 = vld [vmem:[%s286 + $0xb8] sm:$0xff]
        %v7203 = vld [vmem:[%s286 + $0xc0] sm:$0xff]
        %v7204 = vld [vmem:[%s286 + $0xc8] sm:$0xff]
        %v7205 = vld [vmem:[%s286 + $0xd0] sm:$0xff]
        %v7206 = vld [vmem:[%s286 + $0xd8] sm:$0xff]
        %v7207 = vld [vmem:[%s286 + $0xe0] sm:$0xff]
        %v7208 = vld [vmem:[%s286 + $0xe8] sm:$0xff]
        %v7209 = vld [vmem:[%s286 + $0xf0] sm:$0xff]
        %v7210 = vld [vmem:[%s286 + $0xf8] sm:$0xff]
        %v7211 = vadd.f32 %v7179, %v7100
        %v7212 = vadd.f32 %v7180, %v7102
        %v7213 = vadd.f32 %v7181, %v7105
        %v7214 = vadd.f32 %v7182, %v7107
        %v7215 = vadd.f32 %v7183, %v7110
        %v7216 = vadd.f32 %v7184, %v7112
        %v7217 = vadd.f32 %v7185, %v7115
        %v7218 = vadd.f32 %v7186, %v7117
        %v7219 = vadd.f32 %v7187, %v7120
        %v7220 = vadd.f32 %v7188, %v7122
        %v7221 = vadd.f32 %v7189, %v7125
        %v7222 = vadd.f32 %v7190, %v7127
        %v7223 = vadd.f32 %v7191, %v7130
        %v7224 = vadd.f32 %v7192, %v7132
        %v7225 = vadd.f32 %v7193, %v7135
        %v7226 = vadd.f32 %v7194, %v7137
        %v7227 = vadd.f32 %v7195, %v7140
        %v7228 = vadd.f32 %v7196, %v7142
        %v7229 = vadd.f32 %v7197, %v7145
        %v7230 = vadd.f32 %v7198, %v7147
        %v7231 = vadd.f32 %v7199, %v7150
        %v7232 = vadd.f32 %v7200, %v7152
        %v7233 = vadd.f32 %v7201, %v7155
        %v7234 = vadd.f32 %v7202, %v7157
        %v7235 = vadd.f32 %v7203, %v7160
        %v7236 = vadd.f32 %v7204, %v7162
        %v7237 = vadd.f32 %v7205, %v7165
        %v7238 = vadd.f32 %v7206, %v7167
        %v7239 = vadd.f32 %v7207, %v7170
        %v7240 = vadd.f32 %v7208, %v7172
        %v7241 = vadd.f32 %v7209, %v7175
        %v7242 = vadd.f32 %v7210, %v7177
        %7243 = vst [vmem:[%s335] sm:$0xff] %v7211
        %7244 = vst [vmem:[%s335 + $0x8] sm:$0xff] %v7212
        %7245 = vst [vmem:[%s335 + $0x10] sm:$0xff] %v7213
        %7246 = vst [vmem:[%s335 + $0x18] sm:$0xff] %v7214
        %7247 = vst [vmem:[%s335 + $0x20] sm:$0xff] %v7215
        %7248 = vst [vmem:[%s335 + $0x28] sm:$0xff] %v7216
        %7249 = vst [vmem:[%s335 + $0x30] sm:$0xff] %v7217
        %7250 = vst [vmem:[%s335 + $0x38] sm:$0xff] %v7218
        %7251 = vst [vmem:[%s335 + $0x40] sm:$0xff] %v7219
        %7252 = vst [vmem:[%s335 + $0x48] sm:$0xff] %v7220
        %7253 = vst [vmem:[%s335 + $0x50] sm:$0xff] %v7221
        %7254 = vst [vmem:[%s335 + $0x58] sm:$0xff] %v7222
        %7255 = vst [vmem:[%s335 + $0x60] sm:$0xff] %v7223
        %7256 = vst [vmem:[%s335 + $0x68] sm:$0xff] %v7224
        %7257 = vst [vmem:[%s335 + $0x70] sm:$0xff] %v7225
        %7258 = vst [vmem:[%s335 + $0x78] sm:$0xff] %v7226
        %7259 = vst [vmem:[%s335 + $0x80] sm:$0xff] %v7227
        %7260 = vst [vmem:[%s335 + $0x88] sm:$0xff] %v7228
        %7261 = vst [vmem:[%s335 + $0x90] sm:$0xff] %v7229
        %7262 = vst [vmem:[%s335 + $0x98] sm:$0xff] %v7230
        %7263 = vst [vmem:[%s335 + $0xa0] sm:$0xff] %v7231
        %7264 = vst [vmem:[%s335 + $0xa8] sm:$0xff] %v7232
        %7265 = vst [vmem:[%s335 + $0xb0] sm:$0xff] %v7233
        %7266 = vst [vmem:[%s335 + $0xb8] sm:$0xff] %v7234
        %7267 = vst [vmem:[%s335 + $0xc0] sm:$0xff] %v7235
        %7268 = vst [vmem:[%s335 + $0xc8] sm:$0xff] %v7236
        %7269 = vst [vmem:[%s335 + $0xd0] sm:$0xff] %v7237
        %7270 = vst [vmem:[%s335 + $0xd8] sm:$0xff] %v7238
        %7271 = vst [vmem:[%s335 + $0xe0] sm:$0xff] %v7239
        %7272 = vst [vmem:[%s335 + $0xe8] sm:$0xff] %v7240
        %7273 = vst [vmem:[%s335 + $0xf0] sm:$0xff] %v7241
        %7274 = vst [vmem:[%s335 + $0xf8] sm:$0xff] %v7242
        %s7275 = sand.u32 %s164, 1
        %s7276 = scalar_lea.sflag [#allocation5], %s7275
        %s7277 = sand.u32 %s164, 1
        %s7278 = smul.addr %s7277, 256
        %s7279 = scalar_lea.vmem [#allocation12], %s7278
        // Predicated region
        $region65: #{tpu_custom_call.1} parent=43 // pred_check
          %p7280 = pneg %p174
        $region66: #{tpu_custom_call.1} parent=43 // pred_check_branch
          %7282 = sbr.rel (%p7280) target = $region68
        $region67: #{tpu_custom_call.1} parent=43 // pred_region
          %7284 = vsyncadd %s7276, 0
          %s7285 = smul.addr %s25, 32
          %s7286 = smul.addr %s7285, 8
          %s7287 = scalar_lea.hbm %s6, %s7286
          %s7288 = sshll.u32 %s7279, 4
          %s7289 = int_to_ptr.vmem [resolvable:$true] %s7288
          %s7290 = sshll.u32 %s7287, 4
          %s7291 = int_to_ptr.hbm [resolvable:$true] %s7290
          %7296 = dma.vmem_to_hbm [thread:$0]  %s7289, 4096, %s7291, %s7276, 128, 128, 8
        $region68: #{tpu_custom_call.1} parent=43 // pred_fallthru
          _
      $region44: #{tpu_custom_call.1} parent=5 // pred_fallthru
        _
      %p7297 = scmp.le.s32.totalorder 2, %s20
      // Predicated region
      $region69: #{tpu_custom_call.1} parent=5 // pred_check
        %p7298 = pneg %p7297
      $region70: #{tpu_custom_call.1} parent=5 // pred_check_branch
        %7300 = sbr.rel (%p7298) target = $region72
      $region71: #{tpu_custom_call.1} parent=5 // pred_region
        %s7301 = ssub.s32 %s20, 2
        // Predicated region
        $region73: #{tpu_custom_call.1} parent=71 // pred_check
          %p7302 = pneg %p180
        $region74: #{tpu_custom_call.1} parent=71 // pred_check_branch
          %7304 = sbr.rel (%p7302) target = $region76
        $region75: #{tpu_custom_call.1} parent=71 // pred_region
          %s7305 = sand.u32 %s165, 1
          %s7306 = scalar_lea.sflag [#allocation5], %s7305
          %s7307 = sand.u32 %s165, 1
          %s7308 = smul.addr %s7307, 256
          %s7309 = scalar_lea.vmem [#allocation12], %s7308
          %7311 = dma.done %s7306, 4096
        $region76: #{tpu_custom_call.1} parent=71 // pred_fallthru
          _
      $region72: #{tpu_custom_call.1} parent=5 // pred_fallthru
        _
    $region6: #{tpu_custom_call.1} parent=1 // loop_footer
      %s24 = sadd.s32 1, %s20
    $region7: #{tpu_custom_call.1} parent=1 // loop_footer_branch
      %19 = sbr.rel target = $region3
    $region8: #{tpu_custom_call.1} parent=1 // loop_exit
      _
    %7312 = vsyncpa [#allocation4], 1
    %s7313 = scalar_lea.sflag [#allocation4], 1
    %7314 = vsyncpa %s7313, 1
    %7315 = vsyncpa [#allocation7], 1
    %7316 = vsyncpa [#allocation10], 1
    %7317 = vsyncpa [#allocation5], 1
    %s7318 = scalar_lea.sflag [#allocation5], 1
    %7319 = vsyncpa %s7318, 1

</llo_original>
